<compile_context>
chip_gen: v5e
topology: v5e:2x2
jax: 0.10.0
libtpu: 0.0.40
codegen_flags: <defaults>
</compile_context>

<pallas_src>
import jax
import jax.numpy as jnp
from jax import lax
from jax.experimental import pallas as pl
from jax.experimental.pallas import tpu as pltpu

# ----------------------------- sizes (small, synthetic) -----------------------------
B = 4      # batch
BP = 8     # batch padded to a full sublane count
T = 8      # target sequence length
S = 8      # source sequence length (context)
WV = 32    # word_vec_size
H = 32     # rnn_size / hidden_size
L = 2      # opt.layers
VOCAB = 50
PAD = 0    # onmt.Constants.PAD


def decoder_kernel(embg_ref, ctx_ref, ctxp_ref, h0_ref, c0_ref, o0_ref,
                   w0_ref, w1_ref, b1_ref, wout_ref,
                   out_ref, attn_ref, hf_ref, cf_ref):
    # Loop-invariant operands loaded once (stay in vregs across the recurrence).
    ctx = ctx_ref[...]          # (BP, S, H)
    ctxp = ctxp_ref[...]        # (BP, S, H)  context pre-projected by w_in
    w0 = w0_ref[...]            # (2H, 4H)    [o_prev | h_state0] -> layer-0 gates
    w1 = w1_ref[...]            # (2H, 4H)    [h1     | h_state1] -> layer-1 gates
    b1 = b1_ref[...]            # (1, 4H)
    wout = wout_ref[...]        # (2H, H)     [weighted | rnn_out] -> output

    # Gate layout (PyTorch LSTMCell): [i | f | g | o], each H lanes; g gets tanh.
    lane = lax.broadcasted_iota(jnp.int32, (1, 4 * H), 1)
    g_mask = (lane >= 2 * H) & (lane < 3 * H)

    def lstm_cell(gates, c_prev):
        act = jnp.where(g_mask, jnp.tanh(gates), jax.nn.sigmoid(gates))
        i = act[:, 0:H]
        f = act[:, H:2 * H]
        g = act[:, 2 * H:3 * H]
        o = act[:, 3 * H:4 * H]
        c_new = f * c_prev + i * g
        return o * jnp.tanh(c_new), c_new

    def step(t, carry):
        h0s, c0s, h1s, c1s, o_prev = carry

        # ---------------- StackedLSTM, layer 0 (input-feed) ----------------
        # emb-part of the gates (emb_t @ W_ih_emb + b0) was hoisted to the wrapper.
        g0 = embg_ref[t] + jnp.dot(jnp.concatenate([o_prev, h0s], axis=1), w0,
                                   preferred_element_type=jnp.float32)
        h0n, c0n = lstm_cell(g0, c0s)
        # TODO(synk): inter-layer dropout omitted (eval mode / p=0).

        # ---------------- StackedLSTM, layer 1 ----------------
        g1 = b1 + jnp.dot(jnp.concatenate([h0n, h1s], axis=1), w1,
                          preferred_element_type=jnp.float32)
        h1n, c1n = lstm_cell(g1, c1s)
        rnn_out = h1n

        # ---------------- GlobalAttention (MXU batched) ----------------
        scores = jnp.einsum('bqk,bsk->bqs', rnn_out[:, None, :], ctxp,
                            preferred_element_type=jnp.float32)        # (BP,1,S)
        scores = scores - jnp.max(scores, axis=-1, keepdims=True)
        e = jnp.exp(scores)
        attn = e * pl.reciprocal(jnp.sum(e, axis=-1, keepdims=True), approx=True)
        weighted = jnp.einsum('bqs,bsh->bqh', attn, ctx,
                              preferred_element_type=jnp.float32)[:, 0, :]  # (BP,H)
        out = jnp.tanh(jnp.dot(jnp.concatenate([weighted, rnn_out], axis=1), wout,
                               preferred_element_type=jnp.float32))

        out_ref[t] = out                 # VMEM-resident slab, written back once
        attn_ref[t] = attn[:, 0, :]
        return (h0n, c0n, h1n, c1n, out)

    carry0 = (h0_ref[0], c0_ref[0], h0_ref[1], c0_ref[1], o0_ref[...])
    h0f, c0f, h1f, c1f, _ = lax.fori_loop(0, T, step, carry0, unroll=True)

    # Final LSTM state written once after the loop (not every timestep).
    hf_ref[0] = h0f
    hf_ref[1] = h1f
    cf_ref[0] = c0f
    cf_ref[1] = c1f


def _pad_batch(x, axis):
    pad = [(0, 0)] * x.ndim
    pad[axis] = (0, BP - x.shape[axis])
    return jnp.pad(x, pad)


@jax.jit
def decoder_forward(tokens, context, h0, c0, init_output, params):
    """Returns (outputs (B,T,H), (h (L,B,H), c (L,B,H)), attns (B,T,S))."""
    emb = params['emb'][tokens]                    # (B, T, WV) embedding lookup (glue)
    emb = jnp.transpose(emb, (1, 0, 2))            # (T, B, WV)
    ctx = jnp.transpose(context, (1, 0, 2))        # (B, S, H)  == context.t()

    # Pad batch 4 -> 8 so every vreg / MXU row uses all sublanes.
    emb = _pad_batch(emb, 1)                       # (T, BP, WV)
    ctx = _pad_batch(ctx, 0)                       # (BP, S, H)
    h0p = _pad_batch(h0, 1)                        # (L, BP, H)
    c0p = _pad_batch(c0, 1)
    o0p = _pad_batch(init_output, 0)               # (BP, H)

    # Hoisted, non-recurrent projections (one big matmul each instead of T tiny ones).
    w_x0e = params['w_ih0'][:, :WV].T                            # (WV, 4H)
    b0 = (params['b_ih0'] + params['b_hh0'])[None, :]            # (1, 4H)
    emb_gates = jnp.einsum('tbv,vg->tbg', emb, w_x0e) + b0       # (T, BP, 4H)
    ctx_proj = jnp.einsum('bsh,hk->bsk', ctx, params['w_in'])    # (BP, S, H): linear_in folded into ctx

    # Fused per-step weights: one matmul per layer / per output projection.
    W0 = jnp.concatenate([params['w_ih0'][:, WV:].T, params['w_hh0'].T], axis=0)  # (2H, 4H)
    W1 = jnp.concatenate([params['w_ih1'].T, params['w_hh1'].T], axis=0)          # (2H, 4H)
    b1 = (params['b_ih1'] + params['b_hh1'])[None, :]                              # (1, 4H)
    WoutT = params['w_out'].T                                                      # (2H, H)

    vmem = pl.BlockSpec(memory_space=pltpu.MemorySpace.VMEM)   # full arrays resident in VMEM

    outs, attns, hf, cf = pl.pallas_call(
        decoder_kernel,
        out_shape=(
            jax.ShapeDtypeStruct((T, BP, H), jnp.float32),
            jax.ShapeDtypeStruct((T, BP, S), jnp.float32),
            jax.ShapeDtypeStruct((L, BP, H), jnp.float32),
            jax.ShapeDtypeStruct((L, BP, H), jnp.float32),
        ),
        in_specs=[vmem] * 10,
        out_specs=(vmem, vmem, vmem, vmem),
    )(emb_gates, ctx, ctx_proj, h0p, c0p, o0p, W0, W1, b1, WoutT)

    outputs = jnp.transpose(outs[:, :B], (1, 0, 2))    # (B, T, H)
    attns = jnp.transpose(attns[:, :B], (1, 0, 2))     # (B, T, S)
    return outputs, (hf[:, :B], cf[:, :B]), attns


# ----------------------------- pure-JAX reference -----------------------------
def _lstm_cell_ref(x, h, c, w_ih, w_hh, b_ih, b_hh):
    gates = x @ w_ih.T + h @ w_hh.T + b_ih + b_hh
    i, f, g, o = jnp.split(gates, 4, axis=1)
    i, f, g, o = jax.nn.sigmoid(i), jax.nn.sigmoid(f), jnp.tanh(g), jax.nn.sigmoid(o)
    c_new = f * c + i * g
    h_new = o * jnp.tanh(c_new)
    return h_new, c_new


def decoder_forward_ref(tokens, context, h0, c0, init_output, p):
    emb = jnp.transpose(p['emb'][tokens], (1, 0, 2))     # (T, B, WV)
    ctx = jnp.transpose(context, (1, 0, 2))              # (B, S, H)
    h = [h0[0], h0[1]]
    c = [c0[0], c0[1]]
    output = init_output
    outs, attns = [], []
    for t in range(T):
        x = jnp.concatenate([emb[t], output], axis=1)
        h[0], c[0] = _lstm_cell_ref(x, h[0], c[0], p['w_ih0'], p['w_hh0'], p['b_ih0'], p['b_hh0'])
        h[1], c[1] = _lstm_cell_ref(h[0], h[1], c[1], p['w_ih1'], p['w_hh1'], p['b_ih1'], p['b_hh1'])
        rnn_out = h[1]
        target = rnn_out @ p['w_in'].T
        scores = jnp.einsum('bsd,bd->bs', ctx, target)
        attn = jax.nn.softmax(scores, axis=-1)
        weighted = jnp.einsum('bs,bsd->bd', attn, ctx)
        comb = jnp.concatenate([weighted, rnn_out], axis=1)
        output = jnp.tanh(comb @ p['w_out'].T)
        outs.append(output)
        attns.append(attn)
    outputs = jnp.stack(outs)     # (T, B, H)
    attns = jnp.stack(attns)      # (T, B, S)
    return (jnp.transpose(outputs, (1, 0, 2)),
            (jnp.stack(h), jnp.stack(c)),
            jnp.transpose(attns, (1, 0, 2)))


# ----------------------------- deterministic setup -----------------------------
def make_params(key):
    ks = jax.random.split(key, 12)
    u = lambda k, shape, s: jax.random.uniform(k, shape, jnp.float32, -s, s)
    scale = 1.0 / jnp.sqrt(H)
    emb_tbl = u(ks[0], (VOCAB, WV), 0.1)
    emb_tbl = emb_tbl.at[PAD].set(0.0)               # padding_idx
    return dict(
        emb=emb_tbl,
        # layer 0: input_size = WV + H (input feed)
        w_ih0=u(ks[1], (4 * H, WV + H), scale), w_hh0=u(ks[2], (4 * H, H), scale),
        b_ih0=u(ks[3], (4 * H,), scale), b_hh0=u(ks[4], (4 * H,), scale),
        # layer 1: input_size = H
        w_ih1=u(ks[5], (4 * H, H), scale), w_hh1=u(ks[6], (4 * H, H), scale),
        b_ih1=u(ks[7], (4 * H,), scale), b_hh1=u(ks[8], (4 * H,), scale),
        # GlobalAttention (no biases in the original module)
        w_in=u(ks[9], (H, H), scale), w_out=u(ks[10], (H, 2 * H), scale),
    )


if __name__ == "__main__":
    key = jax.random.PRNGKey(0)
    k_tok, k_ctx, k_h, k_c, k_o, k_p = jax.random.split(key, 6)

    tokens = jax.random.randint(k_tok, (B, T), 0, VOCAB, dtype=jnp.int32)
    context = jax.random.normal(k_ctx, (S, B, H), jnp.float32)     # encoder context (src-major)
    h0 = 0.1 * jax.random.normal(k_h, (L, B, H), jnp.float32)
    c0 = 0.1 * jax.random.normal(k_c, (L, B, H), jnp.float32)
    init_output = 0.1 * jax.random.normal(k_o, (B, H), jnp.float32)
    params = make_params(k_p)

    outputs, (hf, cf), attns = decoder_forward(tokens, context, h0, c0, init_output, params)
    jax.block_until_ready((outputs, hf, cf, attns))

    # correctness check against pure-JAX reference
    r_out, (r_h, r_c), r_attn = decoder_forward_ref(tokens, context, h0, c0, init_output, params)
    assert jnp.allclose(outputs, r_out, atol=2e-3, rtol=2e-3)
    assert jnp.allclose(attns, r_attn, atol=2e-3, rtol=2e-3)
    assert jnp.allclose(hf, r_h, atol=2e-3, rtol=2e-3)
    assert jnp.allclose(cf, r_c, atol=2e-3, rtol=2e-3)

    print("KERNEL_OK")
</pallas_src>

<mosaic_0001>
module attributes {stable_mosaic.version = 11 : i64} {
  func.func @decoder_kernel(%arg0: memref<8x8x128xf32, #tpu.memory_space<vmem>>, %arg1: memref<8x8x32xf32, #tpu.memory_space<vmem>>, %arg2: memref<8x8x32xf32, #tpu.memory_space<vmem>>, %arg3: memref<2x8x32xf32, #tpu.memory_space<vmem>>, %arg4: memref<2x8x32xf32, #tpu.memory_space<vmem>>, %arg5: memref<8x32xf32, #tpu.memory_space<vmem>>, %arg6: memref<64x128xf32, #tpu.memory_space<vmem>>, %arg7: memref<64x128xf32, #tpu.memory_space<vmem>>, %arg8: memref<1x128xf32, #tpu.memory_space<vmem>>, %arg9: memref<64x32xf32, #tpu.memory_space<vmem>>, %arg10: memref<8x8x32xf32, #tpu.memory_space<vmem>>, %arg11: memref<8x8x8xf32, #tpu.memory_space<vmem>>, %arg12: memref<2x8x32xf32, #tpu.memory_space<vmem>>, %arg13: memref<2x8x32xf32, #tpu.memory_space<vmem>>) attributes {dimension_semantics = [], scalar_prefetch = 0 : i64, scratch_operands = 0 : i64, tpu.core_type = #tpu.core_type<tc>} {
    %c0 = arith.constant 0 : index
    %c0_0 = arith.constant 0 : index
    %c0_1 = arith.constant 0 : index
    %0 = vector.load %arg1[%c0, %c0_0, %c0_1] : memref<8x8x32xf32, #tpu.memory_space<vmem>>, vector<8x8x32xf32>
    %c0_2 = arith.constant 0 : index
    %c0_3 = arith.constant 0 : index
    %c0_4 = arith.constant 0 : index
    %1 = vector.load %arg2[%c0_2, %c0_3, %c0_4] : memref<8x8x32xf32, #tpu.memory_space<vmem>>, vector<8x8x32xf32>
    %c0_5 = arith.constant 0 : index
    %c0_6 = arith.constant 0 : index
    %2 = vector.load %arg6[%c0_5, %c0_6] : memref<64x128xf32, #tpu.memory_space<vmem>>, vector<64x128xf32>
    %c0_7 = arith.constant 0 : index
    %c0_8 = arith.constant 0 : index
    %3 = vector.load %arg7[%c0_7, %c0_8] : memref<64x128xf32, #tpu.memory_space<vmem>>, vector<64x128xf32>
    %c0_9 = arith.constant 0 : index
    %c0_10 = arith.constant 0 : index
    %4 = vector.load %arg8[%c0_9, %c0_10] : memref<1x128xf32, #tpu.memory_space<vmem>>, vector<1x128xf32>
    %c0_11 = arith.constant 0 : index
    %c0_12 = arith.constant 0 : index
    %5 = vector.load %arg9[%c0_11, %c0_12] : memref<64x32xf32, #tpu.memory_space<vmem>>, vector<64x32xf32>
    %6 = tpu.iota {dimensions = array<i32: 1>} : vector<1x128xi32>
    %c64_i32 = arith.constant 64 : i32
    %7 = vector.broadcast %c64_i32 : i32 to vector<1x128xi32>
    %8 = arith.cmpi sge, %6, %7 : vector<1x128xi32>
    %c96_i32 = arith.constant 96 : i32
    %9 = vector.broadcast %c96_i32 : i32 to vector<1x128xi32>
    %10 = arith.cmpi slt, %6, %9 : vector<1x128xi32>
    %11 = arith.andi %8, %10 : vector<1x128xi1>
    %c0_13 = arith.constant 0 : index
    %c0_14 = arith.constant 0 : index
    %c0_15 = arith.constant 0 : index
    %12 = vector.load %arg3[%c0_13, %c0_14, %c0_15] : memref<2x8x32xf32, #tpu.memory_space<vmem>>, vector<1x8x32xf32>
    %13 = vector.shape_cast %12 : vector<1x8x32xf32> to vector<8x32xf32>
    %c0_16 = arith.constant 0 : index
    %c0_17 = arith.constant 0 : index
    %c0_18 = arith.constant 0 : index
    %14 = vector.load %arg4[%c0_16, %c0_17, %c0_18] : memref<2x8x32xf32, #tpu.memory_space<vmem>>, vector<1x8x32xf32>
    %15 = vector.shape_cast %14 : vector<1x8x32xf32> to vector<8x32xf32>
    %c1 = arith.constant 1 : index
    %c0_19 = arith.constant 0 : index
    %c0_20 = arith.constant 0 : index
    %16 = vector.load %arg3[%c1, %c0_19, %c0_20] : memref<2x8x32xf32, #tpu.memory_space<vmem>>, vector<1x8x32xf32>
    %17 = vector.shape_cast %16 : vector<1x8x32xf32> to vector<8x32xf32>
    %c1_21 = arith.constant 1 : index
    %c0_22 = arith.constant 0 : index
    %c0_23 = arith.constant 0 : index
    %18 = vector.load %arg4[%c1_21, %c0_22, %c0_23] : memref<2x8x32xf32, #tpu.memory_space<vmem>>, vector<1x8x32xf32>
    %19 = vector.shape_cast %18 : vector<1x8x32xf32> to vector<8x32xf32>
    %c0_24 = arith.constant 0 : index
    %c0_25 = arith.constant 0 : index
    %20 = vector.load %arg5[%c0_24, %c0_25] : memref<8x32xf32, #tpu.memory_space<vmem>>, vector<8x32xf32>
    %c0_i32 = arith.constant 0 : i32
    %21 = arith.index_cast %c0_i32 : i32 to index
    %c0_26 = arith.constant 0 : index
    %c0_27 = arith.constant 0 : index
    %22 = vector.load %arg0[%21, %c0_26, %c0_27] : memref<8x8x128xf32, #tpu.memory_space<vmem>>, vector<1x8x128xf32>
    %23 = vector.shape_cast %22 : vector<1x8x128xf32> to vector<8x128xf32>
    %24 = tpu.concatenate %20, %13 in 1 : vector<8x32xf32>, vector<8x32xf32> -> vector<8x64xf32>
    %cst = arith.constant dense<0.000000e+00> : vector<8x128xf32>
    %25 = tpu.matmul %24, %2, %cst {dimension_numbers = #tpu.dot_dimension_numbers<[1], [0], [0], [1], [0, 0, 1, 1], [], []>} : vector<8x64xf32>, vector<64x128xf32>, vector<8x128xf32> -> vector<8x128xf32>
    %26 = arith.addf %23, %25 : vector<8x128xf32>
    %27 = math.tanh %26 : vector<8x128xf32>
    %28 = arith.negf %26 : vector<8x128xf32>
    %29 = math.exp %28 : vector<8x128xf32>
    %cst_28 = arith.constant 1.000000e+00 : f32
    %30 = vector.broadcast %cst_28 : f32 to vector<8x128xf32>
    %31 = arith.addf %30, %29 : vector<8x128xf32>
    %32 = arith.divf %30, %31 : vector<8x128xf32>
    %33 = vector.shape_cast %11 : vector<1x128xi1> to vector<1x128xi1>
    %34 = vector.broadcast %33 : vector<1x128xi1> to vector<8x128xi1>
    %35 = arith.select %34, %27, %32 : vector<8x128xi1>, vector<8x128xf32>
    %36 = vector.extract_strided_slice %35 {offsets = [0, 0], sizes = [8, 32], strides = [1, 1]} : vector<8x128xf32> to vector<8x32xf32>
    %37 = vector.extract_strided_slice %35 {offsets = [0, 32], sizes = [8, 32], strides = [1, 1]} : vector<8x128xf32> to vector<8x32xf32>
    %38 = vector.extract_strided_slice %35 {offsets = [0, 64], sizes = [8, 32], strides = [1, 1]} : vector<8x128xf32> to vector<8x32xf32>
    %39 = vector.extract_strided_slice %35 {offsets = [0, 96], sizes = [8, 32], strides = [1, 1]} : vector<8x128xf32> to vector<8x32xf32>
    %40 = arith.mulf %37, %15 : vector<8x32xf32>
    %41 = arith.mulf %36, %38 : vector<8x32xf32>
    %42 = arith.addf %40, %41 : vector<8x32xf32>
    %43 = math.tanh %42 : vector<8x32xf32>
    %44 = arith.mulf %39, %43 : vector<8x32xf32>
    %45 = tpu.concatenate %44, %17 in 1 : vector<8x32xf32>, vector<8x32xf32> -> vector<8x64xf32>
    %cst_29 = arith.constant dense<0.000000e+00> : vector<8x128xf32>
    %46 = tpu.matmul %45, %3, %cst_29 {dimension_numbers = #tpu.dot_dimension_numbers<[1], [0], [0], [1], [0, 0, 1, 1], [], []>} : vector<8x64xf32>, vector<64x128xf32>, vector<8x128xf32> -> vector<8x128xf32>
    %47 = vector.broadcast %4 : vector<1x128xf32> to vector<8x128xf32>
    %48 = arith.addf %47, %46 : vector<8x128xf32>
    %49 = math.tanh %48 : vector<8x128xf32>
    %50 = arith.negf %48 : vector<8x128xf32>
    %51 = math.exp %50 : vector<8x128xf32>
    %cst_30 = arith.constant 1.000000e+00 : f32
    %52 = vector.broadcast %cst_30 : f32 to vector<8x128xf32>
    %53 = arith.addf %52, %51 : vector<8x128xf32>
    %54 = arith.divf %52, %53 : vector<8x128xf32>
    %55 = vector.shape_cast %11 : vector<1x128xi1> to vector<1x128xi1>
    %56 = vector.broadcast %55 : vector<1x128xi1> to vector<8x128xi1>
    %57 = arith.select %56, %49, %54 : vector<8x128xi1>, vector<8x128xf32>
    %58 = vector.extract_strided_slice %57 {offsets = [0, 0], sizes = [8, 32], strides = [1, 1]} : vector<8x128xf32> to vector<8x32xf32>
    %59 = vector.extract_strided_slice %57 {offsets = [0, 32], sizes = [8, 32], strides = [1, 1]} : vector<8x128xf32> to vector<8x32xf32>
    %60 = vector.extract_strided_slice %57 {offsets = [0, 64], sizes = [8, 32], strides = [1, 1]} : vector<8x128xf32> to vector<8x32xf32>
    %61 = vector.extract_strided_slice %57 {offsets = [0, 96], sizes = [8, 32], strides = [1, 1]} : vector<8x128xf32> to vector<8x32xf32>
    %62 = arith.mulf %59, %19 : vector<8x32xf32>
    %63 = arith.mulf %58, %60 : vector<8x32xf32>
    %64 = arith.addf %62, %63 : vector<8x32xf32>
    %65 = math.tanh %64 : vector<8x32xf32>
    %66 = arith.mulf %61, %65 : vector<8x32xf32>
    %67 = vector.shape_cast %66 : vector<8x32xf32> to vector<8x1x32xf32>
    "tpu.trace_start"() <{level = 10 : i32, message = "bqk,bsk->bqs"}> : () -> ()
    %cst_31 = arith.constant dense<0.000000e+00> : vector<8x1x8xf32>
    %68 = tpu.matmul %67, %1, %cst_31 {dimension_numbers = #tpu.dot_dimension_numbers<[2], [2], [1], [1], [0, 0, 0, 1, 1, 1], [0], [0]>} : vector<8x1x32xf32>, vector<8x8x32xf32>, vector<8x1x8xf32> -> vector<8x1x8xf32>
    "tpu.trace_stop"() : () -> ()
    %cst_32 = arith.constant dense<0xFF800000> : vector<8x1xf32>
    %69 = vector.multi_reduction <maximumf>, %68, %cst_32 [2] : vector<8x1x8xf32> to vector<8x1xf32>
    %70 = vector.shape_cast %69 : vector<8x1xf32> to vector<8x1x1xf32>
    %71 = vector.broadcast %70 : vector<8x1x1xf32> to vector<8x1x8xf32>
    %72 = arith.subf %68, %71 : vector<8x1x8xf32>
    %73 = math.exp %72 : vector<8x1x8xf32>
    %cst_33 = arith.constant dense<0.000000e+00> : vector<8x1xf32>
    %74 = vector.multi_reduction <add>, %73, %cst_33 [2] : vector<8x1x8xf32> to vector<8x1xf32>
    %75 = vector.shape_cast %74 : vector<8x1xf32> to vector<8x1x1xf32>
    %76 = tpu.reciprocal %75 {approx = true} : vector<8x1x1xf32> -> vector<8x1x1xf32>
    %77 = vector.broadcast %76 : vector<8x1x1xf32> to vector<8x1x8xf32>
    %78 = arith.mulf %73, %77 : vector<8x1x8xf32>
    "tpu.trace_start"() <{level = 10 : i32, message = "bqs,bsh->bqh"}> : () -> ()
    %cst_34 = arith.constant dense<0.000000e+00> : vector<8x1x32xf32>
    %79 = tpu.matmul %78, %0, %cst_34 {dimension_numbers = #tpu.dot_dimension_numbers<[2], [1], [1], [2], [0, 0, 0, 1, 1, 2], [0], [0]>} : vector<8x1x8xf32>, vector<8x8x32xf32>, vector<8x1x32xf32> -> vector<8x1x32xf32>
    "tpu.trace_stop"() : () -> ()
    %80 = vector.shape_cast %79 : vector<8x1x32xf32> to vector<8x32xf32>
    %81 = tpu.concatenate %80, %66 in 1 : vector<8x32xf32>, vector<8x32xf32> -> vector<8x64xf32>
    %cst_35 = arith.constant dense<0.000000e+00> : vector<8x32xf32>
    %82 = tpu.matmul %81, %5, %cst_35 {dimension_numbers = #tpu.dot_dimension_numbers<[1], [0], [0], [1], [0, 0, 1, 1], [], []>} : vector<8x64xf32>, vector<64x32xf32>, vector<8x32xf32> -> vector<8x32xf32>
    %83 = math.tanh %82 : vector<8x32xf32>
    %84 = arith.index_cast %c0_i32 : i32 to index
    %c0_36 = arith.constant 0 : index
    %c0_37 = arith.constant 0 : index
    %85 = vector.load %arg10[%84, %c0_36, %c0_37] : memref<8x8x32xf32, #tpu.memory_space<vmem>>, vector<1x8x32xf32>
    %86 = vector.shape_cast %85 : vector<1x8x32xf32> to vector<8x32xf32>
    %87 = vector.shape_cast %83 : vector<8x32xf32> to vector<1x8x32xf32>
    tpu.vector_store %arg10[%84, %c0_36, %c0_37], %87 {strides = array<i32>} : memref<8x8x32xf32, #tpu.memory_space<vmem>>, vector<1x8x32xf32>,
    %88 = vector.shape_cast %78 : vector<8x1x8xf32> to vector<8x8xf32>
    %89 = arith.index_cast %c0_i32 : i32 to index
    %c0_38 = arith.constant 0 : index
    %c0_39 = arith.constant 0 : index
    %90 = vector.load %arg11[%89, %c0_38, %c0_39] : memref<8x8x8xf32, #tpu.memory_space<vmem>>, vector<1x8x8xf32>
    %91 = vector.shape_cast %90 : vector<1x8x8xf32> to vector<8x8xf32>
    %92 = vector.shape_cast %88 : vector<8x8xf32> to vector<1x8x8xf32>
    tpu.vector_store %arg11[%89, %c0_38, %c0_39], %92 {strides = array<i32>} : memref<8x8x8xf32, #tpu.memory_space<vmem>>, vector<1x8x8xf32>,
    %c1_i32 = arith.constant 1 : i32
    %93 = arith.index_cast %c1_i32 : i32 to index
    %c0_40 = arith.constant 0 : index
    %c0_41 = arith.constant 0 : index
    %94 = vector.load %arg0[%93, %c0_40, %c0_41] : memref<8x8x128xf32, #tpu.memory_space<vmem>>, vector<1x8x128xf32>
    %95 = vector.shape_cast %94 : vector<1x8x128xf32> to vector<8x128xf32>
    %96 = tpu.concatenate %83, %44 in 1 : vector<8x32xf32>, vector<8x32xf32> -> vector<8x64xf32>
    %cst_42 = arith.constant dense<0.000000e+00> : vector<8x128xf32>
    %97 = tpu.matmul %96, %2, %cst_42 {dimension_numbers = #tpu.dot_dimension_numbers<[1], [0], [0], [1], [0, 0, 1, 1], [], []>} : vector<8x64xf32>, vector<64x128xf32>, vector<8x128xf32> -> vector<8x128xf32>
    %98 = arith.addf %95, %97 : vector<8x128xf32>
    %99 = math.tanh %98 : vector<8x128xf32>
    %100 = arith.negf %98 : vector<8x128xf32>
    %101 = math.exp %100 : vector<8x128xf32>
    %cst_43 = arith.constant 1.000000e+00 : f32
    %102 = vector.broadcast %cst_43 : f32 to vector<8x128xf32>
    %103 = arith.addf %102, %101 : vector<8x128xf32>
    %104 = arith.divf %102, %103 : vector<8x128xf32>
    %105 = vector.shape_cast %11 : vector<1x128xi1> to vector<1x128xi1>
    %106 = vector.broadcast %105 : vector<1x128xi1> to vector<8x128xi1>
    %107 = arith.select %106, %99, %104 : vector<8x128xi1>, vector<8x128xf32>
    %108 = vector.extract_strided_slice %107 {offsets = [0, 0], sizes = [8, 32], strides = [1, 1]} : vector<8x128xf32> to vector<8x32xf32>
    %109 = vector.extract_strided_slice %107 {offsets = [0, 32], sizes = [8, 32], strides = [1, 1]} : vector<8x128xf32> to vector<8x32xf32>
    %110 = vector.extract_strided_slice %107 {offsets = [0, 64], sizes = [8, 32], strides = [1, 1]} : vector<8x128xf32> to vector<8x32xf32>
    %111 = vector.extract_strided_slice %107 {offsets = [0, 96], sizes = [8, 32], strides = [1, 1]} : vector<8x128xf32> to vector<8x32xf32>
    %112 = arith.mulf %109, %42 : vector<8x32xf32>
    %113 = arith.mulf %108, %110 : vector<8x32xf32>
    %114 = arith.addf %112, %113 : vector<8x32xf32>
    %115 = math.tanh %114 : vector<8x32xf32>
    %116 = arith.mulf %111, %115 : vector<8x32xf32>
    %117 = tpu.concatenate %116, %66 in 1 : vector<8x32xf32>, vector<8x32xf32> -> vector<8x64xf32>
    %cst_44 = arith.constant dense<0.000000e+00> : vector<8x128xf32>
    %118 = tpu.matmul %117, %3, %cst_44 {dimension_numbers = #tpu.dot_dimension_numbers<[1], [0], [0], [1], [0, 0, 1, 1], [], []>} : vector<8x64xf32>, vector<64x128xf32>, vector<8x128xf32> -> vector<8x128xf32>
    %119 = vector.broadcast %4 : vector<1x128xf32> to vector<8x128xf32>
    %120 = arith.addf %119, %118 : vector<8x128xf32>
    %121 = math.tanh %120 : vector<8x128xf32>
    %122 = arith.negf %120 : vector<8x128xf32>
    %123 = math.exp %122 : vector<8x128xf32>
    %cst_45 = arith.constant 1.000000e+00 : f32
    %124 = vector.broadcast %cst_45 : f32 to vector<8x128xf32>
    %125 = arith.addf %124, %123 : vector<8x128xf32>
    %126 = arith.divf %124, %125 : vector<8x128xf32>
    %127 = vector.shape_cast %11 : vector<1x128xi1> to vector<1x128xi1>
    %128 = vector.broadcast %127 : vector<1x128xi1> to vector<8x128xi1>
    %129 = arith.select %128, %121, %126 : vector<8x128xi1>, vector<8x128xf32>
    %130 = vector.extract_strided_slice %129 {offsets = [0, 0], sizes = [8, 32], strides = [1, 1]} : vector<8x128xf32> to vector<8x32xf32>
    %131 = vector.extract_strided_slice %129 {offsets = [0, 32], sizes = [8, 32], strides = [1, 1]} : vector<8x128xf32> to vector<8x32xf32>
    %132 = vector.extract_strided_slice %129 {offsets = [0, 64], sizes = [8, 32], strides = [1, 1]} : vector<8x128xf32> to vector<8x32xf32>
    %133 = vector.extract_strided_slice %129 {offsets = [0, 96], sizes = [8, 32], strides = [1, 1]} : vector<8x128xf32> to vector<8x32xf32>
    %134 = arith.mulf %131, %64 : vector<8x32xf32>
    %135 = arith.mulf %130, %132 : vector<8x32xf32>
    %136 = arith.addf %134, %135 : vector<8x32xf32>
    %137 = math.tanh %136 : vector<8x32xf32>
    %138 = arith.mulf %133, %137 : vector<8x32xf32>
    %139 = vector.shape_cast %138 : vector<8x32xf32> to vector<8x1x32xf32>
    "tpu.trace_start"() <{level = 10 : i32, message = "bqk,bsk->bqs"}> : () -> ()
    %cst_46 = arith.constant dense<0.000000e+00> : vector<8x1x8xf32>
    %140 = tpu.matmul %139, %1, %cst_46 {dimension_numbers = #tpu.dot_dimension_numbers<[2], [2], [1], [1], [0, 0, 0, 1, 1, 1], [0], [0]>} : vector<8x1x32xf32>, vector<8x8x32xf32>, vector<8x1x8xf32> -> vector<8x1x8xf32>
    "tpu.trace_stop"() : () -> ()
    %cst_47 = arith.constant dense<0xFF800000> : vector<8x1xf32>
    %141 = vector.multi_reduction <maximumf>, %140, %cst_47 [2] : vector<8x1x8xf32> to vector<8x1xf32>
    %142 = vector.shape_cast %141 : vector<8x1xf32> to vector<8x1x1xf32>
    %143 = vector.broadcast %142 : vector<8x1x1xf32> to vector<8x1x8xf32>
    %144 = arith.subf %140, %143 : vector<8x1x8xf32>
    %145 = math.exp %144 : vector<8x1x8xf32>
    %cst_48 = arith.constant dense<0.000000e+00> : vector<8x1xf32>
    %146 = vector.multi_reduction <add>, %145, %cst_48 [2] : vector<8x1x8xf32> to vector<8x1xf32>
    %147 = vector.shape_cast %146 : vector<8x1xf32> to vector<8x1x1xf32>
    %148 = tpu.reciprocal %147 {approx = true} : vector<8x1x1xf32> -> vector<8x1x1xf32>
    %149 = vector.broadcast %148 : vector<8x1x1xf32> to vector<8x1x8xf32>
    %150 = arith.mulf %145, %149 : vector<8x1x8xf32>
    "tpu.trace_start"() <{level = 10 : i32, message = "bqs,bsh->bqh"}> : () -> ()
    %cst_49 = arith.constant dense<0.000000e+00> : vector<8x1x32xf32>
    %151 = tpu.matmul %150, %0, %cst_49 {dimension_numbers = #tpu.dot_dimension_numbers<[2], [1], [1], [2], [0, 0, 0, 1, 1, 2], [0], [0]>} : vector<8x1x8xf32>, vector<8x8x32xf32>, vector<8x1x32xf32> -> vector<8x1x32xf32>
    "tpu.trace_stop"() : () -> ()
    %152 = vector.shape_cast %151 : vector<8x1x32xf32> to vector<8x32xf32>
    %153 = tpu.concatenate %152, %138 in 1 : vector<8x32xf32>, vector<8x32xf32> -> vector<8x64xf32>
    %cst_50 = arith.constant dense<0.000000e+00> : vector<8x32xf32>
    %154 = tpu.matmul %153, %5, %cst_50 {dimension_numbers = #tpu.dot_dimension_numbers<[1], [0], [0], [1], [0, 0, 1, 1], [], []>} : vector<8x64xf32>, vector<64x32xf32>, vector<8x32xf32> -> vector<8x32xf32>
    %155 = math.tanh %154 : vector<8x32xf32>
    %156 = arith.index_cast %c1_i32 : i32 to index
    %c0_51 = arith.constant 0 : index
    %c0_52 = arith.constant 0 : index
    %157 = vector.load %arg10[%156, %c0_51, %c0_52] : memref<8x8x32xf32, #tpu.memory_space<vmem>>, vector<1x8x32xf32>
    %158 = vector.shape_cast %157 : vector<1x8x32xf32> to vector<8x32xf32>
    %159 = vector.shape_cast %155 : vector<8x32xf32> to vector<1x8x32xf32>
    tpu.vector_store %arg10[%156, %c0_51, %c0_52], %159 {strides = array<i32>} : memref<8x8x32xf32, #tpu.memory_space<vmem>>, vector<1x8x32xf32>,
    %160 = vector.shape_cast %150 : vector<8x1x8xf32> to vector<8x8xf32>
    %161 = arith.index_cast %c1_i32 : i32 to index
    %c0_53 = arith.constant 0 : index
    %c0_54 = arith.constant 0 : index
    %162 = vector.load %arg11[%161, %c0_53, %c0_54] : memref<8x8x8xf32, #tpu.memory_space<vmem>>, vector<1x8x8xf32>
    %163 = vector.shape_cast %162 : vector<1x8x8xf32> to vector<8x8xf32>
    %164 = vector.shape_cast %160 : vector<8x8xf32> to vector<1x8x8xf32>
    tpu.vector_store %arg11[%161, %c0_53, %c0_54], %164 {strides = array<i32>} : memref<8x8x8xf32, #tpu.memory_space<vmem>>, vector<1x8x8xf32>,
    %c2_i32 = arith.constant 2 : i32
    %165 = arith.index_cast %c2_i32 : i32 to index
    %c0_55 = arith.constant 0 : index
    %c0_56 = arith.constant 0 : index
    %166 = vector.load %arg0[%165, %c0_55, %c0_56] : memref<8x8x128xf32, #tpu.memory_space<vmem>>, vector<1x8x128xf32>
    %167 = vector.shape_cast %166 : vector<1x8x128xf32> to vector<8x128xf32>
    %168 = tpu.concatenate %155, %116 in 1 : vector<8x32xf32>, vector<8x32xf32> -> vector<8x64xf32>
    %cst_57 = arith.constant dense<0.000000e+00> : vector<8x128xf32>
    %169 = tpu.matmul %168, %2, %cst_57 {dimension_numbers = #tpu.dot_dimension_numbers<[1], [0], [0], [1], [0, 0, 1, 1], [], []>} : vector<8x64xf32>, vector<64x128xf32>, vector<8x128xf32> -> vector<8x128xf32>
    %170 = arith.addf %167, %169 : vector<8x128xf32>
    %171 = math.tanh %170 : vector<8x128xf32>
    %172 = arith.negf %170 : vector<8x128xf32>
    %173 = math.exp %172 : vector<8x128xf32>
    %cst_58 = arith.constant 1.000000e+00 : f32
    %174 = vector.broadcast %cst_58 : f32 to vector<8x128xf32>
    %175 = arith.addf %174, %173 : vector<8x128xf32>
    %176 = arith.divf %174, %175 : vector<8x128xf32>
    %177 = vector.shape_cast %11 : vector<1x128xi1> to vector<1x128xi1>
    %178 = vector.broadcast %177 : vector<1x128xi1> to vector<8x128xi1>
    %179 = arith.select %178, %171, %176 : vector<8x128xi1>, vector<8x128xf32>
    %180 = vector.extract_strided_slice %179 {offsets = [0, 0], sizes = [8, 32], strides = [1, 1]} : vector<8x128xf32> to vector<8x32xf32>
    %181 = vector.extract_strided_slice %179 {offsets = [0, 32], sizes = [8, 32], strides = [1, 1]} : vector<8x128xf32> to vector<8x32xf32>
    %182 = vector.extract_strided_slice %179 {offsets = [0, 64], sizes = [8, 32], strides = [1, 1]} : vector<8x128xf32> to vector<8x32xf32>
    %183 = vector.extract_strided_slice %179 {offsets = [0, 96], sizes = [8, 32], strides = [1, 1]} : vector<8x128xf32> to vector<8x32xf32>
    %184 = arith.mulf %181, %114 : vector<8x32xf32>
    %185 = arith.mulf %180, %182 : vector<8x32xf32>
    %186 = arith.addf %184, %185 : vector<8x32xf32>
    %187 = math.tanh %186 : vector<8x32xf32>
    %188 = arith.mulf %183, %187 : vector<8x32xf32>
    %189 = tpu.concatenate %188, %138 in 1 : vector<8x32xf32>, vector<8x32xf32> -> vector<8x64xf32>
    %cst_59 = arith.constant dense<0.000000e+00> : vector<8x128xf32>
    %190 = tpu.matmul %189, %3, %cst_59 {dimension_numbers = #tpu.dot_dimension_numbers<[1], [0], [0], [1], [0, 0, 1, 1], [], []>} : vector<8x64xf32>, vector<64x128xf32>, vector<8x128xf32> -> vector<8x128xf32>
    %191 = vector.broadcast %4 : vector<1x128xf32> to vector<8x128xf32>
    %192 = arith.addf %191, %190 : vector<8x128xf32>
    %193 = math.tanh %192 : vector<8x128xf32>
    %194 = arith.negf %192 : vector<8x128xf32>
    %195 = math.exp %194 : vector<8x128xf32>
    %cst_60 = arith.constant 1.000000e+00 : f32
    %196 = vector.broadcast %cst_60 : f32 to vector<8x128xf32>
    %197 = arith.addf %196, %195 : vector<8x128xf32>
    %198 = arith.divf %196, %197 : vector<8x128xf32>
    %199 = vector.shape_cast %11 : vector<1x128xi1> to vector<1x128xi1>
    %200 = vector.broadcast %199 : vector<1x128xi1> to vector<8x128xi1>
    %201 = arith.select %200, %193, %198 : vector<8x128xi1>, vector<8x128xf32>
    %202 = vector.extract_strided_slice %201 {offsets = [0, 0], sizes = [8, 32], strides = [1, 1]} : vector<8x128xf32> to vector<8x32xf32>
    %203 = vector.extract_strided_slice %201 {offsets = [0, 32], sizes = [8, 32], strides = [1, 1]} : vector<8x128xf32> to vector<8x32xf32>
    %204 = vector.extract_strided_slice %201 {offsets = [0, 64], sizes = [8, 32], strides = [1, 1]} : vector<8x128xf32> to vector<8x32xf32>
    %205 = vector.extract_strided_slice %201 {offsets = [0, 96], sizes = [8, 32], strides = [1, 1]} : vector<8x128xf32> to vector<8x32xf32>
    %206 = arith.mulf %203, %136 : vector<8x32xf32>
    %207 = arith.mulf %202, %204 : vector<8x32xf32>
    %208 = arith.addf %206, %207 : vector<8x32xf32>
    %209 = math.tanh %208 : vector<8x32xf32>
    %210 = arith.mulf %205, %209 : vector<8x32xf32>
    %211 = vector.shape_cast %210 : vector<8x32xf32> to vector<8x1x32xf32>
    "tpu.trace_start"() <{level = 10 : i32, message = "bqk,bsk->bqs"}> : () -> ()
    %cst_61 = arith.constant dense<0.000000e+00> : vector<8x1x8xf32>
    %212 = tpu.matmul %211, %1, %cst_61 {dimension_numbers = #tpu.dot_dimension_numbers<[2], [2], [1], [1], [0, 0, 0, 1, 1, 1], [0], [0]>} : vector<8x1x32xf32>, vector<8x8x32xf32>, vector<8x1x8xf32> -> vector<8x1x8xf32>
    "tpu.trace_stop"() : () -> ()
    %cst_62 = arith.constant dense<0xFF800000> : vector<8x1xf32>
    %213 = vector.multi_reduction <maximumf>, %212, %cst_62 [2] : vector<8x1x8xf32> to vector<8x1xf32>
    %214 = vector.shape_cast %213 : vector<8x1xf32> to vector<8x1x1xf32>
    %215 = vector.broadcast %214 : vector<8x1x1xf32> to vector<8x1x8xf32>
    %216 = arith.subf %212, %215 : vector<8x1x8xf32>
    %217 = math.exp %216 : vector<8x1x8xf32>
    %cst_63 = arith.constant dense<0.000000e+00> : vector<8x1xf32>
    %218 = vector.multi_reduction <add>, %217, %cst_63 [2] : vector<8x1x8xf32> to vector<8x1xf32>
    %219 = vector.shape_cast %218 : vector<8x1xf32> to vector<8x1x1xf32>
    %220 = tpu.reciprocal %219 {approx = true} : vector<8x1x1xf32> -> vector<8x1x1xf32>
    %221 = vector.broadcast %220 : vector<8x1x1xf32> to vector<8x1x8xf32>
    %222 = arith.mulf %217, %221 : vector<8x1x8xf32>
    "tpu.trace_start"() <{level = 10 : i32, message = "bqs,bsh->bqh"}> : () -> ()
    %cst_64 = arith.constant dense<0.000000e+00> : vector<8x1x32xf32>
    %223 = tpu.matmul %222, %0, %cst_64 {dimension_numbers = #tpu.dot_dimension_numbers<[2], [1], [1], [2], [0, 0, 0, 1, 1, 2], [0], [0]>} : vector<8x1x8xf32>, vector<8x8x32xf32>, vector<8x1x32xf32> -> vector<8x1x32xf32>
    "tpu.trace_stop"() : () -> ()
    %224 = vector.shape_cast %223 : vector<8x1x32xf32> to vector<8x32xf32>
    %225 = tpu.concatenate %224, %210 in 1 : vector<8x32xf32>, vector<8x32xf32> -> vector<8x64xf32>
    %cst_65 = arith.constant dense<0.000000e+00> : vector<8x32xf32>
    %226 = tpu.matmul %225, %5, %cst_65 {dimension_numbers = #tpu.dot_dimension_numbers<[1], [0], [0], [1], [0, 0, 1, 1], [], []>} : vector<8x64xf32>, vector<64x32xf32>, vector<8x32xf32> -> vector<8x32xf32>
    %227 = math.tanh %226 : vector<8x32xf32>
    %228 = arith.index_cast %c2_i32 : i32 to index
    %c0_66 = arith.constant 0 : index
    %c0_67 = arith.constant 0 : index
    %229 = vector.load %arg10[%228, %c0_66, %c0_67] : memref<8x8x32xf32, #tpu.memory_space<vmem>>, vector<1x8x32xf32>
    %230 = vector.shape_cast %229 : vector<1x8x32xf32> to vector<8x32xf32>
    %231 = vector.shape_cast %227 : vector<8x32xf32> to vector<1x8x32xf32>
    tpu.vector_store %arg10[%228, %c0_66, %c0_67], %231 {strides = array<i32>} : memref<8x8x32xf32, #tpu.memory_space<vmem>>, vector<1x8x32xf32>,
    %232 = vector.shape_cast %222 : vector<8x1x8xf32> to vector<8x8xf32>
    %233 = arith.index_cast %c2_i32 : i32 to index
    %c0_68 = arith.constant 0 : index
    %c0_69 = arith.constant 0 : index
    %234 = vector.load %arg11[%233, %c0_68, %c0_69] : memref<8x8x8xf32, #tpu.memory_space<vmem>>, vector<1x8x8xf32>
    %235 = vector.shape_cast %234 : vector<1x8x8xf32> to vector<8x8xf32>
    %236 = vector.shape_cast %232 : vector<8x8xf32> to vector<1x8x8xf32>
    tpu.vector_store %arg11[%233, %c0_68, %c0_69], %236 {strides = array<i32>} : memref<8x8x8xf32, #tpu.memory_space<vmem>>, vector<1x8x8xf32>,
    %c3_i32 = arith.constant 3 : i32
    %237 = arith.index_cast %c3_i32 : i32 to index
    %c0_70 = arith.constant 0 : index
    %c0_71 = arith.constant 0 : index
    %238 = vector.load %arg0[%237, %c0_70, %c0_71] : memref<8x8x128xf32, #tpu.memory_space<vmem>>, vector<1x8x128xf32>
    %239 = vector.shape_cast %238 : vector<1x8x128xf32> to vector<8x128xf32>
    %240 = tpu.concatenate %227, %188 in 1 : vector<8x32xf32>, vector<8x32xf32> -> vector<8x64xf32>
    %cst_72 = arith.constant dense<0.000000e+00> : vector<8x128xf32>
    %241 = tpu.matmul %240, %2, %cst_72 {dimension_numbers = #tpu.dot_dimension_numbers<[1], [0], [0], [1], [0, 0, 1, 1], [], []>} : vector<8x64xf32>, vector<64x128xf32>, vector<8x128xf32> -> vector<8x128xf32>
    %242 = arith.addf %239, %241 : vector<8x128xf32>
    %243 = math.tanh %242 : vector<8x128xf32>
    %244 = arith.negf %242 : vector<8x128xf32>
    %245 = math.exp %244 : vector<8x128xf32>
    %cst_73 = arith.constant 1.000000e+00 : f32
    %246 = vector.broadcast %cst_73 : f32 to vector<8x128xf32>
    %247 = arith.addf %246, %245 : vector<8x128xf32>
    %248 = arith.divf %246, %247 : vector<8x128xf32>
    %249 = vector.shape_cast %11 : vector<1x128xi1> to vector<1x128xi1>
    %250 = vector.broadcast %249 : vector<1x128xi1> to vector<8x128xi1>
    %251 = arith.select %250, %243, %248 : vector<8x128xi1>, vector<8x128xf32>
    %252 = vector.extract_strided_slice %251 {offsets = [0, 0], sizes = [8, 32], strides = [1, 1]} : vector<8x128xf32> to vector<8x32xf32>
    %253 = vector.extract_strided_slice %251 {offsets = [0, 32], sizes = [8, 32], strides = [1, 1]} : vector<8x128xf32> to vector<8x32xf32>
    %254 = vector.extract_strided_slice %251 {offsets = [0, 64], sizes = [8, 32], strides = [1, 1]} : vector<8x128xf32> to vector<8x32xf32>
    %255 = vector.extract_strided_slice %251 {offsets = [0, 96], sizes = [8, 32], strides = [1, 1]} : vector<8x128xf32> to vector<8x32xf32>
    %256 = arith.mulf %253, %186 : vector<8x32xf32>
    %257 = arith.mulf %252, %254 : vector<8x32xf32>
    %258 = arith.addf %256, %257 : vector<8x32xf32>
    %259 = math.tanh %258 : vector<8x32xf32>
    %260 = arith.mulf %255, %259 : vector<8x32xf32>
    %261 = tpu.concatenate %260, %210 in 1 : vector<8x32xf32>, vector<8x32xf32> -> vector<8x64xf32>
    %cst_74 = arith.constant dense<0.000000e+00> : vector<8x128xf32>
    %262 = tpu.matmul %261, %3, %cst_74 {dimension_numbers = #tpu.dot_dimension_numbers<[1], [0], [0], [1], [0, 0, 1, 1], [], []>} : vector<8x64xf32>, vector<64x128xf32>, vector<8x128xf32> -> vector<8x128xf32>
    %263 = vector.broadcast %4 : vector<1x128xf32> to vector<8x128xf32>
    %264 = arith.addf %263, %262 : vector<8x128xf32>
    %265 = math.tanh %264 : vector<8x128xf32>
    %266 = arith.negf %264 : vector<8x128xf32>
    %267 = math.exp %266 : vector<8x128xf32>
    %cst_75 = arith.constant 1.000000e+00 : f32
    %268 = vector.broadcast %cst_75 : f32 to vector<8x128xf32>
    %269 = arith.addf %268, %267 : vector<8x128xf32>
    %270 = arith.divf %268, %269 : vector<8x128xf32>
    %271 = vector.shape_cast %11 : vector<1x128xi1> to vector<1x128xi1>
    %272 = vector.broadcast %271 : vector<1x128xi1> to vector<8x128xi1>
    %273 = arith.select %272, %265, %270 : vector<8x128xi1>, vector<8x128xf32>
    %274 = vector.extract_strided_slice %273 {offsets = [0, 0], sizes = [8, 32], strides = [1, 1]} : vector<8x128xf32> to vector<8x32xf32>
    %275 = vector.extract_strided_slice %273 {offsets = [0, 32], sizes = [8, 32], strides = [1, 1]} : vector<8x128xf32> to vector<8x32xf32>
    %276 = vector.extract_strided_slice %273 {offsets = [0, 64], sizes = [8, 32], strides = [1, 1]} : vector<8x128xf32> to vector<8x32xf32>
    %277 = vector.extract_strided_slice %273 {offsets = [0, 96], sizes = [8, 32], strides = [1, 1]} : vector<8x128xf32> to vector<8x32xf32>
    %278 = arith.mulf %275, %208 : vector<8x32xf32>
    %279 = arith.mulf %274, %276 : vector<8x32xf32>
    %280 = arith.addf %278, %279 : vector<8x32xf32>
    %281 = math.tanh %280 : vector<8x32xf32>
    %282 = arith.mulf %277, %281 : vector<8x32xf32>
    %283 = vector.shape_cast %282 : vector<8x32xf32> to vector<8x1x32xf32>
    "tpu.trace_start"() <{level = 10 : i32, message = "bqk,bsk->bqs"}> : () -> ()
    %cst_76 = arith.constant dense<0.000000e+00> : vector<8x1x8xf32>
    %284 = tpu.matmul %283, %1, %cst_76 {dimension_numbers = #tpu.dot_dimension_numbers<[2], [2], [1], [1], [0, 0, 0, 1, 1, 1], [0], [0]>} : vector<8x1x32xf32>, vector<8x8x32xf32>, vector<8x1x8xf32> -> vector<8x1x8xf32>
    "tpu.trace_stop"() : () -> ()
    %cst_77 = arith.constant dense<0xFF800000> : vector<8x1xf32>
    %285 = vector.multi_reduction <maximumf>, %284, %cst_77 [2] : vector<8x1x8xf32> to vector<8x1xf32>
    %286 = vector.shape_cast %285 : vector<8x1xf32> to vector<8x1x1xf32>
    %287 = vector.broadcast %286 : vector<8x1x1xf32> to vector<8x1x8xf32>
    %288 = arith.subf %284, %287 : vector<8x1x8xf32>
    %289 = math.exp %288 : vector<8x1x8xf32>
    %cst_78 = arith.constant dense<0.000000e+00> : vector<8x1xf32>
    %290 = vector.multi_reduction <add>, %289, %cst_78 [2] : vector<8x1x8xf32> to vector<8x1xf32>
    %291 = vector.shape_cast %290 : vector<8x1xf32> to vector<8x1x1xf32>
    %292 = tpu.reciprocal %291 {approx = true} : vector<8x1x1xf32> -> vector<8x1x1xf32>
    %293 = vector.broadcast %292 : vector<8x1x1xf32> to vector<8x1x8xf32>
    %294 = arith.mulf %289, %293 : vector<8x1x8xf32>
    "tpu.trace_start"() <{level = 10 : i32, message = "bqs,bsh->bqh"}> : () -> ()
    %cst_79 = arith.constant dense<0.000000e+00> : vector<8x1x32xf32>
    %295 = tpu.matmul %294, %0, %cst_79 {dimension_numbers = #tpu.dot_dimension_numbers<[2], [1], [1], [2], [0, 0, 0, 1, 1, 2], [0], [0]>} : vector<8x1x8xf32>, vector<8x8x32xf32>, vector<8x1x32xf32> -> vector<8x1x32xf32>
    "tpu.trace_stop"() : () -> ()
    %296 = vector.shape_cast %295 : vector<8x1x32xf32> to vector<8x32xf32>
    %297 = tpu.concatenate %296, %282 in 1 : vector<8x32xf32>, vector<8x32xf32> -> vector<8x64xf32>
    %cst_80 = arith.constant dense<0.000000e+00> : vector<8x32xf32>
    %298 = tpu.matmul %297, %5, %cst_80 {dimension_numbers = #tpu.dot_dimension_numbers<[1], [0], [0], [1], [0, 0, 1, 1], [], []>} : vector<8x64xf32>, vector<64x32xf32>, vector<8x32xf32> -> vector<8x32xf32>
    %299 = math.tanh %298 : vector<8x32xf32>
    %300 = arith.index_cast %c3_i32 : i32 to index
    %c0_81 = arith.constant 0 : index
    %c0_82 = arith.constant 0 : index
    %301 = vector.load %arg10[%300, %c0_81, %c0_82] : memref<8x8x32xf32, #tpu.memory_space<vmem>>, vector<1x8x32xf32>
    %302 = vector.shape_cast %301 : vector<1x8x32xf32> to vector<8x32xf32>
    %303 = vector.shape_cast %299 : vector<8x32xf32> to vector<1x8x32xf32>
    tpu.vector_store %arg10[%300, %c0_81, %c0_82], %303 {strides = array<i32>} : memref<8x8x32xf32, #tpu.memory_space<vmem>>, vector<1x8x32xf32>,
    %304 = vector.shape_cast %294 : vector<8x1x8xf32> to vector<8x8xf32>
    %305 = arith.index_cast %c3_i32 : i32 to index
    %c0_83 = arith.constant 0 : index
    %c0_84 = arith.constant 0 : index
    %306 = vector.load %arg11[%305, %c0_83, %c0_84] : memref<8x8x8xf32, #tpu.memory_space<vmem>>, vector<1x8x8xf32>
    %307 = vector.shape_cast %306 : vector<1x8x8xf32> to vector<8x8xf32>
    %308 = vector.shape_cast %304 : vector<8x8xf32> to vector<1x8x8xf32>
    tpu.vector_store %arg11[%305, %c0_83, %c0_84], %308 {strides = array<i32>} : memref<8x8x8xf32, #tpu.memory_space<vmem>>, vector<1x8x8xf32>,
    %c4_i32 = arith.constant 4 : i32
    %309 = arith.index_cast %c4_i32 : i32 to index
    %c0_85 = arith.constant 0 : index
    %c0_86 = arith.constant 0 : index
    %310 = vector.load %arg0[%309, %c0_85, %c0_86] : memref<8x8x128xf32, #tpu.memory_space<vmem>>, vector<1x8x128xf32>
    %311 = vector.shape_cast %310 : vector<1x8x128xf32> to vector<8x128xf32>
    %312 = tpu.concatenate %299, %260 in 1 : vector<8x32xf32>, vector<8x32xf32> -> vector<8x64xf32>
    %cst_87 = arith.constant dense<0.000000e+00> : vector<8x128xf32>
    %313 = tpu.matmul %312, %2, %cst_87 {dimension_numbers = #tpu.dot_dimension_numbers<[1], [0], [0], [1], [0, 0, 1, 1], [], []>} : vector<8x64xf32>, vector<64x128xf32>, vector<8x128xf32> -> vector<8x128xf32>
    %314 = arith.addf %311, %313 : vector<8x128xf32>
    %315 = math.tanh %314 : vector<8x128xf32>
    %316 = arith.negf %314 : vector<8x128xf32>
    %317 = math.exp %316 : vector<8x128xf32>
    %cst_88 = arith.constant 1.000000e+00 : f32
    %318 = vector.broadcast %cst_88 : f32 to vector<8x128xf32>
    %319 = arith.addf %318, %317 : vector<8x128xf32>
    %320 = arith.divf %318, %319 : vector<8x128xf32>
    %321 = vector.shape_cast %11 : vector<1x128xi1> to vector<1x128xi1>
    %322 = vector.broadcast %321 : vector<1x128xi1> to vector<8x128xi1>
    %323 = arith.select %322, %315, %320 : vector<8x128xi1>, vector<8x128xf32>
    %324 = vector.extract_strided_slice %323 {offsets = [0, 0], sizes = [8, 32], strides = [1, 1]} : vector<8x128xf32> to vector<8x32xf32>
    %325 = vector.extract_strided_slice %323 {offsets = [0, 32], sizes = [8, 32], strides = [1, 1]} : vector<8x128xf32> to vector<8x32xf32>
    %326 = vector.extract_strided_slice %323 {offsets = [0, 64], sizes = [8, 32], strides = [1, 1]} : vector<8x128xf32> to vector<8x32xf32>
    %327 = vector.extract_strided_slice %323 {offsets = [0, 96], sizes = [8, 32], strides = [1, 1]} : vector<8x128xf32> to vector<8x32xf32>
    %328 = arith.mulf %325, %258 : vector<8x32xf32>
    %329 = arith.mulf %324, %326 : vector<8x32xf32>
    %330 = arith.addf %328, %329 : vector<8x32xf32>
    %331 = math.tanh %330 : vector<8x32xf32>
    %332 = arith.mulf %327, %331 : vector<8x32xf32>
    %333 = tpu.concatenate %332, %282 in 1 : vector<8x32xf32>, vector<8x32xf32> -> vector<8x64xf32>
    %cst_89 = arith.constant dense<0.000000e+00> : vector<8x128xf32>
    %334 = tpu.matmul %333, %3, %cst_89 {dimension_numbers = #tpu.dot_dimension_numbers<[1], [0], [0], [1], [0, 0, 1, 1], [], []>} : vector<8x64xf32>, vector<64x128xf32>, vector<8x128xf32> -> vector<8x128xf32>
    %335 = vector.broadcast %4 : vector<1x128xf32> to vector<8x128xf32>
    %336 = arith.addf %335, %334 : vector<8x128xf32>
    %337 = math.tanh %336 : vector<8x128xf32>
    %338 = arith.negf %336 : vector<8x128xf32>
    %339 = math.exp %338 : vector<8x128xf32>
    %cst_90 = arith.constant 1.000000e+00 : f32
    %340 = vector.broadcast %cst_90 : f32 to vector<8x128xf32>
    %341 = arith.addf %340, %339 : vector<8x128xf32>
    %342 = arith.divf %340, %341 : vector<8x128xf32>
    %343 = vector.shape_cast %11 : vector<1x128xi1> to vector<1x128xi1>
    %344 = vector.broadcast %343 : vector<1x128xi1> to vector<8x128xi1>
    %345 = arith.select %344, %337, %342 : vector<8x128xi1>, vector<8x128xf32>
    %346 = vector.extract_strided_slice %345 {offsets = [0, 0], sizes = [8, 32], strides = [1, 1]} : vector<8x128xf32> to vector<8x32xf32>
    %347 = vector.extract_strided_slice %345 {offsets = [0, 32], sizes = [8, 32], strides = [1, 1]} : vector<8x128xf32> to vector<8x32xf32>
    %348 = vector.extract_strided_slice %345 {offsets = [0, 64], sizes = [8, 32], strides = [1, 1]} : vector<8x128xf32> to vector<8x32xf32>
    %349 = vector.extract_strided_slice %345 {offsets = [0, 96], sizes = [8, 32], strides = [1, 1]} : vector<8x128xf32> to vector<8x32xf32>
    %350 = arith.mulf %347, %280 : vector<8x32xf32>
    %351 = arith.mulf %346, %348 : vector<8x32xf32>
    %352 = arith.addf %350, %351 : vector<8x32xf32>
    %353 = math.tanh %352 : vector<8x32xf32>
    %354 = arith.mulf %349, %353 : vector<8x32xf32>
    %355 = vector.shape_cast %354 : vector<8x32xf32> to vector<8x1x32xf32>
    "tpu.trace_start"() <{level = 10 : i32, message = "bqk,bsk->bqs"}> : () -> ()
    %cst_91 = arith.constant dense<0.000000e+00> : vector<8x1x8xf32>
    %356 = tpu.matmul %355, %1, %cst_91 {dimension_numbers = #tpu.dot_dimension_numbers<[2], [2], [1], [1], [0, 0, 0, 1, 1, 1], [0], [0]>} : vector<8x1x32xf32>, vector<8x8x32xf32>, vector<8x1x8xf32> -> vector<8x1x8xf32>
    "tpu.trace_stop"() : () -> ()
    %cst_92 = arith.constant dense<0xFF800000> : vector<8x1xf32>
    %357 = vector.multi_reduction <maximumf>, %356, %cst_92 [2] : vector<8x1x8xf32> to vector<8x1xf32>
    %358 = vector.shape_cast %357 : vector<8x1xf32> to vector<8x1x1xf32>
    %359 = vector.broadcast %358 : vector<8x1x1xf32> to vector<8x1x8xf32>
    %360 = arith.subf %356, %359 : vector<8x1x8xf32>
    %361 = math.exp %360 : vector<8x1x8xf32>
    %cst_93 = arith.constant dense<0.000000e+00> : vector<8x1xf32>
    %362 = vector.multi_reduction <add>, %361, %cst_93 [2] : vector<8x1x8xf32> to vector<8x1xf32>
    %363 = vector.shape_cast %362 : vector<8x1xf32> to vector<8x1x1xf32>
    %364 = tpu.reciprocal %363 {approx = true} : vector<8x1x1xf32> -> vector<8x1x1xf32>
    %365 = vector.broadcast %364 : vector<8x1x1xf32> to vector<8x1x8xf32>
    %366 = arith.mulf %361, %365 : vector<8x1x8xf32>
    "tpu.trace_start"() <{level = 10 : i32, message = "bqs,bsh->bqh"}> : () -> ()
    %cst_94 = arith.constant dense<0.000000e+00> : vector<8x1x32xf32>
    %367 = tpu.matmul %366, %0, %cst_94 {dimension_numbers = #tpu.dot_dimension_numbers<[2], [1], [1], [2], [0, 0, 0, 1, 1, 2], [0], [0]>} : vector<8x1x8xf32>, vector<8x8x32xf32>, vector<8x1x32xf32> -> vector<8x1x32xf32>
    "tpu.trace_stop"() : () -> ()
    %368 = vector.shape_cast %367 : vector<8x1x32xf32> to vector<8x32xf32>
    %369 = tpu.concatenate %368, %354 in 1 : vector<8x32xf32>, vector<8x32xf32> -> vector<8x64xf32>
    %cst_95 = arith.constant dense<0.000000e+00> : vector<8x32xf32>
    %370 = tpu.matmul %369, %5, %cst_95 {dimension_numbers = #tpu.dot_dimension_numbers<[1], [0], [0], [1], [0, 0, 1, 1], [], []>} : vector<8x64xf32>, vector<64x32xf32>, vector<8x32xf32> -> vector<8x32xf32>
    %371 = math.tanh %370 : vector<8x32xf32>
    %372 = arith.index_cast %c4_i32 : i32 to index
    %c0_96 = arith.constant 0 : index
    %c0_97 = arith.constant 0 : index
    %373 = vector.load %arg10[%372, %c0_96, %c0_97] : memref<8x8x32xf32, #tpu.memory_space<vmem>>, vector<1x8x32xf32>
    %374 = vector.shape_cast %373 : vector<1x8x32xf32> to vector<8x32xf32>
    %375 = vector.shape_cast %371 : vector<8x32xf32> to vector<1x8x32xf32>
    tpu.vector_store %arg10[%372, %c0_96, %c0_97], %375 {strides = array<i32>} : memref<8x8x32xf32, #tpu.memory_space<vmem>>, vector<1x8x32xf32>,
    %376 = vector.shape_cast %366 : vector<8x1x8xf32> to vector<8x8xf32>
    %377 = arith.index_cast %c4_i32 : i32 to index
    %c0_98 = arith.constant 0 : index
    %c0_99 = arith.constant 0 : index
    %378 = vector.load %arg11[%377, %c0_98, %c0_99] : memref<8x8x8xf32, #tpu.memory_space<vmem>>, vector<1x8x8xf32>
    %379 = vector.shape_cast %378 : vector<1x8x8xf32> to vector<8x8xf32>
    %380 = vector.shape_cast %376 : vector<8x8xf32> to vector<1x8x8xf32>
    tpu.vector_store %arg11[%377, %c0_98, %c0_99], %380 {strides = array<i32>} : memref<8x8x8xf32, #tpu.memory_space<vmem>>, vector<1x8x8xf32>,
    %c5_i32 = arith.constant 5 : i32
    %381 = arith.index_cast %c5_i32 : i32 to index
    %c0_100 = arith.constant 0 : index
    %c0_101 = arith.constant 0 : index
    %382 = vector.load %arg0[%381, %c0_100, %c0_101] : memref<8x8x128xf32, #tpu.memory_space<vmem>>, vector<1x8x128xf32>
    %383 = vector.shape_cast %382 : vector<1x8x128xf32> to vector<8x128xf32>
    %384 = tpu.concatenate %371, %332 in 1 : vector<8x32xf32>, vector<8x32xf32> -> vector<8x64xf32>
    %cst_102 = arith.constant dense<0.000000e+00> : vector<8x128xf32>
    %385 = tpu.matmul %384, %2, %cst_102 {dimension_numbers = #tpu.dot_dimension_numbers<[1], [0], [0], [1], [0, 0, 1, 1], [], []>} : vector<8x64xf32>, vector<64x128xf32>, vector<8x128xf32> -> vector<8x128xf32>
    %386 = arith.addf %383, %385 : vector<8x128xf32>
    %387 = math.tanh %386 : vector<8x128xf32>
    %388 = arith.negf %386 : vector<8x128xf32>
    %389 = math.exp %388 : vector<8x128xf32>
    %cst_103 = arith.constant 1.000000e+00 : f32
    %390 = vector.broadcast %cst_103 : f32 to vector<8x128xf32>
    %391 = arith.addf %390, %389 : vector<8x128xf32>
    %392 = arith.divf %390, %391 : vector<8x128xf32>
    %393 = vector.shape_cast %11 : vector<1x128xi1> to vector<1x128xi1>
    %394 = vector.broadcast %393 : vector<1x128xi1> to vector<8x128xi1>
    %395 = arith.select %394, %387, %392 : vector<8x128xi1>, vector<8x128xf32>
    %396 = vector.extract_strided_slice %395 {offsets = [0, 0], sizes = [8, 32], strides = [1, 1]} : vector<8x128xf32> to vector<8x32xf32>
    %397 = vector.extract_strided_slice %395 {offsets = [0, 32], sizes = [8, 32], strides = [1, 1]} : vector<8x128xf32> to vector<8x32xf32>
    %398 = vector.extract_strided_slice %395 {offsets = [0, 64], sizes = [8, 32], strides = [1, 1]} : vector<8x128xf32> to vector<8x32xf32>
    %399 = vector.extract_strided_slice %395 {offsets = [0, 96], sizes = [8, 32], strides = [1, 1]} : vector<8x128xf32> to vector<8x32xf32>
    %400 = arith.mulf %397, %330 : vector<8x32xf32>
    %401 = arith.mulf %396, %398 : vector<8x32xf32>
    %402 = arith.addf %400, %401 : vector<8x32xf32>
    %403 = math.tanh %402 : vector<8x32xf32>
    %404 = arith.mulf %399, %403 : vector<8x32xf32>
    %405 = tpu.concatenate %404, %354 in 1 : vector<8x32xf32>, vector<8x32xf32> -> vector<8x64xf32>
    %cst_104 = arith.constant dense<0.000000e+00> : vector<8x128xf32>
    %406 = tpu.matmul %405, %3, %cst_104 {dimension_numbers = #tpu.dot_dimension_numbers<[1], [0], [0], [1], [0, 0, 1, 1], [], []>} : vector<8x64xf32>, vector<64x128xf32>, vector<8x128xf32> -> vector<8x128xf32>
    %407 = vector.broadcast %4 : vector<1x128xf32> to vector<8x128xf32>
    %408 = arith.addf %407, %406 : vector<8x128xf32>
    %409 = math.tanh %408 : vector<8x128xf32>
    %410 = arith.negf %408 : vector<8x128xf32>
    %411 = math.exp %410 : vector<8x128xf32>
    %cst_105 = arith.constant 1.000000e+00 : f32
    %412 = vector.broadcast %cst_105 : f32 to vector<8x128xf32>
    %413 = arith.addf %412, %411 : vector<8x128xf32>
    %414 = arith.divf %412, %413 : vector<8x128xf32>
    %415 = vector.shape_cast %11 : vector<1x128xi1> to vector<1x128xi1>
    %416 = vector.broadcast %415 : vector<1x128xi1> to vector<8x128xi1>
    %417 = arith.select %416, %409, %414 : vector<8x128xi1>, vector<8x128xf32>
    %418 = vector.extract_strided_slice %417 {offsets = [0, 0], sizes = [8, 32], strides = [1, 1]} : vector<8x128xf32> to vector<8x32xf32>
    %419 = vector.extract_strided_slice %417 {offsets = [0, 32], sizes = [8, 32], strides = [1, 1]} : vector<8x128xf32> to vector<8x32xf32>
    %420 = vector.extract_strided_slice %417 {offsets = [0, 64], sizes = [8, 32], strides = [1, 1]} : vector<8x128xf32> to vector<8x32xf32>
    %421 = vector.extract_strided_slice %417 {offsets = [0, 96], sizes = [8, 32], strides = [1, 1]} : vector<8x128xf32> to vector<8x32xf32>
    %422 = arith.mulf %419, %352 : vector<8x32xf32>
    %423 = arith.mulf %418, %420 : vector<8x32xf32>
    %424 = arith.addf %422, %423 : vector<8x32xf32>
    %425 = math.tanh %424 : vector<8x32xf32>
    %426 = arith.mulf %421, %425 : vector<8x32xf32>
    %427 = vector.shape_cast %426 : vector<8x32xf32> to vector<8x1x32xf32>
    "tpu.trace_start"() <{level = 10 : i32, message = "bqk,bsk->bqs"}> : () -> ()
    %cst_106 = arith.constant dense<0.000000e+00> : vector<8x1x8xf32>
    %428 = tpu.matmul %427, %1, %cst_106 {dimension_numbers = #tpu.dot_dimension_numbers<[2], [2], [1], [1], [0, 0, 0, 1, 1, 1], [0], [0]>} : vector<8x1x32xf32>, vector<8x8x32xf32>, vector<8x1x8xf32> -> vector<8x1x8xf32>
    "tpu.trace_stop"() : () -> ()
    %cst_107 = arith.constant dense<0xFF800000> : vector<8x1xf32>
    %429 = vector.multi_reduction <maximumf>, %428, %cst_107 [2] : vector<8x1x8xf32> to vector<8x1xf32>
    %430 = vector.shape_cast %429 : vector<8x1xf32> to vector<8x1x1xf32>
    %431 = vector.broadcast %430 : vector<8x1x1xf32> to vector<8x1x8xf32>
    %432 = arith.subf %428, %431 : vector<8x1x8xf32>
    %433 = math.exp %432 : vector<8x1x8xf32>
    %cst_108 = arith.constant dense<0.000000e+00> : vector<8x1xf32>
    %434 = vector.multi_reduction <add>, %433, %cst_108 [2] : vector<8x1x8xf32> to vector<8x1xf32>
    %435 = vector.shape_cast %434 : vector<8x1xf32> to vector<8x1x1xf32>
    %436 = tpu.reciprocal %435 {approx = true} : vector<8x1x1xf32> -> vector<8x1x1xf32>
    %437 = vector.broadcast %436 : vector<8x1x1xf32> to vector<8x1x8xf32>
    %438 = arith.mulf %433, %437 : vector<8x1x8xf32>
    "tpu.trace_start"() <{level = 10 : i32, message = "bqs,bsh->bqh"}> : () -> ()
    %cst_109 = arith.constant dense<0.000000e+00> : vector<8x1x32xf32>
    %439 = tpu.matmul %438, %0, %cst_109 {dimension_numbers = #tpu.dot_dimension_numbers<[2], [1], [1], [2], [0, 0, 0, 1, 1, 2], [0], [0]>} : vector<8x1x8xf32>, vector<8x8x32xf32>, vector<8x1x32xf32> -> vector<8x1x32xf32>
    "tpu.trace_stop"() : () -> ()
    %440 = vector.shape_cast %439 : vector<8x1x32xf32> to vector<8x32xf32>
    %441 = tpu.concatenate %440, %426 in 1 : vector<8x32xf32>, vector<8x32xf32> -> vector<8x64xf32>
    %cst_110 = arith.constant dense<0.000000e+00> : vector<8x32xf32>
    %442 = tpu.matmul %441, %5, %cst_110 {dimension_numbers = #tpu.dot_dimension_numbers<[1], [0], [0], [1], [0, 0, 1, 1], [], []>} : vector<8x64xf32>, vector<64x32xf32>, vector<8x32xf32> -> vector<8x32xf32>
    %443 = math.tanh %442 : vector<8x32xf32>
    %444 = arith.index_cast %c5_i32 : i32 to index
    %c0_111 = arith.constant 0 : index
    %c0_112 = arith.constant 0 : index
    %445 = vector.load %arg10[%444, %c0_111, %c0_112] : memref<8x8x32xf32, #tpu.memory_space<vmem>>, vector<1x8x32xf32>
    %446 = vector.shape_cast %445 : vector<1x8x32xf32> to vector<8x32xf32>
    %447 = vector.shape_cast %443 : vector<8x32xf32> to vector<1x8x32xf32>
    tpu.vector_store %arg10[%444, %c0_111, %c0_112], %447 {strides = array<i32>} : memref<8x8x32xf32, #tpu.memory_space<vmem>>, vector<1x8x32xf32>,
    %448 = vector.shape_cast %438 : vector<8x1x8xf32> to vector<8x8xf32>
    %449 = arith.index_cast %c5_i32 : i32 to index
    %c0_113 = arith.constant 0 : index
    %c0_114 = arith.constant 0 : index
    %450 = vector.load %arg11[%449, %c0_113, %c0_114] : memref<8x8x8xf32, #tpu.memory_space<vmem>>, vector<1x8x8xf32>
    %451 = vector.shape_cast %450 : vector<1x8x8xf32> to vector<8x8xf32>
    %452 = vector.shape_cast %448 : vector<8x8xf32> to vector<1x8x8xf32>
    tpu.vector_store %arg11[%449, %c0_113, %c0_114], %452 {strides = array<i32>} : memref<8x8x8xf32, #tpu.memory_space<vmem>>, vector<1x8x8xf32>,
    %c6_i32 = arith.constant 6 : i32
    %453 = arith.index_cast %c6_i32 : i32 to index
    %c0_115 = arith.constant 0 : index
    %c0_116 = arith.constant 0 : index
    %454 = vector.load %arg0[%453, %c0_115, %c0_116] : memref<8x8x128xf32, #tpu.memory_space<vmem>>, vector<1x8x128xf32>
    %455 = vector.shape_cast %454 : vector<1x8x128xf32> to vector<8x128xf32>
    %456 = tpu.concatenate %443, %404 in 1 : vector<8x32xf32>, vector<8x32xf32> -> vector<8x64xf32>
    %cst_117 = arith.constant dense<0.000000e+00> : vector<8x128xf32>
    %457 = tpu.matmul %456, %2, %cst_117 {dimension_numbers = #tpu.dot_dimension_numbers<[1], [0], [0], [1], [0, 0, 1, 1], [], []>} : vector<8x64xf32>, vector<64x128xf32>, vector<8x128xf32> -> vector<8x128xf32>
    %458 = arith.addf %455, %457 : vector<8x128xf32>
    %459 = math.tanh %458 : vector<8x128xf32>
    %460 = arith.negf %458 : vector<8x128xf32>
    %461 = math.exp %460 : vector<8x128xf32>
    %cst_118 = arith.constant 1.000000e+00 : f32
    %462 = vector.broadcast %cst_118 : f32 to vector<8x128xf32>
    %463 = arith.addf %462, %461 : vector<8x128xf32>
    %464 = arith.divf %462, %463 : vector<8x128xf32>
    %465 = vector.shape_cast %11 : vector<1x128xi1> to vector<1x128xi1>
    %466 = vector.broadcast %465 : vector<1x128xi1> to vector<8x128xi1>
    %467 = arith.select %466, %459, %464 : vector<8x128xi1>, vector<8x128xf32>
    %468 = vector.extract_strided_slice %467 {offsets = [0, 0], sizes = [8, 32], strides = [1, 1]} : vector<8x128xf32> to vector<8x32xf32>
    %469 = vector.extract_strided_slice %467 {offsets = [0, 32], sizes = [8, 32], strides = [1, 1]} : vector<8x128xf32> to vector<8x32xf32>
    %470 = vector.extract_strided_slice %467 {offsets = [0, 64], sizes = [8, 32], strides = [1, 1]} : vector<8x128xf32> to vector<8x32xf32>
    %471 = vector.extract_strided_slice %467 {offsets = [0, 96], sizes = [8, 32], strides = [1, 1]} : vector<8x128xf32> to vector<8x32xf32>
    %472 = arith.mulf %469, %402 : vector<8x32xf32>
    %473 = arith.mulf %468, %470 : vector<8x32xf32>
    %474 = arith.addf %472, %473 : vector<8x32xf32>
    %475 = math.tanh %474 : vector<8x32xf32>
    %476 = arith.mulf %471, %475 : vector<8x32xf32>
    %477 = tpu.concatenate %476, %426 in 1 : vector<8x32xf32>, vector<8x32xf32> -> vector<8x64xf32>
    %cst_119 = arith.constant dense<0.000000e+00> : vector<8x128xf32>
    %478 = tpu.matmul %477, %3, %cst_119 {dimension_numbers = #tpu.dot_dimension_numbers<[1], [0], [0], [1], [0, 0, 1, 1], [], []>} : vector<8x64xf32>, vector<64x128xf32>, vector<8x128xf32> -> vector<8x128xf32>
    %479 = vector.broadcast %4 : vector<1x128xf32> to vector<8x128xf32>
    %480 = arith.addf %479, %478 : vector<8x128xf32>
    %481 = math.tanh %480 : vector<8x128xf32>
    %482 = arith.negf %480 : vector<8x128xf32>
    %483 = math.exp %482 : vector<8x128xf32>
    %cst_120 = arith.constant 1.000000e+00 : f32
    %484 = vector.broadcast %cst_120 : f32 to vector<8x128xf32>
    %485 = arith.addf %484, %483 : vector<8x128xf32>
    %486 = arith.divf %484, %485 : vector<8x128xf32>
    %487 = vector.shape_cast %11 : vector<1x128xi1> to vector<1x128xi1>
    %488 = vector.broadcast %487 : vector<1x128xi1> to vector<8x128xi1>
    %489 = arith.select %488, %481, %486 : vector<8x128xi1>, vector<8x128xf32>
    %490 = vector.extract_strided_slice %489 {offsets = [0, 0], sizes = [8, 32], strides = [1, 1]} : vector<8x128xf32> to vector<8x32xf32>
    %491 = vector.extract_strided_slice %489 {offsets = [0, 32], sizes = [8, 32], strides = [1, 1]} : vector<8x128xf32> to vector<8x32xf32>
    %492 = vector.extract_strided_slice %489 {offsets = [0, 64], sizes = [8, 32], strides = [1, 1]} : vector<8x128xf32> to vector<8x32xf32>
    %493 = vector.extract_strided_slice %489 {offsets = [0, 96], sizes = [8, 32], strides = [1, 1]} : vector<8x128xf32> to vector<8x32xf32>
    %494 = arith.mulf %491, %424 : vector<8x32xf32>
    %495 = arith.mulf %490, %492 : vector<8x32xf32>
    %496 = arith.addf %494, %495 : vector<8x32xf32>
    %497 = math.tanh %496 : vector<8x32xf32>
    %498 = arith.mulf %493, %497 : vector<8x32xf32>
    %499 = vector.shape_cast %498 : vector<8x32xf32> to vector<8x1x32xf32>
    "tpu.trace_start"() <{level = 10 : i32, message = "bqk,bsk->bqs"}> : () -> ()
    %cst_121 = arith.constant dense<0.000000e+00> : vector<8x1x8xf32>
    %500 = tpu.matmul %499, %1, %cst_121 {dimension_numbers = #tpu.dot_dimension_numbers<[2], [2], [1], [1], [0, 0, 0, 1, 1, 1], [0], [0]>} : vector<8x1x32xf32>, vector<8x8x32xf32>, vector<8x1x8xf32> -> vector<8x1x8xf32>
    "tpu.trace_stop"() : () -> ()
    %cst_122 = arith.constant dense<0xFF800000> : vector<8x1xf32>
    %501 = vector.multi_reduction <maximumf>, %500, %cst_122 [2] : vector<8x1x8xf32> to vector<8x1xf32>
    %502 = vector.shape_cast %501 : vector<8x1xf32> to vector<8x1x1xf32>
    %503 = vector.broadcast %502 : vector<8x1x1xf32> to vector<8x1x8xf32>
    %504 = arith.subf %500, %503 : vector<8x1x8xf32>
    %505 = math.exp %504 : vector<8x1x8xf32>
    %cst_123 = arith.constant dense<0.000000e+00> : vector<8x1xf32>
    %506 = vector.multi_reduction <add>, %505, %cst_123 [2] : vector<8x1x8xf32> to vector<8x1xf32>
    %507 = vector.shape_cast %506 : vector<8x1xf32> to vector<8x1x1xf32>
    %508 = tpu.reciprocal %507 {approx = true} : vector<8x1x1xf32> -> vector<8x1x1xf32>
    %509 = vector.broadcast %508 : vector<8x1x1xf32> to vector<8x1x8xf32>
    %510 = arith.mulf %505, %509 : vector<8x1x8xf32>
    "tpu.trace_start"() <{level = 10 : i32, message = "bqs,bsh->bqh"}> : () -> ()
    %cst_124 = arith.constant dense<0.000000e+00> : vector<8x1x32xf32>
    %511 = tpu.matmul %510, %0, %cst_124 {dimension_numbers = #tpu.dot_dimension_numbers<[2], [1], [1], [2], [0, 0, 0, 1, 1, 2], [0], [0]>} : vector<8x1x8xf32>, vector<8x8x32xf32>, vector<8x1x32xf32> -> vector<8x1x32xf32>
    "tpu.trace_stop"() : () -> ()
    %512 = vector.shape_cast %511 : vector<8x1x32xf32> to vector<8x32xf32>
    %513 = tpu.concatenate %512, %498 in 1 : vector<8x32xf32>, vector<8x32xf32> -> vector<8x64xf32>
    %cst_125 = arith.constant dense<0.000000e+00> : vector<8x32xf32>
    %514 = tpu.matmul %513, %5, %cst_125 {dimension_numbers = #tpu.dot_dimension_numbers<[1], [0], [0], [1], [0, 0, 1, 1], [], []>} : vector<8x64xf32>, vector<64x32xf32>, vector<8x32xf32> -> vector<8x32xf32>
    %515 = math.tanh %514 : vector<8x32xf32>
    %516 = arith.index_cast %c6_i32 : i32 to index
    %c0_126 = arith.constant 0 : index
    %c0_127 = arith.constant 0 : index
    %517 = vector.load %arg10[%516, %c0_126, %c0_127] : memref<8x8x32xf32, #tpu.memory_space<vmem>>, vector<1x8x32xf32>
    %518 = vector.shape_cast %517 : vector<1x8x32xf32> to vector<8x32xf32>
    %519 = vector.shape_cast %515 : vector<8x32xf32> to vector<1x8x32xf32>
    tpu.vector_store %arg10[%516, %c0_126, %c0_127], %519 {strides = array<i32>} : memref<8x8x32xf32, #tpu.memory_space<vmem>>, vector<1x8x32xf32>,
    %520 = vector.shape_cast %510 : vector<8x1x8xf32> to vector<8x8xf32>
    %521 = arith.index_cast %c6_i32 : i32 to index
    %c0_128 = arith.constant 0 : index
    %c0_129 = arith.constant 0 : index
    %522 = vector.load %arg11[%521, %c0_128, %c0_129] : memref<8x8x8xf32, #tpu.memory_space<vmem>>, vector<1x8x8xf32>
    %523 = vector.shape_cast %522 : vector<1x8x8xf32> to vector<8x8xf32>
    %524 = vector.shape_cast %520 : vector<8x8xf32> to vector<1x8x8xf32>
    tpu.vector_store %arg11[%521, %c0_128, %c0_129], %524 {strides = array<i32>} : memref<8x8x8xf32, #tpu.memory_space<vmem>>, vector<1x8x8xf32>,
    %c7_i32 = arith.constant 7 : i32
    %525 = arith.index_cast %c7_i32 : i32 to index
    %c0_130 = arith.constant 0 : index
    %c0_131 = arith.constant 0 : index
    %526 = vector.load %arg0[%525, %c0_130, %c0_131] : memref<8x8x128xf32, #tpu.memory_space<vmem>>, vector<1x8x128xf32>
    %527 = vector.shape_cast %526 : vector<1x8x128xf32> to vector<8x128xf32>
    %528 = tpu.concatenate %515, %476 in 1 : vector<8x32xf32>, vector<8x32xf32> -> vector<8x64xf32>
    %cst_132 = arith.constant dense<0.000000e+00> : vector<8x128xf32>
    %529 = tpu.matmul %528, %2, %cst_132 {dimension_numbers = #tpu.dot_dimension_numbers<[1], [0], [0], [1], [0, 0, 1, 1], [], []>} : vector<8x64xf32>, vector<64x128xf32>, vector<8x128xf32> -> vector<8x128xf32>
    %530 = arith.addf %527, %529 : vector<8x128xf32>
    %531 = math.tanh %530 : vector<8x128xf32>
    %532 = arith.negf %530 : vector<8x128xf32>
    %533 = math.exp %532 : vector<8x128xf32>
    %cst_133 = arith.constant 1.000000e+00 : f32
    %534 = vector.broadcast %cst_133 : f32 to vector<8x128xf32>
    %535 = arith.addf %534, %533 : vector<8x128xf32>
    %536 = arith.divf %534, %535 : vector<8x128xf32>
    %537 = vector.shape_cast %11 : vector<1x128xi1> to vector<1x128xi1>
    %538 = vector.broadcast %537 : vector<1x128xi1> to vector<8x128xi1>
    %539 = arith.select %538, %531, %536 : vector<8x128xi1>, vector<8x128xf32>
    %540 = vector.extract_strided_slice %539 {offsets = [0, 0], sizes = [8, 32], strides = [1, 1]} : vector<8x128xf32> to vector<8x32xf32>
    %541 = vector.extract_strided_slice %539 {offsets = [0, 32], sizes = [8, 32], strides = [1, 1]} : vector<8x128xf32> to vector<8x32xf32>
    %542 = vector.extract_strided_slice %539 {offsets = [0, 64], sizes = [8, 32], strides = [1, 1]} : vector<8x128xf32> to vector<8x32xf32>
    %543 = vector.extract_strided_slice %539 {offsets = [0, 96], sizes = [8, 32], strides = [1, 1]} : vector<8x128xf32> to vector<8x32xf32>
    %544 = arith.mulf %541, %474 : vector<8x32xf32>
    %545 = arith.mulf %540, %542 : vector<8x32xf32>
    %546 = arith.addf %544, %545 : vector<8x32xf32>
    %547 = math.tanh %546 : vector<8x32xf32>
    %548 = arith.mulf %543, %547 : vector<8x32xf32>
    %549 = tpu.concatenate %548, %498 in 1 : vector<8x32xf32>, vector<8x32xf32> -> vector<8x64xf32>
    %cst_134 = arith.constant dense<0.000000e+00> : vector<8x128xf32>
    %550 = tpu.matmul %549, %3, %cst_134 {dimension_numbers = #tpu.dot_dimension_numbers<[1], [0], [0], [1], [0, 0, 1, 1], [], []>} : vector<8x64xf32>, vector<64x128xf32>, vector<8x128xf32> -> vector<8x128xf32>
    %551 = vector.broadcast %4 : vector<1x128xf32> to vector<8x128xf32>
    %552 = arith.addf %551, %550 : vector<8x128xf32>
    %553 = math.tanh %552 : vector<8x128xf32>
    %554 = arith.negf %552 : vector<8x128xf32>
    %555 = math.exp %554 : vector<8x128xf32>
    %cst_135 = arith.constant 1.000000e+00 : f32
    %556 = vector.broadcast %cst_135 : f32 to vector<8x128xf32>
    %557 = arith.addf %556, %555 : vector<8x128xf32>
    %558 = arith.divf %556, %557 : vector<8x128xf32>
    %559 = vector.shape_cast %11 : vector<1x128xi1> to vector<1x128xi1>
    %560 = vector.broadcast %559 : vector<1x128xi1> to vector<8x128xi1>
    %561 = arith.select %560, %553, %558 : vector<8x128xi1>, vector<8x128xf32>
    %562 = vector.extract_strided_slice %561 {offsets = [0, 0], sizes = [8, 32], strides = [1, 1]} : vector<8x128xf32> to vector<8x32xf32>
    %563 = vector.extract_strided_slice %561 {offsets = [0, 32], sizes = [8, 32], strides = [1, 1]} : vector<8x128xf32> to vector<8x32xf32>
    %564 = vector.extract_strided_slice %561 {offsets = [0, 64], sizes = [8, 32], strides = [1, 1]} : vector<8x128xf32> to vector<8x32xf32>
    %565 = vector.extract_strided_slice %561 {offsets = [0, 96], sizes = [8, 32], strides = [1, 1]} : vector<8x128xf32> to vector<8x32xf32>
    %566 = arith.mulf %563, %496 : vector<8x32xf32>
    %567 = arith.mulf %562, %564 : vector<8x32xf32>
    %568 = arith.addf %566, %567 : vector<8x32xf32>
    %569 = math.tanh %568 : vector<8x32xf32>
    %570 = arith.mulf %565, %569 : vector<8x32xf32>
    %571 = vector.shape_cast %570 : vector<8x32xf32> to vector<8x1x32xf32>
    "tpu.trace_start"() <{level = 10 : i32, message = "bqk,bsk->bqs"}> : () -> ()
    %cst_136 = arith.constant dense<0.000000e+00> : vector<8x1x8xf32>
    %572 = tpu.matmul %571, %1, %cst_136 {dimension_numbers = #tpu.dot_dimension_numbers<[2], [2], [1], [1], [0, 0, 0, 1, 1, 1], [0], [0]>} : vector<8x1x32xf32>, vector<8x8x32xf32>, vector<8x1x8xf32> -> vector<8x1x8xf32>
    "tpu.trace_stop"() : () -> ()
    %cst_137 = arith.constant dense<0xFF800000> : vector<8x1xf32>
    %573 = vector.multi_reduction <maximumf>, %572, %cst_137 [2] : vector<8x1x8xf32> to vector<8x1xf32>
    %574 = vector.shape_cast %573 : vector<8x1xf32> to vector<8x1x1xf32>
    %575 = vector.broadcast %574 : vector<8x1x1xf32> to vector<8x1x8xf32>
    %576 = arith.subf %572, %575 : vector<8x1x8xf32>
    %577 = math.exp %576 : vector<8x1x8xf32>
    %cst_138 = arith.constant dense<0.000000e+00> : vector<8x1xf32>
    %578 = vector.multi_reduction <add>, %577, %cst_138 [2] : vector<8x1x8xf32> to vector<8x1xf32>
    %579 = vector.shape_cast %578 : vector<8x1xf32> to vector<8x1x1xf32>
    %580 = tpu.reciprocal %579 {approx = true} : vector<8x1x1xf32> -> vector<8x1x1xf32>
    %581 = vector.broadcast %580 : vector<8x1x1xf32> to vector<8x1x8xf32>
    %582 = arith.mulf %577, %581 : vector<8x1x8xf32>
    "tpu.trace_start"() <{level = 10 : i32, message = "bqs,bsh->bqh"}> : () -> ()
    %cst_139 = arith.constant dense<0.000000e+00> : vector<8x1x32xf32>
    %583 = tpu.matmul %582, %0, %cst_139 {dimension_numbers = #tpu.dot_dimension_numbers<[2], [1], [1], [2], [0, 0, 0, 1, 1, 2], [0], [0]>} : vector<8x1x8xf32>, vector<8x8x32xf32>, vector<8x1x32xf32> -> vector<8x1x32xf32>
    "tpu.trace_stop"() : () -> ()
    %584 = vector.shape_cast %583 : vector<8x1x32xf32> to vector<8x32xf32>
    %585 = tpu.concatenate %584, %570 in 1 : vector<8x32xf32>, vector<8x32xf32> -> vector<8x64xf32>
    %cst_140 = arith.constant dense<0.000000e+00> : vector<8x32xf32>
    %586 = tpu.matmul %585, %5, %cst_140 {dimension_numbers = #tpu.dot_dimension_numbers<[1], [0], [0], [1], [0, 0, 1, 1], [], []>} : vector<8x64xf32>, vector<64x32xf32>, vector<8x32xf32> -> vector<8x32xf32>
    %587 = math.tanh %586 : vector<8x32xf32>
    %588 = arith.index_cast %c7_i32 : i32 to index
    %c0_141 = arith.constant 0 : index
    %c0_142 = arith.constant 0 : index
    %589 = vector.load %arg10[%588, %c0_141, %c0_142] : memref<8x8x32xf32, #tpu.memory_space<vmem>>, vector<1x8x32xf32>
    %590 = vector.shape_cast %589 : vector<1x8x32xf32> to vector<8x32xf32>
    %591 = vector.shape_cast %587 : vector<8x32xf32> to vector<1x8x32xf32>
    tpu.vector_store %arg10[%588, %c0_141, %c0_142], %591 {strides = array<i32>} : memref<8x8x32xf32, #tpu.memory_space<vmem>>, vector<1x8x32xf32>,
    %592 = vector.shape_cast %582 : vector<8x1x8xf32> to vector<8x8xf32>
    %593 = arith.index_cast %c7_i32 : i32 to index
    %c0_143 = arith.constant 0 : index
    %c0_144 = arith.constant 0 : index
    %594 = vector.load %arg11[%593, %c0_143, %c0_144] : memref<8x8x8xf32, #tpu.memory_space<vmem>>, vector<1x8x8xf32>
    %595 = vector.shape_cast %594 : vector<1x8x8xf32> to vector<8x8xf32>
    %596 = vector.shape_cast %592 : vector<8x8xf32> to vector<1x8x8xf32>
    tpu.vector_store %arg11[%593, %c0_143, %c0_144], %596 {strides = array<i32>} : memref<8x8x8xf32, #tpu.memory_space<vmem>>, vector<1x8x8xf32>,
    %c8_i32 = arith.constant 8 : i32
    %c0_145 = arith.constant 0 : index
    %c0_146 = arith.constant 0 : index
    %c0_147 = arith.constant 0 : index
    %597 = vector.load %arg12[%c0_145, %c0_146, %c0_147] : memref<2x8x32xf32, #tpu.memory_space<vmem>>, vector<1x8x32xf32>
    %598 = vector.shape_cast %597 : vector<1x8x32xf32> to vector<8x32xf32>
    %599 = vector.shape_cast %548 : vector<8x32xf32> to vector<1x8x32xf32>
    tpu.vector_store %arg12[%c0_145, %c0_146, %c0_147], %599 {strides = array<i32>} : memref<2x8x32xf32, #tpu.memory_space<vmem>>, vector<1x8x32xf32>,
    %c1_148 = arith.constant 1 : index
    %c0_149 = arith.constant 0 : index
    %c0_150 = arith.constant 0 : index
    %600 = vector.load %arg12[%c1_148, %c0_149, %c0_150] : memref<2x8x32xf32, #tpu.memory_space<vmem>>, vector<1x8x32xf32>
    %601 = vector.shape_cast %600 : vector<1x8x32xf32> to vector<8x32xf32>
    %602 = vector.shape_cast %570 : vector<8x32xf32> to vector<1x8x32xf32>
    tpu.vector_store %arg12[%c1_148, %c0_149, %c0_150], %602 {strides = array<i32>} : memref<2x8x32xf32, #tpu.memory_space<vmem>>, vector<1x8x32xf32>,
    %c0_151 = arith.constant 0 : index
    %c0_152 = arith.constant 0 : index
    %c0_153 = arith.constant 0 : index
    %603 = vector.load %arg13[%c0_151, %c0_152, %c0_153] : memref<2x8x32xf32, #tpu.memory_space<vmem>>, vector<1x8x32xf32>
    %604 = vector.shape_cast %603 : vector<1x8x32xf32> to vector<8x32xf32>
    %605 = vector.shape_cast %546 : vector<8x32xf32> to vector<1x8x32xf32>
    tpu.vector_store %arg13[%c0_151, %c0_152, %c0_153], %605 {strides = array<i32>} : memref<2x8x32xf32, #tpu.memory_space<vmem>>, vector<1x8x32xf32>,
    %c1_154 = arith.constant 1 : index
    %c0_155 = arith.constant 0 : index
    %c0_156 = arith.constant 0 : index
    %606 = vector.load %arg13[%c1_154, %c0_155, %c0_156] : memref<2x8x32xf32, #tpu.memory_space<vmem>>, vector<1x8x32xf32>
    %607 = vector.shape_cast %606 : vector<1x8x32xf32> to vector<8x32xf32>
    %608 = vector.shape_cast %568 : vector<8x32xf32> to vector<1x8x32xf32>
    tpu.vector_store %arg13[%c1_154, %c0_155, %c0_156], %608 {strides = array<i32>} : memref<2x8x32xf32, #tpu.memory_space<vmem>>, vector<1x8x32xf32>,
    return
  }
}

</mosaic_0001>

<llo_original>
// kernel: decoder_forward.1
$region0: #{decoder_forward.1}
  #allocation0 [shape = 'u32[]', space=smem, size = 0x4, offset = 0x4, fixed_abs, tag = 'smem constant byte address 0x4 - core index']
  #allocation1 [shape = 'u32[72,128]{1,0:T(1,128)}', space=vmem, size = 0x9000, scoped, tag = 'internal scratch']
  %s0 = inlined_call_operand.vmem [shape: f32[8,8,128], index: 0, kind: input, shape index: {}]
  %s1 = inlined_call_operand.vmem [shape: f32[8,8,32], index: 1, kind: input, shape index: {}]
  %s2 = inlined_call_operand.vmem [shape: f32[8,8,32], index: 2, kind: input, shape index: {}]
  %s3 = inlined_call_operand.vmem [shape: f32[2,8,32], index: 3, kind: input, shape index: {}]
  %s4 = inlined_call_operand.vmem [shape: f32[2,8,32], index: 4, kind: input, shape index: {}]
  %s5 = inlined_call_operand.vmem [shape: f32[8,32], index: 5, kind: input, shape index: {}]
  %s6 = inlined_call_operand.vmem [shape: f32[64,128], index: 6, kind: input, shape index: {}]
  %s7 = inlined_call_operand.vmem [shape: f32[64,128], index: 7, kind: input, shape index: {}]
  %s8 = inlined_call_operand.vmem [shape: f32[1,128], index: 8, kind: input, shape index: {}]
  %s9 = inlined_call_operand.vmem [shape: f32[64,32], index: 9, kind: input, shape index: {}]
  %s10 = inlined_call_operand.vmem [shape: f32[8,8,32], index: 10, kind: output, shape index: {0}]
  %s11 = inlined_call_operand.vmem [shape: f32[8,8,8], index: 11, kind: output, shape index: {1}]
  %s12 = inlined_call_operand.vmem [shape: f32[2,8,32], index: 12, kind: output, shape index: {2}]
  %s13 = inlined_call_operand.vmem [shape: f32[2,8,32], index: 13, kind: output, shape index: {3}]
  %14 = xla_tuple %s10, %s11, %s12, %s13
  %s15 = sld [smem:[#allocation0]]
  $region74: #{decoder_forward.1} parent=0
    _
  %s17 = ssub.s32 1, %s15
  %s18 = scalar_select 0, %s17, %s15
  // Predicated region
  $region2: #{decoder_forward.1} parent=0 // pred_check
    _
  $region3: #{decoder_forward.1} parent=0 // pred_check_branch
    %20 = sbr.rel (0) target = $region5
  $region4: #{decoder_forward.1} parent=0 // pred_region
    _
  $region5: #{decoder_forward.1} parent=0 // pred_fallthru
    _
  // Predicated region
  $region6: #{decoder_forward.1} parent=0 // pred_check
    _
  $region7: #{decoder_forward.1} parent=0 // pred_check_branch
    %22 = sbr.rel (0) target = $region9
  $region8: #{decoder_forward.1} parent=0 // pred_region
    _
  $region9: #{decoder_forward.1} parent=0 // pred_fallthru
    _
  // Predicated region
  $region10: #{decoder_forward.1} parent=0 // pred_check
    _
  $region11: #{decoder_forward.1} parent=0 // pred_check_branch
    %24 = sbr.rel (0) target = $region13
  $region12: #{decoder_forward.1} parent=0 // pred_region
    _
  $region13: #{decoder_forward.1} parent=0 // pred_fallthru
    _
  // Predicated region
  $region14: #{decoder_forward.1} parent=0 // pred_check
    _
  $region15: #{decoder_forward.1} parent=0 // pred_check_branch
    %26 = sbr.rel (0) target = $region17
  $region16: #{decoder_forward.1} parent=0 // pred_region
    _
  $region17: #{decoder_forward.1} parent=0 // pred_fallthru
    _
  // Predicated region
  $region18: #{decoder_forward.1} parent=0 // pred_check
    _
  $region19: #{decoder_forward.1} parent=0 // pred_check_branch
    %28 = sbr.rel (0) target = $region21
  $region20: #{decoder_forward.1} parent=0 // pred_region
    _
  $region21: #{decoder_forward.1} parent=0 // pred_fallthru
    _
  // Predicated region
  $region22: #{decoder_forward.1} parent=0 // pred_check
    _
  $region23: #{decoder_forward.1} parent=0 // pred_check_branch
    %30 = sbr.rel (0) target = $region25
  $region24: #{decoder_forward.1} parent=0 // pred_region
    _
  $region25: #{decoder_forward.1} parent=0 // pred_fallthru
    _
  // Predicated region
  $region26: #{decoder_forward.1} parent=0 // pred_check
    _
  $region27: #{decoder_forward.1} parent=0 // pred_check_branch
    %32 = sbr.rel (0) target = $region29
  $region28: #{decoder_forward.1} parent=0 // pred_region
    _
  $region29: #{decoder_forward.1} parent=0 // pred_fallthru
    _
  // Predicated region
  $region30: #{decoder_forward.1} parent=0 // pred_check
    _
  $region31: #{decoder_forward.1} parent=0 // pred_check_branch
    %34 = sbr.rel (0) target = $region33
  $region32: #{decoder_forward.1} parent=0 // pred_region
    _
  $region33: #{decoder_forward.1} parent=0 // pred_fallthru
    _
  // Predicated region
  $region34: #{decoder_forward.1} parent=0 // pred_check
    _
  $region35: #{decoder_forward.1} parent=0 // pred_check_branch
    %36 = sbr.rel (0) target = $region37
  $region36: #{decoder_forward.1} parent=0 // pred_region
    _
  $region37: #{decoder_forward.1} parent=0 // pred_fallthru
    _
  // Predicated region
  $region38: #{decoder_forward.1} parent=0 // pred_check
    _
  $region39: #{decoder_forward.1} parent=0 // pred_check_branch
    %38 = sbr.rel (0) target = $region41
  $region40: #{decoder_forward.1} parent=0 // pred_region
    _
  $region41: #{decoder_forward.1} parent=0 // pred_fallthru
    _
  %v39 = vld [vmem:[%s1] sm:$0xff]
  %v40 = vld [vmem:[%s1 + $0x8] sm:$0xff]
  %v41 = vld [vmem:[%s1 + $0x10] sm:$0xff]
  %v42 = vld [vmem:[%s1 + $0x18] sm:$0xff]
  %v43 = vld [vmem:[%s1 + $0x20] sm:$0xff]
  %v44 = vld [vmem:[%s1 + $0x28] sm:$0xff]
  %v45 = vld [vmem:[%s1 + $0x30] sm:$0xff]
  %v46 = vld [vmem:[%s1 + $0x38] sm:$0xff]
  %v47 = vld [vmem:[%s2] sm:$0xff]
  %v48 = vld [vmem:[%s2 + $0x8] sm:$0xff]
  %v49 = vld [vmem:[%s2 + $0x10] sm:$0xff]
  %v50 = vld [vmem:[%s2 + $0x18] sm:$0xff]
  %v51 = vld [vmem:[%s2 + $0x20] sm:$0xff]
  %v52 = vld [vmem:[%s2 + $0x28] sm:$0xff]
  %v53 = vld [vmem:[%s2 + $0x30] sm:$0xff]
  %v54 = vld [vmem:[%s2 + $0x38] sm:$0xff]
  %v55 = vld [vmem:[%s6] sm:$0xff]
  %v56 = vld [vmem:[%s6 + $0x8] sm:$0xff]
  %v57 = vld [vmem:[%s6 + $0x10] sm:$0xff]
  %v58 = vld [vmem:[%s6 + $0x18] sm:$0xff]
  %v59 = vld [vmem:[%s6 + $0x20] sm:$0xff]
  %v60 = vld [vmem:[%s6 + $0x28] sm:$0xff]
  %v61 = vld [vmem:[%s6 + $0x30] sm:$0xff]
  %v62 = vld [vmem:[%s6 + $0x38] sm:$0xff]
  %v63 = vld [vmem:[%s7] sm:$0xff]
  %v64 = vld [vmem:[%s7 + $0x8] sm:$0xff]
  %v65 = vld [vmem:[%s7 + $0x10] sm:$0xff]
  %v66 = vld [vmem:[%s7 + $0x18] sm:$0xff]
  %v67 = vld [vmem:[%s7 + $0x20] sm:$0xff]
  %v68 = vld [vmem:[%s7 + $0x28] sm:$0xff]
  %v69 = vld [vmem:[%s7 + $0x30] sm:$0xff]
  %v70 = vld [vmem:[%s7 + $0x38] sm:$0xff]
  %v71 = vld [vmem:[%s8] sm:$0x1]
  %v72 = vld [vmem:[%s9] sm:$0xff]
  %v73 = vld [vmem:[%s9 + $0x8] sm:$0xff]
  %v74 = vld [vmem:[%s9 + $0x10] sm:$0xff]
  %v75 = vld [vmem:[%s9 + $0x18] sm:$0xff]
  %v76 = vld [vmem:[%s9 + $0x20] sm:$0xff]
  %v77 = vld [vmem:[%s9 + $0x28] sm:$0xff]
  %v78 = vld [vmem:[%s9 + $0x30] sm:$0xff]
  %v79 = vld [vmem:[%s9 + $0x38] sm:$0xff]
  %v80 = vlaneseq
  %v81 = vand.u32 %v80, 127
  %vm82 = vcmp.ge.s32.totalorder %v81, 64
  %vm83 = vcmp.lt.s32.totalorder %v81, 96
  %vm84 = vmand %vm82, %vm83
  %v85 = vld [vmem:[%s3] sm:$0xff]
  %v86 = vld [vmem:[%s4] sm:$0xff]
  %s87 = scalar_lea.vmem %s3, 8
  %v88 = vld [vmem:[%s87] sm:$0xff]
  %s89 = scalar_lea.vmem %s4, 8
  %v90 = vld [vmem:[%s89] sm:$0xff]
  %v91 = vld [vmem:[%s5] sm:$0xff]
  %v92 = vld [vmem:[%s0] sm:$0xff]
  %94 = vrot.lane.b32.xlu0 %v85, 32
  %v95 = vpop.permute.xlu0 %94
  %vm97 = vcmask 261120
  %v98 = vsel %vm97, %v91, %v95
  %vm99 = vcmask 523264
  %v101 = vsel %vm99, %v98, 0
  %103 = vmatpush.msra.mxu0 0.0
  %104 = vmatpush.msra.mxu0 0.0
  %105 = vmatpush.msra.mxu0 0.0
  %106 = vmatpush.msra.mxu0 0.0
  %107 = vmatpush.msra.mxu0 0.0
  %108 = vmatpush.msra.mxu0 0.0
  %109 = vmatpush.msra.mxu0 0.0
  %110 = vmatpush.msra.mxu0 0.0
  %111 = vmatpush.msra.mxu0 %v62
  %112 = vmatpush.msra.mxu0 %v61
  %113 = vmatpush.msra.mxu0 %v60
  %114 = vmatpush.msra.mxu0 %v59
  %115 = vmatpush.msra.mxu0 %v58
  %116 = vmatpush.msra.mxu0 %v57
  %117 = vmatpush.msra.mxu0 %v56
  %118 = vmatpush.msra.mxu0 %v55
  %119 = vmatmul.f32.gmra.mxu0 %v101
  %v120 = vpop.f32.mrf.mxu0
  %v121 = vadd.f32 0.0, %v120
  %122 = vdwg.mxu0
  %v123 = vadd.f32 %v92, %v121
  %v124 = vtanh.pop %v123
  %v125 = vxor.u32 %v123, 2147483648
  %v126 = vmul.f32 %v125, 1.442695
  %v127 = vpow.pop %v126
  %v128 = vadd.f32 %v127, 1.0
  %v129 = vrcp.pop %v128
  %v130 = vmul.f32 %v128, %v129
  %v131 = vsub.f32 1.0, %v130
  %v132 = vmul.f32 %v129, %v131
  %v133 = vadd.f32 %v129, %v132
  %vm134 = vweird.f32 %v128
  %vm135 = vweird.f32 %v129
  %vm136 = vmor %vm134, %vm135
  %v137 = vsel %vm136, %v129, %v133
  %v138 = vand.u32 2147483647, %v128
  %vm139 = vcmp.eq.f32.partialorder %v138, 8.507059e+37
  %v140 = vand.u32 %v128, 2147483648
  %v141 = vor.u32 1.1754944e-38, %v140
  %v142 = vsel %vm139, %v141, %v137
  %v143 = vmul.f32 1.0, %v142
  %v144 = vsel %vm84, 1, 0
  %vm145 = vcmp.eq.s32.totalorder %v144, 1
  %v146 = vsel %vm145, %v124, %v143
  %148 = vrot.lane.b32.xlu0 %v86, 32
  %v149 = vpop.permute.xlu0 %148
  %v151 = vmul.f32 %v146, %v149
  %153 = vrot.lane.b32.xlu0 %v146, 64
  %v154 = vpop.permute.xlu0 %153
  %v156 = vmul.f32 %v146, %v154
  %158 = vrot.lane.b32.xlu0 %v156, 32
  %v159 = vpop.permute.xlu0 %158
  %v161 = vadd.f32 %v151, %v159
  %v162 = vtanh.pop %v161
  %164 = vrot.lane.b32.xlu0 %v162, 64
  %v165 = vpop.permute.xlu0 %164
  %v167 = vmul.f32 %v146, %v165
  %169 = vrot.lane.b32.xlu0 %v167, 32
  %v170 = vpop.permute.xlu0 %169
  %173 = vrot.lane.b32.xlu0 %v88, 32
  %v174 = vpop.permute.xlu0 %173
  %v176 = vsel %vm97, %v170, %v174
  %v178 = vsel %vm99, %v176, 0
  %180 = vmatpush.msra.mxu0 0.0
  %181 = vmatpush.msra.mxu0 0.0
  %182 = vmatpush.msra.mxu0 0.0
  %183 = vmatpush.msra.mxu0 0.0
  %184 = vmatpush.msra.mxu0 0.0
  %185 = vmatpush.msra.mxu0 0.0
  %186 = vmatpush.msra.mxu0 0.0
  %187 = vmatpush.msra.mxu0 0.0
  %188 = vmatpush.msra.mxu0 %v70
  %189 = vmatpush.msra.mxu0 %v69
  %190 = vmatpush.msra.mxu0 %v68
  %191 = vmatpush.msra.mxu0 %v67
  %192 = vmatpush.msra.mxu0 %v66
  %193 = vmatpush.msra.mxu0 %v65
  %194 = vmatpush.msra.mxu0 %v64
  %195 = vmatpush.msra.mxu0 %v63
  %196 = vmatmul.f32.gmra.mxu0 %v178
  %v197 = vpop.f32.mrf.mxu0
  %v198 = vadd.f32 0.0, %v197
  %199 = vdwg.mxu0
  %v201 = vperm.slane %v71, 0
  %v203 = vadd.f32 %v201, %v198
  %v204 = vtanh.pop %v203
  %v205 = vxor.u32 %v203, 2147483648
  %v206 = vmul.f32 %v205, 1.442695
  %v207 = vpow.pop %v206
  %v208 = vadd.f32 %v207, 1.0
  %v209 = vrcp.pop %v208
  %v210 = vmul.f32 %v208, %v209
  %v211 = vsub.f32 1.0, %v210
  %v212 = vmul.f32 %v209, %v211
  %v213 = vadd.f32 %v209, %v212
  %vm214 = vweird.f32 %v208
  %vm215 = vweird.f32 %v209
  %vm216 = vmor %vm214, %vm215
  %v217 = vsel %vm216, %v209, %v213
  %v218 = vand.u32 2147483647, %v208
  %vm219 = vcmp.eq.f32.partialorder %v218, 8.507059e+37
  %v220 = vand.u32 %v208, 2147483648
  %v221 = vor.u32 1.1754944e-38, %v220
  %v222 = vsel %vm219, %v221, %v217
  %v223 = vmul.f32 1.0, %v222
  %v224 = vsel %vm145, %v204, %v223
  %226 = vrot.lane.b32.xlu0 %v90, 32
  %v227 = vpop.permute.xlu0 %226
  %v229 = vmul.f32 %v224, %v227
  %231 = vrot.lane.b32.xlu0 %v224, 64
  %v232 = vpop.permute.xlu0 %231
  %v234 = vmul.f32 %v224, %v232
  %236 = vrot.lane.b32.xlu0 %v234, 32
  %v237 = vpop.permute.xlu0 %236
  %v239 = vadd.f32 %v229, %v237
  %v240 = vtanh.pop %v239
  %242 = vrot.lane.b32.xlu0 %v240, 64
  %v243 = vpop.permute.xlu0 %242
  %v245 = vmul.f32 %v224, %v243
  %v247 = vrot.slane %v245, 1
  %v248 = vrot.slane %v245, 2
  %v249 = vrot.slane %v245, 3
  %v250 = vrot.slane %v245, 4
  %v251 = vrot.slane %v245, 5
  %v252 = vrot.slane %v245, 6
  %v253 = vrot.slane %v245, 7
  %v254 = vperm.slane %v245, 0
  %255 = vrot.lane.b32.xlu0 %v254, 32
  %v256 = vpop.permute.xlu0 %255
  %v257 = vsel %vm97, %v256, 0
  %v260 = vsel %vm97, %v47, 0
  %262 = vmatpush.xpose.msra.mxu0 0.0
  %263 = vmatpush.xpose.msra.mxu0 0.0
  %264 = vmatpush.xpose.msra.mxu0 0.0
  %265 = vmatpush.xpose.msra.mxu0 0.0
  %266 = vmatpush.xpose.msra.mxu0 0.0
  %267 = vmatpush.xpose.msra.mxu0 0.0
  %268 = vmatpush.xpose.msra.mxu0 0.0
  %269 = vmatpush.xpose.msra.mxu0 0.0
  %270 = vmatpush.xpose.msra.mxu0 0.0
  %271 = vmatpush.xpose.msra.mxu0 0.0
  %272 = vmatpush.xpose.msra.mxu0 0.0
  %273 = vmatpush.xpose.msra.mxu0 0.0
  %274 = vmatpush.xpose.msra.mxu0 0.0
  %275 = vmatpush.xpose.msra.mxu0 0.0
  %276 = vmatpush.xpose.msra.mxu0 0.0
  %277 = vmatpush.xpose.msra.mxu0 %v260
  %278 = vmatmul.f32.gmra.mxu0 %v257
  %v279 = vpop.f32.mrf.mxu0
  %v280 = vadd.f32 0.0, %v279
  %281 = vdwg.mxu0
  %v282 = vperm.slane %v247, 0
  %283 = vrot.lane.b32.xlu0 %v282, 32
  %v284 = vpop.permute.xlu0 %283
  %v285 = vsel %vm97, %v284, 0
  %v288 = vsel %vm97, %v48, 0
  %290 = vmatpush.xpose.msra.mxu0 0.0
  %291 = vmatpush.xpose.msra.mxu0 0.0
  %292 = vmatpush.xpose.msra.mxu0 0.0
  %293 = vmatpush.xpose.msra.mxu0 0.0
  %294 = vmatpush.xpose.msra.mxu0 0.0
  %295 = vmatpush.xpose.msra.mxu0 0.0
  %296 = vmatpush.xpose.msra.mxu0 0.0
  %297 = vmatpush.xpose.msra.mxu0 0.0
  %298 = vmatpush.xpose.msra.mxu0 0.0
  %299 = vmatpush.xpose.msra.mxu0 0.0
  %300 = vmatpush.xpose.msra.mxu0 0.0
  %301 = vmatpush.xpose.msra.mxu0 0.0
  %302 = vmatpush.xpose.msra.mxu0 0.0
  %303 = vmatpush.xpose.msra.mxu0 0.0
  %304 = vmatpush.xpose.msra.mxu0 0.0
  %305 = vmatpush.xpose.msra.mxu0 %v288
  %306 = vmatmul.f32.gmra.mxu0 %v285
  %v307 = vpop.f32.mrf.mxu0
  %v308 = vadd.f32 0.0, %v307
  %309 = vdwg.mxu0
  %v310 = vperm.slane %v248, 0
  %311 = vrot.lane.b32.xlu0 %v310, 32
  %v312 = vpop.permute.xlu0 %311
  %v313 = vsel %vm97, %v312, 0
  %v316 = vsel %vm97, %v49, 0
  %318 = vmatpush.xpose.msra.mxu0 0.0
  %319 = vmatpush.xpose.msra.mxu0 0.0
  %320 = vmatpush.xpose.msra.mxu0 0.0
  %321 = vmatpush.xpose.msra.mxu0 0.0
  %322 = vmatpush.xpose.msra.mxu0 0.0
  %323 = vmatpush.xpose.msra.mxu0 0.0
  %324 = vmatpush.xpose.msra.mxu0 0.0
  %325 = vmatpush.xpose.msra.mxu0 0.0
  %326 = vmatpush.xpose.msra.mxu0 0.0
  %327 = vmatpush.xpose.msra.mxu0 0.0
  %328 = vmatpush.xpose.msra.mxu0 0.0
  %329 = vmatpush.xpose.msra.mxu0 0.0
  %330 = vmatpush.xpose.msra.mxu0 0.0
  %331 = vmatpush.xpose.msra.mxu0 0.0
  %332 = vmatpush.xpose.msra.mxu0 0.0
  %333 = vmatpush.xpose.msra.mxu0 %v316
  %334 = vmatmul.f32.gmra.mxu0 %v313
  %v335 = vpop.f32.mrf.mxu0
  %v336 = vadd.f32 0.0, %v335
  %337 = vdwg.mxu0
  %v338 = vperm.slane %v249, 0
  %339 = vrot.lane.b32.xlu0 %v338, 32
  %v340 = vpop.permute.xlu0 %339
  %v341 = vsel %vm97, %v340, 0
  %v344 = vsel %vm97, %v50, 0
  %346 = vmatpush.xpose.msra.mxu0 0.0
  %347 = vmatpush.xpose.msra.mxu0 0.0
  %348 = vmatpush.xpose.msra.mxu0 0.0
  %349 = vmatpush.xpose.msra.mxu0 0.0
  %350 = vmatpush.xpose.msra.mxu0 0.0
  %351 = vmatpush.xpose.msra.mxu0 0.0
  %352 = vmatpush.xpose.msra.mxu0 0.0
  %353 = vmatpush.xpose.msra.mxu0 0.0
  %354 = vmatpush.xpose.msra.mxu0 0.0
  %355 = vmatpush.xpose.msra.mxu0 0.0
  %356 = vmatpush.xpose.msra.mxu0 0.0
  %357 = vmatpush.xpose.msra.mxu0 0.0
  %358 = vmatpush.xpose.msra.mxu0 0.0
  %359 = vmatpush.xpose.msra.mxu0 0.0
  %360 = vmatpush.xpose.msra.mxu0 0.0
  %361 = vmatpush.xpose.msra.mxu0 %v344
  %362 = vmatmul.f32.gmra.mxu0 %v341
  %v363 = vpop.f32.mrf.mxu0
  %v364 = vadd.f32 0.0, %v363
  %365 = vdwg.mxu0
  %v366 = vperm.slane %v250, 0
  %367 = vrot.lane.b32.xlu0 %v366, 32
  %v368 = vpop.permute.xlu0 %367
  %v369 = vsel %vm97, %v368, 0
  %v372 = vsel %vm97, %v51, 0
  %374 = vmatpush.xpose.msra.mxu0 0.0
  %375 = vmatpush.xpose.msra.mxu0 0.0
  %376 = vmatpush.xpose.msra.mxu0 0.0
  %377 = vmatpush.xpose.msra.mxu0 0.0
  %378 = vmatpush.xpose.msra.mxu0 0.0
  %379 = vmatpush.xpose.msra.mxu0 0.0
  %380 = vmatpush.xpose.msra.mxu0 0.0
  %381 = vmatpush.xpose.msra.mxu0 0.0
  %382 = vmatpush.xpose.msra.mxu0 0.0
  %383 = vmatpush.xpose.msra.mxu0 0.0
  %384 = vmatpush.xpose.msra.mxu0 0.0
  %385 = vmatpush.xpose.msra.mxu0 0.0
  %386 = vmatpush.xpose.msra.mxu0 0.0
  %387 = vmatpush.xpose.msra.mxu0 0.0
  %388 = vmatpush.xpose.msra.mxu0 0.0
  %389 = vmatpush.xpose.msra.mxu0 %v372
  %390 = vmatmul.f32.gmra.mxu0 %v369
  %v391 = vpop.f32.mrf.mxu0
  %v392 = vadd.f32 0.0, %v391
  %393 = vdwg.mxu0
  %v394 = vperm.slane %v251, 0
  %395 = vrot.lane.b32.xlu0 %v394, 32
  %v396 = vpop.permute.xlu0 %395
  %v397 = vsel %vm97, %v396, 0
  %v400 = vsel %vm97, %v52, 0
  %402 = vmatpush.xpose.msra.mxu0 0.0
  %403 = vmatpush.xpose.msra.mxu0 0.0
  %404 = vmatpush.xpose.msra.mxu0 0.0
  %405 = vmatpush.xpose.msra.mxu0 0.0
  %406 = vmatpush.xpose.msra.mxu0 0.0
  %407 = vmatpush.xpose.msra.mxu0 0.0
  %408 = vmatpush.xpose.msra.mxu0 0.0
  %409 = vmatpush.xpose.msra.mxu0 0.0
  %410 = vmatpush.xpose.msra.mxu0 0.0
  %411 = vmatpush.xpose.msra.mxu0 0.0
  %412 = vmatpush.xpose.msra.mxu0 0.0
  %413 = vmatpush.xpose.msra.mxu0 0.0
  %414 = vmatpush.xpose.msra.mxu0 0.0
  %415 = vmatpush.xpose.msra.mxu0 0.0
  %416 = vmatpush.xpose.msra.mxu0 0.0
  %417 = vmatpush.xpose.msra.mxu0 %v400
  %418 = vmatmul.f32.gmra.mxu0 %v397
  %v419 = vpop.f32.mrf.mxu0
  %v420 = vadd.f32 0.0, %v419
  %421 = vdwg.mxu0
  %v422 = vperm.slane %v252, 0
  %423 = vrot.lane.b32.xlu0 %v422, 32
  %v424 = vpop.permute.xlu0 %423
  %v425 = vsel %vm97, %v424, 0
  %v428 = vsel %vm97, %v53, 0
  %430 = vmatpush.xpose.msra.mxu0 0.0
  %431 = vmatpush.xpose.msra.mxu0 0.0
  %432 = vmatpush.xpose.msra.mxu0 0.0
  %433 = vmatpush.xpose.msra.mxu0 0.0
  %434 = vmatpush.xpose.msra.mxu0 0.0
  %435 = vmatpush.xpose.msra.mxu0 0.0
  %436 = vmatpush.xpose.msra.mxu0 0.0
  %437 = vmatpush.xpose.msra.mxu0 0.0
  %438 = vmatpush.xpose.msra.mxu0 0.0
  %439 = vmatpush.xpose.msra.mxu0 0.0
  %440 = vmatpush.xpose.msra.mxu0 0.0
  %441 = vmatpush.xpose.msra.mxu0 0.0
  %442 = vmatpush.xpose.msra.mxu0 0.0
  %443 = vmatpush.xpose.msra.mxu0 0.0
  %444 = vmatpush.xpose.msra.mxu0 0.0
  %445 = vmatpush.xpose.msra.mxu0 %v428
  %446 = vmatmul.f32.gmra.mxu0 %v425
  %v447 = vpop.f32.mrf.mxu0
  %v448 = vadd.f32 0.0, %v447
  %449 = vdwg.mxu0
  %v450 = vperm.slane %v253, 0
  %451 = vrot.lane.b32.xlu0 %v450, 32
  %v452 = vpop.permute.xlu0 %451
  %v453 = vsel %vm97, %v452, 0
  %v456 = vsel %vm97, %v54, 0
  %458 = vmatpush.xpose.msra.mxu0 0.0
  %459 = vmatpush.xpose.msra.mxu0 0.0
  %460 = vmatpush.xpose.msra.mxu0 0.0
  %461 = vmatpush.xpose.msra.mxu0 0.0
  %462 = vmatpush.xpose.msra.mxu0 0.0
  %463 = vmatpush.xpose.msra.mxu0 0.0
  %464 = vmatpush.xpose.msra.mxu0 0.0
  %465 = vmatpush.xpose.msra.mxu0 0.0
  %466 = vmatpush.xpose.msra.mxu0 0.0
  %467 = vmatpush.xpose.msra.mxu0 0.0
  %468 = vmatpush.xpose.msra.mxu0 0.0
  %469 = vmatpush.xpose.msra.mxu0 0.0
  %470 = vmatpush.xpose.msra.mxu0 0.0
  %471 = vmatpush.xpose.msra.mxu0 0.0
  %472 = vmatpush.xpose.msra.mxu0 0.0
  %473 = vmatpush.xpose.msra.mxu0 %v456
  %474 = vmatmul.f32.gmra.mxu0 %v453
  %v475 = vpop.f32.mrf.mxu0
  %v476 = vadd.f32 0.0, %v475
  %477 = vdwg.mxu0
  %vm478 = vcmask 57344
  %v479 = vsel %vm478, %v280, -inf
  %480 = vmax.xlane.f32.xlu0 %v479
  %v481 = vpop.xlane.xlu0 %480
  %v482 = vsel %vm478, %v308, -inf
  %483 = vmax.xlane.f32.xlu0 %v482
  %v484 = vpop.xlane.xlu0 %483
  %v485 = vsel %vm478, %v336, -inf
  %486 = vmax.xlane.f32.xlu0 %v485
  %v487 = vpop.xlane.xlu0 %486
  %v488 = vsel %vm478, %v364, -inf
  %489 = vmax.xlane.f32.xlu0 %v488
  %v490 = vpop.xlane.xlu0 %489
  %v491 = vsel %vm478, %v392, -inf
  %492 = vmax.xlane.f32.xlu0 %v491
  %v493 = vpop.xlane.xlu0 %492
  %v494 = vsel %vm478, %v420, -inf
  %495 = vmax.xlane.f32.xlu0 %v494
  %v496 = vpop.xlane.xlu0 %495
  %v497 = vsel %vm478, %v448, -inf
  %498 = vmax.xlane.f32.xlu0 %v497
  %v499 = vpop.xlane.xlu0 %498
  %v500 = vsel %vm478, %v476, -inf
  %501 = vmax.xlane.f32.xlu0 %v500
  %v502 = vpop.xlane.xlu0 %501
  %v503 = vsub.f32 %v280, %v481
  %v504 = vsub.f32 %v308, %v484
  %v505 = vsub.f32 %v336, %v487
  %v506 = vsub.f32 %v364, %v490
  %v507 = vsub.f32 %v392, %v493
  %v508 = vsub.f32 %v420, %v496
  %v509 = vsub.f32 %v448, %v499
  %v510 = vsub.f32 %v476, %v502
  %v511 = vmul.f32 %v503, 1.442695
  %v512 = vpow.pop %v511
  %v513 = vmul.f32 %v504, 1.442695
  %v514 = vpow.pop %v513
  %v515 = vmul.f32 %v505, 1.442695
  %v516 = vpow.pop %v515
  %v517 = vmul.f32 %v506, 1.442695
  %v518 = vpow.pop %v517
  %v519 = vmul.f32 %v507, 1.442695
  %v520 = vpow.pop %v519
  %v521 = vmul.f32 %v508, 1.442695
  %v522 = vpow.pop %v521
  %v523 = vmul.f32 %v509, 1.442695
  %v524 = vpow.pop %v523
  %v525 = vmul.f32 %v510, 1.442695
  %v526 = vpow.pop %v525
  %v527 = vsel %vm478, %v512, 0.0
  %528 = vadd.xlane.f32.xlu0 %v527
  %v529 = vpop.xlane.xlu0 %528
  %v530 = vsel %vm478, %v514, 0.0
  %531 = vadd.xlane.f32.xlu0 %v530
  %v532 = vpop.xlane.xlu0 %531
  %v533 = vsel %vm478, %v516, 0.0
  %534 = vadd.xlane.f32.xlu0 %v533
  %v535 = vpop.xlane.xlu0 %534
  %v536 = vsel %vm478, %v518, 0.0
  %537 = vadd.xlane.f32.xlu0 %v536
  %v538 = vpop.xlane.xlu0 %537
  %v539 = vsel %vm478, %v520, 0.0
  %540 = vadd.xlane.f32.xlu0 %v539
  %v541 = vpop.xlane.xlu0 %540
  %v542 = vsel %vm478, %v522, 0.0
  %543 = vadd.xlane.f32.xlu0 %v542
  %v544 = vpop.xlane.xlu0 %543
  %v545 = vsel %vm478, %v524, 0.0
  %546 = vadd.xlane.f32.xlu0 %v545
  %v547 = vpop.xlane.xlu0 %546
  %v548 = vsel %vm478, %v526, 0.0
  %549 = vadd.xlane.f32.xlu0 %v548
  %v550 = vpop.xlane.xlu0 %549
  %v551 = vrcp.pop %v529
  %v552 = vrcp.pop %v532
  %v553 = vrcp.pop %v535
  %v554 = vrcp.pop %v538
  %v555 = vrcp.pop %v541
  %v556 = vrcp.pop %v544
  %v557 = vrcp.pop %v547
  %v558 = vrcp.pop %v550
  %v559 = vmul.f32 %v512, %v551
  %v560 = vmul.f32 %v514, %v552
  %v561 = vmul.f32 %v516, %v553
  %v562 = vmul.f32 %v518, %v554
  %v563 = vmul.f32 %v520, %v555
  %v564 = vmul.f32 %v522, %v556
  %v565 = vmul.f32 %v524, %v557
  %v566 = vmul.f32 %v526, %v558
  %vm567 = vcmask 64512
  %v569 = vsel %vm567, %v559, 0
  %571 = vmatpush.msra.mxu0 0.0
  %572 = vmatpush.msra.mxu0 0.0
  %573 = vmatpush.msra.mxu0 0.0
  %574 = vmatpush.msra.mxu0 0.0
  %575 = vmatpush.msra.mxu0 0.0
  %576 = vmatpush.msra.mxu0 0.0
  %577 = vmatpush.msra.mxu0 0.0
  %578 = vmatpush.msra.mxu0 0.0
  %579 = vmatpush.msra.mxu0 0.0
  %580 = vmatpush.msra.mxu0 0.0
  %581 = vmatpush.msra.mxu0 0.0
  %582 = vmatpush.msra.mxu0 0.0
  %583 = vmatpush.msra.mxu0 0.0
  %584 = vmatpush.msra.mxu0 0.0
  %585 = vmatpush.msra.mxu0 0.0
  %586 = vmatpush.msra.mxu0 %v39
  %587 = vmatmul.f32.gmra.mxu0 %v569
  %v588 = vpop.f32.mrf.mxu0
  %v589 = vadd.f32 0.0, %v588
  %590 = vdwg.mxu0
  %v592 = vsel %vm567, %v560, 0
  %594 = vmatpush.msra.mxu0 0.0
  %595 = vmatpush.msra.mxu0 0.0
  %596 = vmatpush.msra.mxu0 0.0
  %597 = vmatpush.msra.mxu0 0.0
  %598 = vmatpush.msra.mxu0 0.0
  %599 = vmatpush.msra.mxu0 0.0
  %600 = vmatpush.msra.mxu0 0.0
  %601 = vmatpush.msra.mxu0 0.0
  %602 = vmatpush.msra.mxu0 0.0
  %603 = vmatpush.msra.mxu0 0.0
  %604 = vmatpush.msra.mxu0 0.0
  %605 = vmatpush.msra.mxu0 0.0
  %606 = vmatpush.msra.mxu0 0.0
  %607 = vmatpush.msra.mxu0 0.0
  %608 = vmatpush.msra.mxu0 0.0
  %609 = vmatpush.msra.mxu0 %v40
  %610 = vmatmul.f32.gmra.mxu0 %v592
  %v611 = vpop.f32.mrf.mxu0
  %v612 = vadd.f32 0.0, %v611
  %613 = vdwg.mxu0
  %v615 = vsel %vm567, %v561, 0
  %617 = vmatpush.msra.mxu0 0.0
  %618 = vmatpush.msra.mxu0 0.0
  %619 = vmatpush.msra.mxu0 0.0
  %620 = vmatpush.msra.mxu0 0.0
  %621 = vmatpush.msra.mxu0 0.0
  %622 = vmatpush.msra.mxu0 0.0
  %623 = vmatpush.msra.mxu0 0.0
  %624 = vmatpush.msra.mxu0 0.0
  %625 = vmatpush.msra.mxu0 0.0
  %626 = vmatpush.msra.mxu0 0.0
  %627 = vmatpush.msra.mxu0 0.0
  %628 = vmatpush.msra.mxu0 0.0
  %629 = vmatpush.msra.mxu0 0.0
  %630 = vmatpush.msra.mxu0 0.0
  %631 = vmatpush.msra.mxu0 0.0
  %632 = vmatpush.msra.mxu0 %v41
  %633 = vmatmul.f32.gmra.mxu0 %v615
  %v634 = vpop.f32.mrf.mxu0
  %v635 = vadd.f32 0.0, %v634
  %636 = vdwg.mxu0
  %v638 = vsel %vm567, %v562, 0
  %640 = vmatpush.msra.mxu0 0.0
  %641 = vmatpush.msra.mxu0 0.0
  %642 = vmatpush.msra.mxu0 0.0
  %643 = vmatpush.msra.mxu0 0.0
  %644 = vmatpush.msra.mxu0 0.0
  %645 = vmatpush.msra.mxu0 0.0
  %646 = vmatpush.msra.mxu0 0.0
  %647 = vmatpush.msra.mxu0 0.0
  %648 = vmatpush.msra.mxu0 0.0
  %649 = vmatpush.msra.mxu0 0.0
  %650 = vmatpush.msra.mxu0 0.0
  %651 = vmatpush.msra.mxu0 0.0
  %652 = vmatpush.msra.mxu0 0.0
  %653 = vmatpush.msra.mxu0 0.0
  %654 = vmatpush.msra.mxu0 0.0
  %655 = vmatpush.msra.mxu0 %v42
  %656 = vmatmul.f32.gmra.mxu0 %v638
  %v657 = vpop.f32.mrf.mxu0
  %v658 = vadd.f32 0.0, %v657
  %659 = vdwg.mxu0
  %v661 = vsel %vm567, %v563, 0
  %663 = vmatpush.msra.mxu0 0.0
  %664 = vmatpush.msra.mxu0 0.0
  %665 = vmatpush.msra.mxu0 0.0
  %666 = vmatpush.msra.mxu0 0.0
  %667 = vmatpush.msra.mxu0 0.0
  %668 = vmatpush.msra.mxu0 0.0
  %669 = vmatpush.msra.mxu0 0.0
  %670 = vmatpush.msra.mxu0 0.0
  %671 = vmatpush.msra.mxu0 0.0
  %672 = vmatpush.msra.mxu0 0.0
  %673 = vmatpush.msra.mxu0 0.0
  %674 = vmatpush.msra.mxu0 0.0
  %675 = vmatpush.msra.mxu0 0.0
  %676 = vmatpush.msra.mxu0 0.0
  %677 = vmatpush.msra.mxu0 0.0
  %678 = vmatpush.msra.mxu0 %v43
  %679 = vmatmul.f32.gmra.mxu0 %v661
  %v680 = vpop.f32.mrf.mxu0
  %v681 = vadd.f32 0.0, %v680
  %682 = vdwg.mxu0
  %v684 = vsel %vm567, %v564, 0
  %686 = vmatpush.msra.mxu0 0.0
  %687 = vmatpush.msra.mxu0 0.0
  %688 = vmatpush.msra.mxu0 0.0
  %689 = vmatpush.msra.mxu0 0.0
  %690 = vmatpush.msra.mxu0 0.0
  %691 = vmatpush.msra.mxu0 0.0
  %692 = vmatpush.msra.mxu0 0.0
  %693 = vmatpush.msra.mxu0 0.0
  %694 = vmatpush.msra.mxu0 0.0
  %695 = vmatpush.msra.mxu0 0.0
  %696 = vmatpush.msra.mxu0 0.0
  %697 = vmatpush.msra.mxu0 0.0
  %698 = vmatpush.msra.mxu0 0.0
  %699 = vmatpush.msra.mxu0 0.0
  %700 = vmatpush.msra.mxu0 0.0
  %701 = vmatpush.msra.mxu0 %v44
  %702 = vmatmul.f32.gmra.mxu0 %v684
  %v703 = vpop.f32.mrf.mxu0
  %v704 = vadd.f32 0.0, %v703
  %705 = vdwg.mxu0
  %v707 = vsel %vm567, %v565, 0
  %709 = vmatpush.msra.mxu0 0.0
  %710 = vmatpush.msra.mxu0 0.0
  %711 = vmatpush.msra.mxu0 0.0
  %712 = vmatpush.msra.mxu0 0.0
  %713 = vmatpush.msra.mxu0 0.0
  %714 = vmatpush.msra.mxu0 0.0
  %715 = vmatpush.msra.mxu0 0.0
  %716 = vmatpush.msra.mxu0 0.0
  %717 = vmatpush.msra.mxu0 0.0
  %718 = vmatpush.msra.mxu0 0.0
  %719 = vmatpush.msra.mxu0 0.0
  %720 = vmatpush.msra.mxu0 0.0
  %721 = vmatpush.msra.mxu0 0.0
  %722 = vmatpush.msra.mxu0 0.0
  %723 = vmatpush.msra.mxu0 0.0
  %724 = vmatpush.msra.mxu0 %v45
  %725 = vmatmul.f32.gmra.mxu0 %v707
  %v726 = vpop.f32.mrf.mxu0
  %v727 = vadd.f32 0.0, %v726
  %728 = vdwg.mxu0
  %v730 = vsel %vm567, %v566, 0
  %732 = vmatpush.msra.mxu0 0.0
  %733 = vmatpush.msra.mxu0 0.0
  %734 = vmatpush.msra.mxu0 0.0
  %735 = vmatpush.msra.mxu0 0.0
  %736 = vmatpush.msra.mxu0 0.0
  %737 = vmatpush.msra.mxu0 0.0
  %738 = vmatpush.msra.mxu0 0.0
  %739 = vmatpush.msra.mxu0 0.0
  %740 = vmatpush.msra.mxu0 0.0
  %741 = vmatpush.msra.mxu0 0.0
  %742 = vmatpush.msra.mxu0 0.0
  %743 = vmatpush.msra.mxu0 0.0
  %744 = vmatpush.msra.mxu0 0.0
  %745 = vmatpush.msra.mxu0 0.0
  %746 = vmatpush.msra.mxu0 0.0
  %747 = vmatpush.msra.mxu0 %v46
  %748 = vmatmul.f32.gmra.mxu0 %v730
  %v749 = vpop.f32.mrf.mxu0
  %v750 = vadd.f32 0.0, %v749
  %751 = vdwg.mxu0
  %v760 = vrot.slane %v612, 7
  %vm761 = vcmask 1041409
  %v762 = vsel %vm761, %v760, %v589
  %v763 = vrot.slane %v635, 6
  %vm764 = vcmask 1042434
  %v765 = vsel %vm764, %v763, %v762
  %v766 = vrot.slane %v658, 5
  %vm767 = vcmask 1043459
  %v768 = vsel %vm767, %v766, %v765
  %v769 = vrot.slane %v681, 4
  %vm770 = vcmask 1044484
  %v771 = vsel %vm770, %v769, %v768
  %v772 = vrot.slane %v704, 3
  %vm773 = vcmask 1045509
  %v774 = vsel %vm773, %v772, %v771
  %v775 = vrot.slane %v727, 2
  %vm776 = vcmask 1046534
  %v777 = vsel %vm776, %v775, %v774
  %v778 = vrot.slane %v750, 1
  %vm779 = vcmask 1047559
  %v780 = vsel %vm779, %v778, %v777
  %782 = vrot.lane.b32.xlu0 %v245, 64
  %v783 = vpop.permute.xlu0 %782
  %v785 = vsel %vm97, %v780, %v783
  %v787 = vsel %vm99, %v785, 0
  %789 = vmatpush.msra.mxu0 0.0
  %790 = vmatpush.msra.mxu0 0.0
  %791 = vmatpush.msra.mxu0 0.0
  %792 = vmatpush.msra.mxu0 0.0
  %793 = vmatpush.msra.mxu0 0.0
  %794 = vmatpush.msra.mxu0 0.0
  %795 = vmatpush.msra.mxu0 0.0
  %796 = vmatpush.msra.mxu0 0.0
  %797 = vmatpush.msra.mxu0 %v79
  %798 = vmatpush.msra.mxu0 %v78
  %799 = vmatpush.msra.mxu0 %v77
  %800 = vmatpush.msra.mxu0 %v76
  %801 = vmatpush.msra.mxu0 %v75
  %802 = vmatpush.msra.mxu0 %v74
  %803 = vmatpush.msra.mxu0 %v73
  %804 = vmatpush.msra.mxu0 %v72
  %805 = vmatmul.f32.gmra.mxu0 %v787
  %v806 = vpop.f32.mrf.mxu0
  %v807 = vadd.f32 0.0, %v806
  %808 = vdwg.mxu0
  %v809 = vtanh.pop %v807
  %810 = vst.msk [vmem:[%s10] sm:$0xff] %vm97, %v809
  %v811 = vrot.slane %v560, 7
  %v812 = vsel %vm761, %v811, %v559
  %v813 = vrot.slane %v561, 6
  %v814 = vsel %vm764, %v813, %v812
  %v815 = vrot.slane %v562, 5
  %v816 = vsel %vm767, %v815, %v814
  %v817 = vrot.slane %v563, 4
  %v818 = vsel %vm770, %v817, %v816
  %v819 = vrot.slane %v564, 3
  %v820 = vsel %vm773, %v819, %v818
  %v821 = vrot.slane %v565, 2
  %v822 = vsel %vm776, %v821, %v820
  %v823 = vrot.slane %v566, 1
  %v824 = vsel %vm779, %v823, %v822
  %826 = vst.msk [vmem:[%s11] sm:$0xff] %vm567, %v824
  %s827 = scalar_lea.vmem %s0, 8
  %v828 = vld [vmem:[%s827] sm:$0xff]
  %829 = vrot.lane.b32.xlu0 %v167, 64
  %v830 = vpop.permute.xlu0 %829
  %v832 = vsel %vm97, %v809, %v830
  %v834 = vsel %vm99, %v832, 0
  %836 = vmatpush.msra.mxu0 0.0
  %837 = vmatpush.msra.mxu0 0.0
  %838 = vmatpush.msra.mxu0 0.0
  %839 = vmatpush.msra.mxu0 0.0
  %840 = vmatpush.msra.mxu0 0.0
  %841 = vmatpush.msra.mxu0 0.0
  %842 = vmatpush.msra.mxu0 0.0
  %843 = vmatpush.msra.mxu0 0.0
  %844 = vmatpush.msra.mxu0 %v62
  %845 = vmatpush.msra.mxu0 %v61
  %846 = vmatpush.msra.mxu0 %v60
  %847 = vmatpush.msra.mxu0 %v59
  %848 = vmatpush.msra.mxu0 %v58
  %849 = vmatpush.msra.mxu0 %v57
  %850 = vmatpush.msra.mxu0 %v56
  %851 = vmatpush.msra.mxu0 %v55
  %852 = vmatmul.f32.gmra.mxu0 %v834
  %v853 = vpop.f32.mrf.mxu0
  %v854 = vadd.f32 0.0, %v853
  %855 = vdwg.mxu0
  %v856 = vadd.f32 %v828, %v854
  %v857 = vtanh.pop %v856
  %v858 = vxor.u32 %v856, 2147483648
  %v859 = vmul.f32 %v858, 1.442695
  %v860 = vpow.pop %v859
  %v861 = vadd.f32 %v860, 1.0
  %v862 = vrcp.pop %v861
  %v863 = vmul.f32 %v861, %v862
  %v864 = vsub.f32 1.0, %v863
  %v865 = vmul.f32 %v862, %v864
  %v866 = vadd.f32 %v862, %v865
  %vm867 = vweird.f32 %v861
  %vm868 = vweird.f32 %v862
  %vm869 = vmor %vm867, %vm868
  %v870 = vsel %vm869, %v862, %v866
  %v871 = vand.u32 2147483647, %v861
  %vm872 = vcmp.eq.f32.partialorder %v871, 8.507059e+37
  %v873 = vand.u32 %v861, 2147483648
  %v874 = vor.u32 1.1754944e-38, %v873
  %v875 = vsel %vm872, %v874, %v870
  %v876 = vmul.f32 1.0, %v875
  %v877 = vsel %vm145, %v857, %v876
  %v878 = vmul.f32 %v877, %v161
  %880 = vrot.lane.b32.xlu0 %v877, 64
  %v881 = vpop.permute.xlu0 %880
  %v883 = vmul.f32 %v877, %v881
  %885 = vrot.lane.b32.xlu0 %v883, 32
  %v886 = vpop.permute.xlu0 %885
  %v888 = vadd.f32 %v878, %v886
  %v889 = vtanh.pop %v888
  %891 = vrot.lane.b32.xlu0 %v889, 64
  %v892 = vpop.permute.xlu0 %891
  %v894 = vmul.f32 %v877, %v892
  %896 = vrot.lane.b32.xlu0 %v894, 32
  %v897 = vpop.permute.xlu0 %896
  %v899 = vsel %vm97, %v897, %v783
  %v901 = vsel %vm99, %v899, 0
  %903 = vmatpush.msra.mxu0 0.0
  %904 = vmatpush.msra.mxu0 0.0
  %905 = vmatpush.msra.mxu0 0.0
  %906 = vmatpush.msra.mxu0 0.0
  %907 = vmatpush.msra.mxu0 0.0
  %908 = vmatpush.msra.mxu0 0.0
  %909 = vmatpush.msra.mxu0 0.0
  %910 = vmatpush.msra.mxu0 0.0
  %911 = vmatpush.msra.mxu0 %v70
  %912 = vmatpush.msra.mxu0 %v69
  %913 = vmatpush.msra.mxu0 %v68
  %914 = vmatpush.msra.mxu0 %v67
  %915 = vmatpush.msra.mxu0 %v66
  %916 = vmatpush.msra.mxu0 %v65
  %917 = vmatpush.msra.mxu0 %v64
  %918 = vmatpush.msra.mxu0 %v63
  %919 = vmatmul.f32.gmra.mxu0 %v901
  %v920 = vpop.f32.mrf.mxu0
  %v921 = vadd.f32 0.0, %v920
  %922 = vdwg.mxu0
  %v923 = vadd.f32 %v201, %v921
  %v924 = vtanh.pop %v923
  %v925 = vxor.u32 %v923, 2147483648
  %v926 = vmul.f32 %v925, 1.442695
  %v927 = vpow.pop %v926
  %v928 = vadd.f32 %v927, 1.0
  %v929 = vrcp.pop %v928
  %v930 = vmul.f32 %v928, %v929
  %v931 = vsub.f32 1.0, %v930
  %v932 = vmul.f32 %v929, %v931
  %v933 = vadd.f32 %v929, %v932
  %vm934 = vweird.f32 %v928
  %vm935 = vweird.f32 %v929
  %vm936 = vmor %vm934, %vm935
  %v937 = vsel %vm936, %v929, %v933
  %v938 = vand.u32 2147483647, %v928
  %vm939 = vcmp.eq.f32.partialorder %v938, 8.507059e+37
  %v940 = vand.u32 %v928, 2147483648
  %v941 = vor.u32 1.1754944e-38, %v940
  %v942 = vsel %vm939, %v941, %v937
  %v943 = vmul.f32 1.0, %v942
  %v944 = vsel %vm145, %v924, %v943
  %v945 = vmul.f32 %v944, %v239
  %947 = vrot.lane.b32.xlu0 %v944, 64
  %v948 = vpop.permute.xlu0 %947
  %v950 = vmul.f32 %v944, %v948
  %952 = vrot.lane.b32.xlu0 %v950, 32
  %v953 = vpop.permute.xlu0 %952
  %v955 = vadd.f32 %v945, %v953
  %v956 = vtanh.pop %v955
  %958 = vrot.lane.b32.xlu0 %v956, 64
  %v959 = vpop.permute.xlu0 %958
  %v961 = vmul.f32 %v944, %v959
  %v963 = vrot.slane %v961, 1
  %v964 = vrot.slane %v961, 2
  %v965 = vrot.slane %v961, 3
  %v966 = vrot.slane %v961, 4
  %v967 = vrot.slane %v961, 5
  %v968 = vrot.slane %v961, 6
  %v969 = vrot.slane %v961, 7
  %v970 = vperm.slane %v961, 0
  %971 = vrot.lane.b32.xlu0 %v970, 32
  %v972 = vpop.permute.xlu0 %971
  %v973 = vsel %vm97, %v972, 0
  %975 = vmatpush.xpose.msra.mxu0 0.0
  %976 = vmatpush.xpose.msra.mxu0 0.0
  %977 = vmatpush.xpose.msra.mxu0 0.0
  %978 = vmatpush.xpose.msra.mxu0 0.0
  %979 = vmatpush.xpose.msra.mxu0 0.0
  %980 = vmatpush.xpose.msra.mxu0 0.0
  %981 = vmatpush.xpose.msra.mxu0 0.0
  %982 = vmatpush.xpose.msra.mxu0 0.0
  %983 = vmatpush.xpose.msra.mxu0 0.0
  %984 = vmatpush.xpose.msra.mxu0 0.0
  %985 = vmatpush.xpose.msra.mxu0 0.0
  %986 = vmatpush.xpose.msra.mxu0 0.0
  %987 = vmatpush.xpose.msra.mxu0 0.0
  %988 = vmatpush.xpose.msra.mxu0 0.0
  %989 = vmatpush.xpose.msra.mxu0 0.0
  %990 = vmatpush.xpose.msra.mxu0 %v260
  %991 = vmatmul.f32.gmra.mxu0 %v973
  %v992 = vpop.f32.mrf.mxu0
  %v993 = vadd.f32 0.0, %v992
  %994 = vdwg.mxu0
  %v995 = vperm.slane %v963, 0
  %996 = vrot.lane.b32.xlu0 %v995, 32
  %v997 = vpop.permute.xlu0 %996
  %v998 = vsel %vm97, %v997, 0
  %1000 = vmatpush.xpose.msra.mxu0 0.0
  %1001 = vmatpush.xpose.msra.mxu0 0.0
  %1002 = vmatpush.xpose.msra.mxu0 0.0
  %1003 = vmatpush.xpose.msra.mxu0 0.0
  %1004 = vmatpush.xpose.msra.mxu0 0.0
  %1005 = vmatpush.xpose.msra.mxu0 0.0
  %1006 = vmatpush.xpose.msra.mxu0 0.0
  %1007 = vmatpush.xpose.msra.mxu0 0.0
  %1008 = vmatpush.xpose.msra.mxu0 0.0
  %1009 = vmatpush.xpose.msra.mxu0 0.0
  %1010 = vmatpush.xpose.msra.mxu0 0.0
  %1011 = vmatpush.xpose.msra.mxu0 0.0
  %1012 = vmatpush.xpose.msra.mxu0 0.0
  %1013 = vmatpush.xpose.msra.mxu0 0.0
  %1014 = vmatpush.xpose.msra.mxu0 0.0
  %1015 = vmatpush.xpose.msra.mxu0 %v288
  %1016 = vmatmul.f32.gmra.mxu0 %v998
  %v1017 = vpop.f32.mrf.mxu0
  %v1018 = vadd.f32 0.0, %v1017
  %1019 = vdwg.mxu0
  %v1020 = vperm.slane %v964, 0
  %1021 = vrot.lane.b32.xlu0 %v1020, 32
  %v1022 = vpop.permute.xlu0 %1021
  %v1023 = vsel %vm97, %v1022, 0
  %1025 = vmatpush.xpose.msra.mxu0 0.0
  %1026 = vmatpush.xpose.msra.mxu0 0.0
  %1027 = vmatpush.xpose.msra.mxu0 0.0
  %1028 = vmatpush.xpose.msra.mxu0 0.0
  %1029 = vmatpush.xpose.msra.mxu0 0.0
  %1030 = vmatpush.xpose.msra.mxu0 0.0
  %1031 = vmatpush.xpose.msra.mxu0 0.0
  %1032 = vmatpush.xpose.msra.mxu0 0.0
  %1033 = vmatpush.xpose.msra.mxu0 0.0
  %1034 = vmatpush.xpose.msra.mxu0 0.0
  %1035 = vmatpush.xpose.msra.mxu0 0.0
  %1036 = vmatpush.xpose.msra.mxu0 0.0
  %1037 = vmatpush.xpose.msra.mxu0 0.0
  %1038 = vmatpush.xpose.msra.mxu0 0.0
  %1039 = vmatpush.xpose.msra.mxu0 0.0
  %1040 = vmatpush.xpose.msra.mxu0 %v316
  %1041 = vmatmul.f32.gmra.mxu0 %v1023
  %v1042 = vpop.f32.mrf.mxu0
  %v1043 = vadd.f32 0.0, %v1042
  %1044 = vdwg.mxu0
  %v1045 = vperm.slane %v965, 0
  %1046 = vrot.lane.b32.xlu0 %v1045, 32
  %v1047 = vpop.permute.xlu0 %1046
  %v1048 = vsel %vm97, %v1047, 0
  %1050 = vmatpush.xpose.msra.mxu0 0.0
  %1051 = vmatpush.xpose.msra.mxu0 0.0
  %1052 = vmatpush.xpose.msra.mxu0 0.0
  %1053 = vmatpush.xpose.msra.mxu0 0.0
  %1054 = vmatpush.xpose.msra.mxu0 0.0
  %1055 = vmatpush.xpose.msra.mxu0 0.0
  %1056 = vmatpush.xpose.msra.mxu0 0.0
  %1057 = vmatpush.xpose.msra.mxu0 0.0
  %1058 = vmatpush.xpose.msra.mxu0 0.0
  %1059 = vmatpush.xpose.msra.mxu0 0.0
  %1060 = vmatpush.xpose.msra.mxu0 0.0
  %1061 = vmatpush.xpose.msra.mxu0 0.0
  %1062 = vmatpush.xpose.msra.mxu0 0.0
  %1063 = vmatpush.xpose.msra.mxu0 0.0
  %1064 = vmatpush.xpose.msra.mxu0 0.0
  %1065 = vmatpush.xpose.msra.mxu0 %v344
  %1066 = vmatmul.f32.gmra.mxu0 %v1048
  %v1067 = vpop.f32.mrf.mxu0
  %v1068 = vadd.f32 0.0, %v1067
  %1069 = vdwg.mxu0
  %v1070 = vperm.slane %v966, 0
  %1071 = vrot.lane.b32.xlu0 %v1070, 32
  %v1072 = vpop.permute.xlu0 %1071
  %v1073 = vsel %vm97, %v1072, 0
  %1075 = vmatpush.xpose.msra.mxu0 0.0
  %1076 = vmatpush.xpose.msra.mxu0 0.0
  %1077 = vmatpush.xpose.msra.mxu0 0.0
  %1078 = vmatpush.xpose.msra.mxu0 0.0
  %1079 = vmatpush.xpose.msra.mxu0 0.0
  %1080 = vmatpush.xpose.msra.mxu0 0.0
  %1081 = vmatpush.xpose.msra.mxu0 0.0
  %1082 = vmatpush.xpose.msra.mxu0 0.0
  %1083 = vmatpush.xpose.msra.mxu0 0.0
  %1084 = vmatpush.xpose.msra.mxu0 0.0
  %1085 = vmatpush.xpose.msra.mxu0 0.0
  %1086 = vmatpush.xpose.msra.mxu0 0.0
  %1087 = vmatpush.xpose.msra.mxu0 0.0
  %1088 = vmatpush.xpose.msra.mxu0 0.0
  %1089 = vmatpush.xpose.msra.mxu0 0.0
  %1090 = vmatpush.xpose.msra.mxu0 %v372
  %1091 = vmatmul.f32.gmra.mxu0 %v1073
  %v1092 = vpop.f32.mrf.mxu0
  %v1093 = vadd.f32 0.0, %v1092
  %1094 = vdwg.mxu0
  %v1095 = vperm.slane %v967, 0
  %1096 = vrot.lane.b32.xlu0 %v1095, 32
  %v1097 = vpop.permute.xlu0 %1096
  %v1098 = vsel %vm97, %v1097, 0
  %1100 = vmatpush.xpose.msra.mxu0 0.0
  %1101 = vmatpush.xpose.msra.mxu0 0.0
  %1102 = vmatpush.xpose.msra.mxu0 0.0
  %1103 = vmatpush.xpose.msra.mxu0 0.0
  %1104 = vmatpush.xpose.msra.mxu0 0.0
  %1105 = vmatpush.xpose.msra.mxu0 0.0
  %1106 = vmatpush.xpose.msra.mxu0 0.0
  %1107 = vmatpush.xpose.msra.mxu0 0.0
  %1108 = vmatpush.xpose.msra.mxu0 0.0
  %1109 = vmatpush.xpose.msra.mxu0 0.0
  %1110 = vmatpush.xpose.msra.mxu0 0.0
  %1111 = vmatpush.xpose.msra.mxu0 0.0
  %1112 = vmatpush.xpose.msra.mxu0 0.0
  %1113 = vmatpush.xpose.msra.mxu0 0.0
  %1114 = vmatpush.xpose.msra.mxu0 0.0
  %1115 = vmatpush.xpose.msra.mxu0 %v400
  %1116 = vmatmul.f32.gmra.mxu0 %v1098
  %v1117 = vpop.f32.mrf.mxu0
  %v1118 = vadd.f32 0.0, %v1117
  %1119 = vdwg.mxu0
  %v1120 = vperm.slane %v968, 0
  %1121 = vrot.lane.b32.xlu0 %v1120, 32
  %v1122 = vpop.permute.xlu0 %1121
  %v1123 = vsel %vm97, %v1122, 0
  %1125 = vmatpush.xpose.msra.mxu0 0.0
  %1126 = vmatpush.xpose.msra.mxu0 0.0
  %1127 = vmatpush.xpose.msra.mxu0 0.0
  %1128 = vmatpush.xpose.msra.mxu0 0.0
  %1129 = vmatpush.xpose.msra.mxu0 0.0
  %1130 = vmatpush.xpose.msra.mxu0 0.0
  %1131 = vmatpush.xpose.msra.mxu0 0.0
  %1132 = vmatpush.xpose.msra.mxu0 0.0
  %1133 = vmatpush.xpose.msra.mxu0 0.0
  %1134 = vmatpush.xpose.msra.mxu0 0.0
  %1135 = vmatpush.xpose.msra.mxu0 0.0
  %1136 = vmatpush.xpose.msra.mxu0 0.0
  %1137 = vmatpush.xpose.msra.mxu0 0.0
  %1138 = vmatpush.xpose.msra.mxu0 0.0
  %1139 = vmatpush.xpose.msra.mxu0 0.0
  %1140 = vmatpush.xpose.msra.mxu0 %v428
  %1141 = vmatmul.f32.gmra.mxu0 %v1123
  %v1142 = vpop.f32.mrf.mxu0
  %v1143 = vadd.f32 0.0, %v1142
  %1144 = vdwg.mxu0
  %v1145 = vperm.slane %v969, 0
  %1146 = vrot.lane.b32.xlu0 %v1145, 32
  %v1147 = vpop.permute.xlu0 %1146
  %v1148 = vsel %vm97, %v1147, 0
  %1150 = vmatpush.xpose.msra.mxu0 0.0
  %1151 = vmatpush.xpose.msra.mxu0 0.0
  %1152 = vmatpush.xpose.msra.mxu0 0.0
  %1153 = vmatpush.xpose.msra.mxu0 0.0
  %1154 = vmatpush.xpose.msra.mxu0 0.0
  %1155 = vmatpush.xpose.msra.mxu0 0.0
  %1156 = vmatpush.xpose.msra.mxu0 0.0
  %1157 = vmatpush.xpose.msra.mxu0 0.0
  %1158 = vmatpush.xpose.msra.mxu0 0.0
  %1159 = vmatpush.xpose.msra.mxu0 0.0
  %1160 = vmatpush.xpose.msra.mxu0 0.0
  %1161 = vmatpush.xpose.msra.mxu0 0.0
  %1162 = vmatpush.xpose.msra.mxu0 0.0
  %1163 = vmatpush.xpose.msra.mxu0 0.0
  %1164 = vmatpush.xpose.msra.mxu0 0.0
  %1165 = vmatpush.xpose.msra.mxu0 %v456
  %1166 = vmatmul.f32.gmra.mxu0 %v1148
  %v1167 = vpop.f32.mrf.mxu0
  %v1168 = vadd.f32 0.0, %v1167
  %1169 = vdwg.mxu0
  %v1170 = vsel %vm478, %v993, -inf
  %1171 = vmax.xlane.f32.xlu0 %v1170
  %v1172 = vpop.xlane.xlu0 %1171
  %v1173 = vsel %vm478, %v1018, -inf
  %1174 = vmax.xlane.f32.xlu0 %v1173
  %v1175 = vpop.xlane.xlu0 %1174
  %v1176 = vsel %vm478, %v1043, -inf
  %1177 = vmax.xlane.f32.xlu0 %v1176
  %v1178 = vpop.xlane.xlu0 %1177
  %v1179 = vsel %vm478, %v1068, -inf
  %1180 = vmax.xlane.f32.xlu0 %v1179
  %v1181 = vpop.xlane.xlu0 %1180
  %v1182 = vsel %vm478, %v1093, -inf
  %1183 = vmax.xlane.f32.xlu0 %v1182
  %v1184 = vpop.xlane.xlu0 %1183
  %v1185 = vsel %vm478, %v1118, -inf
  %1186 = vmax.xlane.f32.xlu0 %v1185
  %v1187 = vpop.xlane.xlu0 %1186
  %v1188 = vsel %vm478, %v1143, -inf
  %1189 = vmax.xlane.f32.xlu0 %v1188
  %v1190 = vpop.xlane.xlu0 %1189
  %v1191 = vsel %vm478, %v1168, -inf
  %1192 = vmax.xlane.f32.xlu0 %v1191
  %v1193 = vpop.xlane.xlu0 %1192
  %v1194 = vsub.f32 %v993, %v1172
  %v1195 = vsub.f32 %v1018, %v1175
  %v1196 = vsub.f32 %v1043, %v1178
  %v1197 = vsub.f32 %v1068, %v1181
  %v1198 = vsub.f32 %v1093, %v1184
  %v1199 = vsub.f32 %v1118, %v1187
  %v1200 = vsub.f32 %v1143, %v1190
  %v1201 = vsub.f32 %v1168, %v1193
  %v1202 = vmul.f32 %v1194, 1.442695
  %v1203 = vpow.pop %v1202
  %v1204 = vmul.f32 %v1195, 1.442695
  %v1205 = vpow.pop %v1204
  %v1206 = vmul.f32 %v1196, 1.442695
  %v1207 = vpow.pop %v1206
  %v1208 = vmul.f32 %v1197, 1.442695
  %v1209 = vpow.pop %v1208
  %v1210 = vmul.f32 %v1198, 1.442695
  %v1211 = vpow.pop %v1210
  %v1212 = vmul.f32 %v1199, 1.442695
  %v1213 = vpow.pop %v1212
  %v1214 = vmul.f32 %v1200, 1.442695
  %v1215 = vpow.pop %v1214
  %v1216 = vmul.f32 %v1201, 1.442695
  %v1217 = vpow.pop %v1216
  %v1218 = vsel %vm478, %v1203, 0.0
  %1219 = vadd.xlane.f32.xlu0 %v1218
  %v1220 = vpop.xlane.xlu0 %1219
  %v1221 = vsel %vm478, %v1205, 0.0
  %1222 = vadd.xlane.f32.xlu0 %v1221
  %v1223 = vpop.xlane.xlu0 %1222
  %v1224 = vsel %vm478, %v1207, 0.0
  %1225 = vadd.xlane.f32.xlu0 %v1224
  %v1226 = vpop.xlane.xlu0 %1225
  %v1227 = vsel %vm478, %v1209, 0.0
  %1228 = vadd.xlane.f32.xlu0 %v1227
  %v1229 = vpop.xlane.xlu0 %1228
  %v1230 = vsel %vm478, %v1211, 0.0
  %1231 = vadd.xlane.f32.xlu0 %v1230
  %v1232 = vpop.xlane.xlu0 %1231
  %v1233 = vsel %vm478, %v1213, 0.0
  %1234 = vadd.xlane.f32.xlu0 %v1233
  %v1235 = vpop.xlane.xlu0 %1234
  %v1236 = vsel %vm478, %v1215, 0.0
  %1237 = vadd.xlane.f32.xlu0 %v1236
  %v1238 = vpop.xlane.xlu0 %1237
  %v1239 = vsel %vm478, %v1217, 0.0
  %1240 = vadd.xlane.f32.xlu0 %v1239
  %v1241 = vpop.xlane.xlu0 %1240
  %v1242 = vrcp.pop %v1220
  %v1243 = vrcp.pop %v1223
  %v1244 = vrcp.pop %v1226
  %v1245 = vrcp.pop %v1229
  %v1246 = vrcp.pop %v1232
  %v1247 = vrcp.pop %v1235
  %v1248 = vrcp.pop %v1238
  %v1249 = vrcp.pop %v1241
  %v1250 = vmul.f32 %v1203, %v1242
  %v1251 = vmul.f32 %v1205, %v1243
  %v1252 = vmul.f32 %v1207, %v1244
  %v1253 = vmul.f32 %v1209, %v1245
  %v1254 = vmul.f32 %v1211, %v1246
  %v1255 = vmul.f32 %v1213, %v1247
  %v1256 = vmul.f32 %v1215, %v1248
  %v1257 = vmul.f32 %v1217, %v1249
  %v1259 = vsel %vm567, %v1250, 0
  %1261 = vmatpush.msra.mxu0 0.0
  %1262 = vmatpush.msra.mxu0 0.0
  %1263 = vmatpush.msra.mxu0 0.0
  %1264 = vmatpush.msra.mxu0 0.0
  %1265 = vmatpush.msra.mxu0 0.0
  %1266 = vmatpush.msra.mxu0 0.0
  %1267 = vmatpush.msra.mxu0 0.0
  %1268 = vmatpush.msra.mxu0 0.0
  %1269 = vmatpush.msra.mxu0 0.0
  %1270 = vmatpush.msra.mxu0 0.0
  %1271 = vmatpush.msra.mxu0 0.0
  %1272 = vmatpush.msra.mxu0 0.0
  %1273 = vmatpush.msra.mxu0 0.0
  %1274 = vmatpush.msra.mxu0 0.0
  %1275 = vmatpush.msra.mxu0 0.0
  %1276 = vmatpush.msra.mxu0 %v39
  %1277 = vmatmul.f32.gmra.mxu0 %v1259
  %v1278 = vpop.f32.mrf.mxu0
  %v1279 = vadd.f32 0.0, %v1278
  %1280 = vdwg.mxu0
  %v1282 = vsel %vm567, %v1251, 0
  %1284 = vmatpush.msra.mxu0 0.0
  %1285 = vmatpush.msra.mxu0 0.0
  %1286 = vmatpush.msra.mxu0 0.0
  %1287 = vmatpush.msra.mxu0 0.0
  %1288 = vmatpush.msra.mxu0 0.0
  %1289 = vmatpush.msra.mxu0 0.0
  %1290 = vmatpush.msra.mxu0 0.0
  %1291 = vmatpush.msra.mxu0 0.0
  %1292 = vmatpush.msra.mxu0 0.0
  %1293 = vmatpush.msra.mxu0 0.0
  %1294 = vmatpush.msra.mxu0 0.0
  %1295 = vmatpush.msra.mxu0 0.0
  %1296 = vmatpush.msra.mxu0 0.0
  %1297 = vmatpush.msra.mxu0 0.0
  %1298 = vmatpush.msra.mxu0 0.0
  %1299 = vmatpush.msra.mxu0 %v40
  %1300 = vmatmul.f32.gmra.mxu0 %v1282
  %v1301 = vpop.f32.mrf.mxu0
  %v1302 = vadd.f32 0.0, %v1301
  %1303 = vdwg.mxu0
  %v1305 = vsel %vm567, %v1252, 0
  %1307 = vmatpush.msra.mxu0 0.0
  %1308 = vmatpush.msra.mxu0 0.0
  %1309 = vmatpush.msra.mxu0 0.0
  %1310 = vmatpush.msra.mxu0 0.0
  %1311 = vmatpush.msra.mxu0 0.0
  %1312 = vmatpush.msra.mxu0 0.0
  %1313 = vmatpush.msra.mxu0 0.0
  %1314 = vmatpush.msra.mxu0 0.0
  %1315 = vmatpush.msra.mxu0 0.0
  %1316 = vmatpush.msra.mxu0 0.0
  %1317 = vmatpush.msra.mxu0 0.0
  %1318 = vmatpush.msra.mxu0 0.0
  %1319 = vmatpush.msra.mxu0 0.0
  %1320 = vmatpush.msra.mxu0 0.0
  %1321 = vmatpush.msra.mxu0 0.0
  %1322 = vmatpush.msra.mxu0 %v41
  %1323 = vmatmul.f32.gmra.mxu0 %v1305
  %v1324 = vpop.f32.mrf.mxu0
  %v1325 = vadd.f32 0.0, %v1324
  %1326 = vdwg.mxu0
  %v1328 = vsel %vm567, %v1253, 0
  %1330 = vmatpush.msra.mxu0 0.0
  %1331 = vmatpush.msra.mxu0 0.0
  %1332 = vmatpush.msra.mxu0 0.0
  %1333 = vmatpush.msra.mxu0 0.0
  %1334 = vmatpush.msra.mxu0 0.0
  %1335 = vmatpush.msra.mxu0 0.0
  %1336 = vmatpush.msra.mxu0 0.0
  %1337 = vmatpush.msra.mxu0 0.0
  %1338 = vmatpush.msra.mxu0 0.0
  %1339 = vmatpush.msra.mxu0 0.0
  %1340 = vmatpush.msra.mxu0 0.0
  %1341 = vmatpush.msra.mxu0 0.0
  %1342 = vmatpush.msra.mxu0 0.0
  %1343 = vmatpush.msra.mxu0 0.0
  %1344 = vmatpush.msra.mxu0 0.0
  %1345 = vmatpush.msra.mxu0 %v42
  %1346 = vmatmul.f32.gmra.mxu0 %v1328
  %v1347 = vpop.f32.mrf.mxu0
  %v1348 = vadd.f32 0.0, %v1347
  %1349 = vdwg.mxu0
  %v1351 = vsel %vm567, %v1254, 0
  %1353 = vmatpush.msra.mxu0 0.0
  %1354 = vmatpush.msra.mxu0 0.0
  %1355 = vmatpush.msra.mxu0 0.0
  %1356 = vmatpush.msra.mxu0 0.0
  %1357 = vmatpush.msra.mxu0 0.0
  %1358 = vmatpush.msra.mxu0 0.0
  %1359 = vmatpush.msra.mxu0 0.0
  %1360 = vmatpush.msra.mxu0 0.0
  %1361 = vmatpush.msra.mxu0 0.0
  %1362 = vmatpush.msra.mxu0 0.0
  %1363 = vmatpush.msra.mxu0 0.0
  %1364 = vmatpush.msra.mxu0 0.0
  %1365 = vmatpush.msra.mxu0 0.0
  %1366 = vmatpush.msra.mxu0 0.0
  %1367 = vmatpush.msra.mxu0 0.0
  %1368 = vmatpush.msra.mxu0 %v43
  %1369 = vmatmul.f32.gmra.mxu0 %v1351
  %v1370 = vpop.f32.mrf.mxu0
  %v1371 = vadd.f32 0.0, %v1370
  %1372 = vdwg.mxu0
  %v1374 = vsel %vm567, %v1255, 0
  %1376 = vmatpush.msra.mxu0 0.0
  %1377 = vmatpush.msra.mxu0 0.0
  %1378 = vmatpush.msra.mxu0 0.0
  %1379 = vmatpush.msra.mxu0 0.0
  %1380 = vmatpush.msra.mxu0 0.0
  %1381 = vmatpush.msra.mxu0 0.0
  %1382 = vmatpush.msra.mxu0 0.0
  %1383 = vmatpush.msra.mxu0 0.0
  %1384 = vmatpush.msra.mxu0 0.0
  %1385 = vmatpush.msra.mxu0 0.0
  %1386 = vmatpush.msra.mxu0 0.0
  %1387 = vmatpush.msra.mxu0 0.0
  %1388 = vmatpush.msra.mxu0 0.0
  %1389 = vmatpush.msra.mxu0 0.0
  %1390 = vmatpush.msra.mxu0 0.0
  %1391 = vmatpush.msra.mxu0 %v44
  %1392 = vmatmul.f32.gmra.mxu0 %v1374
  %v1393 = vpop.f32.mrf.mxu0
  %v1394 = vadd.f32 0.0, %v1393
  %1395 = vdwg.mxu0
  %v1397 = vsel %vm567, %v1256, 0
  %1399 = vmatpush.msra.mxu0 0.0
  %1400 = vmatpush.msra.mxu0 0.0
  %1401 = vmatpush.msra.mxu0 0.0
  %1402 = vmatpush.msra.mxu0 0.0
  %1403 = vmatpush.msra.mxu0 0.0
  %1404 = vmatpush.msra.mxu0 0.0
  %1405 = vmatpush.msra.mxu0 0.0
  %1406 = vmatpush.msra.mxu0 0.0
  %1407 = vmatpush.msra.mxu0 0.0
  %1408 = vmatpush.msra.mxu0 0.0
  %1409 = vmatpush.msra.mxu0 0.0
  %1410 = vmatpush.msra.mxu0 0.0
  %1411 = vmatpush.msra.mxu0 0.0
  %1412 = vmatpush.msra.mxu0 0.0
  %1413 = vmatpush.msra.mxu0 0.0
  %1414 = vmatpush.msra.mxu0 %v45
  %1415 = vmatmul.f32.gmra.mxu0 %v1397
  %v1416 = vpop.f32.mrf.mxu0
  %v1417 = vadd.f32 0.0, %v1416
  %1418 = vdwg.mxu0
  %v1420 = vsel %vm567, %v1257, 0
  %1422 = vmatpush.msra.mxu0 0.0
  %1423 = vmatpush.msra.mxu0 0.0
  %1424 = vmatpush.msra.mxu0 0.0
  %1425 = vmatpush.msra.mxu0 0.0
  %1426 = vmatpush.msra.mxu0 0.0
  %1427 = vmatpush.msra.mxu0 0.0
  %1428 = vmatpush.msra.mxu0 0.0
  %1429 = vmatpush.msra.mxu0 0.0
  %1430 = vmatpush.msra.mxu0 0.0
  %1431 = vmatpush.msra.mxu0 0.0
  %1432 = vmatpush.msra.mxu0 0.0
  %1433 = vmatpush.msra.mxu0 0.0
  %1434 = vmatpush.msra.mxu0 0.0
  %1435 = vmatpush.msra.mxu0 0.0
  %1436 = vmatpush.msra.mxu0 0.0
  %1437 = vmatpush.msra.mxu0 %v46
  %1438 = vmatmul.f32.gmra.mxu0 %v1420
  %v1439 = vpop.f32.mrf.mxu0
  %v1440 = vadd.f32 0.0, %v1439
  %1441 = vdwg.mxu0
  %v1450 = vrot.slane %v1302, 7
  %v1451 = vsel %vm761, %v1450, %v1279
  %v1452 = vrot.slane %v1325, 6
  %v1453 = vsel %vm764, %v1452, %v1451
  %v1454 = vrot.slane %v1348, 5
  %v1455 = vsel %vm767, %v1454, %v1453
  %v1456 = vrot.slane %v1371, 4
  %v1457 = vsel %vm770, %v1456, %v1455
  %v1458 = vrot.slane %v1394, 3
  %v1459 = vsel %vm773, %v1458, %v1457
  %v1460 = vrot.slane %v1417, 2
  %v1461 = vsel %vm776, %v1460, %v1459
  %v1462 = vrot.slane %v1440, 1
  %v1463 = vsel %vm779, %v1462, %v1461
  %1465 = vrot.lane.b32.xlu0 %v961, 64
  %v1466 = vpop.permute.xlu0 %1465
  %v1468 = vsel %vm97, %v1463, %v1466
  %v1470 = vsel %vm99, %v1468, 0
  %1472 = vmatpush.msra.mxu0 0.0
  %1473 = vmatpush.msra.mxu0 0.0
  %1474 = vmatpush.msra.mxu0 0.0
  %1475 = vmatpush.msra.mxu0 0.0
  %1476 = vmatpush.msra.mxu0 0.0
  %1477 = vmatpush.msra.mxu0 0.0
  %1478 = vmatpush.msra.mxu0 0.0
  %1479 = vmatpush.msra.mxu0 0.0
  %1480 = vmatpush.msra.mxu0 %v79
  %1481 = vmatpush.msra.mxu0 %v78
  %1482 = vmatpush.msra.mxu0 %v77
  %1483 = vmatpush.msra.mxu0 %v76
  %1484 = vmatpush.msra.mxu0 %v75
  %1485 = vmatpush.msra.mxu0 %v74
  %1486 = vmatpush.msra.mxu0 %v73
  %1487 = vmatpush.msra.mxu0 %v72
  %1488 = vmatmul.f32.gmra.mxu0 %v1470
  %v1489 = vpop.f32.mrf.mxu0
  %v1490 = vadd.f32 0.0, %v1489
  %1491 = vdwg.mxu0
  %v1492 = vtanh.pop %v1490
  %s1493 = scalar_lea.vmem %s10, 8
  %1494 = vst.msk [vmem:[%s1493] sm:$0xff] %vm97, %v1492
  %v1495 = vrot.slane %v1251, 7
  %v1496 = vsel %vm761, %v1495, %v1250
  %v1497 = vrot.slane %v1252, 6
  %v1498 = vsel %vm764, %v1497, %v1496
  %v1499 = vrot.slane %v1253, 5
  %v1500 = vsel %vm767, %v1499, %v1498
  %v1501 = vrot.slane %v1254, 4
  %v1502 = vsel %vm770, %v1501, %v1500
  %v1503 = vrot.slane %v1255, 3
  %v1504 = vsel %vm773, %v1503, %v1502
  %v1505 = vrot.slane %v1256, 2
  %v1506 = vsel %vm776, %v1505, %v1504
  %v1507 = vrot.slane %v1257, 1
  %v1508 = vsel %vm779, %v1507, %v1506
  %s1510 = scalar_lea.vmem %s11, 8
  %1511 = vst.msk [vmem:[%s1510] sm:$0xff] %vm567, %v1508
  %s1512 = scalar_lea.vmem %s0, 16
  %v1513 = vld [vmem:[%s1512] sm:$0xff]
  %1514 = vrot.lane.b32.xlu0 %v894, 64
  %v1515 = vpop.permute.xlu0 %1514
  %v1517 = vsel %vm97, %v1492, %v1515
  %v1519 = vsel %vm99, %v1517, 0
  %1521 = vmatpush.msra.mxu0 0.0
  %1522 = vmatpush.msra.mxu0 0.0
  %1523 = vmatpush.msra.mxu0 0.0
  %1524 = vmatpush.msra.mxu0 0.0
  %1525 = vmatpush.msra.mxu0 0.0
  %1526 = vmatpush.msra.mxu0 0.0
  %1527 = vmatpush.msra.mxu0 0.0
  %1528 = vmatpush.msra.mxu0 0.0
  %1529 = vmatpush.msra.mxu0 %v62
  %1530 = vmatpush.msra.mxu0 %v61
  %1531 = vmatpush.msra.mxu0 %v60
  %1532 = vmatpush.msra.mxu0 %v59
  %1533 = vmatpush.msra.mxu0 %v58
  %1534 = vmatpush.msra.mxu0 %v57
  %1535 = vmatpush.msra.mxu0 %v56
  %1536 = vmatpush.msra.mxu0 %v55
  %1537 = vmatmul.f32.gmra.mxu0 %v1519
  %v1538 = vpop.f32.mrf.mxu0
  %v1539 = vadd.f32 0.0, %v1538
  %1540 = vdwg.mxu0
  %v1541 = vadd.f32 %v1513, %v1539
  %v1542 = vtanh.pop %v1541
  %v1543 = vxor.u32 %v1541, 2147483648
  %v1544 = vmul.f32 %v1543, 1.442695
  %v1545 = vpow.pop %v1544
  %v1546 = vadd.f32 %v1545, 1.0
  %v1547 = vrcp.pop %v1546
  %v1548 = vmul.f32 %v1546, %v1547
  %v1549 = vsub.f32 1.0, %v1548
  %v1550 = vmul.f32 %v1547, %v1549
  %v1551 = vadd.f32 %v1547, %v1550
  %vm1552 = vweird.f32 %v1546
  %vm1553 = vweird.f32 %v1547
  %vm1554 = vmor %vm1552, %vm1553
  %v1555 = vsel %vm1554, %v1547, %v1551
  %v1556 = vand.u32 2147483647, %v1546
  %vm1557 = vcmp.eq.f32.partialorder %v1556, 8.507059e+37
  %v1558 = vand.u32 %v1546, 2147483648
  %v1559 = vor.u32 1.1754944e-38, %v1558
  %v1560 = vsel %vm1557, %v1559, %v1555
  %v1561 = vmul.f32 1.0, %v1560
  %v1562 = vsel %vm145, %v1542, %v1561
  %v1563 = vmul.f32 %v1562, %v888
  %1565 = vrot.lane.b32.xlu0 %v1562, 64
  %v1566 = vpop.permute.xlu0 %1565
  %v1568 = vmul.f32 %v1562, %v1566
  %1570 = vrot.lane.b32.xlu0 %v1568, 32
  %v1571 = vpop.permute.xlu0 %1570
  %v1573 = vadd.f32 %v1563, %v1571
  %v1574 = vtanh.pop %v1573
  %1576 = vrot.lane.b32.xlu0 %v1574, 64
  %v1577 = vpop.permute.xlu0 %1576
  %v1579 = vmul.f32 %v1562, %v1577
  %1581 = vrot.lane.b32.xlu0 %v1579, 32
  %v1582 = vpop.permute.xlu0 %1581
  %v1584 = vsel %vm97, %v1582, %v1466
  %v1586 = vsel %vm99, %v1584, 0
  %1588 = vmatpush.msra.mxu0 0.0
  %1589 = vmatpush.msra.mxu0 0.0
  %1590 = vmatpush.msra.mxu0 0.0
  %1591 = vmatpush.msra.mxu0 0.0
  %1592 = vmatpush.msra.mxu0 0.0
  %1593 = vmatpush.msra.mxu0 0.0
  %1594 = vmatpush.msra.mxu0 0.0
  %1595 = vmatpush.msra.mxu0 0.0
  %1596 = vmatpush.msra.mxu0 %v70
  %1597 = vmatpush.msra.mxu0 %v69
  %1598 = vmatpush.msra.mxu0 %v68
  %1599 = vmatpush.msra.mxu0 %v67
  %1600 = vmatpush.msra.mxu0 %v66
  %1601 = vmatpush.msra.mxu0 %v65
  %1602 = vmatpush.msra.mxu0 %v64
  %1603 = vmatpush.msra.mxu0 %v63
  %1604 = vmatmul.f32.gmra.mxu0 %v1586
  %v1605 = vpop.f32.mrf.mxu0
  %v1606 = vadd.f32 0.0, %v1605
  %1607 = vdwg.mxu0
  %v1608 = vadd.f32 %v201, %v1606
  %v1609 = vtanh.pop %v1608
  %v1610 = vxor.u32 %v1608, 2147483648
  %v1611 = vmul.f32 %v1610, 1.442695
  %v1612 = vpow.pop %v1611
  %v1613 = vadd.f32 %v1612, 1.0
  %v1614 = vrcp.pop %v1613
  %v1615 = vmul.f32 %v1613, %v1614
  %v1616 = vsub.f32 1.0, %v1615
  %v1617 = vmul.f32 %v1614, %v1616
  %v1618 = vadd.f32 %v1614, %v1617
  %vm1619 = vweird.f32 %v1613
  %vm1620 = vweird.f32 %v1614
  %vm1621 = vmor %vm1619, %vm1620
  %v1622 = vsel %vm1621, %v1614, %v1618
  %v1623 = vand.u32 2147483647, %v1613
  %vm1624 = vcmp.eq.f32.partialorder %v1623, 8.507059e+37
  %v1625 = vand.u32 %v1613, 2147483648
  %v1626 = vor.u32 1.1754944e-38, %v1625
  %v1627 = vsel %vm1624, %v1626, %v1622
  %v1628 = vmul.f32 1.0, %v1627
  %v1629 = vsel %vm145, %v1609, %v1628
  %v1630 = vmul.f32 %v1629, %v955
  %1632 = vrot.lane.b32.xlu0 %v1629, 64
  %v1633 = vpop.permute.xlu0 %1632
  %v1635 = vmul.f32 %v1629, %v1633
  %1637 = vrot.lane.b32.xlu0 %v1635, 32
  %v1638 = vpop.permute.xlu0 %1637
  %v1640 = vadd.f32 %v1630, %v1638
  %v1641 = vtanh.pop %v1640
  %1643 = vrot.lane.b32.xlu0 %v1641, 64
  %v1644 = vpop.permute.xlu0 %1643
  %v1646 = vmul.f32 %v1629, %v1644
  %v1648 = vrot.slane %v1646, 1
  %v1649 = vrot.slane %v1646, 2
  %v1650 = vrot.slane %v1646, 3
  %v1651 = vrot.slane %v1646, 4
  %v1652 = vrot.slane %v1646, 5
  %v1653 = vrot.slane %v1646, 6
  %v1654 = vrot.slane %v1646, 7
  %v1655 = vperm.slane %v1646, 0
  %1656 = vrot.lane.b32.xlu0 %v1655, 32
  %v1657 = vpop.permute.xlu0 %1656
  %v1658 = vsel %vm97, %v1657, 0
  %1660 = vmatpush.xpose.msra.mxu0 0.0
  %1661 = vmatpush.xpose.msra.mxu0 0.0
  %1662 = vmatpush.xpose.msra.mxu0 0.0
  %1663 = vmatpush.xpose.msra.mxu0 0.0
  %1664 = vmatpush.xpose.msra.mxu0 0.0
  %1665 = vmatpush.xpose.msra.mxu0 0.0
  %1666 = vmatpush.xpose.msra.mxu0 0.0
  %1667 = vmatpush.xpose.msra.mxu0 0.0
  %1668 = vmatpush.xpose.msra.mxu0 0.0
  %1669 = vmatpush.xpose.msra.mxu0 0.0
  %1670 = vmatpush.xpose.msra.mxu0 0.0
  %1671 = vmatpush.xpose.msra.mxu0 0.0
  %1672 = vmatpush.xpose.msra.mxu0 0.0
  %1673 = vmatpush.xpose.msra.mxu0 0.0
  %1674 = vmatpush.xpose.msra.mxu0 0.0
  %1675 = vmatpush.xpose.msra.mxu0 %v260
  %1676 = vmatmul.f32.gmra.mxu0 %v1658
  %v1677 = vpop.f32.mrf.mxu0
  %v1678 = vadd.f32 0.0, %v1677
  %1679 = vdwg.mxu0
  %v1680 = vperm.slane %v1648, 0
  %1681 = vrot.lane.b32.xlu0 %v1680, 32
  %v1682 = vpop.permute.xlu0 %1681
  %v1683 = vsel %vm97, %v1682, 0
  %1685 = vmatpush.xpose.msra.mxu0 0.0
  %1686 = vmatpush.xpose.msra.mxu0 0.0
  %1687 = vmatpush.xpose.msra.mxu0 0.0
  %1688 = vmatpush.xpose.msra.mxu0 0.0
  %1689 = vmatpush.xpose.msra.mxu0 0.0
  %1690 = vmatpush.xpose.msra.mxu0 0.0
  %1691 = vmatpush.xpose.msra.mxu0 0.0
  %1692 = vmatpush.xpose.msra.mxu0 0.0
  %1693 = vmatpush.xpose.msra.mxu0 0.0
  %1694 = vmatpush.xpose.msra.mxu0 0.0
  %1695 = vmatpush.xpose.msra.mxu0 0.0
  %1696 = vmatpush.xpose.msra.mxu0 0.0
  %1697 = vmatpush.xpose.msra.mxu0 0.0
  %1698 = vmatpush.xpose.msra.mxu0 0.0
  %1699 = vmatpush.xpose.msra.mxu0 0.0
  %1700 = vmatpush.xpose.msra.mxu0 %v288
  %1701 = vmatmul.f32.gmra.mxu0 %v1683
  %v1702 = vpop.f32.mrf.mxu0
  %v1703 = vadd.f32 0.0, %v1702
  %1704 = vdwg.mxu0
  %v1705 = vperm.slane %v1649, 0
  %1706 = vrot.lane.b32.xlu0 %v1705, 32
  %v1707 = vpop.permute.xlu0 %1706
  %v1708 = vsel %vm97, %v1707, 0
  %1710 = vmatpush.xpose.msra.mxu0 0.0
  %1711 = vmatpush.xpose.msra.mxu0 0.0
  %1712 = vmatpush.xpose.msra.mxu0 0.0
  %1713 = vmatpush.xpose.msra.mxu0 0.0
  %1714 = vmatpush.xpose.msra.mxu0 0.0
  %1715 = vmatpush.xpose.msra.mxu0 0.0
  %1716 = vmatpush.xpose.msra.mxu0 0.0
  %1717 = vmatpush.xpose.msra.mxu0 0.0
  %1718 = vmatpush.xpose.msra.mxu0 0.0
  %1719 = vmatpush.xpose.msra.mxu0 0.0
  %1720 = vmatpush.xpose.msra.mxu0 0.0
  %1721 = vmatpush.xpose.msra.mxu0 0.0
  %1722 = vmatpush.xpose.msra.mxu0 0.0
  %1723 = vmatpush.xpose.msra.mxu0 0.0
  %1724 = vmatpush.xpose.msra.mxu0 0.0
  %1725 = vmatpush.xpose.msra.mxu0 %v316
  %1726 = vmatmul.f32.gmra.mxu0 %v1708
  %v1727 = vpop.f32.mrf.mxu0
  %v1728 = vadd.f32 0.0, %v1727
  %1729 = vdwg.mxu0
  %v1730 = vperm.slane %v1650, 0
  %1731 = vrot.lane.b32.xlu0 %v1730, 32
  %v1732 = vpop.permute.xlu0 %1731
  %v1733 = vsel %vm97, %v1732, 0
  %1735 = vmatpush.xpose.msra.mxu0 0.0
  %1736 = vmatpush.xpose.msra.mxu0 0.0
  %1737 = vmatpush.xpose.msra.mxu0 0.0
  %1738 = vmatpush.xpose.msra.mxu0 0.0
  %1739 = vmatpush.xpose.msra.mxu0 0.0
  %1740 = vmatpush.xpose.msra.mxu0 0.0
  %1741 = vmatpush.xpose.msra.mxu0 0.0
  %1742 = vmatpush.xpose.msra.mxu0 0.0
  %1743 = vmatpush.xpose.msra.mxu0 0.0
  %1744 = vmatpush.xpose.msra.mxu0 0.0
  %1745 = vmatpush.xpose.msra.mxu0 0.0
  %1746 = vmatpush.xpose.msra.mxu0 0.0
  %1747 = vmatpush.xpose.msra.mxu0 0.0
  %1748 = vmatpush.xpose.msra.mxu0 0.0
  %1749 = vmatpush.xpose.msra.mxu0 0.0
  %1750 = vmatpush.xpose.msra.mxu0 %v344
  %1751 = vmatmul.f32.gmra.mxu0 %v1733
  %v1752 = vpop.f32.mrf.mxu0
  %v1753 = vadd.f32 0.0, %v1752
  %1754 = vdwg.mxu0
  %v1755 = vperm.slane %v1651, 0
  %1756 = vrot.lane.b32.xlu0 %v1755, 32
  %v1757 = vpop.permute.xlu0 %1756
  %v1758 = vsel %vm97, %v1757, 0
  %1760 = vmatpush.xpose.msra.mxu0 0.0
  %1761 = vmatpush.xpose.msra.mxu0 0.0
  %1762 = vmatpush.xpose.msra.mxu0 0.0
  %1763 = vmatpush.xpose.msra.mxu0 0.0
  %1764 = vmatpush.xpose.msra.mxu0 0.0
  %1765 = vmatpush.xpose.msra.mxu0 0.0
  %1766 = vmatpush.xpose.msra.mxu0 0.0
  %1767 = vmatpush.xpose.msra.mxu0 0.0
  %1768 = vmatpush.xpose.msra.mxu0 0.0
  %1769 = vmatpush.xpose.msra.mxu0 0.0
  %1770 = vmatpush.xpose.msra.mxu0 0.0
  %1771 = vmatpush.xpose.msra.mxu0 0.0
  %1772 = vmatpush.xpose.msra.mxu0 0.0
  %1773 = vmatpush.xpose.msra.mxu0 0.0
  %1774 = vmatpush.xpose.msra.mxu0 0.0
  %1775 = vmatpush.xpose.msra.mxu0 %v372
  %1776 = vmatmul.f32.gmra.mxu0 %v1758
  %v1777 = vpop.f32.mrf.mxu0
  %v1778 = vadd.f32 0.0, %v1777
  %1779 = vdwg.mxu0
  %v1780 = vperm.slane %v1652, 0
  %1781 = vrot.lane.b32.xlu0 %v1780, 32
  %v1782 = vpop.permute.xlu0 %1781
  %v1783 = vsel %vm97, %v1782, 0
  %1785 = vmatpush.xpose.msra.mxu0 0.0
  %1786 = vmatpush.xpose.msra.mxu0 0.0
  %1787 = vmatpush.xpose.msra.mxu0 0.0
  %1788 = vmatpush.xpose.msra.mxu0 0.0
  %1789 = vmatpush.xpose.msra.mxu0 0.0
  %1790 = vmatpush.xpose.msra.mxu0 0.0
  %1791 = vmatpush.xpose.msra.mxu0 0.0
  %1792 = vmatpush.xpose.msra.mxu0 0.0
  %1793 = vmatpush.xpose.msra.mxu0 0.0
  %1794 = vmatpush.xpose.msra.mxu0 0.0
  %1795 = vmatpush.xpose.msra.mxu0 0.0
  %1796 = vmatpush.xpose.msra.mxu0 0.0
  %1797 = vmatpush.xpose.msra.mxu0 0.0
  %1798 = vmatpush.xpose.msra.mxu0 0.0
  %1799 = vmatpush.xpose.msra.mxu0 0.0
  %1800 = vmatpush.xpose.msra.mxu0 %v400
  %1801 = vmatmul.f32.gmra.mxu0 %v1783
  %v1802 = vpop.f32.mrf.mxu0
  %v1803 = vadd.f32 0.0, %v1802
  %1804 = vdwg.mxu0
  %v1805 = vperm.slane %v1653, 0
  %1806 = vrot.lane.b32.xlu0 %v1805, 32
  %v1807 = vpop.permute.xlu0 %1806
  %v1808 = vsel %vm97, %v1807, 0
  %1810 = vmatpush.xpose.msra.mxu0 0.0
  %1811 = vmatpush.xpose.msra.mxu0 0.0
  %1812 = vmatpush.xpose.msra.mxu0 0.0
  %1813 = vmatpush.xpose.msra.mxu0 0.0
  %1814 = vmatpush.xpose.msra.mxu0 0.0
  %1815 = vmatpush.xpose.msra.mxu0 0.0
  %1816 = vmatpush.xpose.msra.mxu0 0.0
  %1817 = vmatpush.xpose.msra.mxu0 0.0
  %1818 = vmatpush.xpose.msra.mxu0 0.0
  %1819 = vmatpush.xpose.msra.mxu0 0.0
  %1820 = vmatpush.xpose.msra.mxu0 0.0
  %1821 = vmatpush.xpose.msra.mxu0 0.0
  %1822 = vmatpush.xpose.msra.mxu0 0.0
  %1823 = vmatpush.xpose.msra.mxu0 0.0
  %1824 = vmatpush.xpose.msra.mxu0 0.0
  %1825 = vmatpush.xpose.msra.mxu0 %v428
  %1826 = vmatmul.f32.gmra.mxu0 %v1808
  %v1827 = vpop.f32.mrf.mxu0
  %v1828 = vadd.f32 0.0, %v1827
  %1829 = vdwg.mxu0
  %v1830 = vperm.slane %v1654, 0
  %1831 = vrot.lane.b32.xlu0 %v1830, 32
  %v1832 = vpop.permute.xlu0 %1831
  %v1833 = vsel %vm97, %v1832, 0
  %1835 = vmatpush.xpose.msra.mxu0 0.0
  %1836 = vmatpush.xpose.msra.mxu0 0.0
  %1837 = vmatpush.xpose.msra.mxu0 0.0
  %1838 = vmatpush.xpose.msra.mxu0 0.0
  %1839 = vmatpush.xpose.msra.mxu0 0.0
  %1840 = vmatpush.xpose.msra.mxu0 0.0
  %1841 = vmatpush.xpose.msra.mxu0 0.0
  %1842 = vmatpush.xpose.msra.mxu0 0.0
  %1843 = vmatpush.xpose.msra.mxu0 0.0
  %1844 = vmatpush.xpose.msra.mxu0 0.0
  %1845 = vmatpush.xpose.msra.mxu0 0.0
  %1846 = vmatpush.xpose.msra.mxu0 0.0
  %1847 = vmatpush.xpose.msra.mxu0 0.0
  %1848 = vmatpush.xpose.msra.mxu0 0.0
  %1849 = vmatpush.xpose.msra.mxu0 0.0
  %1850 = vmatpush.xpose.msra.mxu0 %v456
  %1851 = vmatmul.f32.gmra.mxu0 %v1833
  %v1852 = vpop.f32.mrf.mxu0
  %v1853 = vadd.f32 0.0, %v1852
  %1854 = vdwg.mxu0
  %v1855 = vsel %vm478, %v1678, -inf
  %1856 = vmax.xlane.f32.xlu0 %v1855
  %v1857 = vpop.xlane.xlu0 %1856
  %v1858 = vsel %vm478, %v1703, -inf
  %1859 = vmax.xlane.f32.xlu0 %v1858
  %v1860 = vpop.xlane.xlu0 %1859
  %v1861 = vsel %vm478, %v1728, -inf
  %1862 = vmax.xlane.f32.xlu0 %v1861
  %v1863 = vpop.xlane.xlu0 %1862
  %v1864 = vsel %vm478, %v1753, -inf
  %1865 = vmax.xlane.f32.xlu0 %v1864
  %v1866 = vpop.xlane.xlu0 %1865
  %v1867 = vsel %vm478, %v1778, -inf
  %1868 = vmax.xlane.f32.xlu0 %v1867
  %v1869 = vpop.xlane.xlu0 %1868
  %v1870 = vsel %vm478, %v1803, -inf
  %1871 = vmax.xlane.f32.xlu0 %v1870
  %v1872 = vpop.xlane.xlu0 %1871
  %v1873 = vsel %vm478, %v1828, -inf
  %1874 = vmax.xlane.f32.xlu0 %v1873
  %v1875 = vpop.xlane.xlu0 %1874
  %v1876 = vsel %vm478, %v1853, -inf
  %1877 = vmax.xlane.f32.xlu0 %v1876
  %v1878 = vpop.xlane.xlu0 %1877
  %v1879 = vsub.f32 %v1678, %v1857
  %v1880 = vsub.f32 %v1703, %v1860
  %v1881 = vsub.f32 %v1728, %v1863
  %v1882 = vsub.f32 %v1753, %v1866
  %v1883 = vsub.f32 %v1778, %v1869
  %v1884 = vsub.f32 %v1803, %v1872
  %v1885 = vsub.f32 %v1828, %v1875
  %v1886 = vsub.f32 %v1853, %v1878
  %v1887 = vmul.f32 %v1879, 1.442695
  %v1888 = vpow.pop %v1887
  %v1889 = vmul.f32 %v1880, 1.442695
  %v1890 = vpow.pop %v1889
  %v1891 = vmul.f32 %v1881, 1.442695
  %v1892 = vpow.pop %v1891
  %v1893 = vmul.f32 %v1882, 1.442695
  %v1894 = vpow.pop %v1893
  %v1895 = vmul.f32 %v1883, 1.442695
  %v1896 = vpow.pop %v1895
  %v1897 = vmul.f32 %v1884, 1.442695
  %v1898 = vpow.pop %v1897
  %v1899 = vmul.f32 %v1885, 1.442695
  %v1900 = vpow.pop %v1899
  %v1901 = vmul.f32 %v1886, 1.442695
  %v1902 = vpow.pop %v1901
  %v1903 = vsel %vm478, %v1888, 0.0
  %1904 = vadd.xlane.f32.xlu0 %v1903
  %v1905 = vpop.xlane.xlu0 %1904
  %v1906 = vsel %vm478, %v1890, 0.0
  %1907 = vadd.xlane.f32.xlu0 %v1906
  %v1908 = vpop.xlane.xlu0 %1907
  %v1909 = vsel %vm478, %v1892, 0.0
  %1910 = vadd.xlane.f32.xlu0 %v1909
  %v1911 = vpop.xlane.xlu0 %1910
  %v1912 = vsel %vm478, %v1894, 0.0
  %1913 = vadd.xlane.f32.xlu0 %v1912
  %v1914 = vpop.xlane.xlu0 %1913
  %v1915 = vsel %vm478, %v1896, 0.0
  %1916 = vadd.xlane.f32.xlu0 %v1915
  %v1917 = vpop.xlane.xlu0 %1916
  %v1918 = vsel %vm478, %v1898, 0.0
  %1919 = vadd.xlane.f32.xlu0 %v1918
  %v1920 = vpop.xlane.xlu0 %1919
  %v1921 = vsel %vm478, %v1900, 0.0
  %1922 = vadd.xlane.f32.xlu0 %v1921
  %v1923 = vpop.xlane.xlu0 %1922
  %v1924 = vsel %vm478, %v1902, 0.0
  %1925 = vadd.xlane.f32.xlu0 %v1924
  %v1926 = vpop.xlane.xlu0 %1925
  %v1927 = vrcp.pop %v1905
  %v1928 = vrcp.pop %v1908
  %v1929 = vrcp.pop %v1911
  %v1930 = vrcp.pop %v1914
  %v1931 = vrcp.pop %v1917
  %v1932 = vrcp.pop %v1920
  %v1933 = vrcp.pop %v1923
  %v1934 = vrcp.pop %v1926
  %v1935 = vmul.f32 %v1888, %v1927
  %v1936 = vmul.f32 %v1890, %v1928
  %v1937 = vmul.f32 %v1892, %v1929
  %v1938 = vmul.f32 %v1894, %v1930
  %v1939 = vmul.f32 %v1896, %v1931
  %v1940 = vmul.f32 %v1898, %v1932
  %v1941 = vmul.f32 %v1900, %v1933
  %v1942 = vmul.f32 %v1902, %v1934
  %v1944 = vsel %vm567, %v1935, 0
  %1946 = vmatpush.msra.mxu0 0.0
  %1947 = vmatpush.msra.mxu0 0.0
  %1948 = vmatpush.msra.mxu0 0.0
  %1949 = vmatpush.msra.mxu0 0.0
  %1950 = vmatpush.msra.mxu0 0.0
  %1951 = vmatpush.msra.mxu0 0.0
  %1952 = vmatpush.msra.mxu0 0.0
  %1953 = vmatpush.msra.mxu0 0.0
  %1954 = vmatpush.msra.mxu0 0.0
  %1955 = vmatpush.msra.mxu0 0.0
  %1956 = vmatpush.msra.mxu0 0.0
  %1957 = vmatpush.msra.mxu0 0.0
  %1958 = vmatpush.msra.mxu0 0.0
  %1959 = vmatpush.msra.mxu0 0.0
  %1960 = vmatpush.msra.mxu0 0.0
  %1961 = vmatpush.msra.mxu0 %v39
  %1962 = vmatmul.f32.gmra.mxu0 %v1944
  %v1963 = vpop.f32.mrf.mxu0
  %v1964 = vadd.f32 0.0, %v1963
  %1965 = vdwg.mxu0
  %v1967 = vsel %vm567, %v1936, 0
  %1969 = vmatpush.msra.mxu0 0.0
  %1970 = vmatpush.msra.mxu0 0.0
  %1971 = vmatpush.msra.mxu0 0.0
  %1972 = vmatpush.msra.mxu0 0.0
  %1973 = vmatpush.msra.mxu0 0.0
  %1974 = vmatpush.msra.mxu0 0.0
  %1975 = vmatpush.msra.mxu0 0.0
  %1976 = vmatpush.msra.mxu0 0.0
  %1977 = vmatpush.msra.mxu0 0.0
  %1978 = vmatpush.msra.mxu0 0.0
  %1979 = vmatpush.msra.mxu0 0.0
  %1980 = vmatpush.msra.mxu0 0.0
  %1981 = vmatpush.msra.mxu0 0.0
  %1982 = vmatpush.msra.mxu0 0.0
  %1983 = vmatpush.msra.mxu0 0.0
  %1984 = vmatpush.msra.mxu0 %v40
  %1985 = vmatmul.f32.gmra.mxu0 %v1967
  %v1986 = vpop.f32.mrf.mxu0
  %v1987 = vadd.f32 0.0, %v1986
  %1988 = vdwg.mxu0
  %v1990 = vsel %vm567, %v1937, 0
  %1992 = vmatpush.msra.mxu0 0.0
  %1993 = vmatpush.msra.mxu0 0.0
  %1994 = vmatpush.msra.mxu0 0.0
  %1995 = vmatpush.msra.mxu0 0.0
  %1996 = vmatpush.msra.mxu0 0.0
  %1997 = vmatpush.msra.mxu0 0.0
  %1998 = vmatpush.msra.mxu0 0.0
  %1999 = vmatpush.msra.mxu0 0.0
  %2000 = vmatpush.msra.mxu0 0.0
  %2001 = vmatpush.msra.mxu0 0.0
  %2002 = vmatpush.msra.mxu0 0.0
  %2003 = vmatpush.msra.mxu0 0.0
  %2004 = vmatpush.msra.mxu0 0.0
  %2005 = vmatpush.msra.mxu0 0.0
  %2006 = vmatpush.msra.mxu0 0.0
  %2007 = vmatpush.msra.mxu0 %v41
  %2008 = vmatmul.f32.gmra.mxu0 %v1990
  %v2009 = vpop.f32.mrf.mxu0
  %v2010 = vadd.f32 0.0, %v2009
  %2011 = vdwg.mxu0
  %v2013 = vsel %vm567, %v1938, 0
  %2015 = vmatpush.msra.mxu0 0.0
  %2016 = vmatpush.msra.mxu0 0.0
  %2017 = vmatpush.msra.mxu0 0.0
  %2018 = vmatpush.msra.mxu0 0.0
  %2019 = vmatpush.msra.mxu0 0.0
  %2020 = vmatpush.msra.mxu0 0.0
  %2021 = vmatpush.msra.mxu0 0.0
  %2022 = vmatpush.msra.mxu0 0.0
  %2023 = vmatpush.msra.mxu0 0.0
  %2024 = vmatpush.msra.mxu0 0.0
  %2025 = vmatpush.msra.mxu0 0.0
  %2026 = vmatpush.msra.mxu0 0.0
  %2027 = vmatpush.msra.mxu0 0.0
  %2028 = vmatpush.msra.mxu0 0.0
  %2029 = vmatpush.msra.mxu0 0.0
  %2030 = vmatpush.msra.mxu0 %v42
  %2031 = vmatmul.f32.gmra.mxu0 %v2013
  %v2032 = vpop.f32.mrf.mxu0
  %v2033 = vadd.f32 0.0, %v2032
  %2034 = vdwg.mxu0
  %v2036 = vsel %vm567, %v1939, 0
  %2038 = vmatpush.msra.mxu0 0.0
  %2039 = vmatpush.msra.mxu0 0.0
  %2040 = vmatpush.msra.mxu0 0.0
  %2041 = vmatpush.msra.mxu0 0.0
  %2042 = vmatpush.msra.mxu0 0.0
  %2043 = vmatpush.msra.mxu0 0.0
  %2044 = vmatpush.msra.mxu0 0.0
  %2045 = vmatpush.msra.mxu0 0.0
  %2046 = vmatpush.msra.mxu0 0.0
  %2047 = vmatpush.msra.mxu0 0.0
  %2048 = vmatpush.msra.mxu0 0.0
  %2049 = vmatpush.msra.mxu0 0.0
  %2050 = vmatpush.msra.mxu0 0.0
  %2051 = vmatpush.msra.mxu0 0.0
  %2052 = vmatpush.msra.mxu0 0.0
  %2053 = vmatpush.msra.mxu0 %v43
  %2054 = vmatmul.f32.gmra.mxu0 %v2036
  %v2055 = vpop.f32.mrf.mxu0
  %v2056 = vadd.f32 0.0, %v2055
  %2057 = vdwg.mxu0
  %v2059 = vsel %vm567, %v1940, 0
  %2061 = vmatpush.msra.mxu0 0.0
  %2062 = vmatpush.msra.mxu0 0.0
  %2063 = vmatpush.msra.mxu0 0.0
  %2064 = vmatpush.msra.mxu0 0.0
  %2065 = vmatpush.msra.mxu0 0.0
  %2066 = vmatpush.msra.mxu0 0.0
  %2067 = vmatpush.msra.mxu0 0.0
  %2068 = vmatpush.msra.mxu0 0.0
  %2069 = vmatpush.msra.mxu0 0.0
  %2070 = vmatpush.msra.mxu0 0.0
  %2071 = vmatpush.msra.mxu0 0.0
  %2072 = vmatpush.msra.mxu0 0.0
  %2073 = vmatpush.msra.mxu0 0.0
  %2074 = vmatpush.msra.mxu0 0.0
  %2075 = vmatpush.msra.mxu0 0.0
  %2076 = vmatpush.msra.mxu0 %v44
  %2077 = vmatmul.f32.gmra.mxu0 %v2059
  %v2078 = vpop.f32.mrf.mxu0
  %v2079 = vadd.f32 0.0, %v2078
  %2080 = vdwg.mxu0
  %v2082 = vsel %vm567, %v1941, 0
  %2084 = vmatpush.msra.mxu0 0.0
  %2085 = vmatpush.msra.mxu0 0.0
  %2086 = vmatpush.msra.mxu0 0.0
  %2087 = vmatpush.msra.mxu0 0.0
  %2088 = vmatpush.msra.mxu0 0.0
  %2089 = vmatpush.msra.mxu0 0.0
  %2090 = vmatpush.msra.mxu0 0.0
  %2091 = vmatpush.msra.mxu0 0.0
  %2092 = vmatpush.msra.mxu0 0.0
  %2093 = vmatpush.msra.mxu0 0.0
  %2094 = vmatpush.msra.mxu0 0.0
  %2095 = vmatpush.msra.mxu0 0.0
  %2096 = vmatpush.msra.mxu0 0.0
  %2097 = vmatpush.msra.mxu0 0.0
  %2098 = vmatpush.msra.mxu0 0.0
  %2099 = vmatpush.msra.mxu0 %v45
  %2100 = vmatmul.f32.gmra.mxu0 %v2082
  %v2101 = vpop.f32.mrf.mxu0
  %v2102 = vadd.f32 0.0, %v2101
  %2103 = vdwg.mxu0
  %v2105 = vsel %vm567, %v1942, 0
  %2107 = vmatpush.msra.mxu0 0.0
  %2108 = vmatpush.msra.mxu0 0.0
  %2109 = vmatpush.msra.mxu0 0.0
  %2110 = vmatpush.msra.mxu0 0.0
  %2111 = vmatpush.msra.mxu0 0.0
  %2112 = vmatpush.msra.mxu0 0.0
  %2113 = vmatpush.msra.mxu0 0.0
  %2114 = vmatpush.msra.mxu0 0.0
  %2115 = vmatpush.msra.mxu0 0.0
  %2116 = vmatpush.msra.mxu0 0.0
  %2117 = vmatpush.msra.mxu0 0.0
  %2118 = vmatpush.msra.mxu0 0.0
  %2119 = vmatpush.msra.mxu0 0.0
  %2120 = vmatpush.msra.mxu0 0.0
  %2121 = vmatpush.msra.mxu0 0.0
  %2122 = vmatpush.msra.mxu0 %v46
  %2123 = vmatmul.f32.gmra.mxu0 %v2105
  %v2124 = vpop.f32.mrf.mxu0
  %v2125 = vadd.f32 0.0, %v2124
  %2126 = vdwg.mxu0
  %v2135 = vrot.slane %v1987, 7
  %v2136 = vsel %vm761, %v2135, %v1964
  %v2137 = vrot.slane %v2010, 6
  %v2138 = vsel %vm764, %v2137, %v2136
  %v2139 = vrot.slane %v2033, 5
  %v2140 = vsel %vm767, %v2139, %v2138
  %v2141 = vrot.slane %v2056, 4
  %v2142 = vsel %vm770, %v2141, %v2140
  %v2143 = vrot.slane %v2079, 3
  %v2144 = vsel %vm773, %v2143, %v2142
  %v2145 = vrot.slane %v2102, 2
  %v2146 = vsel %vm776, %v2145, %v2144
  %v2147 = vrot.slane %v2125, 1
  %v2148 = vsel %vm779, %v2147, %v2146
  %2150 = vrot.lane.b32.xlu0 %v1646, 64
  %v2151 = vpop.permute.xlu0 %2150
  %v2153 = vsel %vm97, %v2148, %v2151
  %v2155 = vsel %vm99, %v2153, 0
  %2157 = vmatpush.msra.mxu0 0.0
  %2158 = vmatpush.msra.mxu0 0.0
  %2159 = vmatpush.msra.mxu0 0.0
  %2160 = vmatpush.msra.mxu0 0.0
  %2161 = vmatpush.msra.mxu0 0.0
  %2162 = vmatpush.msra.mxu0 0.0
  %2163 = vmatpush.msra.mxu0 0.0
  %2164 = vmatpush.msra.mxu0 0.0
  %2165 = vmatpush.msra.mxu0 %v79
  %2166 = vmatpush.msra.mxu0 %v78
  %2167 = vmatpush.msra.mxu0 %v77
  %2168 = vmatpush.msra.mxu0 %v76
  %2169 = vmatpush.msra.mxu0 %v75
  %2170 = vmatpush.msra.mxu0 %v74
  %2171 = vmatpush.msra.mxu0 %v73
  %2172 = vmatpush.msra.mxu0 %v72
  %2173 = vmatmul.f32.gmra.mxu0 %v2155
  %v2174 = vpop.f32.mrf.mxu0
  %v2175 = vadd.f32 0.0, %v2174
  %2176 = vdwg.mxu0
  %v2177 = vtanh.pop %v2175
  %s2178 = scalar_lea.vmem %s10, 16
  %2179 = vst.msk [vmem:[%s2178] sm:$0xff] %vm97, %v2177
  %v2180 = vrot.slane %v1936, 7
  %v2181 = vsel %vm761, %v2180, %v1935
  %v2182 = vrot.slane %v1937, 6
  %v2183 = vsel %vm764, %v2182, %v2181
  %v2184 = vrot.slane %v1938, 5
  %v2185 = vsel %vm767, %v2184, %v2183
  %v2186 = vrot.slane %v1939, 4
  %v2187 = vsel %vm770, %v2186, %v2185
  %v2188 = vrot.slane %v1940, 3
  %v2189 = vsel %vm773, %v2188, %v2187
  %v2190 = vrot.slane %v1941, 2
  %v2191 = vsel %vm776, %v2190, %v2189
  %v2192 = vrot.slane %v1942, 1
  %v2193 = vsel %vm779, %v2192, %v2191
  %s2195 = scalar_lea.vmem %s11, 16
  %2196 = vst.msk [vmem:[%s2195] sm:$0xff] %vm567, %v2193
  %s2197 = scalar_lea.vmem %s0, 24
  %v2198 = vld [vmem:[%s2197] sm:$0xff]
  %2199 = vrot.lane.b32.xlu0 %v1579, 64
  %v2200 = vpop.permute.xlu0 %2199
  %v2202 = vsel %vm97, %v2177, %v2200
  %v2204 = vsel %vm99, %v2202, 0
  %2206 = vmatpush.msra.mxu0 0.0
  %2207 = vmatpush.msra.mxu0 0.0
  %2208 = vmatpush.msra.mxu0 0.0
  %2209 = vmatpush.msra.mxu0 0.0
  %2210 = vmatpush.msra.mxu0 0.0
  %2211 = vmatpush.msra.mxu0 0.0
  %2212 = vmatpush.msra.mxu0 0.0
  %2213 = vmatpush.msra.mxu0 0.0
  %2214 = vmatpush.msra.mxu0 %v62
  %2215 = vmatpush.msra.mxu0 %v61
  %2216 = vmatpush.msra.mxu0 %v60
  %2217 = vmatpush.msra.mxu0 %v59
  %2218 = vmatpush.msra.mxu0 %v58
  %2219 = vmatpush.msra.mxu0 %v57
  %2220 = vmatpush.msra.mxu0 %v56
  %2221 = vmatpush.msra.mxu0 %v55
  %2222 = vmatmul.f32.gmra.mxu0 %v2204
  %v2223 = vpop.f32.mrf.mxu0
  %v2224 = vadd.f32 0.0, %v2223
  %2225 = vdwg.mxu0
  %v2226 = vadd.f32 %v2198, %v2224
  %v2227 = vtanh.pop %v2226
  %v2228 = vxor.u32 %v2226, 2147483648
  %v2229 = vmul.f32 %v2228, 1.442695
  %v2230 = vpow.pop %v2229
  %v2231 = vadd.f32 %v2230, 1.0
  %v2232 = vrcp.pop %v2231
  %v2233 = vmul.f32 %v2231, %v2232
  %v2234 = vsub.f32 1.0, %v2233
  %v2235 = vmul.f32 %v2232, %v2234
  %v2236 = vadd.f32 %v2232, %v2235
  %vm2237 = vweird.f32 %v2231
  %vm2238 = vweird.f32 %v2232
  %vm2239 = vmor %vm2237, %vm2238
  %v2240 = vsel %vm2239, %v2232, %v2236
  %v2241 = vand.u32 2147483647, %v2231
  %vm2242 = vcmp.eq.f32.partialorder %v2241, 8.507059e+37
  %v2243 = vand.u32 %v2231, 2147483648
  %v2244 = vor.u32 1.1754944e-38, %v2243
  %v2245 = vsel %vm2242, %v2244, %v2240
  %v2246 = vmul.f32 1.0, %v2245
  %v2247 = vsel %vm145, %v2227, %v2246
  %v2248 = vmul.f32 %v2247, %v1573
  %2250 = vrot.lane.b32.xlu0 %v2247, 64
  %v2251 = vpop.permute.xlu0 %2250
  %v2253 = vmul.f32 %v2247, %v2251
  %2255 = vrot.lane.b32.xlu0 %v2253, 32
  %v2256 = vpop.permute.xlu0 %2255
  %v2258 = vadd.f32 %v2248, %v2256
  %v2259 = vtanh.pop %v2258
  %2261 = vrot.lane.b32.xlu0 %v2259, 64
  %v2262 = vpop.permute.xlu0 %2261
  %v2264 = vmul.f32 %v2247, %v2262
  %2266 = vrot.lane.b32.xlu0 %v2264, 32
  %v2267 = vpop.permute.xlu0 %2266
  %v2269 = vsel %vm97, %v2267, %v2151
  %v2271 = vsel %vm99, %v2269, 0
  %2273 = vmatpush.msra.mxu0 0.0
  %2274 = vmatpush.msra.mxu0 0.0
  %2275 = vmatpush.msra.mxu0 0.0
  %2276 = vmatpush.msra.mxu0 0.0
  %2277 = vmatpush.msra.mxu0 0.0
  %2278 = vmatpush.msra.mxu0 0.0
  %2279 = vmatpush.msra.mxu0 0.0
  %2280 = vmatpush.msra.mxu0 0.0
  %2281 = vmatpush.msra.mxu0 %v70
  %2282 = vmatpush.msra.mxu0 %v69
  %2283 = vmatpush.msra.mxu0 %v68
  %2284 = vmatpush.msra.mxu0 %v67
  %2285 = vmatpush.msra.mxu0 %v66
  %2286 = vmatpush.msra.mxu0 %v65
  %2287 = vmatpush.msra.mxu0 %v64
  %2288 = vmatpush.msra.mxu0 %v63
  %2289 = vmatmul.f32.gmra.mxu0 %v2271
  %v2290 = vpop.f32.mrf.mxu0
  %v2291 = vadd.f32 0.0, %v2290
  %2292 = vdwg.mxu0
  %v2293 = vadd.f32 %v201, %v2291
  %v2294 = vtanh.pop %v2293
  %v2295 = vxor.u32 %v2293, 2147483648
  %v2296 = vmul.f32 %v2295, 1.442695
  %v2297 = vpow.pop %v2296
  %v2298 = vadd.f32 %v2297, 1.0
  %v2299 = vrcp.pop %v2298
  %v2300 = vmul.f32 %v2298, %v2299
  %v2301 = vsub.f32 1.0, %v2300
  %v2302 = vmul.f32 %v2299, %v2301
  %v2303 = vadd.f32 %v2299, %v2302
  %vm2304 = vweird.f32 %v2298
  %vm2305 = vweird.f32 %v2299
  %vm2306 = vmor %vm2304, %vm2305
  %v2307 = vsel %vm2306, %v2299, %v2303
  %v2308 = vand.u32 2147483647, %v2298
  %vm2309 = vcmp.eq.f32.partialorder %v2308, 8.507059e+37
  %v2310 = vand.u32 %v2298, 2147483648
  %v2311 = vor.u32 1.1754944e-38, %v2310
  %v2312 = vsel %vm2309, %v2311, %v2307
  %v2313 = vmul.f32 1.0, %v2312
  %v2314 = vsel %vm145, %v2294, %v2313
  %v2315 = vmul.f32 %v2314, %v1640
  %2317 = vrot.lane.b32.xlu0 %v2314, 64
  %v2318 = vpop.permute.xlu0 %2317
  %v2320 = vmul.f32 %v2314, %v2318
  %2322 = vrot.lane.b32.xlu0 %v2320, 32
  %v2323 = vpop.permute.xlu0 %2322
  %v2325 = vadd.f32 %v2315, %v2323
  %v2326 = vtanh.pop %v2325
  %2328 = vrot.lane.b32.xlu0 %v2326, 64
  %v2329 = vpop.permute.xlu0 %2328
  %v2331 = vmul.f32 %v2314, %v2329
  %v2333 = vrot.slane %v2331, 1
  %v2334 = vrot.slane %v2331, 2
  %v2335 = vrot.slane %v2331, 3
  %v2336 = vrot.slane %v2331, 4
  %v2337 = vrot.slane %v2331, 5
  %v2338 = vrot.slane %v2331, 6
  %v2339 = vrot.slane %v2331, 7
  %v2340 = vperm.slane %v2331, 0
  %2341 = vrot.lane.b32.xlu0 %v2340, 32
  %v2342 = vpop.permute.xlu0 %2341
  %v2343 = vsel %vm97, %v2342, 0
  %2345 = vmatpush.xpose.msra.mxu0 0.0
  %2346 = vmatpush.xpose.msra.mxu0 0.0
  %2347 = vmatpush.xpose.msra.mxu0 0.0
  %2348 = vmatpush.xpose.msra.mxu0 0.0
  %2349 = vmatpush.xpose.msra.mxu0 0.0
  %2350 = vmatpush.xpose.msra.mxu0 0.0
  %2351 = vmatpush.xpose.msra.mxu0 0.0
  %2352 = vmatpush.xpose.msra.mxu0 0.0
  %2353 = vmatpush.xpose.msra.mxu0 0.0
  %2354 = vmatpush.xpose.msra.mxu0 0.0
  %2355 = vmatpush.xpose.msra.mxu0 0.0
  %2356 = vmatpush.xpose.msra.mxu0 0.0
  %2357 = vmatpush.xpose.msra.mxu0 0.0
  %2358 = vmatpush.xpose.msra.mxu0 0.0
  %2359 = vmatpush.xpose.msra.mxu0 0.0
  %2360 = vmatpush.xpose.msra.mxu0 %v260
  %2361 = vmatmul.f32.gmra.mxu0 %v2343
  %v2362 = vpop.f32.mrf.mxu0
  %v2363 = vadd.f32 0.0, %v2362
  %2364 = vdwg.mxu0
  %v2365 = vperm.slane %v2333, 0
  %2366 = vrot.lane.b32.xlu0 %v2365, 32
  %v2367 = vpop.permute.xlu0 %2366
  %v2368 = vsel %vm97, %v2367, 0
  %2370 = vmatpush.xpose.msra.mxu0 0.0
  %2371 = vmatpush.xpose.msra.mxu0 0.0
  %2372 = vmatpush.xpose.msra.mxu0 0.0
  %2373 = vmatpush.xpose.msra.mxu0 0.0
  %2374 = vmatpush.xpose.msra.mxu0 0.0
  %2375 = vmatpush.xpose.msra.mxu0 0.0
  %2376 = vmatpush.xpose.msra.mxu0 0.0
  %2377 = vmatpush.xpose.msra.mxu0 0.0
  %2378 = vmatpush.xpose.msra.mxu0 0.0
  %2379 = vmatpush.xpose.msra.mxu0 0.0
  %2380 = vmatpush.xpose.msra.mxu0 0.0
  %2381 = vmatpush.xpose.msra.mxu0 0.0
  %2382 = vmatpush.xpose.msra.mxu0 0.0
  %2383 = vmatpush.xpose.msra.mxu0 0.0
  %2384 = vmatpush.xpose.msra.mxu0 0.0
  %2385 = vmatpush.xpose.msra.mxu0 %v288
  %2386 = vmatmul.f32.gmra.mxu0 %v2368
  %v2387 = vpop.f32.mrf.mxu0
  %v2388 = vadd.f32 0.0, %v2387
  %2389 = vdwg.mxu0
  %v2390 = vperm.slane %v2334, 0
  %2391 = vrot.lane.b32.xlu0 %v2390, 32
  %v2392 = vpop.permute.xlu0 %2391
  %v2393 = vsel %vm97, %v2392, 0
  %2395 = vmatpush.xpose.msra.mxu0 0.0
  %2396 = vmatpush.xpose.msra.mxu0 0.0
  %2397 = vmatpush.xpose.msra.mxu0 0.0
  %2398 = vmatpush.xpose.msra.mxu0 0.0
  %2399 = vmatpush.xpose.msra.mxu0 0.0
  %2400 = vmatpush.xpose.msra.mxu0 0.0
  %2401 = vmatpush.xpose.msra.mxu0 0.0
  %2402 = vmatpush.xpose.msra.mxu0 0.0
  %2403 = vmatpush.xpose.msra.mxu0 0.0
  %2404 = vmatpush.xpose.msra.mxu0 0.0
  %2405 = vmatpush.xpose.msra.mxu0 0.0
  %2406 = vmatpush.xpose.msra.mxu0 0.0
  %2407 = vmatpush.xpose.msra.mxu0 0.0
  %2408 = vmatpush.xpose.msra.mxu0 0.0
  %2409 = vmatpush.xpose.msra.mxu0 0.0
  %2410 = vmatpush.xpose.msra.mxu0 %v316
  %2411 = vmatmul.f32.gmra.mxu0 %v2393
  %v2412 = vpop.f32.mrf.mxu0
  %v2413 = vadd.f32 0.0, %v2412
  %2414 = vdwg.mxu0
  %v2415 = vperm.slane %v2335, 0
  %2416 = vrot.lane.b32.xlu0 %v2415, 32
  %v2417 = vpop.permute.xlu0 %2416
  %v2418 = vsel %vm97, %v2417, 0
  %2420 = vmatpush.xpose.msra.mxu0 0.0
  %2421 = vmatpush.xpose.msra.mxu0 0.0
  %2422 = vmatpush.xpose.msra.mxu0 0.0
  %2423 = vmatpush.xpose.msra.mxu0 0.0
  %2424 = vmatpush.xpose.msra.mxu0 0.0
  %2425 = vmatpush.xpose.msra.mxu0 0.0
  %2426 = vmatpush.xpose.msra.mxu0 0.0
  %2427 = vmatpush.xpose.msra.mxu0 0.0
  %2428 = vmatpush.xpose.msra.mxu0 0.0
  %2429 = vmatpush.xpose.msra.mxu0 0.0
  %2430 = vmatpush.xpose.msra.mxu0 0.0
  %2431 = vmatpush.xpose.msra.mxu0 0.0
  %2432 = vmatpush.xpose.msra.mxu0 0.0
  %2433 = vmatpush.xpose.msra.mxu0 0.0
  %2434 = vmatpush.xpose.msra.mxu0 0.0
  %2435 = vmatpush.xpose.msra.mxu0 %v344
  %2436 = vmatmul.f32.gmra.mxu0 %v2418
  %v2437 = vpop.f32.mrf.mxu0
  %v2438 = vadd.f32 0.0, %v2437
  %2439 = vdwg.mxu0
  %v2440 = vperm.slane %v2336, 0
  %2441 = vrot.lane.b32.xlu0 %v2440, 32
  %v2442 = vpop.permute.xlu0 %2441
  %v2443 = vsel %vm97, %v2442, 0
  %2445 = vmatpush.xpose.msra.mxu0 0.0
  %2446 = vmatpush.xpose.msra.mxu0 0.0
  %2447 = vmatpush.xpose.msra.mxu0 0.0
  %2448 = vmatpush.xpose.msra.mxu0 0.0
  %2449 = vmatpush.xpose.msra.mxu0 0.0
  %2450 = vmatpush.xpose.msra.mxu0 0.0
  %2451 = vmatpush.xpose.msra.mxu0 0.0
  %2452 = vmatpush.xpose.msra.mxu0 0.0
  %2453 = vmatpush.xpose.msra.mxu0 0.0
  %2454 = vmatpush.xpose.msra.mxu0 0.0
  %2455 = vmatpush.xpose.msra.mxu0 0.0
  %2456 = vmatpush.xpose.msra.mxu0 0.0
  %2457 = vmatpush.xpose.msra.mxu0 0.0
  %2458 = vmatpush.xpose.msra.mxu0 0.0
  %2459 = vmatpush.xpose.msra.mxu0 0.0
  %2460 = vmatpush.xpose.msra.mxu0 %v372
  %2461 = vmatmul.f32.gmra.mxu0 %v2443
  %v2462 = vpop.f32.mrf.mxu0
  %v2463 = vadd.f32 0.0, %v2462
  %2464 = vdwg.mxu0
  %v2465 = vperm.slane %v2337, 0
  %2466 = vrot.lane.b32.xlu0 %v2465, 32
  %v2467 = vpop.permute.xlu0 %2466
  %v2468 = vsel %vm97, %v2467, 0
  %2470 = vmatpush.xpose.msra.mxu0 0.0
  %2471 = vmatpush.xpose.msra.mxu0 0.0
  %2472 = vmatpush.xpose.msra.mxu0 0.0
  %2473 = vmatpush.xpose.msra.mxu0 0.0
  %2474 = vmatpush.xpose.msra.mxu0 0.0
  %2475 = vmatpush.xpose.msra.mxu0 0.0
  %2476 = vmatpush.xpose.msra.mxu0 0.0
  %2477 = vmatpush.xpose.msra.mxu0 0.0
  %2478 = vmatpush.xpose.msra.mxu0 0.0
  %2479 = vmatpush.xpose.msra.mxu0 0.0
  %2480 = vmatpush.xpose.msra.mxu0 0.0
  %2481 = vmatpush.xpose.msra.mxu0 0.0
  %2482 = vmatpush.xpose.msra.mxu0 0.0
  %2483 = vmatpush.xpose.msra.mxu0 0.0
  %2484 = vmatpush.xpose.msra.mxu0 0.0
  %2485 = vmatpush.xpose.msra.mxu0 %v400
  %2486 = vmatmul.f32.gmra.mxu0 %v2468
  %v2487 = vpop.f32.mrf.mxu0
  %v2488 = vadd.f32 0.0, %v2487
  %2489 = vdwg.mxu0
  %v2490 = vperm.slane %v2338, 0
  %2491 = vrot.lane.b32.xlu0 %v2490, 32
  %v2492 = vpop.permute.xlu0 %2491
  %v2493 = vsel %vm97, %v2492, 0
  %2495 = vmatpush.xpose.msra.mxu0 0.0
  %2496 = vmatpush.xpose.msra.mxu0 0.0
  %2497 = vmatpush.xpose.msra.mxu0 0.0
  %2498 = vmatpush.xpose.msra.mxu0 0.0
  %2499 = vmatpush.xpose.msra.mxu0 0.0
  %2500 = vmatpush.xpose.msra.mxu0 0.0
  %2501 = vmatpush.xpose.msra.mxu0 0.0
  %2502 = vmatpush.xpose.msra.mxu0 0.0
  %2503 = vmatpush.xpose.msra.mxu0 0.0
  %2504 = vmatpush.xpose.msra.mxu0 0.0
  %2505 = vmatpush.xpose.msra.mxu0 0.0
  %2506 = vmatpush.xpose.msra.mxu0 0.0
  %2507 = vmatpush.xpose.msra.mxu0 0.0
  %2508 = vmatpush.xpose.msra.mxu0 0.0
  %2509 = vmatpush.xpose.msra.mxu0 0.0
  %2510 = vmatpush.xpose.msra.mxu0 %v428
  %2511 = vmatmul.f32.gmra.mxu0 %v2493
  %v2512 = vpop.f32.mrf.mxu0
  %v2513 = vadd.f32 0.0, %v2512
  %2514 = vdwg.mxu0
  %v2515 = vperm.slane %v2339, 0
  %2516 = vrot.lane.b32.xlu0 %v2515, 32
  %v2517 = vpop.permute.xlu0 %2516
  %v2518 = vsel %vm97, %v2517, 0
  %2520 = vmatpush.xpose.msra.mxu0 0.0
  %2521 = vmatpush.xpose.msra.mxu0 0.0
  %2522 = vmatpush.xpose.msra.mxu0 0.0
  %2523 = vmatpush.xpose.msra.mxu0 0.0
  %2524 = vmatpush.xpose.msra.mxu0 0.0
  %2525 = vmatpush.xpose.msra.mxu0 0.0
  %2526 = vmatpush.xpose.msra.mxu0 0.0
  %2527 = vmatpush.xpose.msra.mxu0 0.0
  %2528 = vmatpush.xpose.msra.mxu0 0.0
  %2529 = vmatpush.xpose.msra.mxu0 0.0
  %2530 = vmatpush.xpose.msra.mxu0 0.0
  %2531 = vmatpush.xpose.msra.mxu0 0.0
  %2532 = vmatpush.xpose.msra.mxu0 0.0
  %2533 = vmatpush.xpose.msra.mxu0 0.0
  %2534 = vmatpush.xpose.msra.mxu0 0.0
  %2535 = vmatpush.xpose.msra.mxu0 %v456
  %2536 = vmatmul.f32.gmra.mxu0 %v2518
  %v2537 = vpop.f32.mrf.mxu0
  %v2538 = vadd.f32 0.0, %v2537
  %2539 = vdwg.mxu0
  %v2540 = vsel %vm478, %v2363, -inf
  %2541 = vmax.xlane.f32.xlu0 %v2540
  %v2542 = vpop.xlane.xlu0 %2541
  %v2543 = vsel %vm478, %v2388, -inf
  %2544 = vmax.xlane.f32.xlu0 %v2543
  %v2545 = vpop.xlane.xlu0 %2544
  %v2546 = vsel %vm478, %v2413, -inf
  %2547 = vmax.xlane.f32.xlu0 %v2546
  %v2548 = vpop.xlane.xlu0 %2547
  %v2549 = vsel %vm478, %v2438, -inf
  %2550 = vmax.xlane.f32.xlu0 %v2549
  %v2551 = vpop.xlane.xlu0 %2550
  %v2552 = vsel %vm478, %v2463, -inf
  %2553 = vmax.xlane.f32.xlu0 %v2552
  %v2554 = vpop.xlane.xlu0 %2553
  %v2555 = vsel %vm478, %v2488, -inf
  %2556 = vmax.xlane.f32.xlu0 %v2555
  %v2557 = vpop.xlane.xlu0 %2556
  %v2558 = vsel %vm478, %v2513, -inf
  %2559 = vmax.xlane.f32.xlu0 %v2558
  %v2560 = vpop.xlane.xlu0 %2559
  %v2561 = vsel %vm478, %v2538, -inf
  %2562 = vmax.xlane.f32.xlu0 %v2561
  %v2563 = vpop.xlane.xlu0 %2562
  %v2564 = vsub.f32 %v2363, %v2542
  %v2565 = vsub.f32 %v2388, %v2545
  %v2566 = vsub.f32 %v2413, %v2548
  %v2567 = vsub.f32 %v2438, %v2551
  %v2568 = vsub.f32 %v2463, %v2554
  %v2569 = vsub.f32 %v2488, %v2557
  %v2570 = vsub.f32 %v2513, %v2560
  %v2571 = vsub.f32 %v2538, %v2563
  %v2572 = vmul.f32 %v2564, 1.442695
  %v2573 = vpow.pop %v2572
  %v2574 = vmul.f32 %v2565, 1.442695
  %v2575 = vpow.pop %v2574
  %v2576 = vmul.f32 %v2566, 1.442695
  %v2577 = vpow.pop %v2576
  %v2578 = vmul.f32 %v2567, 1.442695
  %v2579 = vpow.pop %v2578
  %v2580 = vmul.f32 %v2568, 1.442695
  %v2581 = vpow.pop %v2580
  %v2582 = vmul.f32 %v2569, 1.442695
  %v2583 = vpow.pop %v2582
  %v2584 = vmul.f32 %v2570, 1.442695
  %v2585 = vpow.pop %v2584
  %v2586 = vmul.f32 %v2571, 1.442695
  %v2587 = vpow.pop %v2586
  %v2588 = vsel %vm478, %v2573, 0.0
  %2589 = vadd.xlane.f32.xlu0 %v2588
  %v2590 = vpop.xlane.xlu0 %2589
  %v2591 = vsel %vm478, %v2575, 0.0
  %2592 = vadd.xlane.f32.xlu0 %v2591
  %v2593 = vpop.xlane.xlu0 %2592
  %v2594 = vsel %vm478, %v2577, 0.0
  %2595 = vadd.xlane.f32.xlu0 %v2594
  %v2596 = vpop.xlane.xlu0 %2595
  %v2597 = vsel %vm478, %v2579, 0.0
  %2598 = vadd.xlane.f32.xlu0 %v2597
  %v2599 = vpop.xlane.xlu0 %2598
  %v2600 = vsel %vm478, %v2581, 0.0
  %2601 = vadd.xlane.f32.xlu0 %v2600
  %v2602 = vpop.xlane.xlu0 %2601
  %v2603 = vsel %vm478, %v2583, 0.0
  %2604 = vadd.xlane.f32.xlu0 %v2603
  %v2605 = vpop.xlane.xlu0 %2604
  %v2606 = vsel %vm478, %v2585, 0.0
  %2607 = vadd.xlane.f32.xlu0 %v2606
  %v2608 = vpop.xlane.xlu0 %2607
  %v2609 = vsel %vm478, %v2587, 0.0
  %2610 = vadd.xlane.f32.xlu0 %v2609
  %v2611 = vpop.xlane.xlu0 %2610
  %v2612 = vrcp.pop %v2590
  %v2613 = vrcp.pop %v2593
  %v2614 = vrcp.pop %v2596
  %v2615 = vrcp.pop %v2599
  %v2616 = vrcp.pop %v2602
  %v2617 = vrcp.pop %v2605
  %v2618 = vrcp.pop %v2608
  %v2619 = vrcp.pop %v2611
  %v2620 = vmul.f32 %v2573, %v2612
  %v2621 = vmul.f32 %v2575, %v2613
  %v2622 = vmul.f32 %v2577, %v2614
  %v2623 = vmul.f32 %v2579, %v2615
  %v2624 = vmul.f32 %v2581, %v2616
  %v2625 = vmul.f32 %v2583, %v2617
  %v2626 = vmul.f32 %v2585, %v2618
  %v2627 = vmul.f32 %v2587, %v2619
  %v2629 = vsel %vm567, %v2620, 0
  %2631 = vmatpush.msra.mxu0 0.0
  %2632 = vmatpush.msra.mxu0 0.0
  %2633 = vmatpush.msra.mxu0 0.0
  %2634 = vmatpush.msra.mxu0 0.0
  %2635 = vmatpush.msra.mxu0 0.0
  %2636 = vmatpush.msra.mxu0 0.0
  %2637 = vmatpush.msra.mxu0 0.0
  %2638 = vmatpush.msra.mxu0 0.0
  %2639 = vmatpush.msra.mxu0 0.0
  %2640 = vmatpush.msra.mxu0 0.0
  %2641 = vmatpush.msra.mxu0 0.0
  %2642 = vmatpush.msra.mxu0 0.0
  %2643 = vmatpush.msra.mxu0 0.0
  %2644 = vmatpush.msra.mxu0 0.0
  %2645 = vmatpush.msra.mxu0 0.0
  %2646 = vmatpush.msra.mxu0 %v39
  %2647 = vmatmul.f32.gmra.mxu0 %v2629
  %v2648 = vpop.f32.mrf.mxu0
  %v2649 = vadd.f32 0.0, %v2648
  %2650 = vdwg.mxu0
  %v2652 = vsel %vm567, %v2621, 0
  %2654 = vmatpush.msra.mxu0 0.0
  %2655 = vmatpush.msra.mxu0 0.0
  %2656 = vmatpush.msra.mxu0 0.0
  %2657 = vmatpush.msra.mxu0 0.0
  %2658 = vmatpush.msra.mxu0 0.0
  %2659 = vmatpush.msra.mxu0 0.0
  %2660 = vmatpush.msra.mxu0 0.0
  %2661 = vmatpush.msra.mxu0 0.0
  %2662 = vmatpush.msra.mxu0 0.0
  %2663 = vmatpush.msra.mxu0 0.0
  %2664 = vmatpush.msra.mxu0 0.0
  %2665 = vmatpush.msra.mxu0 0.0
  %2666 = vmatpush.msra.mxu0 0.0
  %2667 = vmatpush.msra.mxu0 0.0
  %2668 = vmatpush.msra.mxu0 0.0
  %2669 = vmatpush.msra.mxu0 %v40
  %2670 = vmatmul.f32.gmra.mxu0 %v2652
  %v2671 = vpop.f32.mrf.mxu0
  %v2672 = vadd.f32 0.0, %v2671
  %2673 = vdwg.mxu0
  %v2675 = vsel %vm567, %v2622, 0
  %2677 = vmatpush.msra.mxu0 0.0
  %2678 = vmatpush.msra.mxu0 0.0
  %2679 = vmatpush.msra.mxu0 0.0
  %2680 = vmatpush.msra.mxu0 0.0
  %2681 = vmatpush.msra.mxu0 0.0
  %2682 = vmatpush.msra.mxu0 0.0
  %2683 = vmatpush.msra.mxu0 0.0
  %2684 = vmatpush.msra.mxu0 0.0
  %2685 = vmatpush.msra.mxu0 0.0
  %2686 = vmatpush.msra.mxu0 0.0
  %2687 = vmatpush.msra.mxu0 0.0
  %2688 = vmatpush.msra.mxu0 0.0
  %2689 = vmatpush.msra.mxu0 0.0
  %2690 = vmatpush.msra.mxu0 0.0
  %2691 = vmatpush.msra.mxu0 0.0
  %2692 = vmatpush.msra.mxu0 %v41
  %2693 = vmatmul.f32.gmra.mxu0 %v2675
  %v2694 = vpop.f32.mrf.mxu0
  %v2695 = vadd.f32 0.0, %v2694
  %2696 = vdwg.mxu0
  %v2698 = vsel %vm567, %v2623, 0
  %2700 = vmatpush.msra.mxu0 0.0
  %2701 = vmatpush.msra.mxu0 0.0
  %2702 = vmatpush.msra.mxu0 0.0
  %2703 = vmatpush.msra.mxu0 0.0
  %2704 = vmatpush.msra.mxu0 0.0
  %2705 = vmatpush.msra.mxu0 0.0
  %2706 = vmatpush.msra.mxu0 0.0
  %2707 = vmatpush.msra.mxu0 0.0
  %2708 = vmatpush.msra.mxu0 0.0
  %2709 = vmatpush.msra.mxu0 0.0
  %2710 = vmatpush.msra.mxu0 0.0
  %2711 = vmatpush.msra.mxu0 0.0
  %2712 = vmatpush.msra.mxu0 0.0
  %2713 = vmatpush.msra.mxu0 0.0
  %2714 = vmatpush.msra.mxu0 0.0
  %2715 = vmatpush.msra.mxu0 %v42
  %2716 = vmatmul.f32.gmra.mxu0 %v2698
  %v2717 = vpop.f32.mrf.mxu0
  %v2718 = vadd.f32 0.0, %v2717
  %2719 = vdwg.mxu0
  %v2721 = vsel %vm567, %v2624, 0
  %2723 = vmatpush.msra.mxu0 0.0
  %2724 = vmatpush.msra.mxu0 0.0
  %2725 = vmatpush.msra.mxu0 0.0
  %2726 = vmatpush.msra.mxu0 0.0
  %2727 = vmatpush.msra.mxu0 0.0
  %2728 = vmatpush.msra.mxu0 0.0
  %2729 = vmatpush.msra.mxu0 0.0
  %2730 = vmatpush.msra.mxu0 0.0
  %2731 = vmatpush.msra.mxu0 0.0
  %2732 = vmatpush.msra.mxu0 0.0
  %2733 = vmatpush.msra.mxu0 0.0
  %2734 = vmatpush.msra.mxu0 0.0
  %2735 = vmatpush.msra.mxu0 0.0
  %2736 = vmatpush.msra.mxu0 0.0
  %2737 = vmatpush.msra.mxu0 0.0
  %2738 = vmatpush.msra.mxu0 %v43
  %2739 = vmatmul.f32.gmra.mxu0 %v2721
  %v2740 = vpop.f32.mrf.mxu0
  %v2741 = vadd.f32 0.0, %v2740
  %2742 = vdwg.mxu0
  %v2744 = vsel %vm567, %v2625, 0
  %2746 = vmatpush.msra.mxu0 0.0
  %2747 = vmatpush.msra.mxu0 0.0
  %2748 = vmatpush.msra.mxu0 0.0
  %2749 = vmatpush.msra.mxu0 0.0
  %2750 = vmatpush.msra.mxu0 0.0
  %2751 = vmatpush.msra.mxu0 0.0
  %2752 = vmatpush.msra.mxu0 0.0
  %2753 = vmatpush.msra.mxu0 0.0
  %2754 = vmatpush.msra.mxu0 0.0
  %2755 = vmatpush.msra.mxu0 0.0
  %2756 = vmatpush.msra.mxu0 0.0
  %2757 = vmatpush.msra.mxu0 0.0
  %2758 = vmatpush.msra.mxu0 0.0
  %2759 = vmatpush.msra.mxu0 0.0
  %2760 = vmatpush.msra.mxu0 0.0
  %2761 = vmatpush.msra.mxu0 %v44
  %2762 = vmatmul.f32.gmra.mxu0 %v2744
  %v2763 = vpop.f32.mrf.mxu0
  %v2764 = vadd.f32 0.0, %v2763
  %2765 = vdwg.mxu0
  %v2767 = vsel %vm567, %v2626, 0
  %2769 = vmatpush.msra.mxu0 0.0
  %2770 = vmatpush.msra.mxu0 0.0
  %2771 = vmatpush.msra.mxu0 0.0
  %2772 = vmatpush.msra.mxu0 0.0
  %2773 = vmatpush.msra.mxu0 0.0
  %2774 = vmatpush.msra.mxu0 0.0
  %2775 = vmatpush.msra.mxu0 0.0
  %2776 = vmatpush.msra.mxu0 0.0
  %2777 = vmatpush.msra.mxu0 0.0
  %2778 = vmatpush.msra.mxu0 0.0
  %2779 = vmatpush.msra.mxu0 0.0
  %2780 = vmatpush.msra.mxu0 0.0
  %2781 = vmatpush.msra.mxu0 0.0
  %2782 = vmatpush.msra.mxu0 0.0
  %2783 = vmatpush.msra.mxu0 0.0
  %2784 = vmatpush.msra.mxu0 %v45
  %2785 = vmatmul.f32.gmra.mxu0 %v2767
  %v2786 = vpop.f32.mrf.mxu0
  %v2787 = vadd.f32 0.0, %v2786
  %2788 = vdwg.mxu0
  %v2790 = vsel %vm567, %v2627, 0
  %2792 = vmatpush.msra.mxu0 0.0
  %2793 = vmatpush.msra.mxu0 0.0
  %2794 = vmatpush.msra.mxu0 0.0
  %2795 = vmatpush.msra.mxu0 0.0
  %2796 = vmatpush.msra.mxu0 0.0
  %2797 = vmatpush.msra.mxu0 0.0
  %2798 = vmatpush.msra.mxu0 0.0
  %2799 = vmatpush.msra.mxu0 0.0
  %2800 = vmatpush.msra.mxu0 0.0
  %2801 = vmatpush.msra.mxu0 0.0
  %2802 = vmatpush.msra.mxu0 0.0
  %2803 = vmatpush.msra.mxu0 0.0
  %2804 = vmatpush.msra.mxu0 0.0
  %2805 = vmatpush.msra.mxu0 0.0
  %2806 = vmatpush.msra.mxu0 0.0
  %2807 = vmatpush.msra.mxu0 %v46
  %2808 = vmatmul.f32.gmra.mxu0 %v2790
  %v2809 = vpop.f32.mrf.mxu0
  %v2810 = vadd.f32 0.0, %v2809
  %2811 = vdwg.mxu0
  %v2820 = vrot.slane %v2672, 7
  %v2821 = vsel %vm761, %v2820, %v2649
  %v2822 = vrot.slane %v2695, 6
  %v2823 = vsel %vm764, %v2822, %v2821
  %v2824 = vrot.slane %v2718, 5
  %v2825 = vsel %vm767, %v2824, %v2823
  %v2826 = vrot.slane %v2741, 4
  %v2827 = vsel %vm770, %v2826, %v2825
  %v2828 = vrot.slane %v2764, 3
  %v2829 = vsel %vm773, %v2828, %v2827
  %v2830 = vrot.slane %v2787, 2
  %v2831 = vsel %vm776, %v2830, %v2829
  %v2832 = vrot.slane %v2810, 1
  %v2833 = vsel %vm779, %v2832, %v2831
  %2835 = vrot.lane.b32.xlu0 %v2331, 64
  %v2836 = vpop.permute.xlu0 %2835
  %v2838 = vsel %vm97, %v2833, %v2836
  %v2840 = vsel %vm99, %v2838, 0
  %2842 = vmatpush.msra.mxu0 0.0
  %2843 = vmatpush.msra.mxu0 0.0
  %2844 = vmatpush.msra.mxu0 0.0
  %2845 = vmatpush.msra.mxu0 0.0
  %2846 = vmatpush.msra.mxu0 0.0
  %2847 = vmatpush.msra.mxu0 0.0
  %2848 = vmatpush.msra.mxu0 0.0
  %2849 = vmatpush.msra.mxu0 0.0
  %2850 = vmatpush.msra.mxu0 %v79
  %2851 = vmatpush.msra.mxu0 %v78
  %2852 = vmatpush.msra.mxu0 %v77
  %2853 = vmatpush.msra.mxu0 %v76
  %2854 = vmatpush.msra.mxu0 %v75
  %2855 = vmatpush.msra.mxu0 %v74
  %2856 = vmatpush.msra.mxu0 %v73
  %2857 = vmatpush.msra.mxu0 %v72
  %2858 = vmatmul.f32.gmra.mxu0 %v2840
  %v2859 = vpop.f32.mrf.mxu0
  %v2860 = vadd.f32 0.0, %v2859
  %2861 = vdwg.mxu0
  %v2862 = vtanh.pop %v2860
  %s2863 = scalar_lea.vmem %s10, 24
  %2864 = vst.msk [vmem:[%s2863] sm:$0xff] %vm97, %v2862
  %v2865 = vrot.slane %v2621, 7
  %v2866 = vsel %vm761, %v2865, %v2620
  %v2867 = vrot.slane %v2622, 6
  %v2868 = vsel %vm764, %v2867, %v2866
  %v2869 = vrot.slane %v2623, 5
  %v2870 = vsel %vm767, %v2869, %v2868
  %v2871 = vrot.slane %v2624, 4
  %v2872 = vsel %vm770, %v2871, %v2870
  %v2873 = vrot.slane %v2625, 3
  %v2874 = vsel %vm773, %v2873, %v2872
  %v2875 = vrot.slane %v2626, 2
  %v2876 = vsel %vm776, %v2875, %v2874
  %v2877 = vrot.slane %v2627, 1
  %v2878 = vsel %vm779, %v2877, %v2876
  %s2880 = scalar_lea.vmem %s11, 24
  %2881 = vst.msk [vmem:[%s2880] sm:$0xff] %vm567, %v2878
  %s2882 = scalar_lea.vmem %s0, 32
  %v2883 = vld [vmem:[%s2882] sm:$0xff]
  %2884 = vrot.lane.b32.xlu0 %v2264, 64
  %v2885 = vpop.permute.xlu0 %2884
  %v2887 = vsel %vm97, %v2862, %v2885
  %v2889 = vsel %vm99, %v2887, 0
  %2891 = vmatpush.msra.mxu0 0.0
  %2892 = vmatpush.msra.mxu0 0.0
  %2893 = vmatpush.msra.mxu0 0.0
  %2894 = vmatpush.msra.mxu0 0.0
  %2895 = vmatpush.msra.mxu0 0.0
  %2896 = vmatpush.msra.mxu0 0.0
  %2897 = vmatpush.msra.mxu0 0.0
  %2898 = vmatpush.msra.mxu0 0.0
  %2899 = vmatpush.msra.mxu0 %v62
  %2900 = vmatpush.msra.mxu0 %v61
  %2901 = vmatpush.msra.mxu0 %v60
  %2902 = vmatpush.msra.mxu0 %v59
  %2903 = vmatpush.msra.mxu0 %v58
  %2904 = vmatpush.msra.mxu0 %v57
  %2905 = vmatpush.msra.mxu0 %v56
  %2906 = vmatpush.msra.mxu0 %v55
  %2907 = vmatmul.f32.gmra.mxu0 %v2889
  %v2908 = vpop.f32.mrf.mxu0
  %v2909 = vadd.f32 0.0, %v2908
  %2910 = vdwg.mxu0
  %v2911 = vadd.f32 %v2883, %v2909
  %v2912 = vtanh.pop %v2911
  %v2913 = vxor.u32 %v2911, 2147483648
  %v2914 = vmul.f32 %v2913, 1.442695
  %v2915 = vpow.pop %v2914
  %v2916 = vadd.f32 %v2915, 1.0
  %v2917 = vrcp.pop %v2916
  %v2918 = vmul.f32 %v2916, %v2917
  %v2919 = vsub.f32 1.0, %v2918
  %v2920 = vmul.f32 %v2917, %v2919
  %v2921 = vadd.f32 %v2917, %v2920
  %vm2922 = vweird.f32 %v2916
  %vm2923 = vweird.f32 %v2917
  %vm2924 = vmor %vm2922, %vm2923
  %v2925 = vsel %vm2924, %v2917, %v2921
  %v2926 = vand.u32 2147483647, %v2916
  %vm2927 = vcmp.eq.f32.partialorder %v2926, 8.507059e+37
  %v2928 = vand.u32 %v2916, 2147483648
  %v2929 = vor.u32 1.1754944e-38, %v2928
  %v2930 = vsel %vm2927, %v2929, %v2925
  %v2931 = vmul.f32 1.0, %v2930
  %v2932 = vsel %vm145, %v2912, %v2931
  %v2933 = vmul.f32 %v2932, %v2258
  %2935 = vrot.lane.b32.xlu0 %v2932, 64
  %v2936 = vpop.permute.xlu0 %2935
  %v2938 = vmul.f32 %v2932, %v2936
  %2940 = vrot.lane.b32.xlu0 %v2938, 32
  %v2941 = vpop.permute.xlu0 %2940
  %v2943 = vadd.f32 %v2933, %v2941
  %v2944 = vtanh.pop %v2943
  %2946 = vrot.lane.b32.xlu0 %v2944, 64
  %v2947 = vpop.permute.xlu0 %2946
  %v2949 = vmul.f32 %v2932, %v2947
  %2951 = vrot.lane.b32.xlu0 %v2949, 32
  %v2952 = vpop.permute.xlu0 %2951
  %v2954 = vsel %vm97, %v2952, %v2836
  %v2956 = vsel %vm99, %v2954, 0
  %2958 = vmatpush.msra.mxu0 0.0
  %2959 = vmatpush.msra.mxu0 0.0
  %2960 = vmatpush.msra.mxu0 0.0
  %2961 = vmatpush.msra.mxu0 0.0
  %2962 = vmatpush.msra.mxu0 0.0
  %2963 = vmatpush.msra.mxu0 0.0
  %2964 = vmatpush.msra.mxu0 0.0
  %2965 = vmatpush.msra.mxu0 0.0
  %2966 = vmatpush.msra.mxu0 %v70
  %2967 = vmatpush.msra.mxu0 %v69
  %2968 = vmatpush.msra.mxu0 %v68
  %2969 = vmatpush.msra.mxu0 %v67
  %2970 = vmatpush.msra.mxu0 %v66
  %2971 = vmatpush.msra.mxu0 %v65
  %2972 = vmatpush.msra.mxu0 %v64
  %2973 = vmatpush.msra.mxu0 %v63
  %2974 = vmatmul.f32.gmra.mxu0 %v2956
  %v2975 = vpop.f32.mrf.mxu0
  %v2976 = vadd.f32 0.0, %v2975
  %2977 = vdwg.mxu0
  %v2978 = vadd.f32 %v201, %v2976
  %v2979 = vtanh.pop %v2978
  %v2980 = vxor.u32 %v2978, 2147483648
  %v2981 = vmul.f32 %v2980, 1.442695
  %v2982 = vpow.pop %v2981
  %v2983 = vadd.f32 %v2982, 1.0
  %v2984 = vrcp.pop %v2983
  %v2985 = vmul.f32 %v2983, %v2984
  %v2986 = vsub.f32 1.0, %v2985
  %v2987 = vmul.f32 %v2984, %v2986
  %v2988 = vadd.f32 %v2984, %v2987
  %vm2989 = vweird.f32 %v2983
  %vm2990 = vweird.f32 %v2984
  %vm2991 = vmor %vm2989, %vm2990
  %v2992 = vsel %vm2991, %v2984, %v2988
  %v2993 = vand.u32 2147483647, %v2983
  %vm2994 = vcmp.eq.f32.partialorder %v2993, 8.507059e+37
  %v2995 = vand.u32 %v2983, 2147483648
  %v2996 = vor.u32 1.1754944e-38, %v2995
  %v2997 = vsel %vm2994, %v2996, %v2992
  %v2998 = vmul.f32 1.0, %v2997
  %v2999 = vsel %vm145, %v2979, %v2998
  %v3000 = vmul.f32 %v2999, %v2325
  %3002 = vrot.lane.b32.xlu0 %v2999, 64
  %v3003 = vpop.permute.xlu0 %3002
  %v3005 = vmul.f32 %v2999, %v3003
  %3007 = vrot.lane.b32.xlu0 %v3005, 32
  %v3008 = vpop.permute.xlu0 %3007
  %v3010 = vadd.f32 %v3000, %v3008
  %v3011 = vtanh.pop %v3010
  %3013 = vrot.lane.b32.xlu0 %v3011, 64
  %v3014 = vpop.permute.xlu0 %3013
  %v3016 = vmul.f32 %v2999, %v3014
  %v3018 = vrot.slane %v3016, 1
  %v3019 = vrot.slane %v3016, 2
  %v3020 = vrot.slane %v3016, 3
  %v3021 = vrot.slane %v3016, 4
  %v3022 = vrot.slane %v3016, 5
  %v3023 = vrot.slane %v3016, 6
  %v3024 = vrot.slane %v3016, 7
  %v3025 = vperm.slane %v3016, 0
  %3026 = vrot.lane.b32.xlu0 %v3025, 32
  %v3027 = vpop.permute.xlu0 %3026
  %v3028 = vsel %vm97, %v3027, 0
  %3030 = vmatpush.xpose.msra.mxu0 0.0
  %3031 = vmatpush.xpose.msra.mxu0 0.0
  %3032 = vmatpush.xpose.msra.mxu0 0.0
  %3033 = vmatpush.xpose.msra.mxu0 0.0
  %3034 = vmatpush.xpose.msra.mxu0 0.0
  %3035 = vmatpush.xpose.msra.mxu0 0.0
  %3036 = vmatpush.xpose.msra.mxu0 0.0
  %3037 = vmatpush.xpose.msra.mxu0 0.0
  %3038 = vmatpush.xpose.msra.mxu0 0.0
  %3039 = vmatpush.xpose.msra.mxu0 0.0
  %3040 = vmatpush.xpose.msra.mxu0 0.0
  %3041 = vmatpush.xpose.msra.mxu0 0.0
  %3042 = vmatpush.xpose.msra.mxu0 0.0
  %3043 = vmatpush.xpose.msra.mxu0 0.0
  %3044 = vmatpush.xpose.msra.mxu0 0.0
  %3045 = vmatpush.xpose.msra.mxu0 %v260
  %3046 = vmatmul.f32.gmra.mxu0 %v3028
  %v3047 = vpop.f32.mrf.mxu0
  %v3048 = vadd.f32 0.0, %v3047
  %3049 = vdwg.mxu0
  %v3050 = vperm.slane %v3018, 0
  %3051 = vrot.lane.b32.xlu0 %v3050, 32
  %v3052 = vpop.permute.xlu0 %3051
  %v3053 = vsel %vm97, %v3052, 0
  %3055 = vmatpush.xpose.msra.mxu0 0.0
  %3056 = vmatpush.xpose.msra.mxu0 0.0
  %3057 = vmatpush.xpose.msra.mxu0 0.0
  %3058 = vmatpush.xpose.msra.mxu0 0.0
  %3059 = vmatpush.xpose.msra.mxu0 0.0
  %3060 = vmatpush.xpose.msra.mxu0 0.0
  %3061 = vmatpush.xpose.msra.mxu0 0.0
  %3062 = vmatpush.xpose.msra.mxu0 0.0
  %3063 = vmatpush.xpose.msra.mxu0 0.0
  %3064 = vmatpush.xpose.msra.mxu0 0.0
  %3065 = vmatpush.xpose.msra.mxu0 0.0
  %3066 = vmatpush.xpose.msra.mxu0 0.0
  %3067 = vmatpush.xpose.msra.mxu0 0.0
  %3068 = vmatpush.xpose.msra.mxu0 0.0
  %3069 = vmatpush.xpose.msra.mxu0 0.0
  %3070 = vmatpush.xpose.msra.mxu0 %v288
  %3071 = vmatmul.f32.gmra.mxu0 %v3053
  %v3072 = vpop.f32.mrf.mxu0
  %v3073 = vadd.f32 0.0, %v3072
  %3074 = vdwg.mxu0
  %v3075 = vperm.slane %v3019, 0
  %3076 = vrot.lane.b32.xlu0 %v3075, 32
  %v3077 = vpop.permute.xlu0 %3076
  %v3078 = vsel %vm97, %v3077, 0
  %3080 = vmatpush.xpose.msra.mxu0 0.0
  %3081 = vmatpush.xpose.msra.mxu0 0.0
  %3082 = vmatpush.xpose.msra.mxu0 0.0
  %3083 = vmatpush.xpose.msra.mxu0 0.0
  %3084 = vmatpush.xpose.msra.mxu0 0.0
  %3085 = vmatpush.xpose.msra.mxu0 0.0
  %3086 = vmatpush.xpose.msra.mxu0 0.0
  %3087 = vmatpush.xpose.msra.mxu0 0.0
  %3088 = vmatpush.xpose.msra.mxu0 0.0
  %3089 = vmatpush.xpose.msra.mxu0 0.0
  %3090 = vmatpush.xpose.msra.mxu0 0.0
  %3091 = vmatpush.xpose.msra.mxu0 0.0
  %3092 = vmatpush.xpose.msra.mxu0 0.0
  %3093 = vmatpush.xpose.msra.mxu0 0.0
  %3094 = vmatpush.xpose.msra.mxu0 0.0
  %3095 = vmatpush.xpose.msra.mxu0 %v316
  %3096 = vmatmul.f32.gmra.mxu0 %v3078
  %v3097 = vpop.f32.mrf.mxu0
  %v3098 = vadd.f32 0.0, %v3097
  %3099 = vdwg.mxu0
  %v3100 = vperm.slane %v3020, 0
  %3101 = vrot.lane.b32.xlu0 %v3100, 32
  %v3102 = vpop.permute.xlu0 %3101
  %v3103 = vsel %vm97, %v3102, 0
  %3105 = vmatpush.xpose.msra.mxu0 0.0
  %3106 = vmatpush.xpose.msra.mxu0 0.0
  %3107 = vmatpush.xpose.msra.mxu0 0.0
  %3108 = vmatpush.xpose.msra.mxu0 0.0
  %3109 = vmatpush.xpose.msra.mxu0 0.0
  %3110 = vmatpush.xpose.msra.mxu0 0.0
  %3111 = vmatpush.xpose.msra.mxu0 0.0
  %3112 = vmatpush.xpose.msra.mxu0 0.0
  %3113 = vmatpush.xpose.msra.mxu0 0.0
  %3114 = vmatpush.xpose.msra.mxu0 0.0
  %3115 = vmatpush.xpose.msra.mxu0 0.0
  %3116 = vmatpush.xpose.msra.mxu0 0.0
  %3117 = vmatpush.xpose.msra.mxu0 0.0
  %3118 = vmatpush.xpose.msra.mxu0 0.0
  %3119 = vmatpush.xpose.msra.mxu0 0.0
  %3120 = vmatpush.xpose.msra.mxu0 %v344
  %3121 = vmatmul.f32.gmra.mxu0 %v3103
  %v3122 = vpop.f32.mrf.mxu0
  %v3123 = vadd.f32 0.0, %v3122
  %3124 = vdwg.mxu0
  %v3125 = vperm.slane %v3021, 0
  %3126 = vrot.lane.b32.xlu0 %v3125, 32
  %v3127 = vpop.permute.xlu0 %3126
  %v3128 = vsel %vm97, %v3127, 0
  %3130 = vmatpush.xpose.msra.mxu0 0.0
  %3131 = vmatpush.xpose.msra.mxu0 0.0
  %3132 = vmatpush.xpose.msra.mxu0 0.0
  %3133 = vmatpush.xpose.msra.mxu0 0.0
  %3134 = vmatpush.xpose.msra.mxu0 0.0
  %3135 = vmatpush.xpose.msra.mxu0 0.0
  %3136 = vmatpush.xpose.msra.mxu0 0.0
  %3137 = vmatpush.xpose.msra.mxu0 0.0
  %3138 = vmatpush.xpose.msra.mxu0 0.0
  %3139 = vmatpush.xpose.msra.mxu0 0.0
  %3140 = vmatpush.xpose.msra.mxu0 0.0
  %3141 = vmatpush.xpose.msra.mxu0 0.0
  %3142 = vmatpush.xpose.msra.mxu0 0.0
  %3143 = vmatpush.xpose.msra.mxu0 0.0
  %3144 = vmatpush.xpose.msra.mxu0 0.0
  %3145 = vmatpush.xpose.msra.mxu0 %v372
  %3146 = vmatmul.f32.gmra.mxu0 %v3128
  %v3147 = vpop.f32.mrf.mxu0
  %v3148 = vadd.f32 0.0, %v3147
  %3149 = vdwg.mxu0
  %v3150 = vperm.slane %v3022, 0
  %3151 = vrot.lane.b32.xlu0 %v3150, 32
  %v3152 = vpop.permute.xlu0 %3151
  %v3153 = vsel %vm97, %v3152, 0
  %3155 = vmatpush.xpose.msra.mxu0 0.0
  %3156 = vmatpush.xpose.msra.mxu0 0.0
  %3157 = vmatpush.xpose.msra.mxu0 0.0
  %3158 = vmatpush.xpose.msra.mxu0 0.0
  %3159 = vmatpush.xpose.msra.mxu0 0.0
  %3160 = vmatpush.xpose.msra.mxu0 0.0
  %3161 = vmatpush.xpose.msra.mxu0 0.0
  %3162 = vmatpush.xpose.msra.mxu0 0.0
  %3163 = vmatpush.xpose.msra.mxu0 0.0
  %3164 = vmatpush.xpose.msra.mxu0 0.0
  %3165 = vmatpush.xpose.msra.mxu0 0.0
  %3166 = vmatpush.xpose.msra.mxu0 0.0
  %3167 = vmatpush.xpose.msra.mxu0 0.0
  %3168 = vmatpush.xpose.msra.mxu0 0.0
  %3169 = vmatpush.xpose.msra.mxu0 0.0
  %3170 = vmatpush.xpose.msra.mxu0 %v400
  %3171 = vmatmul.f32.gmra.mxu0 %v3153
  %v3172 = vpop.f32.mrf.mxu0
  %v3173 = vadd.f32 0.0, %v3172
  %3174 = vdwg.mxu0
  %v3175 = vperm.slane %v3023, 0
  %3176 = vrot.lane.b32.xlu0 %v3175, 32
  %v3177 = vpop.permute.xlu0 %3176
  %v3178 = vsel %vm97, %v3177, 0
  %3180 = vmatpush.xpose.msra.mxu0 0.0
  %3181 = vmatpush.xpose.msra.mxu0 0.0
  %3182 = vmatpush.xpose.msra.mxu0 0.0
  %3183 = vmatpush.xpose.msra.mxu0 0.0
  %3184 = vmatpush.xpose.msra.mxu0 0.0
  %3185 = vmatpush.xpose.msra.mxu0 0.0
  %3186 = vmatpush.xpose.msra.mxu0 0.0
  %3187 = vmatpush.xpose.msra.mxu0 0.0
  %3188 = vmatpush.xpose.msra.mxu0 0.0
  %3189 = vmatpush.xpose.msra.mxu0 0.0
  %3190 = vmatpush.xpose.msra.mxu0 0.0
  %3191 = vmatpush.xpose.msra.mxu0 0.0
  %3192 = vmatpush.xpose.msra.mxu0 0.0
  %3193 = vmatpush.xpose.msra.mxu0 0.0
  %3194 = vmatpush.xpose.msra.mxu0 0.0
  %3195 = vmatpush.xpose.msra.mxu0 %v428
  %3196 = vmatmul.f32.gmra.mxu0 %v3178
  %v3197 = vpop.f32.mrf.mxu0
  %v3198 = vadd.f32 0.0, %v3197
  %3199 = vdwg.mxu0
  %v3200 = vperm.slane %v3024, 0
  %3201 = vrot.lane.b32.xlu0 %v3200, 32
  %v3202 = vpop.permute.xlu0 %3201
  %v3203 = vsel %vm97, %v3202, 0
  %3205 = vmatpush.xpose.msra.mxu0 0.0
  %3206 = vmatpush.xpose.msra.mxu0 0.0
  %3207 = vmatpush.xpose.msra.mxu0 0.0
  %3208 = vmatpush.xpose.msra.mxu0 0.0
  %3209 = vmatpush.xpose.msra.mxu0 0.0
  %3210 = vmatpush.xpose.msra.mxu0 0.0
  %3211 = vmatpush.xpose.msra.mxu0 0.0
  %3212 = vmatpush.xpose.msra.mxu0 0.0
  %3213 = vmatpush.xpose.msra.mxu0 0.0
  %3214 = vmatpush.xpose.msra.mxu0 0.0
  %3215 = vmatpush.xpose.msra.mxu0 0.0
  %3216 = vmatpush.xpose.msra.mxu0 0.0
  %3217 = vmatpush.xpose.msra.mxu0 0.0
  %3218 = vmatpush.xpose.msra.mxu0 0.0
  %3219 = vmatpush.xpose.msra.mxu0 0.0
  %3220 = vmatpush.xpose.msra.mxu0 %v456
  %3221 = vmatmul.f32.gmra.mxu0 %v3203
  %v3222 = vpop.f32.mrf.mxu0
  %v3223 = vadd.f32 0.0, %v3222
  %3224 = vdwg.mxu0
  %v3225 = vsel %vm478, %v3048, -inf
  %3226 = vmax.xlane.f32.xlu0 %v3225
  %v3227 = vpop.xlane.xlu0 %3226
  %v3228 = vsel %vm478, %v3073, -inf
  %3229 = vmax.xlane.f32.xlu0 %v3228
  %v3230 = vpop.xlane.xlu0 %3229
  %v3231 = vsel %vm478, %v3098, -inf
  %3232 = vmax.xlane.f32.xlu0 %v3231
  %v3233 = vpop.xlane.xlu0 %3232
  %v3234 = vsel %vm478, %v3123, -inf
  %3235 = vmax.xlane.f32.xlu0 %v3234
  %v3236 = vpop.xlane.xlu0 %3235
  %v3237 = vsel %vm478, %v3148, -inf
  %3238 = vmax.xlane.f32.xlu0 %v3237
  %v3239 = vpop.xlane.xlu0 %3238
  %v3240 = vsel %vm478, %v3173, -inf
  %3241 = vmax.xlane.f32.xlu0 %v3240
  %v3242 = vpop.xlane.xlu0 %3241
  %v3243 = vsel %vm478, %v3198, -inf
  %3244 = vmax.xlane.f32.xlu0 %v3243
  %v3245 = vpop.xlane.xlu0 %3244
  %v3246 = vsel %vm478, %v3223, -inf
  %3247 = vmax.xlane.f32.xlu0 %v3246
  %v3248 = vpop.xlane.xlu0 %3247
  %v3249 = vsub.f32 %v3048, %v3227
  %v3250 = vsub.f32 %v3073, %v3230
  %v3251 = vsub.f32 %v3098, %v3233
  %v3252 = vsub.f32 %v3123, %v3236
  %v3253 = vsub.f32 %v3148, %v3239
  %v3254 = vsub.f32 %v3173, %v3242
  %v3255 = vsub.f32 %v3198, %v3245
  %v3256 = vsub.f32 %v3223, %v3248
  %v3257 = vmul.f32 %v3249, 1.442695
  %v3258 = vpow.pop %v3257
  %v3259 = vmul.f32 %v3250, 1.442695
  %v3260 = vpow.pop %v3259
  %v3261 = vmul.f32 %v3251, 1.442695
  %v3262 = vpow.pop %v3261
  %v3263 = vmul.f32 %v3252, 1.442695
  %v3264 = vpow.pop %v3263
  %v3265 = vmul.f32 %v3253, 1.442695
  %v3266 = vpow.pop %v3265
  %v3267 = vmul.f32 %v3254, 1.442695
  %v3268 = vpow.pop %v3267
  %v3269 = vmul.f32 %v3255, 1.442695
  %v3270 = vpow.pop %v3269
  %v3271 = vmul.f32 %v3256, 1.442695
  %v3272 = vpow.pop %v3271
  %v3273 = vsel %vm478, %v3258, 0.0
  %3274 = vadd.xlane.f32.xlu0 %v3273
  %v3275 = vpop.xlane.xlu0 %3274
  %v3276 = vsel %vm478, %v3260, 0.0
  %3277 = vadd.xlane.f32.xlu0 %v3276
  %v3278 = vpop.xlane.xlu0 %3277
  %v3279 = vsel %vm478, %v3262, 0.0
  %3280 = vadd.xlane.f32.xlu0 %v3279
  %v3281 = vpop.xlane.xlu0 %3280
  %v3282 = vsel %vm478, %v3264, 0.0
  %3283 = vadd.xlane.f32.xlu0 %v3282
  %v3284 = vpop.xlane.xlu0 %3283
  %v3285 = vsel %vm478, %v3266, 0.0
  %3286 = vadd.xlane.f32.xlu0 %v3285
  %v3287 = vpop.xlane.xlu0 %3286
  %v3288 = vsel %vm478, %v3268, 0.0
  %3289 = vadd.xlane.f32.xlu0 %v3288
  %v3290 = vpop.xlane.xlu0 %3289
  %v3291 = vsel %vm478, %v3270, 0.0
  %3292 = vadd.xlane.f32.xlu0 %v3291
  %v3293 = vpop.xlane.xlu0 %3292
  %v3294 = vsel %vm478, %v3272, 0.0
  %3295 = vadd.xlane.f32.xlu0 %v3294
  %v3296 = vpop.xlane.xlu0 %3295
  %v3297 = vrcp.pop %v3275
  %v3298 = vrcp.pop %v3278
  %v3299 = vrcp.pop %v3281
  %v3300 = vrcp.pop %v3284
  %v3301 = vrcp.pop %v3287
  %v3302 = vrcp.pop %v3290
  %v3303 = vrcp.pop %v3293
  %v3304 = vrcp.pop %v3296
  %v3305 = vmul.f32 %v3258, %v3297
  %v3306 = vmul.f32 %v3260, %v3298
  %v3307 = vmul.f32 %v3262, %v3299
  %v3308 = vmul.f32 %v3264, %v3300
  %v3309 = vmul.f32 %v3266, %v3301
  %v3310 = vmul.f32 %v3268, %v3302
  %v3311 = vmul.f32 %v3270, %v3303
  %v3312 = vmul.f32 %v3272, %v3304
  %v3314 = vsel %vm567, %v3305, 0
  %3316 = vmatpush.msra.mxu0 0.0
  %3317 = vmatpush.msra.mxu0 0.0
  %3318 = vmatpush.msra.mxu0 0.0
  %3319 = vmatpush.msra.mxu0 0.0
  %3320 = vmatpush.msra.mxu0 0.0
  %3321 = vmatpush.msra.mxu0 0.0
  %3322 = vmatpush.msra.mxu0 0.0
  %3323 = vmatpush.msra.mxu0 0.0
  %3324 = vmatpush.msra.mxu0 0.0
  %3325 = vmatpush.msra.mxu0 0.0
  %3326 = vmatpush.msra.mxu0 0.0
  %3327 = vmatpush.msra.mxu0 0.0
  %3328 = vmatpush.msra.mxu0 0.0
  %3329 = vmatpush.msra.mxu0 0.0
  %3330 = vmatpush.msra.mxu0 0.0
  %3331 = vmatpush.msra.mxu0 %v39
  %3332 = vmatmul.f32.gmra.mxu0 %v3314
  %v3333 = vpop.f32.mrf.mxu0
  %v3334 = vadd.f32 0.0, %v3333
  %3335 = vdwg.mxu0
  %v3337 = vsel %vm567, %v3306, 0
  %3339 = vmatpush.msra.mxu0 0.0
  %3340 = vmatpush.msra.mxu0 0.0
  %3341 = vmatpush.msra.mxu0 0.0
  %3342 = vmatpush.msra.mxu0 0.0
  %3343 = vmatpush.msra.mxu0 0.0
  %3344 = vmatpush.msra.mxu0 0.0
  %3345 = vmatpush.msra.mxu0 0.0
  %3346 = vmatpush.msra.mxu0 0.0
  %3347 = vmatpush.msra.mxu0 0.0
  %3348 = vmatpush.msra.mxu0 0.0
  %3349 = vmatpush.msra.mxu0 0.0
  %3350 = vmatpush.msra.mxu0 0.0
  %3351 = vmatpush.msra.mxu0 0.0
  %3352 = vmatpush.msra.mxu0 0.0
  %3353 = vmatpush.msra.mxu0 0.0
  %3354 = vmatpush.msra.mxu0 %v40
  %3355 = vmatmul.f32.gmra.mxu0 %v3337
  %v3356 = vpop.f32.mrf.mxu0
  %v3357 = vadd.f32 0.0, %v3356
  %3358 = vdwg.mxu0
  %v3360 = vsel %vm567, %v3307, 0
  %3362 = vmatpush.msra.mxu0 0.0
  %3363 = vmatpush.msra.mxu0 0.0
  %3364 = vmatpush.msra.mxu0 0.0
  %3365 = vmatpush.msra.mxu0 0.0
  %3366 = vmatpush.msra.mxu0 0.0
  %3367 = vmatpush.msra.mxu0 0.0
  %3368 = vmatpush.msra.mxu0 0.0
  %3369 = vmatpush.msra.mxu0 0.0
  %3370 = vmatpush.msra.mxu0 0.0
  %3371 = vmatpush.msra.mxu0 0.0
  %3372 = vmatpush.msra.mxu0 0.0
  %3373 = vmatpush.msra.mxu0 0.0
  %3374 = vmatpush.msra.mxu0 0.0
  %3375 = vmatpush.msra.mxu0 0.0
  %3376 = vmatpush.msra.mxu0 0.0
  %3377 = vmatpush.msra.mxu0 %v41
  %3378 = vmatmul.f32.gmra.mxu0 %v3360
  %v3379 = vpop.f32.mrf.mxu0
  %v3380 = vadd.f32 0.0, %v3379
  %3381 = vdwg.mxu0
  %v3383 = vsel %vm567, %v3308, 0
  %3385 = vmatpush.msra.mxu0 0.0
  %3386 = vmatpush.msra.mxu0 0.0
  %3387 = vmatpush.msra.mxu0 0.0
  %3388 = vmatpush.msra.mxu0 0.0
  %3389 = vmatpush.msra.mxu0 0.0
  %3390 = vmatpush.msra.mxu0 0.0
  %3391 = vmatpush.msra.mxu0 0.0
  %3392 = vmatpush.msra.mxu0 0.0
  %3393 = vmatpush.msra.mxu0 0.0
  %3394 = vmatpush.msra.mxu0 0.0
  %3395 = vmatpush.msra.mxu0 0.0
  %3396 = vmatpush.msra.mxu0 0.0
  %3397 = vmatpush.msra.mxu0 0.0
  %3398 = vmatpush.msra.mxu0 0.0
  %3399 = vmatpush.msra.mxu0 0.0
  %3400 = vmatpush.msra.mxu0 %v42
  %3401 = vmatmul.f32.gmra.mxu0 %v3383
  %v3402 = vpop.f32.mrf.mxu0
  %v3403 = vadd.f32 0.0, %v3402
  %3404 = vdwg.mxu0
  %v3406 = vsel %vm567, %v3309, 0
  %3408 = vmatpush.msra.mxu0 0.0
  %3409 = vmatpush.msra.mxu0 0.0
  %3410 = vmatpush.msra.mxu0 0.0
  %3411 = vmatpush.msra.mxu0 0.0
  %3412 = vmatpush.msra.mxu0 0.0
  %3413 = vmatpush.msra.mxu0 0.0
  %3414 = vmatpush.msra.mxu0 0.0
  %3415 = vmatpush.msra.mxu0 0.0
  %3416 = vmatpush.msra.mxu0 0.0
  %3417 = vmatpush.msra.mxu0 0.0
  %3418 = vmatpush.msra.mxu0 0.0
  %3419 = vmatpush.msra.mxu0 0.0
  %3420 = vmatpush.msra.mxu0 0.0
  %3421 = vmatpush.msra.mxu0 0.0
  %3422 = vmatpush.msra.mxu0 0.0
  %3423 = vmatpush.msra.mxu0 %v43
  %3424 = vmatmul.f32.gmra.mxu0 %v3406
  %v3425 = vpop.f32.mrf.mxu0
  %v3426 = vadd.f32 0.0, %v3425
  %3427 = vdwg.mxu0
  %v3429 = vsel %vm567, %v3310, 0
  %3431 = vmatpush.msra.mxu0 0.0
  %3432 = vmatpush.msra.mxu0 0.0
  %3433 = vmatpush.msra.mxu0 0.0
  %3434 = vmatpush.msra.mxu0 0.0
  %3435 = vmatpush.msra.mxu0 0.0
  %3436 = vmatpush.msra.mxu0 0.0
  %3437 = vmatpush.msra.mxu0 0.0
  %3438 = vmatpush.msra.mxu0 0.0
  %3439 = vmatpush.msra.mxu0 0.0
  %3440 = vmatpush.msra.mxu0 0.0
  %3441 = vmatpush.msra.mxu0 0.0
  %3442 = vmatpush.msra.mxu0 0.0
  %3443 = vmatpush.msra.mxu0 0.0
  %3444 = vmatpush.msra.mxu0 0.0
  %3445 = vmatpush.msra.mxu0 0.0
  %3446 = vmatpush.msra.mxu0 %v44
  %3447 = vmatmul.f32.gmra.mxu0 %v3429
  %v3448 = vpop.f32.mrf.mxu0
  %v3449 = vadd.f32 0.0, %v3448
  %3450 = vdwg.mxu0
  %v3452 = vsel %vm567, %v3311, 0
  %3454 = vmatpush.msra.mxu0 0.0
  %3455 = vmatpush.msra.mxu0 0.0
  %3456 = vmatpush.msra.mxu0 0.0
  %3457 = vmatpush.msra.mxu0 0.0
  %3458 = vmatpush.msra.mxu0 0.0
  %3459 = vmatpush.msra.mxu0 0.0
  %3460 = vmatpush.msra.mxu0 0.0
  %3461 = vmatpush.msra.mxu0 0.0
  %3462 = vmatpush.msra.mxu0 0.0
  %3463 = vmatpush.msra.mxu0 0.0
  %3464 = vmatpush.msra.mxu0 0.0
  %3465 = vmatpush.msra.mxu0 0.0
  %3466 = vmatpush.msra.mxu0 0.0
  %3467 = vmatpush.msra.mxu0 0.0
  %3468 = vmatpush.msra.mxu0 0.0
  %3469 = vmatpush.msra.mxu0 %v45
  %3470 = vmatmul.f32.gmra.mxu0 %v3452
  %v3471 = vpop.f32.mrf.mxu0
  %v3472 = vadd.f32 0.0, %v3471
  %3473 = vdwg.mxu0
  %v3475 = vsel %vm567, %v3312, 0
  %3477 = vmatpush.msra.mxu0 0.0
  %3478 = vmatpush.msra.mxu0 0.0
  %3479 = vmatpush.msra.mxu0 0.0
  %3480 = vmatpush.msra.mxu0 0.0
  %3481 = vmatpush.msra.mxu0 0.0
  %3482 = vmatpush.msra.mxu0 0.0
  %3483 = vmatpush.msra.mxu0 0.0
  %3484 = vmatpush.msra.mxu0 0.0
  %3485 = vmatpush.msra.mxu0 0.0
  %3486 = vmatpush.msra.mxu0 0.0
  %3487 = vmatpush.msra.mxu0 0.0
  %3488 = vmatpush.msra.mxu0 0.0
  %3489 = vmatpush.msra.mxu0 0.0
  %3490 = vmatpush.msra.mxu0 0.0
  %3491 = vmatpush.msra.mxu0 0.0
  %3492 = vmatpush.msra.mxu0 %v46
  %3493 = vmatmul.f32.gmra.mxu0 %v3475
  %v3494 = vpop.f32.mrf.mxu0
  %v3495 = vadd.f32 0.0, %v3494
  %3496 = vdwg.mxu0
  %v3505 = vrot.slane %v3357, 7
  %v3506 = vsel %vm761, %v3505, %v3334
  %v3507 = vrot.slane %v3380, 6
  %v3508 = vsel %vm764, %v3507, %v3506
  %v3509 = vrot.slane %v3403, 5
  %v3510 = vsel %vm767, %v3509, %v3508
  %v3511 = vrot.slane %v3426, 4
  %v3512 = vsel %vm770, %v3511, %v3510
  %v3513 = vrot.slane %v3449, 3
  %v3514 = vsel %vm773, %v3513, %v3512
  %v3515 = vrot.slane %v3472, 2
  %v3516 = vsel %vm776, %v3515, %v3514
  %v3517 = vrot.slane %v3495, 1
  %v3518 = vsel %vm779, %v3517, %v3516
  %3520 = vrot.lane.b32.xlu0 %v3016, 64
  %v3521 = vpop.permute.xlu0 %3520
  %v3523 = vsel %vm97, %v3518, %v3521
  %v3525 = vsel %vm99, %v3523, 0
  %3527 = vmatpush.msra.mxu0 0.0
  %3528 = vmatpush.msra.mxu0 0.0
  %3529 = vmatpush.msra.mxu0 0.0
  %3530 = vmatpush.msra.mxu0 0.0
  %3531 = vmatpush.msra.mxu0 0.0
  %3532 = vmatpush.msra.mxu0 0.0
  %3533 = vmatpush.msra.mxu0 0.0
  %3534 = vmatpush.msra.mxu0 0.0
  %3535 = vmatpush.msra.mxu0 %v79
  %3536 = vmatpush.msra.mxu0 %v78
  %3537 = vmatpush.msra.mxu0 %v77
  %3538 = vmatpush.msra.mxu0 %v76
  %3539 = vmatpush.msra.mxu0 %v75
  %3540 = vmatpush.msra.mxu0 %v74
  %3541 = vmatpush.msra.mxu0 %v73
  %3542 = vmatpush.msra.mxu0 %v72
  %3543 = vmatmul.f32.gmra.mxu0 %v3525
  %v3544 = vpop.f32.mrf.mxu0
  %v3545 = vadd.f32 0.0, %v3544
  %3546 = vdwg.mxu0
  %v3547 = vtanh.pop %v3545
  %s3548 = scalar_lea.vmem %s10, 32
  %3549 = vst.msk [vmem:[%s3548] sm:$0xff] %vm97, %v3547
  %v3550 = vrot.slane %v3306, 7
  %v3551 = vsel %vm761, %v3550, %v3305
  %v3552 = vrot.slane %v3307, 6
  %v3553 = vsel %vm764, %v3552, %v3551
  %v3554 = vrot.slane %v3308, 5
  %v3555 = vsel %vm767, %v3554, %v3553
  %v3556 = vrot.slane %v3309, 4
  %v3557 = vsel %vm770, %v3556, %v3555
  %v3558 = vrot.slane %v3310, 3
  %v3559 = vsel %vm773, %v3558, %v3557
  %v3560 = vrot.slane %v3311, 2
  %v3561 = vsel %vm776, %v3560, %v3559
  %v3562 = vrot.slane %v3312, 1
  %v3563 = vsel %vm779, %v3562, %v3561
  %s3565 = scalar_lea.vmem %s11, 32
  %3566 = vst.msk [vmem:[%s3565] sm:$0xff] %vm567, %v3563
  %s3567 = scalar_lea.vmem %s0, 40
  %v3568 = vld [vmem:[%s3567] sm:$0xff]
  %3569 = vrot.lane.b32.xlu0 %v2949, 64
  %v3570 = vpop.permute.xlu0 %3569
  %v3572 = vsel %vm97, %v3547, %v3570
  %v3574 = vsel %vm99, %v3572, 0
  %3576 = vmatpush.msra.mxu0 0.0
  %3577 = vmatpush.msra.mxu0 0.0
  %3578 = vmatpush.msra.mxu0 0.0
  %3579 = vmatpush.msra.mxu0 0.0
  %3580 = vmatpush.msra.mxu0 0.0
  %3581 = vmatpush.msra.mxu0 0.0
  %3582 = vmatpush.msra.mxu0 0.0
  %3583 = vmatpush.msra.mxu0 0.0
  %3584 = vmatpush.msra.mxu0 %v62
  %3585 = vmatpush.msra.mxu0 %v61
  %3586 = vmatpush.msra.mxu0 %v60
  %3587 = vmatpush.msra.mxu0 %v59
  %3588 = vmatpush.msra.mxu0 %v58
  %3589 = vmatpush.msra.mxu0 %v57
  %3590 = vmatpush.msra.mxu0 %v56
  %3591 = vmatpush.msra.mxu0 %v55
  %3592 = vmatmul.f32.gmra.mxu0 %v3574
  %v3593 = vpop.f32.mrf.mxu0
  %v3594 = vadd.f32 0.0, %v3593
  %3595 = vdwg.mxu0
  %v3596 = vadd.f32 %v3568, %v3594
  %v3597 = vtanh.pop %v3596
  %v3598 = vxor.u32 %v3596, 2147483648
  %v3599 = vmul.f32 %v3598, 1.442695
  %v3600 = vpow.pop %v3599
  %v3601 = vadd.f32 %v3600, 1.0
  %v3602 = vrcp.pop %v3601
  %v3603 = vmul.f32 %v3601, %v3602
  %v3604 = vsub.f32 1.0, %v3603
  %v3605 = vmul.f32 %v3602, %v3604
  %v3606 = vadd.f32 %v3602, %v3605
  %vm3607 = vweird.f32 %v3601
  %vm3608 = vweird.f32 %v3602
  %vm3609 = vmor %vm3607, %vm3608
  %v3610 = vsel %vm3609, %v3602, %v3606
  %v3611 = vand.u32 2147483647, %v3601
  %vm3612 = vcmp.eq.f32.partialorder %v3611, 8.507059e+37
  %v3613 = vand.u32 %v3601, 2147483648
  %v3614 = vor.u32 1.1754944e-38, %v3613
  %v3615 = vsel %vm3612, %v3614, %v3610
  %v3616 = vmul.f32 1.0, %v3615
  %v3617 = vsel %vm145, %v3597, %v3616
  %v3618 = vmul.f32 %v3617, %v2943
  %3620 = vrot.lane.b32.xlu0 %v3617, 64
  %v3621 = vpop.permute.xlu0 %3620
  %v3623 = vmul.f32 %v3617, %v3621
  %3625 = vrot.lane.b32.xlu0 %v3623, 32
  %v3626 = vpop.permute.xlu0 %3625
  %v3628 = vadd.f32 %v3618, %v3626
  %v3629 = vtanh.pop %v3628
  %3631 = vrot.lane.b32.xlu0 %v3629, 64
  %v3632 = vpop.permute.xlu0 %3631
  %v3634 = vmul.f32 %v3617, %v3632
  %3636 = vrot.lane.b32.xlu0 %v3634, 32
  %v3637 = vpop.permute.xlu0 %3636
  %v3639 = vsel %vm97, %v3637, %v3521
  %v3641 = vsel %vm99, %v3639, 0
  %3643 = vmatpush.msra.mxu0 0.0
  %3644 = vmatpush.msra.mxu0 0.0
  %3645 = vmatpush.msra.mxu0 0.0
  %3646 = vmatpush.msra.mxu0 0.0
  %3647 = vmatpush.msra.mxu0 0.0
  %3648 = vmatpush.msra.mxu0 0.0
  %3649 = vmatpush.msra.mxu0 0.0
  %3650 = vmatpush.msra.mxu0 0.0
  %3651 = vmatpush.msra.mxu0 %v70
  %3652 = vmatpush.msra.mxu0 %v69
  %3653 = vmatpush.msra.mxu0 %v68
  %3654 = vmatpush.msra.mxu0 %v67
  %3655 = vmatpush.msra.mxu0 %v66
  %3656 = vmatpush.msra.mxu0 %v65
  %3657 = vmatpush.msra.mxu0 %v64
  %3658 = vmatpush.msra.mxu0 %v63
  %3659 = vmatmul.f32.gmra.mxu0 %v3641
  %v3660 = vpop.f32.mrf.mxu0
  %v3661 = vadd.f32 0.0, %v3660
  %3662 = vdwg.mxu0
  %v3663 = vadd.f32 %v201, %v3661
  %v3664 = vtanh.pop %v3663
  %v3665 = vxor.u32 %v3663, 2147483648
  %v3666 = vmul.f32 %v3665, 1.442695
  %v3667 = vpow.pop %v3666
  %v3668 = vadd.f32 %v3667, 1.0
  %v3669 = vrcp.pop %v3668
  %v3670 = vmul.f32 %v3668, %v3669
  %v3671 = vsub.f32 1.0, %v3670
  %v3672 = vmul.f32 %v3669, %v3671
  %v3673 = vadd.f32 %v3669, %v3672
  %vm3674 = vweird.f32 %v3668
  %vm3675 = vweird.f32 %v3669
  %vm3676 = vmor %vm3674, %vm3675
  %v3677 = vsel %vm3676, %v3669, %v3673
  %v3678 = vand.u32 2147483647, %v3668
  %vm3679 = vcmp.eq.f32.partialorder %v3678, 8.507059e+37
  %v3680 = vand.u32 %v3668, 2147483648
  %v3681 = vor.u32 1.1754944e-38, %v3680
  %v3682 = vsel %vm3679, %v3681, %v3677
  %v3683 = vmul.f32 1.0, %v3682
  %v3684 = vsel %vm145, %v3664, %v3683
  %v3685 = vmul.f32 %v3684, %v3010
  %3687 = vrot.lane.b32.xlu0 %v3684, 64
  %v3688 = vpop.permute.xlu0 %3687
  %v3690 = vmul.f32 %v3684, %v3688
  %3692 = vrot.lane.b32.xlu0 %v3690, 32
  %v3693 = vpop.permute.xlu0 %3692
  %v3695 = vadd.f32 %v3685, %v3693
  %v3696 = vtanh.pop %v3695
  %3698 = vrot.lane.b32.xlu0 %v3696, 64
  %v3699 = vpop.permute.xlu0 %3698
  %v3701 = vmul.f32 %v3684, %v3699
  %v3703 = vrot.slane %v3701, 1
  %v3704 = vrot.slane %v3701, 2
  %v3705 = vrot.slane %v3701, 3
  %v3706 = vrot.slane %v3701, 4
  %v3707 = vrot.slane %v3701, 5
  %v3708 = vrot.slane %v3701, 6
  %v3709 = vrot.slane %v3701, 7
  %v3710 = vperm.slane %v3701, 0
  %3711 = vrot.lane.b32.xlu0 %v3710, 32
  %v3712 = vpop.permute.xlu0 %3711
  %v3713 = vsel %vm97, %v3712, 0
  %3715 = vmatpush.xpose.msra.mxu0 0.0
  %3716 = vmatpush.xpose.msra.mxu0 0.0
  %3717 = vmatpush.xpose.msra.mxu0 0.0
  %3718 = vmatpush.xpose.msra.mxu0 0.0
  %3719 = vmatpush.xpose.msra.mxu0 0.0
  %3720 = vmatpush.xpose.msra.mxu0 0.0
  %3721 = vmatpush.xpose.msra.mxu0 0.0
  %3722 = vmatpush.xpose.msra.mxu0 0.0
  %3723 = vmatpush.xpose.msra.mxu0 0.0
  %3724 = vmatpush.xpose.msra.mxu0 0.0
  %3725 = vmatpush.xpose.msra.mxu0 0.0
  %3726 = vmatpush.xpose.msra.mxu0 0.0
  %3727 = vmatpush.xpose.msra.mxu0 0.0
  %3728 = vmatpush.xpose.msra.mxu0 0.0
  %3729 = vmatpush.xpose.msra.mxu0 0.0
  %3730 = vmatpush.xpose.msra.mxu0 %v260
  %3731 = vmatmul.f32.gmra.mxu0 %v3713
  %v3732 = vpop.f32.mrf.mxu0
  %v3733 = vadd.f32 0.0, %v3732
  %3734 = vdwg.mxu0
  %v3735 = vperm.slane %v3703, 0
  %3736 = vrot.lane.b32.xlu0 %v3735, 32
  %v3737 = vpop.permute.xlu0 %3736
  %v3738 = vsel %vm97, %v3737, 0
  %3740 = vmatpush.xpose.msra.mxu0 0.0
  %3741 = vmatpush.xpose.msra.mxu0 0.0
  %3742 = vmatpush.xpose.msra.mxu0 0.0
  %3743 = vmatpush.xpose.msra.mxu0 0.0
  %3744 = vmatpush.xpose.msra.mxu0 0.0
  %3745 = vmatpush.xpose.msra.mxu0 0.0
  %3746 = vmatpush.xpose.msra.mxu0 0.0
  %3747 = vmatpush.xpose.msra.mxu0 0.0
  %3748 = vmatpush.xpose.msra.mxu0 0.0
  %3749 = vmatpush.xpose.msra.mxu0 0.0
  %3750 = vmatpush.xpose.msra.mxu0 0.0
  %3751 = vmatpush.xpose.msra.mxu0 0.0
  %3752 = vmatpush.xpose.msra.mxu0 0.0
  %3753 = vmatpush.xpose.msra.mxu0 0.0
  %3754 = vmatpush.xpose.msra.mxu0 0.0
  %3755 = vmatpush.xpose.msra.mxu0 %v288
  %3756 = vmatmul.f32.gmra.mxu0 %v3738
  %v3757 = vpop.f32.mrf.mxu0
  %v3758 = vadd.f32 0.0, %v3757
  %3759 = vdwg.mxu0
  %v3760 = vperm.slane %v3704, 0
  %3761 = vrot.lane.b32.xlu0 %v3760, 32
  %v3762 = vpop.permute.xlu0 %3761
  %v3763 = vsel %vm97, %v3762, 0
  %3765 = vmatpush.xpose.msra.mxu0 0.0
  %3766 = vmatpush.xpose.msra.mxu0 0.0
  %3767 = vmatpush.xpose.msra.mxu0 0.0
  %3768 = vmatpush.xpose.msra.mxu0 0.0
  %3769 = vmatpush.xpose.msra.mxu0 0.0
  %3770 = vmatpush.xpose.msra.mxu0 0.0
  %3771 = vmatpush.xpose.msra.mxu0 0.0
  %3772 = vmatpush.xpose.msra.mxu0 0.0
  %3773 = vmatpush.xpose.msra.mxu0 0.0
  %3774 = vmatpush.xpose.msra.mxu0 0.0
  %3775 = vmatpush.xpose.msra.mxu0 0.0
  %3776 = vmatpush.xpose.msra.mxu0 0.0
  %3777 = vmatpush.xpose.msra.mxu0 0.0
  %3778 = vmatpush.xpose.msra.mxu0 0.0
  %3779 = vmatpush.xpose.msra.mxu0 0.0
  %3780 = vmatpush.xpose.msra.mxu0 %v316
  %3781 = vmatmul.f32.gmra.mxu0 %v3763
  %v3782 = vpop.f32.mrf.mxu0
  %v3783 = vadd.f32 0.0, %v3782
  %3784 = vdwg.mxu0
  %v3785 = vperm.slane %v3705, 0
  %3786 = vrot.lane.b32.xlu0 %v3785, 32
  %v3787 = vpop.permute.xlu0 %3786
  %v3788 = vsel %vm97, %v3787, 0
  %3790 = vmatpush.xpose.msra.mxu0 0.0
  %3791 = vmatpush.xpose.msra.mxu0 0.0
  %3792 = vmatpush.xpose.msra.mxu0 0.0
  %3793 = vmatpush.xpose.msra.mxu0 0.0
  %3794 = vmatpush.xpose.msra.mxu0 0.0
  %3795 = vmatpush.xpose.msra.mxu0 0.0
  %3796 = vmatpush.xpose.msra.mxu0 0.0
  %3797 = vmatpush.xpose.msra.mxu0 0.0
  %3798 = vmatpush.xpose.msra.mxu0 0.0
  %3799 = vmatpush.xpose.msra.mxu0 0.0
  %3800 = vmatpush.xpose.msra.mxu0 0.0
  %3801 = vmatpush.xpose.msra.mxu0 0.0
  %3802 = vmatpush.xpose.msra.mxu0 0.0
  %3803 = vmatpush.xpose.msra.mxu0 0.0
  %3804 = vmatpush.xpose.msra.mxu0 0.0
  %3805 = vmatpush.xpose.msra.mxu0 %v344
  %3806 = vmatmul.f32.gmra.mxu0 %v3788
  %v3807 = vpop.f32.mrf.mxu0
  %v3808 = vadd.f32 0.0, %v3807
  %3809 = vdwg.mxu0
  %v3810 = vperm.slane %v3706, 0
  %3811 = vrot.lane.b32.xlu0 %v3810, 32
  %v3812 = vpop.permute.xlu0 %3811
  %v3813 = vsel %vm97, %v3812, 0
  %3815 = vmatpush.xpose.msra.mxu0 0.0
  %3816 = vmatpush.xpose.msra.mxu0 0.0
  %3817 = vmatpush.xpose.msra.mxu0 0.0
  %3818 = vmatpush.xpose.msra.mxu0 0.0
  %3819 = vmatpush.xpose.msra.mxu0 0.0
  %3820 = vmatpush.xpose.msra.mxu0 0.0
  %3821 = vmatpush.xpose.msra.mxu0 0.0
  %3822 = vmatpush.xpose.msra.mxu0 0.0
  %3823 = vmatpush.xpose.msra.mxu0 0.0
  %3824 = vmatpush.xpose.msra.mxu0 0.0
  %3825 = vmatpush.xpose.msra.mxu0 0.0
  %3826 = vmatpush.xpose.msra.mxu0 0.0
  %3827 = vmatpush.xpose.msra.mxu0 0.0
  %3828 = vmatpush.xpose.msra.mxu0 0.0
  %3829 = vmatpush.xpose.msra.mxu0 0.0
  %3830 = vmatpush.xpose.msra.mxu0 %v372
  %3831 = vmatmul.f32.gmra.mxu0 %v3813
  %v3832 = vpop.f32.mrf.mxu0
  %v3833 = vadd.f32 0.0, %v3832
  %3834 = vdwg.mxu0
  %v3835 = vperm.slane %v3707, 0
  %3836 = vrot.lane.b32.xlu0 %v3835, 32
  %v3837 = vpop.permute.xlu0 %3836
  %v3838 = vsel %vm97, %v3837, 0
  %3840 = vmatpush.xpose.msra.mxu0 0.0
  %3841 = vmatpush.xpose.msra.mxu0 0.0
  %3842 = vmatpush.xpose.msra.mxu0 0.0
  %3843 = vmatpush.xpose.msra.mxu0 0.0
  %3844 = vmatpush.xpose.msra.mxu0 0.0
  %3845 = vmatpush.xpose.msra.mxu0 0.0
  %3846 = vmatpush.xpose.msra.mxu0 0.0
  %3847 = vmatpush.xpose.msra.mxu0 0.0
  %3848 = vmatpush.xpose.msra.mxu0 0.0
  %3849 = vmatpush.xpose.msra.mxu0 0.0
  %3850 = vmatpush.xpose.msra.mxu0 0.0
  %3851 = vmatpush.xpose.msra.mxu0 0.0
  %3852 = vmatpush.xpose.msra.mxu0 0.0
  %3853 = vmatpush.xpose.msra.mxu0 0.0
  %3854 = vmatpush.xpose.msra.mxu0 0.0
  %3855 = vmatpush.xpose.msra.mxu0 %v400
  %3856 = vmatmul.f32.gmra.mxu0 %v3838
  %v3857 = vpop.f32.mrf.mxu0
  %v3858 = vadd.f32 0.0, %v3857
  %3859 = vdwg.mxu0
  %v3860 = vperm.slane %v3708, 0
  %3861 = vrot.lane.b32.xlu0 %v3860, 32
  %v3862 = vpop.permute.xlu0 %3861
  %v3863 = vsel %vm97, %v3862, 0
  %3865 = vmatpush.xpose.msra.mxu0 0.0
  %3866 = vmatpush.xpose.msra.mxu0 0.0
  %3867 = vmatpush.xpose.msra.mxu0 0.0
  %3868 = vmatpush.xpose.msra.mxu0 0.0
  %3869 = vmatpush.xpose.msra.mxu0 0.0
  %3870 = vmatpush.xpose.msra.mxu0 0.0
  %3871 = vmatpush.xpose.msra.mxu0 0.0
  %3872 = vmatpush.xpose.msra.mxu0 0.0
  %3873 = vmatpush.xpose.msra.mxu0 0.0
  %3874 = vmatpush.xpose.msra.mxu0 0.0
  %3875 = vmatpush.xpose.msra.mxu0 0.0
  %3876 = vmatpush.xpose.msra.mxu0 0.0
  %3877 = vmatpush.xpose.msra.mxu0 0.0
  %3878 = vmatpush.xpose.msra.mxu0 0.0
  %3879 = vmatpush.xpose.msra.mxu0 0.0
  %3880 = vmatpush.xpose.msra.mxu0 %v428
  %3881 = vmatmul.f32.gmra.mxu0 %v3863
  %v3882 = vpop.f32.mrf.mxu0
  %v3883 = vadd.f32 0.0, %v3882
  %3884 = vdwg.mxu0
  %v3885 = vperm.slane %v3709, 0
  %3886 = vrot.lane.b32.xlu0 %v3885, 32
  %v3887 = vpop.permute.xlu0 %3886
  %v3888 = vsel %vm97, %v3887, 0
  %3890 = vmatpush.xpose.msra.mxu0 0.0
  %3891 = vmatpush.xpose.msra.mxu0 0.0
  %3892 = vmatpush.xpose.msra.mxu0 0.0
  %3893 = vmatpush.xpose.msra.mxu0 0.0
  %3894 = vmatpush.xpose.msra.mxu0 0.0
  %3895 = vmatpush.xpose.msra.mxu0 0.0
  %3896 = vmatpush.xpose.msra.mxu0 0.0
  %3897 = vmatpush.xpose.msra.mxu0 0.0
  %3898 = vmatpush.xpose.msra.mxu0 0.0
  %3899 = vmatpush.xpose.msra.mxu0 0.0
  %3900 = vmatpush.xpose.msra.mxu0 0.0
  %3901 = vmatpush.xpose.msra.mxu0 0.0
  %3902 = vmatpush.xpose.msra.mxu0 0.0
  %3903 = vmatpush.xpose.msra.mxu0 0.0
  %3904 = vmatpush.xpose.msra.mxu0 0.0
  %3905 = vmatpush.xpose.msra.mxu0 %v456
  %3906 = vmatmul.f32.gmra.mxu0 %v3888
  %v3907 = vpop.f32.mrf.mxu0
  %v3908 = vadd.f32 0.0, %v3907
  %3909 = vdwg.mxu0
  %v3910 = vsel %vm478, %v3733, -inf
  %3911 = vmax.xlane.f32.xlu0 %v3910
  %v3912 = vpop.xlane.xlu0 %3911
  %v3913 = vsel %vm478, %v3758, -inf
  %3914 = vmax.xlane.f32.xlu0 %v3913
  %v3915 = vpop.xlane.xlu0 %3914
  %v3916 = vsel %vm478, %v3783, -inf
  %3917 = vmax.xlane.f32.xlu0 %v3916
  %v3918 = vpop.xlane.xlu0 %3917
  %v3919 = vsel %vm478, %v3808, -inf
  %3920 = vmax.xlane.f32.xlu0 %v3919
  %v3921 = vpop.xlane.xlu0 %3920
  %v3922 = vsel %vm478, %v3833, -inf
  %3923 = vmax.xlane.f32.xlu0 %v3922
  %v3924 = vpop.xlane.xlu0 %3923
  %v3925 = vsel %vm478, %v3858, -inf
  %3926 = vmax.xlane.f32.xlu0 %v3925
  %v3927 = vpop.xlane.xlu0 %3926
  %v3928 = vsel %vm478, %v3883, -inf
  %3929 = vmax.xlane.f32.xlu0 %v3928
  %v3930 = vpop.xlane.xlu0 %3929
  %v3931 = vsel %vm478, %v3908, -inf
  %3932 = vmax.xlane.f32.xlu0 %v3931
  %v3933 = vpop.xlane.xlu0 %3932
  %v3934 = vsub.f32 %v3733, %v3912
  %v3935 = vsub.f32 %v3758, %v3915
  %v3936 = vsub.f32 %v3783, %v3918
  %v3937 = vsub.f32 %v3808, %v3921
  %v3938 = vsub.f32 %v3833, %v3924
  %v3939 = vsub.f32 %v3858, %v3927
  %v3940 = vsub.f32 %v3883, %v3930
  %v3941 = vsub.f32 %v3908, %v3933
  %v3942 = vmul.f32 %v3934, 1.442695
  %v3943 = vpow.pop %v3942
  %v3944 = vmul.f32 %v3935, 1.442695
  %v3945 = vpow.pop %v3944
  %v3946 = vmul.f32 %v3936, 1.442695
  %v3947 = vpow.pop %v3946
  %v3948 = vmul.f32 %v3937, 1.442695
  %v3949 = vpow.pop %v3948
  %v3950 = vmul.f32 %v3938, 1.442695
  %v3951 = vpow.pop %v3950
  %v3952 = vmul.f32 %v3939, 1.442695
  %v3953 = vpow.pop %v3952
  %v3954 = vmul.f32 %v3940, 1.442695
  %v3955 = vpow.pop %v3954
  %v3956 = vmul.f32 %v3941, 1.442695
  %v3957 = vpow.pop %v3956
  %v3958 = vsel %vm478, %v3943, 0.0
  %3959 = vadd.xlane.f32.xlu0 %v3958
  %v3960 = vpop.xlane.xlu0 %3959
  %v3961 = vsel %vm478, %v3945, 0.0
  %3962 = vadd.xlane.f32.xlu0 %v3961
  %v3963 = vpop.xlane.xlu0 %3962
  %v3964 = vsel %vm478, %v3947, 0.0
  %3965 = vadd.xlane.f32.xlu0 %v3964
  %v3966 = vpop.xlane.xlu0 %3965
  %v3967 = vsel %vm478, %v3949, 0.0
  %3968 = vadd.xlane.f32.xlu0 %v3967
  %v3969 = vpop.xlane.xlu0 %3968
  %v3970 = vsel %vm478, %v3951, 0.0
  %3971 = vadd.xlane.f32.xlu0 %v3970
  %v3972 = vpop.xlane.xlu0 %3971
  %v3973 = vsel %vm478, %v3953, 0.0
  %3974 = vadd.xlane.f32.xlu0 %v3973
  %v3975 = vpop.xlane.xlu0 %3974
  %v3976 = vsel %vm478, %v3955, 0.0
  %3977 = vadd.xlane.f32.xlu0 %v3976
  %v3978 = vpop.xlane.xlu0 %3977
  %v3979 = vsel %vm478, %v3957, 0.0
  %3980 = vadd.xlane.f32.xlu0 %v3979
  %v3981 = vpop.xlane.xlu0 %3980
  %v3982 = vrcp.pop %v3960
  %v3983 = vrcp.pop %v3963
  %v3984 = vrcp.pop %v3966
  %v3985 = vrcp.pop %v3969
  %v3986 = vrcp.pop %v3972
  %v3987 = vrcp.pop %v3975
  %v3988 = vrcp.pop %v3978
  %v3989 = vrcp.pop %v3981
  %v3990 = vmul.f32 %v3943, %v3982
  %v3991 = vmul.f32 %v3945, %v3983
  %v3992 = vmul.f32 %v3947, %v3984
  %v3993 = vmul.f32 %v3949, %v3985
  %v3994 = vmul.f32 %v3951, %v3986
  %v3995 = vmul.f32 %v3953, %v3987
  %v3996 = vmul.f32 %v3955, %v3988
  %v3997 = vmul.f32 %v3957, %v3989
  %v3999 = vsel %vm567, %v3990, 0
  %4001 = vmatpush.msra.mxu0 0.0
  %4002 = vmatpush.msra.mxu0 0.0
  %4003 = vmatpush.msra.mxu0 0.0
  %4004 = vmatpush.msra.mxu0 0.0
  %4005 = vmatpush.msra.mxu0 0.0
  %4006 = vmatpush.msra.mxu0 0.0
  %4007 = vmatpush.msra.mxu0 0.0
  %4008 = vmatpush.msra.mxu0 0.0
  %4009 = vmatpush.msra.mxu0 0.0
  %4010 = vmatpush.msra.mxu0 0.0
  %4011 = vmatpush.msra.mxu0 0.0
  %4012 = vmatpush.msra.mxu0 0.0
  %4013 = vmatpush.msra.mxu0 0.0
  %4014 = vmatpush.msra.mxu0 0.0
  %4015 = vmatpush.msra.mxu0 0.0
  %4016 = vmatpush.msra.mxu0 %v39
  %4017 = vmatmul.f32.gmra.mxu0 %v3999
  %v4018 = vpop.f32.mrf.mxu0
  %v4019 = vadd.f32 0.0, %v4018
  %4020 = vdwg.mxu0
  %v4022 = vsel %vm567, %v3991, 0
  %4024 = vmatpush.msra.mxu0 0.0
  %4025 = vmatpush.msra.mxu0 0.0
  %4026 = vmatpush.msra.mxu0 0.0
  %4027 = vmatpush.msra.mxu0 0.0
  %4028 = vmatpush.msra.mxu0 0.0
  %4029 = vmatpush.msra.mxu0 0.0
  %4030 = vmatpush.msra.mxu0 0.0
  %4031 = vmatpush.msra.mxu0 0.0
  %4032 = vmatpush.msra.mxu0 0.0
  %4033 = vmatpush.msra.mxu0 0.0
  %4034 = vmatpush.msra.mxu0 0.0
  %4035 = vmatpush.msra.mxu0 0.0
  %4036 = vmatpush.msra.mxu0 0.0
  %4037 = vmatpush.msra.mxu0 0.0
  %4038 = vmatpush.msra.mxu0 0.0
  %4039 = vmatpush.msra.mxu0 %v40
  %4040 = vmatmul.f32.gmra.mxu0 %v4022
  %v4041 = vpop.f32.mrf.mxu0
  %v4042 = vadd.f32 0.0, %v4041
  %4043 = vdwg.mxu0
  %v4045 = vsel %vm567, %v3992, 0
  %4047 = vmatpush.msra.mxu0 0.0
  %4048 = vmatpush.msra.mxu0 0.0
  %4049 = vmatpush.msra.mxu0 0.0
  %4050 = vmatpush.msra.mxu0 0.0
  %4051 = vmatpush.msra.mxu0 0.0
  %4052 = vmatpush.msra.mxu0 0.0
  %4053 = vmatpush.msra.mxu0 0.0
  %4054 = vmatpush.msra.mxu0 0.0
  %4055 = vmatpush.msra.mxu0 0.0
  %4056 = vmatpush.msra.mxu0 0.0
  %4057 = vmatpush.msra.mxu0 0.0
  %4058 = vmatpush.msra.mxu0 0.0
  %4059 = vmatpush.msra.mxu0 0.0
  %4060 = vmatpush.msra.mxu0 0.0
  %4061 = vmatpush.msra.mxu0 0.0
  %4062 = vmatpush.msra.mxu0 %v41
  %4063 = vmatmul.f32.gmra.mxu0 %v4045
  %v4064 = vpop.f32.mrf.mxu0
  %v4065 = vadd.f32 0.0, %v4064
  %4066 = vdwg.mxu0
  %v4068 = vsel %vm567, %v3993, 0
  %4070 = vmatpush.msra.mxu0 0.0
  %4071 = vmatpush.msra.mxu0 0.0
  %4072 = vmatpush.msra.mxu0 0.0
  %4073 = vmatpush.msra.mxu0 0.0
  %4074 = vmatpush.msra.mxu0 0.0
  %4075 = vmatpush.msra.mxu0 0.0
  %4076 = vmatpush.msra.mxu0 0.0
  %4077 = vmatpush.msra.mxu0 0.0
  %4078 = vmatpush.msra.mxu0 0.0
  %4079 = vmatpush.msra.mxu0 0.0
  %4080 = vmatpush.msra.mxu0 0.0
  %4081 = vmatpush.msra.mxu0 0.0
  %4082 = vmatpush.msra.mxu0 0.0
  %4083 = vmatpush.msra.mxu0 0.0
  %4084 = vmatpush.msra.mxu0 0.0
  %4085 = vmatpush.msra.mxu0 %v42
  %4086 = vmatmul.f32.gmra.mxu0 %v4068
  %v4087 = vpop.f32.mrf.mxu0
  %v4088 = vadd.f32 0.0, %v4087
  %4089 = vdwg.mxu0
  %v4091 = vsel %vm567, %v3994, 0
  %4093 = vmatpush.msra.mxu0 0.0
  %4094 = vmatpush.msra.mxu0 0.0
  %4095 = vmatpush.msra.mxu0 0.0
  %4096 = vmatpush.msra.mxu0 0.0
  %4097 = vmatpush.msra.mxu0 0.0
  %4098 = vmatpush.msra.mxu0 0.0
  %4099 = vmatpush.msra.mxu0 0.0
  %4100 = vmatpush.msra.mxu0 0.0
  %4101 = vmatpush.msra.mxu0 0.0
  %4102 = vmatpush.msra.mxu0 0.0
  %4103 = vmatpush.msra.mxu0 0.0
  %4104 = vmatpush.msra.mxu0 0.0
  %4105 = vmatpush.msra.mxu0 0.0
  %4106 = vmatpush.msra.mxu0 0.0
  %4107 = vmatpush.msra.mxu0 0.0
  %4108 = vmatpush.msra.mxu0 %v43
  %4109 = vmatmul.f32.gmra.mxu0 %v4091
  %v4110 = vpop.f32.mrf.mxu0
  %v4111 = vadd.f32 0.0, %v4110
  %4112 = vdwg.mxu0
  %v4114 = vsel %vm567, %v3995, 0
  %4116 = vmatpush.msra.mxu0 0.0
  %4117 = vmatpush.msra.mxu0 0.0
  %4118 = vmatpush.msra.mxu0 0.0
  %4119 = vmatpush.msra.mxu0 0.0
  %4120 = vmatpush.msra.mxu0 0.0
  %4121 = vmatpush.msra.mxu0 0.0
  %4122 = vmatpush.msra.mxu0 0.0
  %4123 = vmatpush.msra.mxu0 0.0
  %4124 = vmatpush.msra.mxu0 0.0
  %4125 = vmatpush.msra.mxu0 0.0
  %4126 = vmatpush.msra.mxu0 0.0
  %4127 = vmatpush.msra.mxu0 0.0
  %4128 = vmatpush.msra.mxu0 0.0
  %4129 = vmatpush.msra.mxu0 0.0
  %4130 = vmatpush.msra.mxu0 0.0
  %4131 = vmatpush.msra.mxu0 %v44
  %4132 = vmatmul.f32.gmra.mxu0 %v4114
  %v4133 = vpop.f32.mrf.mxu0
  %v4134 = vadd.f32 0.0, %v4133
  %4135 = vdwg.mxu0
  %v4137 = vsel %vm567, %v3996, 0
  %4139 = vmatpush.msra.mxu0 0.0
  %4140 = vmatpush.msra.mxu0 0.0
  %4141 = vmatpush.msra.mxu0 0.0
  %4142 = vmatpush.msra.mxu0 0.0
  %4143 = vmatpush.msra.mxu0 0.0
  %4144 = vmatpush.msra.mxu0 0.0
  %4145 = vmatpush.msra.mxu0 0.0
  %4146 = vmatpush.msra.mxu0 0.0
  %4147 = vmatpush.msra.mxu0 0.0
  %4148 = vmatpush.msra.mxu0 0.0
  %4149 = vmatpush.msra.mxu0 0.0
  %4150 = vmatpush.msra.mxu0 0.0
  %4151 = vmatpush.msra.mxu0 0.0
  %4152 = vmatpush.msra.mxu0 0.0
  %4153 = vmatpush.msra.mxu0 0.0
  %4154 = vmatpush.msra.mxu0 %v45
  %4155 = vmatmul.f32.gmra.mxu0 %v4137
  %v4156 = vpop.f32.mrf.mxu0
  %v4157 = vadd.f32 0.0, %v4156
  %4158 = vdwg.mxu0
  %v4160 = vsel %vm567, %v3997, 0
  %4162 = vmatpush.msra.mxu0 0.0
  %4163 = vmatpush.msra.mxu0 0.0
  %4164 = vmatpush.msra.mxu0 0.0
  %4165 = vmatpush.msra.mxu0 0.0
  %4166 = vmatpush.msra.mxu0 0.0
  %4167 = vmatpush.msra.mxu0 0.0
  %4168 = vmatpush.msra.mxu0 0.0
  %4169 = vmatpush.msra.mxu0 0.0
  %4170 = vmatpush.msra.mxu0 0.0
  %4171 = vmatpush.msra.mxu0 0.0
  %4172 = vmatpush.msra.mxu0 0.0
  %4173 = vmatpush.msra.mxu0 0.0
  %4174 = vmatpush.msra.mxu0 0.0
  %4175 = vmatpush.msra.mxu0 0.0
  %4176 = vmatpush.msra.mxu0 0.0
  %4177 = vmatpush.msra.mxu0 %v46
  %4178 = vmatmul.f32.gmra.mxu0 %v4160
  %v4179 = vpop.f32.mrf.mxu0
  %v4180 = vadd.f32 0.0, %v4179
  %4181 = vdwg.mxu0
  %v4190 = vrot.slane %v4042, 7
  %v4191 = vsel %vm761, %v4190, %v4019
  %v4192 = vrot.slane %v4065, 6
  %v4193 = vsel %vm764, %v4192, %v4191
  %v4194 = vrot.slane %v4088, 5
  %v4195 = vsel %vm767, %v4194, %v4193
  %v4196 = vrot.slane %v4111, 4
  %v4197 = vsel %vm770, %v4196, %v4195
  %v4198 = vrot.slane %v4134, 3
  %v4199 = vsel %vm773, %v4198, %v4197
  %v4200 = vrot.slane %v4157, 2
  %v4201 = vsel %vm776, %v4200, %v4199
  %v4202 = vrot.slane %v4180, 1
  %v4203 = vsel %vm779, %v4202, %v4201
  %4205 = vrot.lane.b32.xlu0 %v3701, 64
  %v4206 = vpop.permute.xlu0 %4205
  %v4208 = vsel %vm97, %v4203, %v4206
  %v4210 = vsel %vm99, %v4208, 0
  %4212 = vmatpush.msra.mxu0 0.0
  %4213 = vmatpush.msra.mxu0 0.0
  %4214 = vmatpush.msra.mxu0 0.0
  %4215 = vmatpush.msra.mxu0 0.0
  %4216 = vmatpush.msra.mxu0 0.0
  %4217 = vmatpush.msra.mxu0 0.0
  %4218 = vmatpush.msra.mxu0 0.0
  %4219 = vmatpush.msra.mxu0 0.0
  %4220 = vmatpush.msra.mxu0 %v79
  %4221 = vmatpush.msra.mxu0 %v78
  %4222 = vmatpush.msra.mxu0 %v77
  %4223 = vmatpush.msra.mxu0 %v76
  %4224 = vmatpush.msra.mxu0 %v75
  %4225 = vmatpush.msra.mxu0 %v74
  %4226 = vmatpush.msra.mxu0 %v73
  %4227 = vmatpush.msra.mxu0 %v72
  %4228 = vmatmul.f32.gmra.mxu0 %v4210
  %v4229 = vpop.f32.mrf.mxu0
  %v4230 = vadd.f32 0.0, %v4229
  %4231 = vdwg.mxu0
  %v4232 = vtanh.pop %v4230
  %s4233 = scalar_lea.vmem %s10, 40
  %4234 = vst.msk [vmem:[%s4233] sm:$0xff] %vm97, %v4232
  %v4235 = vrot.slane %v3991, 7
  %v4236 = vsel %vm761, %v4235, %v3990
  %v4237 = vrot.slane %v3992, 6
  %v4238 = vsel %vm764, %v4237, %v4236
  %v4239 = vrot.slane %v3993, 5
  %v4240 = vsel %vm767, %v4239, %v4238
  %v4241 = vrot.slane %v3994, 4
  %v4242 = vsel %vm770, %v4241, %v4240
  %v4243 = vrot.slane %v3995, 3
  %v4244 = vsel %vm773, %v4243, %v4242
  %v4245 = vrot.slane %v3996, 2
  %v4246 = vsel %vm776, %v4245, %v4244
  %v4247 = vrot.slane %v3997, 1
  %v4248 = vsel %vm779, %v4247, %v4246
  %s4250 = scalar_lea.vmem %s11, 40
  %4251 = vst.msk [vmem:[%s4250] sm:$0xff] %vm567, %v4248
  %s4252 = scalar_lea.vmem %s0, 48
  %v4253 = vld [vmem:[%s4252] sm:$0xff]
  %4254 = vrot.lane.b32.xlu0 %v3634, 64
  %v4255 = vpop.permute.xlu0 %4254
  %v4257 = vsel %vm97, %v4232, %v4255
  %v4259 = vsel %vm99, %v4257, 0
  %4261 = vmatpush.msra.mxu0 0.0
  %4262 = vmatpush.msra.mxu0 0.0
  %4263 = vmatpush.msra.mxu0 0.0
  %4264 = vmatpush.msra.mxu0 0.0
  %4265 = vmatpush.msra.mxu0 0.0
  %4266 = vmatpush.msra.mxu0 0.0
  %4267 = vmatpush.msra.mxu0 0.0
  %4268 = vmatpush.msra.mxu0 0.0
  %4269 = vmatpush.msra.mxu0 %v62
  %4270 = vmatpush.msra.mxu0 %v61
  %4271 = vmatpush.msra.mxu0 %v60
  %4272 = vmatpush.msra.mxu0 %v59
  %4273 = vmatpush.msra.mxu0 %v58
  %4274 = vmatpush.msra.mxu0 %v57
  %4275 = vmatpush.msra.mxu0 %v56
  %4276 = vmatpush.msra.mxu0 %v55
  %4277 = vmatmul.f32.gmra.mxu0 %v4259
  %v4278 = vpop.f32.mrf.mxu0
  %v4279 = vadd.f32 0.0, %v4278
  %4280 = vdwg.mxu0
  %v4281 = vadd.f32 %v4253, %v4279
  %v4282 = vtanh.pop %v4281
  %v4283 = vxor.u32 %v4281, 2147483648
  %v4284 = vmul.f32 %v4283, 1.442695
  %v4285 = vpow.pop %v4284
  %v4286 = vadd.f32 %v4285, 1.0
  %v4287 = vrcp.pop %v4286
  %v4288 = vmul.f32 %v4286, %v4287
  %v4289 = vsub.f32 1.0, %v4288
  %v4290 = vmul.f32 %v4287, %v4289
  %v4291 = vadd.f32 %v4287, %v4290
  %vm4292 = vweird.f32 %v4286
  %vm4293 = vweird.f32 %v4287
  %vm4294 = vmor %vm4292, %vm4293
  %v4295 = vsel %vm4294, %v4287, %v4291
  %v4296 = vand.u32 2147483647, %v4286
  %vm4297 = vcmp.eq.f32.partialorder %v4296, 8.507059e+37
  %v4298 = vand.u32 %v4286, 2147483648
  %v4299 = vor.u32 1.1754944e-38, %v4298
  %v4300 = vsel %vm4297, %v4299, %v4295
  %v4301 = vmul.f32 1.0, %v4300
  %v4302 = vsel %vm145, %v4282, %v4301
  %v4303 = vmul.f32 %v4302, %v3628
  %4305 = vrot.lane.b32.xlu0 %v4302, 64
  %v4306 = vpop.permute.xlu0 %4305
  %v4308 = vmul.f32 %v4302, %v4306
  %4310 = vrot.lane.b32.xlu0 %v4308, 32
  %v4311 = vpop.permute.xlu0 %4310
  %v4313 = vadd.f32 %v4303, %v4311
  %v4314 = vtanh.pop %v4313
  %4316 = vrot.lane.b32.xlu0 %v4314, 64
  %v4317 = vpop.permute.xlu0 %4316
  %v4319 = vmul.f32 %v4302, %v4317
  %4321 = vrot.lane.b32.xlu0 %v4319, 32
  %v4322 = vpop.permute.xlu0 %4321
  %v4324 = vsel %vm97, %v4322, %v4206
  %v4326 = vsel %vm99, %v4324, 0
  %4328 = vmatpush.msra.mxu0 0.0
  %4329 = vmatpush.msra.mxu0 0.0
  %4330 = vmatpush.msra.mxu0 0.0
  %4331 = vmatpush.msra.mxu0 0.0
  %4332 = vmatpush.msra.mxu0 0.0
  %4333 = vmatpush.msra.mxu0 0.0
  %4334 = vmatpush.msra.mxu0 0.0
  %4335 = vmatpush.msra.mxu0 0.0
  %4336 = vmatpush.msra.mxu0 %v70
  %4337 = vmatpush.msra.mxu0 %v69
  %4338 = vmatpush.msra.mxu0 %v68
  %4339 = vmatpush.msra.mxu0 %v67
  %4340 = vmatpush.msra.mxu0 %v66
  %4341 = vmatpush.msra.mxu0 %v65
  %4342 = vmatpush.msra.mxu0 %v64
  %4343 = vmatpush.msra.mxu0 %v63
  %4344 = vmatmul.f32.gmra.mxu0 %v4326
  %v4345 = vpop.f32.mrf.mxu0
  %v4346 = vadd.f32 0.0, %v4345
  %4347 = vdwg.mxu0
  %v4348 = vadd.f32 %v201, %v4346
  %v4349 = vtanh.pop %v4348
  %v4350 = vxor.u32 %v4348, 2147483648
  %v4351 = vmul.f32 %v4350, 1.442695
  %v4352 = vpow.pop %v4351
  %v4353 = vadd.f32 %v4352, 1.0
  %v4354 = vrcp.pop %v4353
  %v4355 = vmul.f32 %v4353, %v4354
  %v4356 = vsub.f32 1.0, %v4355
  %v4357 = vmul.f32 %v4354, %v4356
  %v4358 = vadd.f32 %v4354, %v4357
  %vm4359 = vweird.f32 %v4353
  %vm4360 = vweird.f32 %v4354
  %vm4361 = vmor %vm4359, %vm4360
  %v4362 = vsel %vm4361, %v4354, %v4358
  %v4363 = vand.u32 2147483647, %v4353
  %vm4364 = vcmp.eq.f32.partialorder %v4363, 8.507059e+37
  %v4365 = vand.u32 %v4353, 2147483648
  %v4366 = vor.u32 1.1754944e-38, %v4365
  %v4367 = vsel %vm4364, %v4366, %v4362
  %v4368 = vmul.f32 1.0, %v4367
  %v4369 = vsel %vm145, %v4349, %v4368
  %v4370 = vmul.f32 %v4369, %v3695
  %4372 = vrot.lane.b32.xlu0 %v4369, 64
  %v4373 = vpop.permute.xlu0 %4372
  %v4375 = vmul.f32 %v4369, %v4373
  %4377 = vrot.lane.b32.xlu0 %v4375, 32
  %v4378 = vpop.permute.xlu0 %4377
  %v4380 = vadd.f32 %v4370, %v4378
  %v4381 = vtanh.pop %v4380
  %4383 = vrot.lane.b32.xlu0 %v4381, 64
  %v4384 = vpop.permute.xlu0 %4383
  %v4386 = vmul.f32 %v4369, %v4384
  %v4388 = vrot.slane %v4386, 1
  %v4389 = vrot.slane %v4386, 2
  %v4390 = vrot.slane %v4386, 3
  %v4391 = vrot.slane %v4386, 4
  %v4392 = vrot.slane %v4386, 5
  %v4393 = vrot.slane %v4386, 6
  %v4394 = vrot.slane %v4386, 7
  %v4395 = vperm.slane %v4386, 0
  %4396 = vrot.lane.b32.xlu0 %v4395, 32
  %v4397 = vpop.permute.xlu0 %4396
  %v4398 = vsel %vm97, %v4397, 0
  %4400 = vmatpush.xpose.msra.mxu0 0.0
  %4401 = vmatpush.xpose.msra.mxu0 0.0
  %4402 = vmatpush.xpose.msra.mxu0 0.0
  %4403 = vmatpush.xpose.msra.mxu0 0.0
  %4404 = vmatpush.xpose.msra.mxu0 0.0
  %4405 = vmatpush.xpose.msra.mxu0 0.0
  %4406 = vmatpush.xpose.msra.mxu0 0.0
  %4407 = vmatpush.xpose.msra.mxu0 0.0
  %4408 = vmatpush.xpose.msra.mxu0 0.0
  %4409 = vmatpush.xpose.msra.mxu0 0.0
  %4410 = vmatpush.xpose.msra.mxu0 0.0
  %4411 = vmatpush.xpose.msra.mxu0 0.0
  %4412 = vmatpush.xpose.msra.mxu0 0.0
  %4413 = vmatpush.xpose.msra.mxu0 0.0
  %4414 = vmatpush.xpose.msra.mxu0 0.0
  %4415 = vmatpush.xpose.msra.mxu0 %v260
  %4416 = vmatmul.f32.gmra.mxu0 %v4398
  %v4417 = vpop.f32.mrf.mxu0
  %v4418 = vadd.f32 0.0, %v4417
  %4419 = vdwg.mxu0
  %v4420 = vperm.slane %v4388, 0
  %4421 = vrot.lane.b32.xlu0 %v4420, 32
  %v4422 = vpop.permute.xlu0 %4421
  %v4423 = vsel %vm97, %v4422, 0
  %4425 = vmatpush.xpose.msra.mxu0 0.0
  %4426 = vmatpush.xpose.msra.mxu0 0.0
  %4427 = vmatpush.xpose.msra.mxu0 0.0
  %4428 = vmatpush.xpose.msra.mxu0 0.0
  %4429 = vmatpush.xpose.msra.mxu0 0.0
  %4430 = vmatpush.xpose.msra.mxu0 0.0
  %4431 = vmatpush.xpose.msra.mxu0 0.0
  %4432 = vmatpush.xpose.msra.mxu0 0.0
  %4433 = vmatpush.xpose.msra.mxu0 0.0
  %4434 = vmatpush.xpose.msra.mxu0 0.0
  %4435 = vmatpush.xpose.msra.mxu0 0.0
  %4436 = vmatpush.xpose.msra.mxu0 0.0
  %4437 = vmatpush.xpose.msra.mxu0 0.0
  %4438 = vmatpush.xpose.msra.mxu0 0.0
  %4439 = vmatpush.xpose.msra.mxu0 0.0
  %4440 = vmatpush.xpose.msra.mxu0 %v288
  %4441 = vmatmul.f32.gmra.mxu0 %v4423
  %v4442 = vpop.f32.mrf.mxu0
  %v4443 = vadd.f32 0.0, %v4442
  %4444 = vdwg.mxu0
  %v4445 = vperm.slane %v4389, 0
  %4446 = vrot.lane.b32.xlu0 %v4445, 32
  %v4447 = vpop.permute.xlu0 %4446
  %v4448 = vsel %vm97, %v4447, 0
  %4450 = vmatpush.xpose.msra.mxu0 0.0
  %4451 = vmatpush.xpose.msra.mxu0 0.0
  %4452 = vmatpush.xpose.msra.mxu0 0.0
  %4453 = vmatpush.xpose.msra.mxu0 0.0
  %4454 = vmatpush.xpose.msra.mxu0 0.0
  %4455 = vmatpush.xpose.msra.mxu0 0.0
  %4456 = vmatpush.xpose.msra.mxu0 0.0
  %4457 = vmatpush.xpose.msra.mxu0 0.0
  %4458 = vmatpush.xpose.msra.mxu0 0.0
  %4459 = vmatpush.xpose.msra.mxu0 0.0
  %4460 = vmatpush.xpose.msra.mxu0 0.0
  %4461 = vmatpush.xpose.msra.mxu0 0.0
  %4462 = vmatpush.xpose.msra.mxu0 0.0
  %4463 = vmatpush.xpose.msra.mxu0 0.0
  %4464 = vmatpush.xpose.msra.mxu0 0.0
  %4465 = vmatpush.xpose.msra.mxu0 %v316
  %4466 = vmatmul.f32.gmra.mxu0 %v4448
  %v4467 = vpop.f32.mrf.mxu0
  %v4468 = vadd.f32 0.0, %v4467
  %4469 = vdwg.mxu0
  %v4470 = vperm.slane %v4390, 0
  %4471 = vrot.lane.b32.xlu0 %v4470, 32
  %v4472 = vpop.permute.xlu0 %4471
  %v4473 = vsel %vm97, %v4472, 0
  %4475 = vmatpush.xpose.msra.mxu0 0.0
  %4476 = vmatpush.xpose.msra.mxu0 0.0
  %4477 = vmatpush.xpose.msra.mxu0 0.0
  %4478 = vmatpush.xpose.msra.mxu0 0.0
  %4479 = vmatpush.xpose.msra.mxu0 0.0
  %4480 = vmatpush.xpose.msra.mxu0 0.0
  %4481 = vmatpush.xpose.msra.mxu0 0.0
  %4482 = vmatpush.xpose.msra.mxu0 0.0
  %4483 = vmatpush.xpose.msra.mxu0 0.0
  %4484 = vmatpush.xpose.msra.mxu0 0.0
  %4485 = vmatpush.xpose.msra.mxu0 0.0
  %4486 = vmatpush.xpose.msra.mxu0 0.0
  %4487 = vmatpush.xpose.msra.mxu0 0.0
  %4488 = vmatpush.xpose.msra.mxu0 0.0
  %4489 = vmatpush.xpose.msra.mxu0 0.0
  %4490 = vmatpush.xpose.msra.mxu0 %v344
  %4491 = vmatmul.f32.gmra.mxu0 %v4473
  %v4492 = vpop.f32.mrf.mxu0
  %v4493 = vadd.f32 0.0, %v4492
  %4494 = vdwg.mxu0
  %v4495 = vperm.slane %v4391, 0
  %4496 = vrot.lane.b32.xlu0 %v4495, 32
  %v4497 = vpop.permute.xlu0 %4496
  %v4498 = vsel %vm97, %v4497, 0
  %4500 = vmatpush.xpose.msra.mxu0 0.0
  %4501 = vmatpush.xpose.msra.mxu0 0.0
  %4502 = vmatpush.xpose.msra.mxu0 0.0
  %4503 = vmatpush.xpose.msra.mxu0 0.0
  %4504 = vmatpush.xpose.msra.mxu0 0.0
  %4505 = vmatpush.xpose.msra.mxu0 0.0
  %4506 = vmatpush.xpose.msra.mxu0 0.0
  %4507 = vmatpush.xpose.msra.mxu0 0.0
  %4508 = vmatpush.xpose.msra.mxu0 0.0
  %4509 = vmatpush.xpose.msra.mxu0 0.0
  %4510 = vmatpush.xpose.msra.mxu0 0.0
  %4511 = vmatpush.xpose.msra.mxu0 0.0
  %4512 = vmatpush.xpose.msra.mxu0 0.0
  %4513 = vmatpush.xpose.msra.mxu0 0.0
  %4514 = vmatpush.xpose.msra.mxu0 0.0
  %4515 = vmatpush.xpose.msra.mxu0 %v372
  %4516 = vmatmul.f32.gmra.mxu0 %v4498
  %v4517 = vpop.f32.mrf.mxu0
  %v4518 = vadd.f32 0.0, %v4517
  %4519 = vdwg.mxu0
  %v4520 = vperm.slane %v4392, 0
  %4521 = vrot.lane.b32.xlu0 %v4520, 32
  %v4522 = vpop.permute.xlu0 %4521
  %v4523 = vsel %vm97, %v4522, 0
  %4525 = vmatpush.xpose.msra.mxu0 0.0
  %4526 = vmatpush.xpose.msra.mxu0 0.0
  %4527 = vmatpush.xpose.msra.mxu0 0.0
  %4528 = vmatpush.xpose.msra.mxu0 0.0
  %4529 = vmatpush.xpose.msra.mxu0 0.0
  %4530 = vmatpush.xpose.msra.mxu0 0.0
  %4531 = vmatpush.xpose.msra.mxu0 0.0
  %4532 = vmatpush.xpose.msra.mxu0 0.0
  %4533 = vmatpush.xpose.msra.mxu0 0.0
  %4534 = vmatpush.xpose.msra.mxu0 0.0
  %4535 = vmatpush.xpose.msra.mxu0 0.0
  %4536 = vmatpush.xpose.msra.mxu0 0.0
  %4537 = vmatpush.xpose.msra.mxu0 0.0
  %4538 = vmatpush.xpose.msra.mxu0 0.0
  %4539 = vmatpush.xpose.msra.mxu0 0.0
  %4540 = vmatpush.xpose.msra.mxu0 %v400
  %4541 = vmatmul.f32.gmra.mxu0 %v4523
  %v4542 = vpop.f32.mrf.mxu0
  %v4543 = vadd.f32 0.0, %v4542
  %4544 = vdwg.mxu0
  %v4545 = vperm.slane %v4393, 0
  %4546 = vrot.lane.b32.xlu0 %v4545, 32
  %v4547 = vpop.permute.xlu0 %4546
  %v4548 = vsel %vm97, %v4547, 0
  %4550 = vmatpush.xpose.msra.mxu0 0.0
  %4551 = vmatpush.xpose.msra.mxu0 0.0
  %4552 = vmatpush.xpose.msra.mxu0 0.0
  %4553 = vmatpush.xpose.msra.mxu0 0.0
  %4554 = vmatpush.xpose.msra.mxu0 0.0
  %4555 = vmatpush.xpose.msra.mxu0 0.0
  %4556 = vmatpush.xpose.msra.mxu0 0.0
  %4557 = vmatpush.xpose.msra.mxu0 0.0
  %4558 = vmatpush.xpose.msra.mxu0 0.0
  %4559 = vmatpush.xpose.msra.mxu0 0.0
  %4560 = vmatpush.xpose.msra.mxu0 0.0
  %4561 = vmatpush.xpose.msra.mxu0 0.0
  %4562 = vmatpush.xpose.msra.mxu0 0.0
  %4563 = vmatpush.xpose.msra.mxu0 0.0
  %4564 = vmatpush.xpose.msra.mxu0 0.0
  %4565 = vmatpush.xpose.msra.mxu0 %v428
  %4566 = vmatmul.f32.gmra.mxu0 %v4548
  %v4567 = vpop.f32.mrf.mxu0
  %v4568 = vadd.f32 0.0, %v4567
  %4569 = vdwg.mxu0
  %v4570 = vperm.slane %v4394, 0
  %4571 = vrot.lane.b32.xlu0 %v4570, 32
  %v4572 = vpop.permute.xlu0 %4571
  %v4573 = vsel %vm97, %v4572, 0
  %4575 = vmatpush.xpose.msra.mxu0 0.0
  %4576 = vmatpush.xpose.msra.mxu0 0.0
  %4577 = vmatpush.xpose.msra.mxu0 0.0
  %4578 = vmatpush.xpose.msra.mxu0 0.0
  %4579 = vmatpush.xpose.msra.mxu0 0.0
  %4580 = vmatpush.xpose.msra.mxu0 0.0
  %4581 = vmatpush.xpose.msra.mxu0 0.0
  %4582 = vmatpush.xpose.msra.mxu0 0.0
  %4583 = vmatpush.xpose.msra.mxu0 0.0
  %4584 = vmatpush.xpose.msra.mxu0 0.0
  %4585 = vmatpush.xpose.msra.mxu0 0.0
  %4586 = vmatpush.xpose.msra.mxu0 0.0
  %4587 = vmatpush.xpose.msra.mxu0 0.0
  %4588 = vmatpush.xpose.msra.mxu0 0.0
  %4589 = vmatpush.xpose.msra.mxu0 0.0
  %4590 = vmatpush.xpose.msra.mxu0 %v456
  %4591 = vmatmul.f32.gmra.mxu0 %v4573
  %v4592 = vpop.f32.mrf.mxu0
  %v4593 = vadd.f32 0.0, %v4592
  %4594 = vdwg.mxu0
  %v4595 = vsel %vm478, %v4418, -inf
  %4596 = vmax.xlane.f32.xlu0 %v4595
  %v4597 = vpop.xlane.xlu0 %4596
  %v4598 = vsel %vm478, %v4443, -inf
  %4599 = vmax.xlane.f32.xlu0 %v4598
  %v4600 = vpop.xlane.xlu0 %4599
  %v4601 = vsel %vm478, %v4468, -inf
  %4602 = vmax.xlane.f32.xlu0 %v4601
  %v4603 = vpop.xlane.xlu0 %4602
  %v4604 = vsel %vm478, %v4493, -inf
  %4605 = vmax.xlane.f32.xlu0 %v4604
  %v4606 = vpop.xlane.xlu0 %4605
  %v4607 = vsel %vm478, %v4518, -inf
  %4608 = vmax.xlane.f32.xlu0 %v4607
  %v4609 = vpop.xlane.xlu0 %4608
  %v4610 = vsel %vm478, %v4543, -inf
  %4611 = vmax.xlane.f32.xlu0 %v4610
  %v4612 = vpop.xlane.xlu0 %4611
  %v4613 = vsel %vm478, %v4568, -inf
  %4614 = vmax.xlane.f32.xlu0 %v4613
  %v4615 = vpop.xlane.xlu0 %4614
  %v4616 = vsel %vm478, %v4593, -inf
  %4617 = vmax.xlane.f32.xlu0 %v4616
  %v4618 = vpop.xlane.xlu0 %4617
  %v4619 = vsub.f32 %v4418, %v4597
  %v4620 = vsub.f32 %v4443, %v4600
  %v4621 = vsub.f32 %v4468, %v4603
  %v4622 = vsub.f32 %v4493, %v4606
  %v4623 = vsub.f32 %v4518, %v4609
  %v4624 = vsub.f32 %v4543, %v4612
  %v4625 = vsub.f32 %v4568, %v4615
  %v4626 = vsub.f32 %v4593, %v4618
  %v4627 = vmul.f32 %v4619, 1.442695
  %v4628 = vpow.pop %v4627
  %v4629 = vmul.f32 %v4620, 1.442695
  %v4630 = vpow.pop %v4629
  %v4631 = vmul.f32 %v4621, 1.442695
  %v4632 = vpow.pop %v4631
  %v4633 = vmul.f32 %v4622, 1.442695
  %v4634 = vpow.pop %v4633
  %v4635 = vmul.f32 %v4623, 1.442695
  %v4636 = vpow.pop %v4635
  %v4637 = vmul.f32 %v4624, 1.442695
  %v4638 = vpow.pop %v4637
  %v4639 = vmul.f32 %v4625, 1.442695
  %v4640 = vpow.pop %v4639
  %v4641 = vmul.f32 %v4626, 1.442695
  %v4642 = vpow.pop %v4641
  %v4643 = vsel %vm478, %v4628, 0.0
  %4644 = vadd.xlane.f32.xlu0 %v4643
  %v4645 = vpop.xlane.xlu0 %4644
  %v4646 = vsel %vm478, %v4630, 0.0
  %4647 = vadd.xlane.f32.xlu0 %v4646
  %v4648 = vpop.xlane.xlu0 %4647
  %v4649 = vsel %vm478, %v4632, 0.0
  %4650 = vadd.xlane.f32.xlu0 %v4649
  %v4651 = vpop.xlane.xlu0 %4650
  %v4652 = vsel %vm478, %v4634, 0.0
  %4653 = vadd.xlane.f32.xlu0 %v4652
  %v4654 = vpop.xlane.xlu0 %4653
  %v4655 = vsel %vm478, %v4636, 0.0
  %4656 = vadd.xlane.f32.xlu0 %v4655
  %v4657 = vpop.xlane.xlu0 %4656
  %v4658 = vsel %vm478, %v4638, 0.0
  %4659 = vadd.xlane.f32.xlu0 %v4658
  %v4660 = vpop.xlane.xlu0 %4659
  %v4661 = vsel %vm478, %v4640, 0.0
  %4662 = vadd.xlane.f32.xlu0 %v4661
  %v4663 = vpop.xlane.xlu0 %4662
  %v4664 = vsel %vm478, %v4642, 0.0
  %4665 = vadd.xlane.f32.xlu0 %v4664
  %v4666 = vpop.xlane.xlu0 %4665
  %v4667 = vrcp.pop %v4645
  %v4668 = vrcp.pop %v4648
  %v4669 = vrcp.pop %v4651
  %v4670 = vrcp.pop %v4654
  %v4671 = vrcp.pop %v4657
  %v4672 = vrcp.pop %v4660
  %v4673 = vrcp.pop %v4663
  %v4674 = vrcp.pop %v4666
  %v4675 = vmul.f32 %v4628, %v4667
  %v4676 = vmul.f32 %v4630, %v4668
  %v4677 = vmul.f32 %v4632, %v4669
  %v4678 = vmul.f32 %v4634, %v4670
  %v4679 = vmul.f32 %v4636, %v4671
  %v4680 = vmul.f32 %v4638, %v4672
  %v4681 = vmul.f32 %v4640, %v4673
  %v4682 = vmul.f32 %v4642, %v4674
  %v4684 = vsel %vm567, %v4675, 0
  %4686 = vmatpush.msra.mxu0 0.0
  %4687 = vmatpush.msra.mxu0 0.0
  %4688 = vmatpush.msra.mxu0 0.0
  %4689 = vmatpush.msra.mxu0 0.0
  %4690 = vmatpush.msra.mxu0 0.0
  %4691 = vmatpush.msra.mxu0 0.0
  %4692 = vmatpush.msra.mxu0 0.0
  %4693 = vmatpush.msra.mxu0 0.0
  %4694 = vmatpush.msra.mxu0 0.0
  %4695 = vmatpush.msra.mxu0 0.0
  %4696 = vmatpush.msra.mxu0 0.0
  %4697 = vmatpush.msra.mxu0 0.0
  %4698 = vmatpush.msra.mxu0 0.0
  %4699 = vmatpush.msra.mxu0 0.0
  %4700 = vmatpush.msra.mxu0 0.0
  %4701 = vmatpush.msra.mxu0 %v39
  %4702 = vmatmul.f32.gmra.mxu0 %v4684
  %v4703 = vpop.f32.mrf.mxu0
  %v4704 = vadd.f32 0.0, %v4703
  %4705 = vdwg.mxu0
  %v4707 = vsel %vm567, %v4676, 0
  %4709 = vmatpush.msra.mxu0 0.0
  %4710 = vmatpush.msra.mxu0 0.0
  %4711 = vmatpush.msra.mxu0 0.0
  %4712 = vmatpush.msra.mxu0 0.0
  %4713 = vmatpush.msra.mxu0 0.0
  %4714 = vmatpush.msra.mxu0 0.0
  %4715 = vmatpush.msra.mxu0 0.0
  %4716 = vmatpush.msra.mxu0 0.0
  %4717 = vmatpush.msra.mxu0 0.0
  %4718 = vmatpush.msra.mxu0 0.0
  %4719 = vmatpush.msra.mxu0 0.0
  %4720 = vmatpush.msra.mxu0 0.0
  %4721 = vmatpush.msra.mxu0 0.0
  %4722 = vmatpush.msra.mxu0 0.0
  %4723 = vmatpush.msra.mxu0 0.0
  %4724 = vmatpush.msra.mxu0 %v40
  %4725 = vmatmul.f32.gmra.mxu0 %v4707
  %v4726 = vpop.f32.mrf.mxu0
  %v4727 = vadd.f32 0.0, %v4726
  %4728 = vdwg.mxu0
  %v4730 = vsel %vm567, %v4677, 0
  %4732 = vmatpush.msra.mxu0 0.0
  %4733 = vmatpush.msra.mxu0 0.0
  %4734 = vmatpush.msra.mxu0 0.0
  %4735 = vmatpush.msra.mxu0 0.0
  %4736 = vmatpush.msra.mxu0 0.0
  %4737 = vmatpush.msra.mxu0 0.0
  %4738 = vmatpush.msra.mxu0 0.0
  %4739 = vmatpush.msra.mxu0 0.0
  %4740 = vmatpush.msra.mxu0 0.0
  %4741 = vmatpush.msra.mxu0 0.0
  %4742 = vmatpush.msra.mxu0 0.0
  %4743 = vmatpush.msra.mxu0 0.0
  %4744 = vmatpush.msra.mxu0 0.0
  %4745 = vmatpush.msra.mxu0 0.0
  %4746 = vmatpush.msra.mxu0 0.0
  %4747 = vmatpush.msra.mxu0 %v41
  %4748 = vmatmul.f32.gmra.mxu0 %v4730
  %v4749 = vpop.f32.mrf.mxu0
  %v4750 = vadd.f32 0.0, %v4749
  %4751 = vdwg.mxu0
  %v4753 = vsel %vm567, %v4678, 0
  %4755 = vmatpush.msra.mxu0 0.0
  %4756 = vmatpush.msra.mxu0 0.0
  %4757 = vmatpush.msra.mxu0 0.0
  %4758 = vmatpush.msra.mxu0 0.0
  %4759 = vmatpush.msra.mxu0 0.0
  %4760 = vmatpush.msra.mxu0 0.0
  %4761 = vmatpush.msra.mxu0 0.0
  %4762 = vmatpush.msra.mxu0 0.0
  %4763 = vmatpush.msra.mxu0 0.0
  %4764 = vmatpush.msra.mxu0 0.0
  %4765 = vmatpush.msra.mxu0 0.0
  %4766 = vmatpush.msra.mxu0 0.0
  %4767 = vmatpush.msra.mxu0 0.0
  %4768 = vmatpush.msra.mxu0 0.0
  %4769 = vmatpush.msra.mxu0 0.0
  %4770 = vmatpush.msra.mxu0 %v42
  %4771 = vmatmul.f32.gmra.mxu0 %v4753
  %v4772 = vpop.f32.mrf.mxu0
  %v4773 = vadd.f32 0.0, %v4772
  %4774 = vdwg.mxu0
  %v4776 = vsel %vm567, %v4679, 0
  %4778 = vmatpush.msra.mxu0 0.0
  %4779 = vmatpush.msra.mxu0 0.0
  %4780 = vmatpush.msra.mxu0 0.0
  %4781 = vmatpush.msra.mxu0 0.0
  %4782 = vmatpush.msra.mxu0 0.0
  %4783 = vmatpush.msra.mxu0 0.0
  %4784 = vmatpush.msra.mxu0 0.0
  %4785 = vmatpush.msra.mxu0 0.0
  %4786 = vmatpush.msra.mxu0 0.0
  %4787 = vmatpush.msra.mxu0 0.0
  %4788 = vmatpush.msra.mxu0 0.0
  %4789 = vmatpush.msra.mxu0 0.0
  %4790 = vmatpush.msra.mxu0 0.0
  %4791 = vmatpush.msra.mxu0 0.0
  %4792 = vmatpush.msra.mxu0 0.0
  %4793 = vmatpush.msra.mxu0 %v43
  %4794 = vmatmul.f32.gmra.mxu0 %v4776
  %v4795 = vpop.f32.mrf.mxu0
  %v4796 = vadd.f32 0.0, %v4795
  %4797 = vdwg.mxu0
  %v4799 = vsel %vm567, %v4680, 0
  %4801 = vmatpush.msra.mxu0 0.0
  %4802 = vmatpush.msra.mxu0 0.0
  %4803 = vmatpush.msra.mxu0 0.0
  %4804 = vmatpush.msra.mxu0 0.0
  %4805 = vmatpush.msra.mxu0 0.0
  %4806 = vmatpush.msra.mxu0 0.0
  %4807 = vmatpush.msra.mxu0 0.0
  %4808 = vmatpush.msra.mxu0 0.0
  %4809 = vmatpush.msra.mxu0 0.0
  %4810 = vmatpush.msra.mxu0 0.0
  %4811 = vmatpush.msra.mxu0 0.0
  %4812 = vmatpush.msra.mxu0 0.0
  %4813 = vmatpush.msra.mxu0 0.0
  %4814 = vmatpush.msra.mxu0 0.0
  %4815 = vmatpush.msra.mxu0 0.0
  %4816 = vmatpush.msra.mxu0 %v44
  %4817 = vmatmul.f32.gmra.mxu0 %v4799
  %v4818 = vpop.f32.mrf.mxu0
  %v4819 = vadd.f32 0.0, %v4818
  %4820 = vdwg.mxu0
  %v4822 = vsel %vm567, %v4681, 0
  %4824 = vmatpush.msra.mxu0 0.0
  %4825 = vmatpush.msra.mxu0 0.0
  %4826 = vmatpush.msra.mxu0 0.0
  %4827 = vmatpush.msra.mxu0 0.0
  %4828 = vmatpush.msra.mxu0 0.0
  %4829 = vmatpush.msra.mxu0 0.0
  %4830 = vmatpush.msra.mxu0 0.0
  %4831 = vmatpush.msra.mxu0 0.0
  %4832 = vmatpush.msra.mxu0 0.0
  %4833 = vmatpush.msra.mxu0 0.0
  %4834 = vmatpush.msra.mxu0 0.0
  %4835 = vmatpush.msra.mxu0 0.0
  %4836 = vmatpush.msra.mxu0 0.0
  %4837 = vmatpush.msra.mxu0 0.0
  %4838 = vmatpush.msra.mxu0 0.0
  %4839 = vmatpush.msra.mxu0 %v45
  %4840 = vmatmul.f32.gmra.mxu0 %v4822
  %v4841 = vpop.f32.mrf.mxu0
  %v4842 = vadd.f32 0.0, %v4841
  %4843 = vdwg.mxu0
  %v4845 = vsel %vm567, %v4682, 0
  %4847 = vmatpush.msra.mxu0 0.0
  %4848 = vmatpush.msra.mxu0 0.0
  %4849 = vmatpush.msra.mxu0 0.0
  %4850 = vmatpush.msra.mxu0 0.0
  %4851 = vmatpush.msra.mxu0 0.0
  %4852 = vmatpush.msra.mxu0 0.0
  %4853 = vmatpush.msra.mxu0 0.0
  %4854 = vmatpush.msra.mxu0 0.0
  %4855 = vmatpush.msra.mxu0 0.0
  %4856 = vmatpush.msra.mxu0 0.0
  %4857 = vmatpush.msra.mxu0 0.0
  %4858 = vmatpush.msra.mxu0 0.0
  %4859 = vmatpush.msra.mxu0 0.0
  %4860 = vmatpush.msra.mxu0 0.0
  %4861 = vmatpush.msra.mxu0 0.0
  %4862 = vmatpush.msra.mxu0 %v46
  %4863 = vmatmul.f32.gmra.mxu0 %v4845
  %v4864 = vpop.f32.mrf.mxu0
  %v4865 = vadd.f32 0.0, %v4864
  %4866 = vdwg.mxu0
  %v4875 = vrot.slane %v4727, 7
  %v4876 = vsel %vm761, %v4875, %v4704
  %v4877 = vrot.slane %v4750, 6
  %v4878 = vsel %vm764, %v4877, %v4876
  %v4879 = vrot.slane %v4773, 5
  %v4880 = vsel %vm767, %v4879, %v4878
  %v4881 = vrot.slane %v4796, 4
  %v4882 = vsel %vm770, %v4881, %v4880
  %v4883 = vrot.slane %v4819, 3
  %v4884 = vsel %vm773, %v4883, %v4882
  %v4885 = vrot.slane %v4842, 2
  %v4886 = vsel %vm776, %v4885, %v4884
  %v4887 = vrot.slane %v4865, 1
  %v4888 = vsel %vm779, %v4887, %v4886
  %4890 = vrot.lane.b32.xlu0 %v4386, 64
  %v4891 = vpop.permute.xlu0 %4890
  %v4893 = vsel %vm97, %v4888, %v4891
  %v4895 = vsel %vm99, %v4893, 0
  %4897 = vmatpush.msra.mxu0 0.0
  %4898 = vmatpush.msra.mxu0 0.0
  %4899 = vmatpush.msra.mxu0 0.0
  %4900 = vmatpush.msra.mxu0 0.0
  %4901 = vmatpush.msra.mxu0 0.0
  %4902 = vmatpush.msra.mxu0 0.0
  %4903 = vmatpush.msra.mxu0 0.0
  %4904 = vmatpush.msra.mxu0 0.0
  %4905 = vmatpush.msra.mxu0 %v79
  %4906 = vmatpush.msra.mxu0 %v78
  %4907 = vmatpush.msra.mxu0 %v77
  %4908 = vmatpush.msra.mxu0 %v76
  %4909 = vmatpush.msra.mxu0 %v75
  %4910 = vmatpush.msra.mxu0 %v74
  %4911 = vmatpush.msra.mxu0 %v73
  %4912 = vmatpush.msra.mxu0 %v72
  %4913 = vmatmul.f32.gmra.mxu0 %v4895
  %v4914 = vpop.f32.mrf.mxu0
  %v4915 = vadd.f32 0.0, %v4914
  %4916 = vdwg.mxu0
  %v4917 = vtanh.pop %v4915
  %s4918 = scalar_lea.vmem %s10, 48
  %4919 = vst.msk [vmem:[%s4918] sm:$0xff] %vm97, %v4917
  %v4920 = vrot.slane %v4676, 7
  %v4921 = vsel %vm761, %v4920, %v4675
  %v4922 = vrot.slane %v4677, 6
  %v4923 = vsel %vm764, %v4922, %v4921
  %v4924 = vrot.slane %v4678, 5
  %v4925 = vsel %vm767, %v4924, %v4923
  %v4926 = vrot.slane %v4679, 4
  %v4927 = vsel %vm770, %v4926, %v4925
  %v4928 = vrot.slane %v4680, 3
  %v4929 = vsel %vm773, %v4928, %v4927
  %v4930 = vrot.slane %v4681, 2
  %v4931 = vsel %vm776, %v4930, %v4929
  %v4932 = vrot.slane %v4682, 1
  %v4933 = vsel %vm779, %v4932, %v4931
  %s4935 = scalar_lea.vmem %s11, 48
  %4936 = vst.msk [vmem:[%s4935] sm:$0xff] %vm567, %v4933
  %s4937 = scalar_lea.vmem %s0, 56
  %v4938 = vld [vmem:[%s4937] sm:$0xff]
  %4939 = vrot.lane.b32.xlu0 %v4319, 64
  %v4940 = vpop.permute.xlu0 %4939
  %v4942 = vsel %vm97, %v4917, %v4940
  %v4944 = vsel %vm99, %v4942, 0
  %4946 = vmatpush.msra.mxu0 0.0
  %4947 = vmatpush.msra.mxu0 0.0
  %4948 = vmatpush.msra.mxu0 0.0
  %4949 = vmatpush.msra.mxu0 0.0
  %4950 = vmatpush.msra.mxu0 0.0
  %4951 = vmatpush.msra.mxu0 0.0
  %4952 = vmatpush.msra.mxu0 0.0
  %4953 = vmatpush.msra.mxu0 0.0
  %4954 = vmatpush.msra.mxu0 %v62
  %4955 = vmatpush.msra.mxu0 %v61
  %4956 = vmatpush.msra.mxu0 %v60
  %4957 = vmatpush.msra.mxu0 %v59
  %4958 = vmatpush.msra.mxu0 %v58
  %4959 = vmatpush.msra.mxu0 %v57
  %4960 = vmatpush.msra.mxu0 %v56
  %4961 = vmatpush.msra.mxu0 %v55
  %4962 = vmatmul.f32.gmra.mxu0 %v4944
  %v4963 = vpop.f32.mrf.mxu0
  %v4964 = vadd.f32 0.0, %v4963
  %4965 = vdwg.mxu0
  %v4966 = vadd.f32 %v4938, %v4964
  %v4967 = vtanh.pop %v4966
  %v4968 = vxor.u32 %v4966, 2147483648
  %v4969 = vmul.f32 %v4968, 1.442695
  %v4970 = vpow.pop %v4969
  %v4971 = vadd.f32 %v4970, 1.0
  %v4972 = vrcp.pop %v4971
  %v4973 = vmul.f32 %v4971, %v4972
  %v4974 = vsub.f32 1.0, %v4973
  %v4975 = vmul.f32 %v4972, %v4974
  %v4976 = vadd.f32 %v4972, %v4975
  %vm4977 = vweird.f32 %v4971
  %vm4978 = vweird.f32 %v4972
  %vm4979 = vmor %vm4977, %vm4978
  %v4980 = vsel %vm4979, %v4972, %v4976
  %v4981 = vand.u32 2147483647, %v4971
  %vm4982 = vcmp.eq.f32.partialorder %v4981, 8.507059e+37
  %v4983 = vand.u32 %v4971, 2147483648
  %v4984 = vor.u32 1.1754944e-38, %v4983
  %v4985 = vsel %vm4982, %v4984, %v4980
  %v4986 = vmul.f32 1.0, %v4985
  %v4987 = vsel %vm145, %v4967, %v4986
  %v4988 = vmul.f32 %v4987, %v4313
  %4990 = vrot.lane.b32.xlu0 %v4987, 64
  %v4991 = vpop.permute.xlu0 %4990
  %v4993 = vmul.f32 %v4987, %v4991
  %4995 = vrot.lane.b32.xlu0 %v4993, 32
  %v4996 = vpop.permute.xlu0 %4995
  %v4998 = vadd.f32 %v4988, %v4996
  %v4999 = vtanh.pop %v4998
  %5001 = vrot.lane.b32.xlu0 %v4999, 64
  %v5002 = vpop.permute.xlu0 %5001
  %v5004 = vmul.f32 %v4987, %v5002
  %5006 = vrot.lane.b32.xlu0 %v5004, 32
  %v5007 = vpop.permute.xlu0 %5006
  %v5009 = vsel %vm97, %v5007, %v4891
  %v5011 = vsel %vm99, %v5009, 0
  %5013 = vmatpush.msra.mxu0 0.0
  %5014 = vmatpush.msra.mxu0 0.0
  %5015 = vmatpush.msra.mxu0 0.0
  %5016 = vmatpush.msra.mxu0 0.0
  %5017 = vmatpush.msra.mxu0 0.0
  %5018 = vmatpush.msra.mxu0 0.0
  %5019 = vmatpush.msra.mxu0 0.0
  %5020 = vmatpush.msra.mxu0 0.0
  %5021 = vmatpush.msra.mxu0 %v70
  %5022 = vmatpush.msra.mxu0 %v69
  %5023 = vmatpush.msra.mxu0 %v68
  %5024 = vmatpush.msra.mxu0 %v67
  %5025 = vmatpush.msra.mxu0 %v66
  %5026 = vmatpush.msra.mxu0 %v65
  %5027 = vmatpush.msra.mxu0 %v64
  %5028 = vmatpush.msra.mxu0 %v63
  %5029 = vmatmul.f32.gmra.mxu0 %v5011
  %v5030 = vpop.f32.mrf.mxu0
  %v5031 = vadd.f32 0.0, %v5030
  %5032 = vdwg.mxu0
  %v5033 = vadd.f32 %v201, %v5031
  %v5034 = vtanh.pop %v5033
  %v5035 = vxor.u32 %v5033, 2147483648
  %v5036 = vmul.f32 %v5035, 1.442695
  %v5037 = vpow.pop %v5036
  %v5038 = vadd.f32 %v5037, 1.0
  %v5039 = vrcp.pop %v5038
  %v5040 = vmul.f32 %v5038, %v5039
  %v5041 = vsub.f32 1.0, %v5040
  %v5042 = vmul.f32 %v5039, %v5041
  %v5043 = vadd.f32 %v5039, %v5042
  %vm5044 = vweird.f32 %v5038
  %vm5045 = vweird.f32 %v5039
  %vm5046 = vmor %vm5044, %vm5045
  %v5047 = vsel %vm5046, %v5039, %v5043
  %v5048 = vand.u32 2147483647, %v5038
  %vm5049 = vcmp.eq.f32.partialorder %v5048, 8.507059e+37
  %v5050 = vand.u32 %v5038, 2147483648
  %v5051 = vor.u32 1.1754944e-38, %v5050
  %v5052 = vsel %vm5049, %v5051, %v5047
  %v5053 = vmul.f32 1.0, %v5052
  %v5054 = vsel %vm145, %v5034, %v5053
  %v5055 = vmul.f32 %v5054, %v4380
  %5057 = vrot.lane.b32.xlu0 %v5054, 64
  %v5058 = vpop.permute.xlu0 %5057
  %v5060 = vmul.f32 %v5054, %v5058
  %5062 = vrot.lane.b32.xlu0 %v5060, 32
  %v5063 = vpop.permute.xlu0 %5062
  %v5065 = vadd.f32 %v5055, %v5063
  %v5066 = vtanh.pop %v5065
  %5068 = vrot.lane.b32.xlu0 %v5066, 64
  %v5069 = vpop.permute.xlu0 %5068
  %v5071 = vmul.f32 %v5054, %v5069
  %v5073 = vrot.slane %v5071, 1
  %v5074 = vrot.slane %v5071, 2
  %v5075 = vrot.slane %v5071, 3
  %v5076 = vrot.slane %v5071, 4
  %v5077 = vrot.slane %v5071, 5
  %v5078 = vrot.slane %v5071, 6
  %v5079 = vrot.slane %v5071, 7
  %v5080 = vperm.slane %v5071, 0
  %5081 = vrot.lane.b32.xlu0 %v5080, 32
  %v5082 = vpop.permute.xlu0 %5081
  %v5083 = vsel %vm97, %v5082, 0
  %5085 = vmatpush.xpose.msra.mxu0 0.0
  %5086 = vmatpush.xpose.msra.mxu0 0.0
  %5087 = vmatpush.xpose.msra.mxu0 0.0
  %5088 = vmatpush.xpose.msra.mxu0 0.0
  %5089 = vmatpush.xpose.msra.mxu0 0.0
  %5090 = vmatpush.xpose.msra.mxu0 0.0
  %5091 = vmatpush.xpose.msra.mxu0 0.0
  %5092 = vmatpush.xpose.msra.mxu0 0.0
  %5093 = vmatpush.xpose.msra.mxu0 0.0
  %5094 = vmatpush.xpose.msra.mxu0 0.0
  %5095 = vmatpush.xpose.msra.mxu0 0.0
  %5096 = vmatpush.xpose.msra.mxu0 0.0
  %5097 = vmatpush.xpose.msra.mxu0 0.0
  %5098 = vmatpush.xpose.msra.mxu0 0.0
  %5099 = vmatpush.xpose.msra.mxu0 0.0
  %5100 = vmatpush.xpose.msra.mxu0 %v260
  %5101 = vmatmul.f32.gmra.mxu0 %v5083
  %v5102 = vpop.f32.mrf.mxu0
  %v5103 = vadd.f32 0.0, %v5102
  %5104 = vdwg.mxu0
  %v5105 = vperm.slane %v5073, 0
  %5106 = vrot.lane.b32.xlu0 %v5105, 32
  %v5107 = vpop.permute.xlu0 %5106
  %v5108 = vsel %vm97, %v5107, 0
  %5110 = vmatpush.xpose.msra.mxu0 0.0
  %5111 = vmatpush.xpose.msra.mxu0 0.0
  %5112 = vmatpush.xpose.msra.mxu0 0.0
  %5113 = vmatpush.xpose.msra.mxu0 0.0
  %5114 = vmatpush.xpose.msra.mxu0 0.0
  %5115 = vmatpush.xpose.msra.mxu0 0.0
  %5116 = vmatpush.xpose.msra.mxu0 0.0
  %5117 = vmatpush.xpose.msra.mxu0 0.0
  %5118 = vmatpush.xpose.msra.mxu0 0.0
  %5119 = vmatpush.xpose.msra.mxu0 0.0
  %5120 = vmatpush.xpose.msra.mxu0 0.0
  %5121 = vmatpush.xpose.msra.mxu0 0.0
  %5122 = vmatpush.xpose.msra.mxu0 0.0
  %5123 = vmatpush.xpose.msra.mxu0 0.0
  %5124 = vmatpush.xpose.msra.mxu0 0.0
  %5125 = vmatpush.xpose.msra.mxu0 %v288
  %5126 = vmatmul.f32.gmra.mxu0 %v5108
  %v5127 = vpop.f32.mrf.mxu0
  %v5128 = vadd.f32 0.0, %v5127
  %5129 = vdwg.mxu0
  %v5130 = vperm.slane %v5074, 0
  %5131 = vrot.lane.b32.xlu0 %v5130, 32
  %v5132 = vpop.permute.xlu0 %5131
  %v5133 = vsel %vm97, %v5132, 0
  %5135 = vmatpush.xpose.msra.mxu0 0.0
  %5136 = vmatpush.xpose.msra.mxu0 0.0
  %5137 = vmatpush.xpose.msra.mxu0 0.0
  %5138 = vmatpush.xpose.msra.mxu0 0.0
  %5139 = vmatpush.xpose.msra.mxu0 0.0
  %5140 = vmatpush.xpose.msra.mxu0 0.0
  %5141 = vmatpush.xpose.msra.mxu0 0.0
  %5142 = vmatpush.xpose.msra.mxu0 0.0
  %5143 = vmatpush.xpose.msra.mxu0 0.0
  %5144 = vmatpush.xpose.msra.mxu0 0.0
  %5145 = vmatpush.xpose.msra.mxu0 0.0
  %5146 = vmatpush.xpose.msra.mxu0 0.0
  %5147 = vmatpush.xpose.msra.mxu0 0.0
  %5148 = vmatpush.xpose.msra.mxu0 0.0
  %5149 = vmatpush.xpose.msra.mxu0 0.0
  %5150 = vmatpush.xpose.msra.mxu0 %v316
  %5151 = vmatmul.f32.gmra.mxu0 %v5133
  %v5152 = vpop.f32.mrf.mxu0
  %v5153 = vadd.f32 0.0, %v5152
  %5154 = vdwg.mxu0
  %v5155 = vperm.slane %v5075, 0
  %5156 = vrot.lane.b32.xlu0 %v5155, 32
  %v5157 = vpop.permute.xlu0 %5156
  %v5158 = vsel %vm97, %v5157, 0
  %5160 = vmatpush.xpose.msra.mxu0 0.0
  %5161 = vmatpush.xpose.msra.mxu0 0.0
  %5162 = vmatpush.xpose.msra.mxu0 0.0
  %5163 = vmatpush.xpose.msra.mxu0 0.0
  %5164 = vmatpush.xpose.msra.mxu0 0.0
  %5165 = vmatpush.xpose.msra.mxu0 0.0
  %5166 = vmatpush.xpose.msra.mxu0 0.0
  %5167 = vmatpush.xpose.msra.mxu0 0.0
  %5168 = vmatpush.xpose.msra.mxu0 0.0
  %5169 = vmatpush.xpose.msra.mxu0 0.0
  %5170 = vmatpush.xpose.msra.mxu0 0.0
  %5171 = vmatpush.xpose.msra.mxu0 0.0
  %5172 = vmatpush.xpose.msra.mxu0 0.0
  %5173 = vmatpush.xpose.msra.mxu0 0.0
  %5174 = vmatpush.xpose.msra.mxu0 0.0
  %5175 = vmatpush.xpose.msra.mxu0 %v344
  %5176 = vmatmul.f32.gmra.mxu0 %v5158
  %v5177 = vpop.f32.mrf.mxu0
  %v5178 = vadd.f32 0.0, %v5177
  %5179 = vdwg.mxu0
  %v5180 = vperm.slane %v5076, 0
  %5181 = vrot.lane.b32.xlu0 %v5180, 32
  %v5182 = vpop.permute.xlu0 %5181
  %v5183 = vsel %vm97, %v5182, 0
  %5185 = vmatpush.xpose.msra.mxu0 0.0
  %5186 = vmatpush.xpose.msra.mxu0 0.0
  %5187 = vmatpush.xpose.msra.mxu0 0.0
  %5188 = vmatpush.xpose.msra.mxu0 0.0
  %5189 = vmatpush.xpose.msra.mxu0 0.0
  %5190 = vmatpush.xpose.msra.mxu0 0.0
  %5191 = vmatpush.xpose.msra.mxu0 0.0
  %5192 = vmatpush.xpose.msra.mxu0 0.0
  %5193 = vmatpush.xpose.msra.mxu0 0.0
  %5194 = vmatpush.xpose.msra.mxu0 0.0
  %5195 = vmatpush.xpose.msra.mxu0 0.0
  %5196 = vmatpush.xpose.msra.mxu0 0.0
  %5197 = vmatpush.xpose.msra.mxu0 0.0
  %5198 = vmatpush.xpose.msra.mxu0 0.0
  %5199 = vmatpush.xpose.msra.mxu0 0.0
  %5200 = vmatpush.xpose.msra.mxu0 %v372
  %5201 = vmatmul.f32.gmra.mxu0 %v5183
  %v5202 = vpop.f32.mrf.mxu0
  %v5203 = vadd.f32 0.0, %v5202
  %5204 = vdwg.mxu0
  %v5205 = vperm.slane %v5077, 0
  %5206 = vrot.lane.b32.xlu0 %v5205, 32
  %v5207 = vpop.permute.xlu0 %5206
  %v5208 = vsel %vm97, %v5207, 0
  %5210 = vmatpush.xpose.msra.mxu0 0.0
  %5211 = vmatpush.xpose.msra.mxu0 0.0
  %5212 = vmatpush.xpose.msra.mxu0 0.0
  %5213 = vmatpush.xpose.msra.mxu0 0.0
  %5214 = vmatpush.xpose.msra.mxu0 0.0
  %5215 = vmatpush.xpose.msra.mxu0 0.0
  %5216 = vmatpush.xpose.msra.mxu0 0.0
  %5217 = vmatpush.xpose.msra.mxu0 0.0
  %5218 = vmatpush.xpose.msra.mxu0 0.0
  %5219 = vmatpush.xpose.msra.mxu0 0.0
  %5220 = vmatpush.xpose.msra.mxu0 0.0
  %5221 = vmatpush.xpose.msra.mxu0 0.0
  %5222 = vmatpush.xpose.msra.mxu0 0.0
  %5223 = vmatpush.xpose.msra.mxu0 0.0
  %5224 = vmatpush.xpose.msra.mxu0 0.0
  %5225 = vmatpush.xpose.msra.mxu0 %v400
  %5226 = vmatmul.f32.gmra.mxu0 %v5208
  %v5227 = vpop.f32.mrf.mxu0
  %v5228 = vadd.f32 0.0, %v5227
  %5229 = vdwg.mxu0
  %v5230 = vperm.slane %v5078, 0
  %5231 = vrot.lane.b32.xlu0 %v5230, 32
  %v5232 = vpop.permute.xlu0 %5231
  %v5233 = vsel %vm97, %v5232, 0
  %5235 = vmatpush.xpose.msra.mxu0 0.0
  %5236 = vmatpush.xpose.msra.mxu0 0.0
  %5237 = vmatpush.xpose.msra.mxu0 0.0
  %5238 = vmatpush.xpose.msra.mxu0 0.0
  %5239 = vmatpush.xpose.msra.mxu0 0.0
  %5240 = vmatpush.xpose.msra.mxu0 0.0
  %5241 = vmatpush.xpose.msra.mxu0 0.0
  %5242 = vmatpush.xpose.msra.mxu0 0.0
  %5243 = vmatpush.xpose.msra.mxu0 0.0
  %5244 = vmatpush.xpose.msra.mxu0 0.0
  %5245 = vmatpush.xpose.msra.mxu0 0.0
  %5246 = vmatpush.xpose.msra.mxu0 0.0
  %5247 = vmatpush.xpose.msra.mxu0 0.0
  %5248 = vmatpush.xpose.msra.mxu0 0.0
  %5249 = vmatpush.xpose.msra.mxu0 0.0
  %5250 = vmatpush.xpose.msra.mxu0 %v428
  %5251 = vmatmul.f32.gmra.mxu0 %v5233
  %v5252 = vpop.f32.mrf.mxu0
  %v5253 = vadd.f32 0.0, %v5252
  %5254 = vdwg.mxu0
  %v5255 = vperm.slane %v5079, 0
  %5256 = vrot.lane.b32.xlu0 %v5255, 32
  %v5257 = vpop.permute.xlu0 %5256
  %v5258 = vsel %vm97, %v5257, 0
  %5260 = vmatpush.xpose.msra.mxu0 0.0
  %5261 = vmatpush.xpose.msra.mxu0 0.0
  %5262 = vmatpush.xpose.msra.mxu0 0.0
  %5263 = vmatpush.xpose.msra.mxu0 0.0
  %5264 = vmatpush.xpose.msra.mxu0 0.0
  %5265 = vmatpush.xpose.msra.mxu0 0.0
  %5266 = vmatpush.xpose.msra.mxu0 0.0
  %5267 = vmatpush.xpose.msra.mxu0 0.0
  %5268 = vmatpush.xpose.msra.mxu0 0.0
  %5269 = vmatpush.xpose.msra.mxu0 0.0
  %5270 = vmatpush.xpose.msra.mxu0 0.0
  %5271 = vmatpush.xpose.msra.mxu0 0.0
  %5272 = vmatpush.xpose.msra.mxu0 0.0
  %5273 = vmatpush.xpose.msra.mxu0 0.0
  %5274 = vmatpush.xpose.msra.mxu0 0.0
  %5275 = vmatpush.xpose.msra.mxu0 %v456
  %5276 = vmatmul.f32.gmra.mxu0 %v5258
  %v5277 = vpop.f32.mrf.mxu0
  %v5278 = vadd.f32 0.0, %v5277
  %5279 = vdwg.mxu0
  %v5280 = vsel %vm478, %v5103, -inf
  %5281 = vmax.xlane.f32.xlu0 %v5280
  %v5282 = vpop.xlane.xlu0 %5281
  %v5283 = vsel %vm478, %v5128, -inf
  %5284 = vmax.xlane.f32.xlu0 %v5283
  %v5285 = vpop.xlane.xlu0 %5284
  %v5286 = vsel %vm478, %v5153, -inf
  %5287 = vmax.xlane.f32.xlu0 %v5286
  %v5288 = vpop.xlane.xlu0 %5287
  %v5289 = vsel %vm478, %v5178, -inf
  %5290 = vmax.xlane.f32.xlu0 %v5289
  %v5291 = vpop.xlane.xlu0 %5290
  %v5292 = vsel %vm478, %v5203, -inf
  %5293 = vmax.xlane.f32.xlu0 %v5292
  %v5294 = vpop.xlane.xlu0 %5293
  %v5295 = vsel %vm478, %v5228, -inf
  %5296 = vmax.xlane.f32.xlu0 %v5295
  %v5297 = vpop.xlane.xlu0 %5296
  %v5298 = vsel %vm478, %v5253, -inf
  %5299 = vmax.xlane.f32.xlu0 %v5298
  %v5300 = vpop.xlane.xlu0 %5299
  %v5301 = vsel %vm478, %v5278, -inf
  %5302 = vmax.xlane.f32.xlu0 %v5301
  %v5303 = vpop.xlane.xlu0 %5302
  %v5304 = vsub.f32 %v5103, %v5282
  %v5305 = vsub.f32 %v5128, %v5285
  %v5306 = vsub.f32 %v5153, %v5288
  %v5307 = vsub.f32 %v5178, %v5291
  %v5308 = vsub.f32 %v5203, %v5294
  %v5309 = vsub.f32 %v5228, %v5297
  %v5310 = vsub.f32 %v5253, %v5300
  %v5311 = vsub.f32 %v5278, %v5303
  %v5312 = vmul.f32 %v5304, 1.442695
  %v5313 = vpow.pop %v5312
  %v5314 = vmul.f32 %v5305, 1.442695
  %v5315 = vpow.pop %v5314
  %v5316 = vmul.f32 %v5306, 1.442695
  %v5317 = vpow.pop %v5316
  %v5318 = vmul.f32 %v5307, 1.442695
  %v5319 = vpow.pop %v5318
  %v5320 = vmul.f32 %v5308, 1.442695
  %v5321 = vpow.pop %v5320
  %v5322 = vmul.f32 %v5309, 1.442695
  %v5323 = vpow.pop %v5322
  %v5324 = vmul.f32 %v5310, 1.442695
  %v5325 = vpow.pop %v5324
  %v5326 = vmul.f32 %v5311, 1.442695
  %v5327 = vpow.pop %v5326
  %v5328 = vsel %vm478, %v5313, 0.0
  %5329 = vadd.xlane.f32.xlu0 %v5328
  %v5330 = vpop.xlane.xlu0 %5329
  %v5331 = vsel %vm478, %v5315, 0.0
  %5332 = vadd.xlane.f32.xlu0 %v5331
  %v5333 = vpop.xlane.xlu0 %5332
  %v5334 = vsel %vm478, %v5317, 0.0
  %5335 = vadd.xlane.f32.xlu0 %v5334
  %v5336 = vpop.xlane.xlu0 %5335
  %v5337 = vsel %vm478, %v5319, 0.0
  %5338 = vadd.xlane.f32.xlu0 %v5337
  %v5339 = vpop.xlane.xlu0 %5338
  %v5340 = vsel %vm478, %v5321, 0.0
  %5341 = vadd.xlane.f32.xlu0 %v5340
  %v5342 = vpop.xlane.xlu0 %5341
  %v5343 = vsel %vm478, %v5323, 0.0
  %5344 = vadd.xlane.f32.xlu0 %v5343
  %v5345 = vpop.xlane.xlu0 %5344
  %v5346 = vsel %vm478, %v5325, 0.0
  %5347 = vadd.xlane.f32.xlu0 %v5346
  %v5348 = vpop.xlane.xlu0 %5347
  %v5349 = vsel %vm478, %v5327, 0.0
  %5350 = vadd.xlane.f32.xlu0 %v5349
  %v5351 = vpop.xlane.xlu0 %5350
  %v5352 = vrcp.pop %v5330
  %v5353 = vrcp.pop %v5333
  %v5354 = vrcp.pop %v5336
  %v5355 = vrcp.pop %v5339
  %v5356 = vrcp.pop %v5342
  %v5357 = vrcp.pop %v5345
  %v5358 = vrcp.pop %v5348
  %v5359 = vrcp.pop %v5351
  %v5360 = vmul.f32 %v5313, %v5352
  %v5361 = vmul.f32 %v5315, %v5353
  %v5362 = vmul.f32 %v5317, %v5354
  %v5363 = vmul.f32 %v5319, %v5355
  %v5364 = vmul.f32 %v5321, %v5356
  %v5365 = vmul.f32 %v5323, %v5357
  %v5366 = vmul.f32 %v5325, %v5358
  %v5367 = vmul.f32 %v5327, %v5359
  %v5369 = vsel %vm567, %v5360, 0
  %5371 = vmatpush.msra.mxu0 0.0
  %5372 = vmatpush.msra.mxu0 0.0
  %5373 = vmatpush.msra.mxu0 0.0
  %5374 = vmatpush.msra.mxu0 0.0
  %5375 = vmatpush.msra.mxu0 0.0
  %5376 = vmatpush.msra.mxu0 0.0
  %5377 = vmatpush.msra.mxu0 0.0
  %5378 = vmatpush.msra.mxu0 0.0
  %5379 = vmatpush.msra.mxu0 0.0
  %5380 = vmatpush.msra.mxu0 0.0
  %5381 = vmatpush.msra.mxu0 0.0
  %5382 = vmatpush.msra.mxu0 0.0
  %5383 = vmatpush.msra.mxu0 0.0
  %5384 = vmatpush.msra.mxu0 0.0
  %5385 = vmatpush.msra.mxu0 0.0
  %5386 = vmatpush.msra.mxu0 %v39
  %5387 = vmatmul.f32.gmra.mxu0 %v5369
  %v5388 = vpop.f32.mrf.mxu0
  %v5389 = vadd.f32 0.0, %v5388
  %5390 = vdwg.mxu0
  %v5392 = vsel %vm567, %v5361, 0
  %5394 = vmatpush.msra.mxu0 0.0
  %5395 = vmatpush.msra.mxu0 0.0
  %5396 = vmatpush.msra.mxu0 0.0
  %5397 = vmatpush.msra.mxu0 0.0
  %5398 = vmatpush.msra.mxu0 0.0
  %5399 = vmatpush.msra.mxu0 0.0
  %5400 = vmatpush.msra.mxu0 0.0
  %5401 = vmatpush.msra.mxu0 0.0
  %5402 = vmatpush.msra.mxu0 0.0
  %5403 = vmatpush.msra.mxu0 0.0
  %5404 = vmatpush.msra.mxu0 0.0
  %5405 = vmatpush.msra.mxu0 0.0
  %5406 = vmatpush.msra.mxu0 0.0
  %5407 = vmatpush.msra.mxu0 0.0
  %5408 = vmatpush.msra.mxu0 0.0
  %5409 = vmatpush.msra.mxu0 %v40
  %5410 = vmatmul.f32.gmra.mxu0 %v5392
  %v5411 = vpop.f32.mrf.mxu0
  %v5412 = vadd.f32 0.0, %v5411
  %5413 = vdwg.mxu0
  %v5415 = vsel %vm567, %v5362, 0
  %5417 = vmatpush.msra.mxu0 0.0
  %5418 = vmatpush.msra.mxu0 0.0
  %5419 = vmatpush.msra.mxu0 0.0
  %5420 = vmatpush.msra.mxu0 0.0
  %5421 = vmatpush.msra.mxu0 0.0
  %5422 = vmatpush.msra.mxu0 0.0
  %5423 = vmatpush.msra.mxu0 0.0
  %5424 = vmatpush.msra.mxu0 0.0
  %5425 = vmatpush.msra.mxu0 0.0
  %5426 = vmatpush.msra.mxu0 0.0
  %5427 = vmatpush.msra.mxu0 0.0
  %5428 = vmatpush.msra.mxu0 0.0
  %5429 = vmatpush.msra.mxu0 0.0
  %5430 = vmatpush.msra.mxu0 0.0
  %5431 = vmatpush.msra.mxu0 0.0
  %5432 = vmatpush.msra.mxu0 %v41
  %5433 = vmatmul.f32.gmra.mxu0 %v5415
  %v5434 = vpop.f32.mrf.mxu0
  %v5435 = vadd.f32 0.0, %v5434
  %5436 = vdwg.mxu0
  %v5438 = vsel %vm567, %v5363, 0
  %5440 = vmatpush.msra.mxu0 0.0
  %5441 = vmatpush.msra.mxu0 0.0
  %5442 = vmatpush.msra.mxu0 0.0
  %5443 = vmatpush.msra.mxu0 0.0
  %5444 = vmatpush.msra.mxu0 0.0
  %5445 = vmatpush.msra.mxu0 0.0
  %5446 = vmatpush.msra.mxu0 0.0
  %5447 = vmatpush.msra.mxu0 0.0
  %5448 = vmatpush.msra.mxu0 0.0
  %5449 = vmatpush.msra.mxu0 0.0
  %5450 = vmatpush.msra.mxu0 0.0
  %5451 = vmatpush.msra.mxu0 0.0
  %5452 = vmatpush.msra.mxu0 0.0
  %5453 = vmatpush.msra.mxu0 0.0
  %5454 = vmatpush.msra.mxu0 0.0
  %5455 = vmatpush.msra.mxu0 %v42
  %5456 = vmatmul.f32.gmra.mxu0 %v5438
  %v5457 = vpop.f32.mrf.mxu0
  %v5458 = vadd.f32 0.0, %v5457
  %5459 = vdwg.mxu0
  %v5461 = vsel %vm567, %v5364, 0
  %5463 = vmatpush.msra.mxu0 0.0
  %5464 = vmatpush.msra.mxu0 0.0
  %5465 = vmatpush.msra.mxu0 0.0
  %5466 = vmatpush.msra.mxu0 0.0
  %5467 = vmatpush.msra.mxu0 0.0
  %5468 = vmatpush.msra.mxu0 0.0
  %5469 = vmatpush.msra.mxu0 0.0
  %5470 = vmatpush.msra.mxu0 0.0
  %5471 = vmatpush.msra.mxu0 0.0
  %5472 = vmatpush.msra.mxu0 0.0
  %5473 = vmatpush.msra.mxu0 0.0
  %5474 = vmatpush.msra.mxu0 0.0
  %5475 = vmatpush.msra.mxu0 0.0
  %5476 = vmatpush.msra.mxu0 0.0
  %5477 = vmatpush.msra.mxu0 0.0
  %5478 = vmatpush.msra.mxu0 %v43
  %5479 = vmatmul.f32.gmra.mxu0 %v5461
  %v5480 = vpop.f32.mrf.mxu0
  %v5481 = vadd.f32 0.0, %v5480
  %5482 = vdwg.mxu0
  %v5484 = vsel %vm567, %v5365, 0
  %5486 = vmatpush.msra.mxu0 0.0
  %5487 = vmatpush.msra.mxu0 0.0
  %5488 = vmatpush.msra.mxu0 0.0
  %5489 = vmatpush.msra.mxu0 0.0
  %5490 = vmatpush.msra.mxu0 0.0
  %5491 = vmatpush.msra.mxu0 0.0
  %5492 = vmatpush.msra.mxu0 0.0
  %5493 = vmatpush.msra.mxu0 0.0
  %5494 = vmatpush.msra.mxu0 0.0
  %5495 = vmatpush.msra.mxu0 0.0
  %5496 = vmatpush.msra.mxu0 0.0
  %5497 = vmatpush.msra.mxu0 0.0
  %5498 = vmatpush.msra.mxu0 0.0
  %5499 = vmatpush.msra.mxu0 0.0
  %5500 = vmatpush.msra.mxu0 0.0
  %5501 = vmatpush.msra.mxu0 %v44
  %5502 = vmatmul.f32.gmra.mxu0 %v5484
  %v5503 = vpop.f32.mrf.mxu0
  %v5504 = vadd.f32 0.0, %v5503
  %5505 = vdwg.mxu0
  %v5507 = vsel %vm567, %v5366, 0
  %5509 = vmatpush.msra.mxu0 0.0
  %5510 = vmatpush.msra.mxu0 0.0
  %5511 = vmatpush.msra.mxu0 0.0
  %5512 = vmatpush.msra.mxu0 0.0
  %5513 = vmatpush.msra.mxu0 0.0
  %5514 = vmatpush.msra.mxu0 0.0
  %5515 = vmatpush.msra.mxu0 0.0
  %5516 = vmatpush.msra.mxu0 0.0
  %5517 = vmatpush.msra.mxu0 0.0
  %5518 = vmatpush.msra.mxu0 0.0
  %5519 = vmatpush.msra.mxu0 0.0
  %5520 = vmatpush.msra.mxu0 0.0
  %5521 = vmatpush.msra.mxu0 0.0
  %5522 = vmatpush.msra.mxu0 0.0
  %5523 = vmatpush.msra.mxu0 0.0
  %5524 = vmatpush.msra.mxu0 %v45
  %5525 = vmatmul.f32.gmra.mxu0 %v5507
  %v5526 = vpop.f32.mrf.mxu0
  %v5527 = vadd.f32 0.0, %v5526
  %5528 = vdwg.mxu0
  %v5530 = vsel %vm567, %v5367, 0
  %5532 = vmatpush.msra.mxu0 0.0
  %5533 = vmatpush.msra.mxu0 0.0
  %5534 = vmatpush.msra.mxu0 0.0
  %5535 = vmatpush.msra.mxu0 0.0
  %5536 = vmatpush.msra.mxu0 0.0
  %5537 = vmatpush.msra.mxu0 0.0
  %5538 = vmatpush.msra.mxu0 0.0
  %5539 = vmatpush.msra.mxu0 0.0
  %5540 = vmatpush.msra.mxu0 0.0
  %5541 = vmatpush.msra.mxu0 0.0
  %5542 = vmatpush.msra.mxu0 0.0
  %5543 = vmatpush.msra.mxu0 0.0
  %5544 = vmatpush.msra.mxu0 0.0
  %5545 = vmatpush.msra.mxu0 0.0
  %5546 = vmatpush.msra.mxu0 0.0
  %5547 = vmatpush.msra.mxu0 %v46
  %5548 = vmatmul.f32.gmra.mxu0 %v5530
  %v5549 = vpop.f32.mrf.mxu0
  %v5550 = vadd.f32 0.0, %v5549
  %5551 = vdwg.mxu0
  %v5560 = vrot.slane %v5412, 7
  %v5561 = vsel %vm761, %v5560, %v5389
  %v5562 = vrot.slane %v5435, 6
  %v5563 = vsel %vm764, %v5562, %v5561
  %v5564 = vrot.slane %v5458, 5
  %v5565 = vsel %vm767, %v5564, %v5563
  %v5566 = vrot.slane %v5481, 4
  %v5567 = vsel %vm770, %v5566, %v5565
  %v5568 = vrot.slane %v5504, 3
  %v5569 = vsel %vm773, %v5568, %v5567
  %v5570 = vrot.slane %v5527, 2
  %v5571 = vsel %vm776, %v5570, %v5569
  %v5572 = vrot.slane %v5550, 1
  %v5573 = vsel %vm779, %v5572, %v5571
  %5575 = vrot.lane.b32.xlu0 %v5071, 64
  %v5576 = vpop.permute.xlu0 %5575
  %v5578 = vsel %vm97, %v5573, %v5576
  %v5580 = vsel %vm99, %v5578, 0
  %5582 = vmatpush.msra.mxu0 0.0
  %5583 = vmatpush.msra.mxu0 0.0
  %5584 = vmatpush.msra.mxu0 0.0
  %5585 = vmatpush.msra.mxu0 0.0
  %5586 = vmatpush.msra.mxu0 0.0
  %5587 = vmatpush.msra.mxu0 0.0
  %5588 = vmatpush.msra.mxu0 0.0
  %5589 = vmatpush.msra.mxu0 0.0
  %5590 = vmatpush.msra.mxu0 %v79
  %5591 = vmatpush.msra.mxu0 %v78
  %5592 = vmatpush.msra.mxu0 %v77
  %5593 = vmatpush.msra.mxu0 %v76
  %5594 = vmatpush.msra.mxu0 %v75
  %5595 = vmatpush.msra.mxu0 %v74
  %5596 = vmatpush.msra.mxu0 %v73
  %5597 = vmatpush.msra.mxu0 %v72
  %5598 = vmatmul.f32.gmra.mxu0 %v5580
  %v5599 = vpop.f32.mrf.mxu0
  %v5600 = vadd.f32 0.0, %v5599
  %5601 = vdwg.mxu0
  %v5602 = vtanh.pop %v5600
  %s5603 = scalar_lea.vmem %s10, 56
  %5604 = vst.msk [vmem:[%s5603] sm:$0xff] %vm97, %v5602
  %v5605 = vrot.slane %v5361, 7
  %v5606 = vsel %vm761, %v5605, %v5360
  %v5607 = vrot.slane %v5362, 6
  %v5608 = vsel %vm764, %v5607, %v5606
  %v5609 = vrot.slane %v5363, 5
  %v5610 = vsel %vm767, %v5609, %v5608
  %v5611 = vrot.slane %v5364, 4
  %v5612 = vsel %vm770, %v5611, %v5610
  %v5613 = vrot.slane %v5365, 3
  %v5614 = vsel %vm773, %v5613, %v5612
  %v5615 = vrot.slane %v5366, 2
  %v5616 = vsel %vm776, %v5615, %v5614
  %v5617 = vrot.slane %v5367, 1
  %v5618 = vsel %vm779, %v5617, %v5616
  %s5620 = scalar_lea.vmem %s11, 56
  %5621 = vst.msk [vmem:[%s5620] sm:$0xff] %vm567, %v5618
  %5622 = vst.msk [vmem:[%s12] sm:$0xff] %vm97, %v5007
  %5623 = vrot.lane.b32.xlu0 %v5071, 32
  %v5624 = vpop.permute.xlu0 %5623
  %s5626 = scalar_lea.vmem %s12, 8
  %5627 = vst.msk [vmem:[%s5626] sm:$0xff] %vm97, %v5624
  %5629 = vrot.lane.b32.xlu0 %v4998, 96
  %v5630 = vpop.permute.xlu0 %5629
  %5632 = vst.msk [vmem:[%s13] sm:$0xff] %vm97, %v5630
  %5634 = vrot.lane.b32.xlu0 %v5065, 96
  %v5635 = vpop.permute.xlu0 %5634
  %s5637 = scalar_lea.vmem %s13, 8
  %5638 = vst.msk [vmem:[%s5637] sm:$0xff] %vm97, %v5635
  // Predicated region
  $region42: #{decoder_forward.1} parent=0 // pred_check
    _
  $region43: #{decoder_forward.1} parent=0 // pred_check_branch
    %5640 = sbr.rel (0) target = $region45
  $region44: #{decoder_forward.1} parent=0 // pred_region
    _
  $region45: #{decoder_forward.1} parent=0 // pred_fallthru
    _
  // Predicated region
  $region46: #{decoder_forward.1} parent=0 // pred_check
    _
  $region47: #{decoder_forward.1} parent=0 // pred_check_branch
    %5642 = sbr.rel (0) target = $region49
  $region48: #{decoder_forward.1} parent=0 // pred_region
    _
  $region49: #{decoder_forward.1} parent=0 // pred_fallthru
    _
  // Predicated region
  $region50: #{decoder_forward.1} parent=0 // pred_check
    _
  $region51: #{decoder_forward.1} parent=0 // pred_check_branch
    %5644 = sbr.rel (0) target = $region53
  $region52: #{decoder_forward.1} parent=0 // pred_region
    _
  $region53: #{decoder_forward.1} parent=0 // pred_fallthru
    _
  // Predicated region
  $region54: #{decoder_forward.1} parent=0 // pred_check
    _
  $region55: #{decoder_forward.1} parent=0 // pred_check_branch
    %5646 = sbr.rel (0) target = $region57
  $region56: #{decoder_forward.1} parent=0 // pred_region
    _
  $region57: #{decoder_forward.1} parent=0 // pred_fallthru
    _
  // Predicated region
  $region58: #{decoder_forward.1} parent=0 // pred_check
    _
  $region59: #{decoder_forward.1} parent=0 // pred_check_branch
    %5648 = sbr.rel (0) target = $region61
  $region60: #{decoder_forward.1} parent=0 // pred_region
    _
  $region61: #{decoder_forward.1} parent=0 // pred_fallthru
    _
  // Predicated region
  $region62: #{decoder_forward.1} parent=0 // pred_check
    _
  $region63: #{decoder_forward.1} parent=0 // pred_check_branch
    %5650 = sbr.rel (0) target = $region65
  $region64: #{decoder_forward.1} parent=0 // pred_region
    _
  $region65: #{decoder_forward.1} parent=0 // pred_fallthru
    _
  // Predicated region
  $region66: #{decoder_forward.1} parent=0 // pred_check
    _
  $region67: #{decoder_forward.1} parent=0 // pred_check_branch
    %5652 = sbr.rel (0) target = $region69
  $region68: #{decoder_forward.1} parent=0 // pred_region
    _
  $region69: #{decoder_forward.1} parent=0 // pred_fallthru
    _
  // Predicated region
  $region70: #{decoder_forward.1} parent=0 // pred_check
    _
  $region71: #{decoder_forward.1} parent=0 // pred_check_branch
    %5654 = sbr.rel (0) target = $region73
  $region72: #{decoder_forward.1} parent=0 // pred_region
    _
  $region73: #{decoder_forward.1} parent=0 // pred_fallthru
    _

</llo_original>
